<compile_context>
chip_gen: v6e
topology: v6e:2x2x1
jax: 0.10.0
libtpu: 0.0.40
codegen_flags: <defaults>
</compile_context>

<pallas_src>
import jax
import jax.numpy as jnp
from jax import lax
from jax.experimental import pallas as pl
from jax.experimental.pallas import tpu as pltpu


# ----------------------------- static geometry ------------------------------

_K = 5                                    # conv kernel size
_H1, _W1 = 32, 32                         # conv1 input spatial
_HO1, _WO1 = 28, 28                       # conv1 output spatial
_NW1 = (_HO1 - 1) * _W1 + _WO1            # 892: "wide" conv1 output width
_OFF1 = tuple(i * _W1 + j for i in range(_K) for j in range(_K))

_H2, _W2 = 14, 14                         # conv2 input spatial (after pool1)
_HO2, _WO2 = 10, 10
_NW2 = (_HO2 - 1) * _W2 + _WO2            # 136
_OFF2 = tuple(i * _W2 + j for i in range(_K) for j in range(_K))

_C1, _C2 = 6, 16
_POOL2 = (_HO2 // 2) * (_WO2 // 2)        # 25 pooled pixels per conv2 channel
_FLAT = _C2 * _POOL2                      # 400
_NCLS = 10

# Matmul-operand dtype (accumulation is always f32).  bf16 ~doubles MXU rate
# on v5e/v6e/v7x and halves operand VMEM; set to jnp.float32 for exact parity.
_MXU_DTYPE = jnp.bfloat16

_WEIGHT_ORDER = ("w1e", "b1e", "w2e", "b2e", "p1", "p2",
                 "fc1_w", "fc1_b", "fc2_w", "fc2_b", "fc3_w", "fc3_b")


def _pool_select_matrix(wi, ho, wo):
    """Constant (Nw, (ho//2)*(wo//2)) matrix.

    Right-multiplying a "wide" conv activation (flat row stride `wi`) by this
    matrix simultaneously (a) drops the invalid wrap-around columns and
    (b) performs the 2x2 / stride-2 average pool (weight 0.25)."""
    nw = (ho - 1) * wi + wo
    hp, wp = ho // 2, wo // 2
    k = jnp.arange(nw)
    r, c = k // wi, k % wi
    m = jnp.arange(hp * wp)
    p, q = m // wp, m % wp
    hit = ((r[:, None] // 2) == p[None, :]) \
        & ((c[:, None] // 2) == q[None, :]) \
        & (c[:, None] < wo)
    return jnp.where(hit, 0.25, 0.0).astype(jnp.float32)


def _sigmoid(y):
    # exp + approx reciprocal both run on the EUP slot (frees the VALU).
    return pl.reciprocal(1.0 + jnp.exp(-y), approx=True)


# --------------------------------- kernel ------------------------------------

def _lenet_kernel(x_ref, w1e_ref, b1e_ref, w2e_ref, b2e_ref, p1_ref, p2_ref,
                  fc1w_ref, fc1b_ref, fc2w_ref, fc2b_ref, fc3w_ref, fc3b_ref,
                  o_ref):
    bb = x_ref.shape[0]                                   # batch block size
    xb = x_ref[...].astype(_MXU_DTYPE)                    # (bb, 1024)

    # conv1: in-kernel wide-conv im2col.  The 25 taps are 25 shifted
    # lane-slices of the flat images, sublane-concatenated tap-major /
    # batch-minor so that the block-diagonal weight (w1 ⊗ I_bb) turns the
    # whole block into ONE 2-D MXU matmul with M = 6*bb rows.
    xs = jnp.concatenate([xb[:, o:o + _NW1] for o in _OFF1], axis=0)   # (25*bb, 892)
    y1 = jnp.dot(w1e_ref[...], xs,
                 preferred_element_type=jnp.float32) + b1e_ref[...]    # (6*bb, 892)
    a1 = _sigmoid(y1)
    # fused 2x2 avg-pool + junk-column drop as one matmul with constant P1.
    h1 = jnp.dot(a1.astype(_MXU_DTYPE), p1_ref[...],
                 preferred_element_type=jnp.float32)                   # (6*bb, 196)
    h1 = h1.astype(_MXU_DTYPE)

    # conv2: same wide-conv trick; rows of xs2 are ordered (tap, ci, batch),
    # matching the (co, i, j, ci) ⊗ I_bb flattening of w2e.
    xs2 = jnp.concatenate([h1[:, o:o + _NW2] for o in _OFF2], axis=0)  # (150*bb, 136)
    y2 = jnp.dot(w2e_ref[...], xs2,
                 preferred_element_type=jnp.float32) + b2e_ref[...]    # (16*bb, 136)
    a2 = _sigmoid(y2)
    f = jnp.dot(a2.astype(_MXU_DTYPE), p2_ref[...],
                preferred_element_type=jnp.float32)                    # (16*bb, 25)
    f = f.astype(_MXU_DTYPE)                                           # rows = (co, b)

    # fc1: torch Flatten order is channel-major, so fc1 is the sum over the
    # 16 conv channels of a (bb, 25) @ (25, 120) matmul (all static slices).
    fc1w = fc1w_ref[...]                                               # (400, 120)
    acc = jnp.zeros((bb, fc1w.shape[1]), jnp.float32)
    for co in range(_C2):
        acc = acc + jnp.dot(f[co * bb:(co + 1) * bb, :],
                            fc1w[co * _POOL2:(co + 1) * _POOL2, :],
                            preferred_element_type=jnp.float32)
    h = _sigmoid(acc + fc1b_ref[...])                                  # (bb, 120)
    h = _sigmoid(jnp.dot(h.astype(_MXU_DTYPE), fc2w_ref[...],
                         preferred_element_type=jnp.float32) + fc2b_ref[...])
    y = jnp.dot(h.astype(_MXU_DTYPE), fc3w_ref[...],
                preferred_element_type=jnp.float32) + fc3b_ref[...]    # (bb, 10)

    z = y - jnp.max(y, axis=-1, keepdims=True)
    o_ref[...] = z - jnp.log(jnp.sum(jnp.exp(z), axis=-1, keepdims=True))


# --------------------------------- wrapper ------------------------------------

def lenet_forward(kp, x):
    """x: (B, 1, 32, 32) float32 -> (B, 10) log-probabilities."""
    B = x.shape[0]
    bb = kp["b1e"].shape[0] // _C1          # batch block size baked into weights
    bp = ((B + bb - 1) // bb) * bb
    xf = x.astype(jnp.float32).reshape(B, _H1 * _W1)
    if bp != B:
        xf = jnp.pad(xf, ((0, bp - B), (0, 0)))

    out = pl.pallas_call(
        _lenet_kernel,
        out_shape=jax.ShapeDtypeStruct((bp, _NCLS), jnp.float32),
        grid_spec=pltpu.PrefetchScalarGridSpec(
            num_scalar_prefetch=0,
            grid=(bp // bb,),
            in_specs=[pl.BlockSpec((bb, _H1 * _W1), lambda i: (i, 0))]   # images
                     + [pl.BlockSpec(kp[name].shape, lambda i: (0, 0))   # weights
                        for name in _WEIGHT_ORDER],                      # (VMEM-resident)
            out_specs=pl.BlockSpec((bb, _NCLS), lambda i: (i, 0)),
        ),
        compiler_params=pltpu.CompilerParams(
            dimension_semantics=("parallel",),          # megacore / 2-TC sharding
            vmem_limit_bytes=32 * 1024 * 1024),
    )(xf, *[kp[name] for name in _WEIGHT_ORDER])
    return out[:B]


# ------------------------------ LeNet params -----------------------------------

def init_lenet_params(key):
    """Random params in the PyTorch module's native layout."""
    ks = jax.random.split(key, 10)

    def w(k, shape, fan_in):
        return jax.random.normal(k, shape, jnp.float32) / jnp.sqrt(fan_in)

    return {
        "c1_w": w(ks[0], (_C1, 1, _K, _K), 1 * _K * _K),
        "c1_b": w(ks[1], (_C1,), 1 * _K * _K),
        "c2_w": w(ks[2], (_C2, _C1, _K, _K), _C1 * _K * _K),
        "c2_b": w(ks[3], (_C2,), _C1 * _K * _K),
        "fc1_w": w(ks[4], (120, _FLAT), _FLAT),   # torch Linear layout (out, in)
        "fc1_b": w(ks[5], (120,), _FLAT),
        "fc2_w": w(ks[6], (84, 120), 120),
        "fc2_b": w(ks[7], (84,), 120),
        "fc3_w": w(ks[8], (10, 84), 84),
        "fc3_b": w(ks[9], (10,), 84),
    }


def prepare_params(p, *, block_batch=16):
    """One-time kernel-layout preparation (no per-forward transposes).

    Conv weights are expanded to block-diagonal form (W ⊗ I_bb) so each conv
    layer of a whole batch block is a single 2-D MXU matmul; matmul operands
    are stored in _MXU_DTYPE, biases stay f32."""
    bb = int(block_batch)
    eye = jnp.eye(bb, dtype=jnp.float32)
    # conv1: (6,1,5,5) -> (6,25); columns in (i,j) order == _OFF1 order.
    w1m = p["c1_w"].reshape(_C1, _K * _K)
    # conv2: (16,6,5,5) -> (16,150); columns in (i,j,ci) order to match the
    # (tap, ci, batch) stacking done inside the kernel.
    w2m = jnp.transpose(p["c2_w"], (0, 2, 3, 1)).reshape(_C2, _C1 * _K * _K)
    return {
        "w1e": jnp.kron(w1m, eye).astype(_MXU_DTYPE),            # (6*bb, 25*bb)
        "b1e": jnp.repeat(p["c1_b"], bb).reshape(_C1 * bb, 1),
        "w2e": jnp.kron(w2m, eye).astype(_MXU_DTYPE),            # (16*bb, 150*bb)
        "b2e": jnp.repeat(p["c2_b"], bb).reshape(_C2 * bb, 1),
        # constant pool / column-select matrices (0 and 0.25 are exact in bf16)
        "p1": _pool_select_matrix(_W1, _HO1, _WO1).astype(_MXU_DTYPE),   # (892,196)
        "p2": _pool_select_matrix(_W2, _HO2, _WO2).astype(_MXU_DTYPE),   # (136, 25)
        # fc weights stored (in, out) so the kernel does x @ W directly.
        "fc1_w": p["fc1_w"].T.astype(_MXU_DTYPE), "fc1_b": p["fc1_b"].reshape(1, -1),
        "fc2_w": p["fc2_w"].T.astype(_MXU_DTYPE), "fc2_b": p["fc2_b"].reshape(1, -1),
        "fc3_w": p["fc3_w"].T.astype(_MXU_DTYPE), "fc3_b": p["fc3_b"].reshape(1, -1),
    }


# ------------------------- pure-JAX reference (check) --------------------------

def lenet_reference(p, x):
    hi = jax.lax.Precision.HIGHEST

    def conv(a, w, b):
        y = lax.conv_general_dilated(a, w, (1, 1), "VALID",
                                     dimension_numbers=("NCHW", "OIHW", "NCHW"),
                                     precision=hi)
        return y + b[None, :, None, None]

    def pool(a):
        b, c, h, w = a.shape
        return a.reshape(b, c, h // 2, 2, w // 2, 2).mean(axis=(3, 5))

    a = jax.nn.sigmoid(conv(x, p["c1_w"], p["c1_b"]))
    a = pool(a)
    a = jax.nn.sigmoid(conv(a, p["c2_w"], p["c2_b"]))
    a = pool(a)
    a = a.reshape(x.shape[0], -1)
    a = jax.nn.sigmoid(jnp.dot(a, p["fc1_w"].T, precision=hi) + p["fc1_b"])
    a = jax.nn.sigmoid(jnp.dot(a, p["fc2_w"].T, precision=hi) + p["fc2_b"])
    y = jnp.dot(a, p["fc3_w"].T, precision=hi) + p["fc3_b"]
    return jax.nn.log_softmax(y, axis=-1)


if __name__ == "__main__":
    key = jax.random.PRNGKey(0)
    pkey, xkey = jax.random.split(key)
    torch_layout_params = init_lenet_params(pkey)
    kparams = prepare_params(torch_layout_params, block_batch=16)   # one-time prep

    # LeNet requires 32x32 spatial so that flatten yields 400 features.
    x = jax.random.normal(xkey, (2, 1, 32, 32), jnp.float32)

    out = jax.block_until_ready(jax.jit(lenet_forward)(kparams, x))

    assert out.shape == (2, 10), out.shape
    row_sums = jnp.exp(out).sum(axis=1)
    assert jnp.allclose(row_sums, 1.0, atol=1e-3), row_sums

    ref = lenet_reference(torch_layout_params, x)
    # bf16 MXU operands (f32 accumulation) -> slightly looser tolerance than
    # the exact-f32 version; observed error is ~1e-3 on log-probabilities.
    assert jnp.allclose(out, ref, atol=1e-2, rtol=1e-2), \
        float(jnp.max(jnp.abs(out - ref)))

    print("KERNEL_OK")
</pallas_src>

<mosaic_0001>
module attributes {stable_mosaic.version = 11 : i64} {
  func.func @_lenet_kernel(%arg0: i32, %arg1: memref<16x1024xf32, #tpu.memory_space<vmem>>, %arg2: memref<96x400xbf16, #tpu.memory_space<vmem>>, %arg3: memref<96x1xf32, #tpu.memory_space<vmem>>, %arg4: memref<256x2400xbf16, #tpu.memory_space<vmem>>, %arg5: memref<256x1xf32, #tpu.memory_space<vmem>>, %arg6: memref<892x196xbf16, #tpu.memory_space<vmem>>, %arg7: memref<136x25xbf16, #tpu.memory_space<vmem>>, %arg8: memref<400x120xbf16, #tpu.memory_space<vmem>>, %arg9: memref<1x120xf32, #tpu.memory_space<vmem>>, %arg10: memref<120x84xbf16, #tpu.memory_space<vmem>>, %arg11: memref<1x84xf32, #tpu.memory_space<vmem>>, %arg12: memref<84x10xbf16, #tpu.memory_space<vmem>>, %arg13: memref<1x10xf32, #tpu.memory_space<vmem>>, %arg14: memref<16x10xf32, #tpu.memory_space<vmem>>) attributes {dimension_semantics = [#tpu.dimension_semantics<parallel>], iteration_bounds = array<i64: 1>, scalar_prefetch = 0 : i64, scratch_operands = 0 : i64, tpu.core_type = #tpu.core_type<tc>, window_params = [{transform_indices = @transform_0, window_bounds = array<i64: 16, 1024>}, {pipeline_mode = #tpu.pipeline_mode<synchronous>, transform_indices = @transform_1, window_bounds = array<i64: 96, 400>}, {pipeline_mode = #tpu.pipeline_mode<synchronous>, transform_indices = @transform_2, window_bounds = array<i64: 96, 1>}, {pipeline_mode = #tpu.pipeline_mode<synchronous>, transform_indices = @transform_3, window_bounds = array<i64: 256, 2400>}, {pipeline_mode = #tpu.pipeline_mode<synchronous>, transform_indices = @transform_4, window_bounds = array<i64: 256, 1>}, {pipeline_mode = #tpu.pipeline_mode<synchronous>, transform_indices = @transform_5, window_bounds = array<i64: 892, 196>}, {pipeline_mode = #tpu.pipeline_mode<synchronous>, transform_indices = @transform_6, window_bounds = array<i64: 136, 25>}, {pipeline_mode = #tpu.pipeline_mode<synchronous>, transform_indices = @transform_7, window_bounds = array<i64: 400, 120>}, {pipeline_mode = #tpu.pipeline_mode<synchronous>, transform_indices = @transform_8, window_bounds = array<i64: 1, 120>}, {pipeline_mode = #tpu.pipeline_mode<synchronous>, transform_indices = @transform_9, window_bounds = array<i64: 120, 84>}, {pipeline_mode = #tpu.pipeline_mode<synchronous>, transform_indices = @transform_10, window_bounds = array<i64: 1, 84>}, {pipeline_mode = #tpu.pipeline_mode<synchronous>, transform_indices = @transform_11, window_bounds = array<i64: 84, 10>}, {pipeline_mode = #tpu.pipeline_mode<synchronous>, transform_indices = @transform_12, window_bounds = array<i64: 1, 10>}, {transform_indices = @transform_13, window_bounds = array<i64: 16, 10>}]} {
    %c0 = arith.constant 0 : index
    %c0_0 = arith.constant 0 : index
    %0 = vector.load %arg1[%c0, %c0_0] : memref<16x1024xf32, #tpu.memory_space<vmem>>, vector<16x1024xf32>
    %1 = arith.truncf %0 : vector<16x1024xf32> to vector<16x1024xbf16>
    %2 = vector.extract_strided_slice %1 {offsets = [0, 0], sizes = [16, 892], strides = [1, 1]} : vector<16x1024xbf16> to vector<16x892xbf16>
    %3 = vector.extract_strided_slice %1 {offsets = [0, 1], sizes = [16, 892], strides = [1, 1]} : vector<16x1024xbf16> to vector<16x892xbf16>
    %4 = vector.extract_strided_slice %1 {offsets = [0, 2], sizes = [16, 892], strides = [1, 1]} : vector<16x1024xbf16> to vector<16x892xbf16>
    %5 = vector.extract_strided_slice %1 {offsets = [0, 3], sizes = [16, 892], strides = [1, 1]} : vector<16x1024xbf16> to vector<16x892xbf16>
    %6 = vector.extract_strided_slice %1 {offsets = [0, 4], sizes = [16, 892], strides = [1, 1]} : vector<16x1024xbf16> to vector<16x892xbf16>
    %7 = vector.extract_strided_slice %1 {offsets = [0, 32], sizes = [16, 892], strides = [1, 1]} : vector<16x1024xbf16> to vector<16x892xbf16>
    %8 = vector.extract_strided_slice %1 {offsets = [0, 33], sizes = [16, 892], strides = [1, 1]} : vector<16x1024xbf16> to vector<16x892xbf16>
    %9 = vector.extract_strided_slice %1 {offsets = [0, 34], sizes = [16, 892], strides = [1, 1]} : vector<16x1024xbf16> to vector<16x892xbf16>
    %10 = vector.extract_strided_slice %1 {offsets = [0, 35], sizes = [16, 892], strides = [1, 1]} : vector<16x1024xbf16> to vector<16x892xbf16>
    %11 = vector.extract_strided_slice %1 {offsets = [0, 36], sizes = [16, 892], strides = [1, 1]} : vector<16x1024xbf16> to vector<16x892xbf16>
    %12 = vector.extract_strided_slice %1 {offsets = [0, 64], sizes = [16, 892], strides = [1, 1]} : vector<16x1024xbf16> to vector<16x892xbf16>
    %13 = vector.extract_strided_slice %1 {offsets = [0, 65], sizes = [16, 892], strides = [1, 1]} : vector<16x1024xbf16> to vector<16x892xbf16>
    %14 = vector.extract_strided_slice %1 {offsets = [0, 66], sizes = [16, 892], strides = [1, 1]} : vector<16x1024xbf16> to vector<16x892xbf16>
    %15 = vector.extract_strided_slice %1 {offsets = [0, 67], sizes = [16, 892], strides = [1, 1]} : vector<16x1024xbf16> to vector<16x892xbf16>
    %16 = vector.extract_strided_slice %1 {offsets = [0, 68], sizes = [16, 892], strides = [1, 1]} : vector<16x1024xbf16> to vector<16x892xbf16>
    %17 = vector.extract_strided_slice %1 {offsets = [0, 96], sizes = [16, 892], strides = [1, 1]} : vector<16x1024xbf16> to vector<16x892xbf16>
    %18 = vector.extract_strided_slice %1 {offsets = [0, 97], sizes = [16, 892], strides = [1, 1]} : vector<16x1024xbf16> to vector<16x892xbf16>
    %19 = vector.extract_strided_slice %1 {offsets = [0, 98], sizes = [16, 892], strides = [1, 1]} : vector<16x1024xbf16> to vector<16x892xbf16>
    %20 = vector.extract_strided_slice %1 {offsets = [0, 99], sizes = [16, 892], strides = [1, 1]} : vector<16x1024xbf16> to vector<16x892xbf16>
    %21 = vector.extract_strided_slice %1 {offsets = [0, 100], sizes = [16, 892], strides = [1, 1]} : vector<16x1024xbf16> to vector<16x892xbf16>
    %22 = vector.extract_strided_slice %1 {offsets = [0, 128], sizes = [16, 892], strides = [1, 1]} : vector<16x1024xbf16> to vector<16x892xbf16>
    %23 = vector.extract_strided_slice %1 {offsets = [0, 129], sizes = [16, 892], strides = [1, 1]} : vector<16x1024xbf16> to vector<16x892xbf16>
    %24 = vector.extract_strided_slice %1 {offsets = [0, 130], sizes = [16, 892], strides = [1, 1]} : vector<16x1024xbf16> to vector<16x892xbf16>
    %25 = vector.extract_strided_slice %1 {offsets = [0, 131], sizes = [16, 892], strides = [1, 1]} : vector<16x1024xbf16> to vector<16x892xbf16>
    %26 = vector.extract_strided_slice %1 {offsets = [0, 132], sizes = [16, 892], strides = [1, 1]} : vector<16x1024xbf16> to vector<16x892xbf16>
    %27 = tpu.concatenate %2, %3, %4, %5, %6, %7, %8, %9, %10, %11, %12, %13, %14, %15, %16, %17 in 0 : vector<16x892xbf16>, vector<16x892xbf16>, vector<16x892xbf16>, vector<16x892xbf16>, vector<16x892xbf16>, vector<16x892xbf16>, vector<16x892xbf16>, vector<16x892xbf16>, vector<16x892xbf16>, vector<16x892xbf16>, vector<16x892xbf16>, vector<16x892xbf16>, vector<16x892xbf16>, vector<16x892xbf16>, vector<16x892xbf16>, vector<16x892xbf16> -> vector<256x892xbf16>
    %28 = tpu.concatenate %18, %19, %20, %21, %22, %23, %24, %25, %26 in 0 : vector<16x892xbf16>, vector<16x892xbf16>, vector<16x892xbf16>, vector<16x892xbf16>, vector<16x892xbf16>, vector<16x892xbf16>, vector<16x892xbf16>, vector<16x892xbf16>, vector<16x892xbf16> -> vector<144x892xbf16>
    %29 = tpu.concatenate %27, %28 in 0 : vector<256x892xbf16>, vector<144x892xbf16> -> vector<400x892xbf16>
    %c0_1 = arith.constant 0 : index
    %c0_2 = arith.constant 0 : index
    %30 = vector.load %arg2[%c0_1, %c0_2] : memref<96x400xbf16, #tpu.memory_space<vmem>>, vector<96x400xbf16>
    %cst = arith.constant dense<0.000000e+00> : vector<96x892xf32>
    %31 = tpu.matmul %30, %29, %cst {dimension_numbers = #tpu.dot_dimension_numbers<[1], [0], [0], [1], [0, 0, 1, 1], [], []>} : vector<96x400xbf16>, vector<400x892xbf16>, vector<96x892xf32> -> vector<96x892xf32>
    %c0_3 = arith.constant 0 : index
    %c0_4 = arith.constant 0 : index
    %32 = vector.load %arg3[%c0_3, %c0_4] : memref<96x1xf32, #tpu.memory_space<vmem>>, vector<96x1xf32>
    %33 = vector.broadcast %32 : vector<96x1xf32> to vector<96x892xf32>
    %34 = arith.addf %31, %33 : vector<96x892xf32>
    %cst_5 = arith.constant 0.000000e+00 : f32
    %35 = vector.broadcast %cst_5 : f32 to vector<96x892xf32>
    %36 = arith.subf %35, %34 : vector<96x892xf32>
    %37 = math.exp %36 : vector<96x892xf32>
    %cst_6 = arith.constant 1.000000e+00 : f32
    %38 = vector.broadcast %cst_6 : f32 to vector<96x892xf32>
    %39 = arith.addf %38, %37 : vector<96x892xf32>
    %40 = tpu.reciprocal %39 {approx = true} : vector<96x892xf32> -> vector<96x892xf32>
    %41 = arith.truncf %40 : vector<96x892xf32> to vector<96x892xbf16>
    %c0_7 = arith.constant 0 : index
    %c0_8 = arith.constant 0 : index
    %42 = vector.load %arg6[%c0_7, %c0_8] : memref<892x196xbf16, #tpu.memory_space<vmem>>, vector<892x196xbf16>
    %cst_9 = arith.constant dense<0.000000e+00> : vector<96x196xf32>
    %43 = tpu.matmul %41, %42, %cst_9 {dimension_numbers = #tpu.dot_dimension_numbers<[1], [0], [0], [1], [0, 0, 1, 1], [], []>} : vector<96x892xbf16>, vector<892x196xbf16>, vector<96x196xf32> -> vector<96x196xf32>
    %44 = arith.truncf %43 : vector<96x196xf32> to vector<96x196xbf16>
    %45 = vector.extract_strided_slice %44 {offsets = [0, 0], sizes = [96, 136], strides = [1, 1]} : vector<96x196xbf16> to vector<96x136xbf16>
    %46 = vector.extract_strided_slice %44 {offsets = [0, 1], sizes = [96, 136], strides = [1, 1]} : vector<96x196xbf16> to vector<96x136xbf16>
    %47 = vector.extract_strided_slice %44 {offsets = [0, 2], sizes = [96, 136], strides = [1, 1]} : vector<96x196xbf16> to vector<96x136xbf16>
    %48 = vector.extract_strided_slice %44 {offsets = [0, 3], sizes = [96, 136], strides = [1, 1]} : vector<96x196xbf16> to vector<96x136xbf16>
    %49 = vector.extract_strided_slice %44 {offsets = [0, 4], sizes = [96, 136], strides = [1, 1]} : vector<96x196xbf16> to vector<96x136xbf16>
    %50 = vector.extract_strided_slice %44 {offsets = [0, 14], sizes = [96, 136], strides = [1, 1]} : vector<96x196xbf16> to vector<96x136xbf16>
    %51 = vector.extract_strided_slice %44 {offsets = [0, 15], sizes = [96, 136], strides = [1, 1]} : vector<96x196xbf16> to vector<96x136xbf16>
    %52 = vector.extract_strided_slice %44 {offsets = [0, 16], sizes = [96, 136], strides = [1, 1]} : vector<96x196xbf16> to vector<96x136xbf16>
    %53 = vector.extract_strided_slice %44 {offsets = [0, 17], sizes = [96, 136], strides = [1, 1]} : vector<96x196xbf16> to vector<96x136xbf16>
    %54 = vector.extract_strided_slice %44 {offsets = [0, 18], sizes = [96, 136], strides = [1, 1]} : vector<96x196xbf16> to vector<96x136xbf16>
    %55 = vector.extract_strided_slice %44 {offsets = [0, 28], sizes = [96, 136], strides = [1, 1]} : vector<96x196xbf16> to vector<96x136xbf16>
    %56 = vector.extract_strided_slice %44 {offsets = [0, 29], sizes = [96, 136], strides = [1, 1]} : vector<96x196xbf16> to vector<96x136xbf16>
    %57 = vector.extract_strided_slice %44 {offsets = [0, 30], sizes = [96, 136], strides = [1, 1]} : vector<96x196xbf16> to vector<96x136xbf16>
    %58 = vector.extract_strided_slice %44 {offsets = [0, 31], sizes = [96, 136], strides = [1, 1]} : vector<96x196xbf16> to vector<96x136xbf16>
    %59 = vector.extract_strided_slice %44 {offsets = [0, 32], sizes = [96, 136], strides = [1, 1]} : vector<96x196xbf16> to vector<96x136xbf16>
    %60 = vector.extract_strided_slice %44 {offsets = [0, 42], sizes = [96, 136], strides = [1, 1]} : vector<96x196xbf16> to vector<96x136xbf16>
    %61 = vector.extract_strided_slice %44 {offsets = [0, 43], sizes = [96, 136], strides = [1, 1]} : vector<96x196xbf16> to vector<96x136xbf16>
    %62 = vector.extract_strided_slice %44 {offsets = [0, 44], sizes = [96, 136], strides = [1, 1]} : vector<96x196xbf16> to vector<96x136xbf16>
    %63 = vector.extract_strided_slice %44 {offsets = [0, 45], sizes = [96, 136], strides = [1, 1]} : vector<96x196xbf16> to vector<96x136xbf16>
    %64 = vector.extract_strided_slice %44 {offsets = [0, 46], sizes = [96, 136], strides = [1, 1]} : vector<96x196xbf16> to vector<96x136xbf16>
    %65 = vector.extract_strided_slice %44 {offsets = [0, 56], sizes = [96, 136], strides = [1, 1]} : vector<96x196xbf16> to vector<96x136xbf16>
    %66 = vector.extract_strided_slice %44 {offsets = [0, 57], sizes = [96, 136], strides = [1, 1]} : vector<96x196xbf16> to vector<96x136xbf16>
    %67 = vector.extract_strided_slice %44 {offsets = [0, 58], sizes = [96, 136], strides = [1, 1]} : vector<96x196xbf16> to vector<96x136xbf16>
    %68 = vector.extract_strided_slice %44 {offsets = [0, 59], sizes = [96, 136], strides = [1, 1]} : vector<96x196xbf16> to vector<96x136xbf16>
    %69 = vector.extract_strided_slice %44 {offsets = [0, 60], sizes = [96, 136], strides = [1, 1]} : vector<96x196xbf16> to vector<96x136xbf16>
    %70 = tpu.concatenate %45, %46, %47, %48, %49, %50, %51, %52, %53, %54, %55, %56, %57, %58, %59, %60 in 0 : vector<96x136xbf16>, vector<96x136xbf16>, vector<96x136xbf16>, vector<96x136xbf16>, vector<96x136xbf16>, vector<96x136xbf16>, vector<96x136xbf16>, vector<96x136xbf16>, vector<96x136xbf16>, vector<96x136xbf16>, vector<96x136xbf16>, vector<96x136xbf16>, vector<96x136xbf16>, vector<96x136xbf16>, vector<96x136xbf16>, vector<96x136xbf16> -> vector<1536x136xbf16>
    %71 = tpu.concatenate %61, %62, %63, %64, %65, %66, %67, %68, %69 in 0 : vector<96x136xbf16>, vector<96x136xbf16>, vector<96x136xbf16>, vector<96x136xbf16>, vector<96x136xbf16>, vector<96x136xbf16>, vector<96x136xbf16>, vector<96x136xbf16>, vector<96x136xbf16> -> vector<864x136xbf16>
    %72 = tpu.concatenate %70, %71 in 0 : vector<1536x136xbf16>, vector<864x136xbf16> -> vector<2400x136xbf16>
    %c0_10 = arith.constant 0 : index
    %c0_11 = arith.constant 0 : index
    %73 = vector.load %arg4[%c0_10, %c0_11] : memref<256x2400xbf16, #tpu.memory_space<vmem>>, vector<256x2400xbf16>
    %cst_12 = arith.constant dense<0.000000e+00> : vector<256x136xf32>
    %74 = tpu.matmul %73, %72, %cst_12 {dimension_numbers = #tpu.dot_dimension_numbers<[1], [0], [0], [1], [0, 0, 1, 1], [], []>} : vector<256x2400xbf16>, vector<2400x136xbf16>, vector<256x136xf32> -> vector<256x136xf32>
    %c0_13 = arith.constant 0 : index
    %c0_14 = arith.constant 0 : index
    %75 = vector.load %arg5[%c0_13, %c0_14] : memref<256x1xf32, #tpu.memory_space<vmem>>, vector<256x1xf32>
    %76 = vector.broadcast %75 : vector<256x1xf32> to vector<256x136xf32>
    %77 = arith.addf %74, %76 : vector<256x136xf32>
    %cst_15 = arith.constant 0.000000e+00 : f32
    %78 = vector.broadcast %cst_15 : f32 to vector<256x136xf32>
    %79 = arith.subf %78, %77 : vector<256x136xf32>
    %80 = math.exp %79 : vector<256x136xf32>
    %cst_16 = arith.constant 1.000000e+00 : f32
    %81 = vector.broadcast %cst_16 : f32 to vector<256x136xf32>
    %82 = arith.addf %81, %80 : vector<256x136xf32>
    %83 = tpu.reciprocal %82 {approx = true} : vector<256x136xf32> -> vector<256x136xf32>
    %84 = arith.truncf %83 : vector<256x136xf32> to vector<256x136xbf16>
    %c0_17 = arith.constant 0 : index
    %c0_18 = arith.constant 0 : index
    %85 = vector.load %arg7[%c0_17, %c0_18] : memref<136x25xbf16, #tpu.memory_space<vmem>>, vector<136x25xbf16>
    %cst_19 = arith.constant dense<0.000000e+00> : vector<256x25xf32>
    %86 = tpu.matmul %84, %85, %cst_19 {dimension_numbers = #tpu.dot_dimension_numbers<[1], [0], [0], [1], [0, 0, 1, 1], [], []>} : vector<256x136xbf16>, vector<136x25xbf16>, vector<256x25xf32> -> vector<256x25xf32>
    %87 = arith.truncf %86 : vector<256x25xf32> to vector<256x25xbf16>
    %c0_20 = arith.constant 0 : index
    %c0_21 = arith.constant 0 : index
    %88 = vector.load %arg8[%c0_20, %c0_21] : memref<400x120xbf16, #tpu.memory_space<vmem>>, vector<400x120xbf16>
    %cst_22 = arith.constant 0.000000e+00 : f32
    %89 = vector.broadcast %cst_22 : f32 to vector<16x120xf32>
    %90 = vector.extract_strided_slice %87 {offsets = [0, 0], sizes = [16, 25], strides = [1, 1]} : vector<256x25xbf16> to vector<16x25xbf16>
    %91 = vector.extract_strided_slice %88 {offsets = [0, 0], sizes = [25, 120], strides = [1, 1]} : vector<400x120xbf16> to vector<25x120xbf16>
    %cst_23 = arith.constant dense<0.000000e+00> : vector<16x120xf32>
    %92 = tpu.matmul %90, %91, %cst_23 {dimension_numbers = #tpu.dot_dimension_numbers<[1], [0], [0], [1], [0, 0, 1, 1], [], []>} : vector<16x25xbf16>, vector<25x120xbf16>, vector<16x120xf32> -> vector<16x120xf32>
    %93 = arith.addf %89, %92 : vector<16x120xf32>
    %94 = vector.extract_strided_slice %87 {offsets = [16, 0], sizes = [16, 25], strides = [1, 1]} : vector<256x25xbf16> to vector<16x25xbf16>
    %95 = vector.extract_strided_slice %88 {offsets = [25, 0], sizes = [25, 120], strides = [1, 1]} : vector<400x120xbf16> to vector<25x120xbf16>
    %cst_24 = arith.constant dense<0.000000e+00> : vector<16x120xf32>
    %96 = tpu.matmul %94, %95, %cst_24 {dimension_numbers = #tpu.dot_dimension_numbers<[1], [0], [0], [1], [0, 0, 1, 1], [], []>} : vector<16x25xbf16>, vector<25x120xbf16>, vector<16x120xf32> -> vector<16x120xf32>
    %97 = arith.addf %93, %96 : vector<16x120xf32>
    %98 = vector.extract_strided_slice %87 {offsets = [32, 0], sizes = [16, 25], strides = [1, 1]} : vector<256x25xbf16> to vector<16x25xbf16>
    %99 = vector.extract_strided_slice %88 {offsets = [50, 0], sizes = [25, 120], strides = [1, 1]} : vector<400x120xbf16> to vector<25x120xbf16>
    %cst_25 = arith.constant dense<0.000000e+00> : vector<16x120xf32>
    %100 = tpu.matmul %98, %99, %cst_25 {dimension_numbers = #tpu.dot_dimension_numbers<[1], [0], [0], [1], [0, 0, 1, 1], [], []>} : vector<16x25xbf16>, vector<25x120xbf16>, vector<16x120xf32> -> vector<16x120xf32>
    %101 = arith.addf %97, %100 : vector<16x120xf32>
    %102 = vector.extract_strided_slice %87 {offsets = [48, 0], sizes = [16, 25], strides = [1, 1]} : vector<256x25xbf16> to vector<16x25xbf16>
    %103 = vector.extract_strided_slice %88 {offsets = [75, 0], sizes = [25, 120], strides = [1, 1]} : vector<400x120xbf16> to vector<25x120xbf16>
    %cst_26 = arith.constant dense<0.000000e+00> : vector<16x120xf32>
    %104 = tpu.matmul %102, %103, %cst_26 {dimension_numbers = #tpu.dot_dimension_numbers<[1], [0], [0], [1], [0, 0, 1, 1], [], []>} : vector<16x25xbf16>, vector<25x120xbf16>, vector<16x120xf32> -> vector<16x120xf32>
    %105 = arith.addf %101, %104 : vector<16x120xf32>
    %106 = vector.extract_strided_slice %87 {offsets = [64, 0], sizes = [16, 25], strides = [1, 1]} : vector<256x25xbf16> to vector<16x25xbf16>
    %107 = vector.extract_strided_slice %88 {offsets = [100, 0], sizes = [25, 120], strides = [1, 1]} : vector<400x120xbf16> to vector<25x120xbf16>
    %cst_27 = arith.constant dense<0.000000e+00> : vector<16x120xf32>
    %108 = tpu.matmul %106, %107, %cst_27 {dimension_numbers = #tpu.dot_dimension_numbers<[1], [0], [0], [1], [0, 0, 1, 1], [], []>} : vector<16x25xbf16>, vector<25x120xbf16>, vector<16x120xf32> -> vector<16x120xf32>
    %109 = arith.addf %105, %108 : vector<16x120xf32>
    %110 = vector.extract_strided_slice %87 {offsets = [80, 0], sizes = [16, 25], strides = [1, 1]} : vector<256x25xbf16> to vector<16x25xbf16>
    %111 = vector.extract_strided_slice %88 {offsets = [125, 0], sizes = [25, 120], strides = [1, 1]} : vector<400x120xbf16> to vector<25x120xbf16>
    %cst_28 = arith.constant dense<0.000000e+00> : vector<16x120xf32>
    %112 = tpu.matmul %110, %111, %cst_28 {dimension_numbers = #tpu.dot_dimension_numbers<[1], [0], [0], [1], [0, 0, 1, 1], [], []>} : vector<16x25xbf16>, vector<25x120xbf16>, vector<16x120xf32> -> vector<16x120xf32>
    %113 = arith.addf %109, %112 : vector<16x120xf32>
    %114 = vector.extract_strided_slice %87 {offsets = [96, 0], sizes = [16, 25], strides = [1, 1]} : vector<256x25xbf16> to vector<16x25xbf16>
    %115 = vector.extract_strided_slice %88 {offsets = [150, 0], sizes = [25, 120], strides = [1, 1]} : vector<400x120xbf16> to vector<25x120xbf16>
    %cst_29 = arith.constant dense<0.000000e+00> : vector<16x120xf32>
    %116 = tpu.matmul %114, %115, %cst_29 {dimension_numbers = #tpu.dot_dimension_numbers<[1], [0], [0], [1], [0, 0, 1, 1], [], []>} : vector<16x25xbf16>, vector<25x120xbf16>, vector<16x120xf32> -> vector<16x120xf32>
    %117 = arith.addf %113, %116 : vector<16x120xf32>
    %118 = vector.extract_strided_slice %87 {offsets = [112, 0], sizes = [16, 25], strides = [1, 1]} : vector<256x25xbf16> to vector<16x25xbf16>
    %119 = vector.extract_strided_slice %88 {offsets = [175, 0], sizes = [25, 120], strides = [1, 1]} : vector<400x120xbf16> to vector<25x120xbf16>
    %cst_30 = arith.constant dense<0.000000e+00> : vector<16x120xf32>
    %120 = tpu.matmul %118, %119, %cst_30 {dimension_numbers = #tpu.dot_dimension_numbers<[1], [0], [0], [1], [0, 0, 1, 1], [], []>} : vector<16x25xbf16>, vector<25x120xbf16>, vector<16x120xf32> -> vector<16x120xf32>
    %121 = arith.addf %117, %120 : vector<16x120xf32>
    %122 = vector.extract_strided_slice %87 {offsets = [128, 0], sizes = [16, 25], strides = [1, 1]} : vector<256x25xbf16> to vector<16x25xbf16>
    %123 = vector.extract_strided_slice %88 {offsets = [200, 0], sizes = [25, 120], strides = [1, 1]} : vector<400x120xbf16> to vector<25x120xbf16>
    %cst_31 = arith.constant dense<0.000000e+00> : vector<16x120xf32>
    %124 = tpu.matmul %122, %123, %cst_31 {dimension_numbers = #tpu.dot_dimension_numbers<[1], [0], [0], [1], [0, 0, 1, 1], [], []>} : vector<16x25xbf16>, vector<25x120xbf16>, vector<16x120xf32> -> vector<16x120xf32>
    %125 = arith.addf %121, %124 : vector<16x120xf32>
    %126 = vector.extract_strided_slice %87 {offsets = [144, 0], sizes = [16, 25], strides = [1, 1]} : vector<256x25xbf16> to vector<16x25xbf16>
    %127 = vector.extract_strided_slice %88 {offsets = [225, 0], sizes = [25, 120], strides = [1, 1]} : vector<400x120xbf16> to vector<25x120xbf16>
    %cst_32 = arith.constant dense<0.000000e+00> : vector<16x120xf32>
    %128 = tpu.matmul %126, %127, %cst_32 {dimension_numbers = #tpu.dot_dimension_numbers<[1], [0], [0], [1], [0, 0, 1, 1], [], []>} : vector<16x25xbf16>, vector<25x120xbf16>, vector<16x120xf32> -> vector<16x120xf32>
    %129 = arith.addf %125, %128 : vector<16x120xf32>
    %130 = vector.extract_strided_slice %87 {offsets = [160, 0], sizes = [16, 25], strides = [1, 1]} : vector<256x25xbf16> to vector<16x25xbf16>
    %131 = vector.extract_strided_slice %88 {offsets = [250, 0], sizes = [25, 120], strides = [1, 1]} : vector<400x120xbf16> to vector<25x120xbf16>
    %cst_33 = arith.constant dense<0.000000e+00> : vector<16x120xf32>
    %132 = tpu.matmul %130, %131, %cst_33 {dimension_numbers = #tpu.dot_dimension_numbers<[1], [0], [0], [1], [0, 0, 1, 1], [], []>} : vector<16x25xbf16>, vector<25x120xbf16>, vector<16x120xf32> -> vector<16x120xf32>
    %133 = arith.addf %129, %132 : vector<16x120xf32>
    %134 = vector.extract_strided_slice %87 {offsets = [176, 0], sizes = [16, 25], strides = [1, 1]} : vector<256x25xbf16> to vector<16x25xbf16>
    %135 = vector.extract_strided_slice %88 {offsets = [275, 0], sizes = [25, 120], strides = [1, 1]} : vector<400x120xbf16> to vector<25x120xbf16>
    %cst_34 = arith.constant dense<0.000000e+00> : vector<16x120xf32>
    %136 = tpu.matmul %134, %135, %cst_34 {dimension_numbers = #tpu.dot_dimension_numbers<[1], [0], [0], [1], [0, 0, 1, 1], [], []>} : vector<16x25xbf16>, vector<25x120xbf16>, vector<16x120xf32> -> vector<16x120xf32>
    %137 = arith.addf %133, %136 : vector<16x120xf32>
    %138 = vector.extract_strided_slice %87 {offsets = [192, 0], sizes = [16, 25], strides = [1, 1]} : vector<256x25xbf16> to vector<16x25xbf16>
    %139 = vector.extract_strided_slice %88 {offsets = [300, 0], sizes = [25, 120], strides = [1, 1]} : vector<400x120xbf16> to vector<25x120xbf16>
    %cst_35 = arith.constant dense<0.000000e+00> : vector<16x120xf32>
    %140 = tpu.matmul %138, %139, %cst_35 {dimension_numbers = #tpu.dot_dimension_numbers<[1], [0], [0], [1], [0, 0, 1, 1], [], []>} : vector<16x25xbf16>, vector<25x120xbf16>, vector<16x120xf32> -> vector<16x120xf32>
    %141 = arith.addf %137, %140 : vector<16x120xf32>
    %142 = vector.extract_strided_slice %87 {offsets = [208, 0], sizes = [16, 25], strides = [1, 1]} : vector<256x25xbf16> to vector<16x25xbf16>
    %143 = vector.extract_strided_slice %88 {offsets = [325, 0], sizes = [25, 120], strides = [1, 1]} : vector<400x120xbf16> to vector<25x120xbf16>
    %cst_36 = arith.constant dense<0.000000e+00> : vector<16x120xf32>
    %144 = tpu.matmul %142, %143, %cst_36 {dimension_numbers = #tpu.dot_dimension_numbers<[1], [0], [0], [1], [0, 0, 1, 1], [], []>} : vector<16x25xbf16>, vector<25x120xbf16>, vector<16x120xf32> -> vector<16x120xf32>
    %145 = arith.addf %141, %144 : vector<16x120xf32>
    %146 = vector.extract_strided_slice %87 {offsets = [224, 0], sizes = [16, 25], strides = [1, 1]} : vector<256x25xbf16> to vector<16x25xbf16>
    %147 = vector.extract_strided_slice %88 {offsets = [350, 0], sizes = [25, 120], strides = [1, 1]} : vector<400x120xbf16> to vector<25x120xbf16>
    %cst_37 = arith.constant dense<0.000000e+00> : vector<16x120xf32>
    %148 = tpu.matmul %146, %147, %cst_37 {dimension_numbers = #tpu.dot_dimension_numbers<[1], [0], [0], [1], [0, 0, 1, 1], [], []>} : vector<16x25xbf16>, vector<25x120xbf16>, vector<16x120xf32> -> vector<16x120xf32>
    %149 = arith.addf %145, %148 : vector<16x120xf32>
    %150 = vector.extract_strided_slice %87 {offsets = [240, 0], sizes = [16, 25], strides = [1, 1]} : vector<256x25xbf16> to vector<16x25xbf16>
    %151 = vector.extract_strided_slice %88 {offsets = [375, 0], sizes = [25, 120], strides = [1, 1]} : vector<400x120xbf16> to vector<25x120xbf16>
    %cst_38 = arith.constant dense<0.000000e+00> : vector<16x120xf32>
    %152 = tpu.matmul %150, %151, %cst_38 {dimension_numbers = #tpu.dot_dimension_numbers<[1], [0], [0], [1], [0, 0, 1, 1], [], []>} : vector<16x25xbf16>, vector<25x120xbf16>, vector<16x120xf32> -> vector<16x120xf32>
    %153 = arith.addf %149, %152 : vector<16x120xf32>
    %c0_39 = arith.constant 0 : index
    %c0_40 = arith.constant 0 : index
    %154 = vector.load %arg9[%c0_39, %c0_40] : memref<1x120xf32, #tpu.memory_space<vmem>>, vector<1x120xf32>
    %155 = vector.broadcast %154 : vector<1x120xf32> to vector<16x120xf32>
    %156 = arith.addf %153, %155 : vector<16x120xf32>
    %cst_41 = arith.constant 0.000000e+00 : f32
    %157 = vector.broadcast %cst_41 : f32 to vector<16x120xf32>
    %158 = arith.subf %157, %156 : vector<16x120xf32>
    %159 = math.exp %158 : vector<16x120xf32>
    %cst_42 = arith.constant 1.000000e+00 : f32
    %160 = vector.broadcast %cst_42 : f32 to vector<16x120xf32>
    %161 = arith.addf %160, %159 : vector<16x120xf32>
    %162 = tpu.reciprocal %161 {approx = true} : vector<16x120xf32> -> vector<16x120xf32>
    %163 = arith.truncf %162 : vector<16x120xf32> to vector<16x120xbf16>
    %c0_43 = arith.constant 0 : index
    %c0_44 = arith.constant 0 : index
    %164 = vector.load %arg10[%c0_43, %c0_44] : memref<120x84xbf16, #tpu.memory_space<vmem>>, vector<120x84xbf16>
    %cst_45 = arith.constant dense<0.000000e+00> : vector<16x84xf32>
    %165 = tpu.matmul %163, %164, %cst_45 {dimension_numbers = #tpu.dot_dimension_numbers<[1], [0], [0], [1], [0, 0, 1, 1], [], []>} : vector<16x120xbf16>, vector<120x84xbf16>, vector<16x84xf32> -> vector<16x84xf32>
    %c0_46 = arith.constant 0 : index
    %c0_47 = arith.constant 0 : index
    %166 = vector.load %arg11[%c0_46, %c0_47] : memref<1x84xf32, #tpu.memory_space<vmem>>, vector<1x84xf32>
    %167 = vector.broadcast %166 : vector<1x84xf32> to vector<16x84xf32>
    %168 = arith.addf %165, %167 : vector<16x84xf32>
    %cst_48 = arith.constant 0.000000e+00 : f32
    %169 = vector.broadcast %cst_48 : f32 to vector<16x84xf32>
    %170 = arith.subf %169, %168 : vector<16x84xf32>
    %171 = math.exp %170 : vector<16x84xf32>
    %cst_49 = arith.constant 1.000000e+00 : f32
    %172 = vector.broadcast %cst_49 : f32 to vector<16x84xf32>
    %173 = arith.addf %172, %171 : vector<16x84xf32>
    %174 = tpu.reciprocal %173 {approx = true} : vector<16x84xf32> -> vector<16x84xf32>
    %175 = arith.truncf %174 : vector<16x84xf32> to vector<16x84xbf16>
    %c0_50 = arith.constant 0 : index
    %c0_51 = arith.constant 0 : index
    %176 = vector.load %arg12[%c0_50, %c0_51] : memref<84x10xbf16, #tpu.memory_space<vmem>>, vector<84x10xbf16>
    %cst_52 = arith.constant dense<0.000000e+00> : vector<16x10xf32>
    %177 = tpu.matmul %175, %176, %cst_52 {dimension_numbers = #tpu.dot_dimension_numbers<[1], [0], [0], [1], [0, 0, 1, 1], [], []>} : vector<16x84xbf16>, vector<84x10xbf16>, vector<16x10xf32> -> vector<16x10xf32>
    %c0_53 = arith.constant 0 : index
    %c0_54 = arith.constant 0 : index
    %178 = vector.load %arg13[%c0_53, %c0_54] : memref<1x10xf32, #tpu.memory_space<vmem>>, vector<1x10xf32>
    %179 = vector.broadcast %178 : vector<1x10xf32> to vector<16x10xf32>
    %180 = arith.addf %177, %179 : vector<16x10xf32>
    %cst_55 = arith.constant dense<0xFF800000> : vector<16xf32>
    %181 = vector.multi_reduction <maximumf>, %180, %cst_55 [1] : vector<16x10xf32> to vector<16xf32>
    %182 = vector.shape_cast %181 : vector<16xf32> to vector<16x1xf32>
    %183 = vector.broadcast %182 : vector<16x1xf32> to vector<16x10xf32>
    %184 = arith.subf %180, %183 : vector<16x10xf32>
    %185 = math.exp %184 : vector<16x10xf32>
    %cst_56 = arith.constant dense<0.000000e+00> : vector<16xf32>
    %186 = vector.multi_reduction <add>, %185, %cst_56 [1] : vector<16x10xf32> to vector<16xf32>
    %187 = vector.shape_cast %186 : vector<16xf32> to vector<16x1xf32>
    %188 = math.log %187 : vector<16x1xf32>
    %189 = vector.broadcast %188 : vector<16x1xf32> to vector<16x10xf32>
    %190 = arith.subf %184, %189 : vector<16x10xf32>
    %c0_57 = arith.constant 0 : index
    %c0_58 = arith.constant 0 : index
    %191 = vector.load %arg14[%c0_57, %c0_58] : memref<16x10xf32, #tpu.memory_space<vmem>>, vector<16x10xf32>
    tpu.vector_store %arg14[%c0_57, %c0_58], %190 {strides = array<i32>} : memref<16x10xf32, #tpu.memory_space<vmem>>, vector<16x10xf32>,
    return
  }
  func.func @transform_0(%arg0: i32) -> (i32, i32) {
    %c0_i32 = arith.constant 0 : i32
    %c0_i32_0 = arith.constant 0 : i32
    return %arg0, %c0_i32 : i32, i32
  }
  func.func @transform_1(%arg0: i32) -> (i32, i32) {
    %c0_i32 = arith.constant 0 : i32
    %c0_i32_0 = arith.constant 0 : i32
    %c0_i32_1 = arith.constant 0 : i32
    return %c0_i32, %c0_i32_0 : i32, i32
  }
  func.func @transform_2(%arg0: i32) -> (i32, i32) {
    %c0_i32 = arith.constant 0 : i32
    %c0_i32_0 = arith.constant 0 : i32
    %c0_i32_1 = arith.constant 0 : i32
    return %c0_i32, %c0_i32_0 : i32, i32
  }
  func.func @transform_3(%arg0: i32) -> (i32, i32) {
    %c0_i32 = arith.constant 0 : i32
    %c0_i32_0 = arith.constant 0 : i32
    %c0_i32_1 = arith.constant 0 : i32
    return %c0_i32, %c0_i32_0 : i32, i32
  }
  func.func @transform_4(%arg0: i32) -> (i32, i32) {
    %c0_i32 = arith.constant 0 : i32
    %c0_i32_0 = arith.constant 0 : i32
    %c0_i32_1 = arith.constant 0 : i32
    return %c0_i32, %c0_i32_0 : i32, i32
  }
  func.func @transform_5(%arg0: i32) -> (i32, i32) {
    %c0_i32 = arith.constant 0 : i32
    %c0_i32_0 = arith.constant 0 : i32
    %c0_i32_1 = arith.constant 0 : i32
    return %c0_i32, %c0_i32_0 : i32, i32
  }
  func.func @transform_6(%arg0: i32) -> (i32, i32) {
    %c0_i32 = arith.constant 0 : i32
    %c0_i32_0 = arith.constant 0 : i32
    %c0_i32_1 = arith.constant 0 : i32
    return %c0_i32, %c0_i32_0 : i32, i32
  }
  func.func @transform_7(%arg0: i32) -> (i32, i32) {
    %c0_i32 = arith.constant 0 : i32
    %c0_i32_0 = arith.constant 0 : i32
    %c0_i32_1 = arith.constant 0 : i32
    return %c0_i32, %c0_i32_0 : i32, i32
  }
  func.func @transform_8(%arg0: i32) -> (i32, i32) {
    %c0_i32 = arith.constant 0 : i32
    %c0_i32_0 = arith.constant 0 : i32
    %c0_i32_1 = arith.constant 0 : i32
    return %c0_i32, %c0_i32_0 : i32, i32
  }
  func.func @transform_9(%arg0: i32) -> (i32, i32) {
    %c0_i32 = arith.constant 0 : i32
    %c0_i32_0 = arith.constant 0 : i32
    %c0_i32_1 = arith.constant 0 : i32
    return %c0_i32, %c0_i32_0 : i32, i32
  }
  func.func @transform_10(%arg0: i32) -> (i32, i32) {
    %c0_i32 = arith.constant 0 : i32
    %c0_i32_0 = arith.constant 0 : i32
    %c0_i32_1 = arith.constant 0 : i32
    return %c0_i32, %c0_i32_0 : i32, i32
  }
  func.func @transform_11(%arg0: i32) -> (i32, i32) {
    %c0_i32 = arith.constant 0 : i32
    %c0_i32_0 = arith.constant 0 : i32
    %c0_i32_1 = arith.constant 0 : i32
    return %c0_i32, %c0_i32_0 : i32, i32
  }
  func.func @transform_12(%arg0: i32) -> (i32, i32) {
    %c0_i32 = arith.constant 0 : i32
    %c0_i32_0 = arith.constant 0 : i32
    %c0_i32_1 = arith.constant 0 : i32
    return %c0_i32, %c0_i32_0 : i32, i32
  }
  func.func @transform_13(%arg0: i32) -> (i32, i32) {
    %c0_i32 = arith.constant 0 : i32
    %c0_i32_0 = arith.constant 0 : i32
    return %arg0, %c0_i32 : i32, i32
  }
}

</mosaic_0001>

<llo_original>
// kernel: lenet_forward.1
$region0: #{lenet_forward.1}
  #allocation0 [shape = 'u32[]', space=smem, size = 0x4, offset = 0x4, fixed_abs, tag = 'smem constant byte address 0x4 - core index']
  #allocation1 [shape = 'u32[144,128]{1,0:T(1,128)}', space=vmem, size = 0x12000, scoped, tag = 'internal scratch']
  %s0 = inlined_call_operand.vmem [shape: f32[16,1024], index: 0, kind: input, shape index: {}]
  %s1 = inlined_call_operand.vmem [shape: bf16[96,400], index: 1, kind: input, shape index: {}]
  %s2 = inlined_call_operand.vmem [shape: f32[96,1], index: 2, kind: input, shape index: {}]
  %s3 = inlined_call_operand.vmem [shape: bf16[256,2400], index: 3, kind: input, shape index: {}]
  %s4 = inlined_call_operand.vmem [shape: f32[256,1], index: 4, kind: input, shape index: {}]
  %s5 = inlined_call_operand.vmem [shape: bf16[892,196], index: 5, kind: input, shape index: {}]
  %s6 = inlined_call_operand.vmem [shape: bf16[136,25], index: 6, kind: input, shape index: {}]
  %s7 = inlined_call_operand.vmem [shape: bf16[400,120], index: 7, kind: input, shape index: {}]
  %s8 = inlined_call_operand.vmem [shape: f32[1,120], index: 8, kind: input, shape index: {}]
  %s9 = inlined_call_operand.vmem [shape: bf16[120,84], index: 9, kind: input, shape index: {}]
  %s10 = inlined_call_operand.vmem [shape: f32[1,84], index: 10, kind: input, shape index: {}]
  %s11 = inlined_call_operand.vmem [shape: bf16[84,10], index: 11, kind: input, shape index: {}]
  %s12 = inlined_call_operand.vmem [shape: f32[1,10], index: 12, kind: input, shape index: {}]
  %s13 = inlined_call_operand.vmem [shape: f32[16,10], index: 13, kind: output, shape index: {}]
  %s14 = sld [smem:[#allocation0]]
  $region62: #{lenet_forward.1} parent=0
    _
  %s16 = ssub.s32 1, %s14
  %s17 = scalar_select 0, %s16, %s14
  // Predicated region
  $region2: #{lenet_forward.1} parent=0 // pred_check
    _
  $region3: #{lenet_forward.1} parent=0 // pred_check_branch
    %19 = sbr.rel (0) target = $region5
  $region4: #{lenet_forward.1} parent=0 // pred_region
    _
  $region5: #{lenet_forward.1} parent=0 // pred_fallthru
    _
  // Predicated region
  $region6: #{lenet_forward.1} parent=0 // pred_check
    _
  $region7: #{lenet_forward.1} parent=0 // pred_check_branch
    %21 = sbr.rel (0) target = $region9
  $region8: #{lenet_forward.1} parent=0 // pred_region
    _
  $region9: #{lenet_forward.1} parent=0 // pred_fallthru
    _
  // Predicated region
  $region10: #{lenet_forward.1} parent=0 // pred_check
    _
  $region11: #{lenet_forward.1} parent=0 // pred_check_branch
    %23 = sbr.rel (0) target = $region13
  $region12: #{lenet_forward.1} parent=0 // pred_region
    _
  $region13: #{lenet_forward.1} parent=0 // pred_fallthru
    _
  // Predicated region
  $region14: #{lenet_forward.1} parent=0 // pred_check
    _
  $region15: #{lenet_forward.1} parent=0 // pred_check_branch
    %25 = sbr.rel (0) target = $region17
  $region16: #{lenet_forward.1} parent=0 // pred_region
    _
  $region17: #{lenet_forward.1} parent=0 // pred_fallthru
    _
  // Predicated region
  $region18: #{lenet_forward.1} parent=0 // pred_check
    _
  $region19: #{lenet_forward.1} parent=0 // pred_check_branch
    %27 = sbr.rel (0) target = $region21
  $region20: #{lenet_forward.1} parent=0 // pred_region
    _
  $region21: #{lenet_forward.1} parent=0 // pred_fallthru
    _
  // Predicated region
  $region22: #{lenet_forward.1} parent=0 // pred_check
    _
  $region23: #{lenet_forward.1} parent=0 // pred_check_branch
    %29 = sbr.rel (0) target = $region25
  $region24: #{lenet_forward.1} parent=0 // pred_region
    _
  $region25: #{lenet_forward.1} parent=0 // pred_fallthru
    _
  // Predicated region
  $region26: #{lenet_forward.1} parent=0 // pred_check
    _
  $region27: #{lenet_forward.1} parent=0 // pred_check_branch
    %31 = sbr.rel (0) target = $region29
  $region28: #{lenet_forward.1} parent=0 // pred_region
    _
  $region29: #{lenet_forward.1} parent=0 // pred_fallthru
    _
  // Predicated region
  $region30: #{lenet_forward.1} parent=0 // pred_check
    _
  $region31: #{lenet_forward.1} parent=0 // pred_check_branch
    %33 = sbr.rel (0) target = $region33
  $region32: #{lenet_forward.1} parent=0 // pred_region
    _
  $region33: #{lenet_forward.1} parent=0 // pred_fallthru
    _
  // Predicated region
  $region34: #{lenet_forward.1} parent=0 // pred_check
    _
  $region35: #{lenet_forward.1} parent=0 // pred_check_branch
    %35 = sbr.rel (0) target = $region37
  $region36: #{lenet_forward.1} parent=0 // pred_region
    _
  $region37: #{lenet_forward.1} parent=0 // pred_fallthru
    _
  // Predicated region
  $region38: #{lenet_forward.1} parent=0 // pred_check
    _
  $region39: #{lenet_forward.1} parent=0 // pred_check_branch
    %37 = sbr.rel (0) target = $region41
  $region40: #{lenet_forward.1} parent=0 // pred_region
    _
  $region41: #{lenet_forward.1} parent=0 // pred_fallthru
    _
  // Predicated region
  $region42: #{lenet_forward.1} parent=0 // pred_check
    _
  $region43: #{lenet_forward.1} parent=0 // pred_check_branch
    %39 = sbr.rel (0) target = $region45
  $region44: #{lenet_forward.1} parent=0 // pred_region
    _
  $region45: #{lenet_forward.1} parent=0 // pred_fallthru
    _
  // Predicated region
  $region46: #{lenet_forward.1} parent=0 // pred_check
    _
  $region47: #{lenet_forward.1} parent=0 // pred_check_branch
    %41 = sbr.rel (0) target = $region49
  $region48: #{lenet_forward.1} parent=0 // pred_region
    _
  $region49: #{lenet_forward.1} parent=0 // pred_fallthru
    _
  // Predicated region
  $region50: #{lenet_forward.1} parent=0 // pred_check
    _
  $region51: #{lenet_forward.1} parent=0 // pred_check_branch
    %43 = sbr.rel (0) target = $region53
  $region52: #{lenet_forward.1} parent=0 // pred_region
    _
  $region53: #{lenet_forward.1} parent=0 // pred_fallthru
    _
  %v45 = vld [vmem:[%s0] sm:$0xff]
  %v46 = vld [vmem:[%s0 + $0x8] sm:$0xff]
  %v47 = vld [vmem:[%s0 + $0x10] sm:$0xff]
  %v48 = vld [vmem:[%s0 + $0x18] sm:$0xff]
  %v49 = vld [vmem:[%s0 + $0x20] sm:$0xff]
  %v50 = vld [vmem:[%s0 + $0x28] sm:$0xff]
  %v51 = vld [vmem:[%s0 + $0x30] sm:$0xff]
  %v52 = vld [vmem:[%s0 + $0x38] sm:$0xff]
  %v53 = vld [vmem:[%s0 + $0x40] sm:$0xff]
  %v54 = vld [vmem:[%s0 + $0x48] sm:$0xff]
  %v55 = vld [vmem:[%s0 + $0x50] sm:$0xff]
  %v56 = vld [vmem:[%s0 + $0x58] sm:$0xff]
  %v57 = vld [vmem:[%s0 + $0x60] sm:$0xff]
  %v58 = vld [vmem:[%s0 + $0x68] sm:$0xff]
  %v59 = vld [vmem:[%s0 + $0x70] sm:$0xff]
  %v60 = vld [vmem:[%s0 + $0x78] sm:$0xff]
  %v61 = vpack.c.bf16 %v53, %v45
  %v62 = vpack.c.bf16 %v54, %v46
  %v63 = vpack.c.bf16 %v55, %v47
  %v64 = vpack.c.bf16 %v56, %v48
  %v65 = vpack.c.bf16 %v57, %v49
  %v66 = vpack.c.bf16 %v58, %v50
  %v67 = vpack.c.bf16 %v59, %v51
  %v68 = vpack.c.bf16 %v60, %v52
  %76 = vrot.lane.b32.xlu0 %v61, 127
  %v77 = vpop.permute.xlu0 %76
  %78 = vrot.lane.b32.xlu0 %v62, 127
  %v79 = vpop.permute.xlu0 %78
  %80 = vrot.lane.b32.xlu0 %v63, 127
  %v81 = vpop.permute.xlu0 %80
  %82 = vrot.lane.b32.xlu0 %v64, 127
  %v83 = vpop.permute.xlu0 %82
  %84 = vrot.lane.b32.xlu0 %v65, 127
  %v85 = vpop.permute.xlu0 %84
  %86 = vrot.lane.b32.xlu0 %v66, 127
  %v87 = vpop.permute.xlu0 %86
  %88 = vrot.lane.b32.xlu0 %v67, 127
  %v89 = vpop.permute.xlu0 %88
  %vm90 = vcmask 1039360
  %v91 = vsel %vm90, %v77, %v79
  %v92 = vsel %vm90, %v79, %v81
  %v93 = vsel %vm90, %v81, %v83
  %v94 = vsel %vm90, %v83, %v85
  %v95 = vsel %vm90, %v85, %v87
  %v96 = vsel %vm90, %v87, %v89
  %104 = vrot.lane.b32.xlu0 %v61, 126
  %v105 = vpop.permute.xlu0 %104
  %106 = vrot.lane.b32.xlu0 %v62, 126
  %v107 = vpop.permute.xlu0 %106
  %108 = vrot.lane.b32.xlu0 %v63, 126
  %v109 = vpop.permute.xlu0 %108
  %110 = vrot.lane.b32.xlu0 %v64, 126
  %v111 = vpop.permute.xlu0 %110
  %112 = vrot.lane.b32.xlu0 %v65, 126
  %v113 = vpop.permute.xlu0 %112
  %114 = vrot.lane.b32.xlu0 %v66, 126
  %v115 = vpop.permute.xlu0 %114
  %116 = vrot.lane.b32.xlu0 %v67, 126
  %v117 = vpop.permute.xlu0 %116
  %vm118 = vcmask 1031168
  %v119 = vsel %vm118, %v105, %v107
  %v120 = vsel %vm118, %v107, %v109
  %v121 = vsel %vm118, %v109, %v111
  %v122 = vsel %vm118, %v111, %v113
  %v123 = vsel %vm118, %v113, %v115
  %v124 = vsel %vm118, %v115, %v117
  %132 = vrot.lane.b32.xlu0 %v61, 125
  %v133 = vpop.permute.xlu0 %132
  %134 = vrot.lane.b32.xlu0 %v62, 125
  %v135 = vpop.permute.xlu0 %134
  %136 = vrot.lane.b32.xlu0 %v63, 125
  %v137 = vpop.permute.xlu0 %136
  %138 = vrot.lane.b32.xlu0 %v64, 125
  %v139 = vpop.permute.xlu0 %138
  %140 = vrot.lane.b32.xlu0 %v65, 125
  %v141 = vpop.permute.xlu0 %140
  %142 = vrot.lane.b32.xlu0 %v66, 125
  %v143 = vpop.permute.xlu0 %142
  %144 = vrot.lane.b32.xlu0 %v67, 125
  %v145 = vpop.permute.xlu0 %144
  %vm146 = vcmask 1022976
  %v147 = vsel %vm146, %v133, %v135
  %v148 = vsel %vm146, %v135, %v137
  %v149 = vsel %vm146, %v137, %v139
  %v150 = vsel %vm146, %v139, %v141
  %v151 = vsel %vm146, %v141, %v143
  %v152 = vsel %vm146, %v143, %v145
  %160 = vrot.lane.b32.xlu0 %v61, 124
  %v161 = vpop.permute.xlu0 %160
  %162 = vrot.lane.b32.xlu0 %v62, 124
  %v163 = vpop.permute.xlu0 %162
  %164 = vrot.lane.b32.xlu0 %v63, 124
  %v165 = vpop.permute.xlu0 %164
  %166 = vrot.lane.b32.xlu0 %v64, 124
  %v167 = vpop.permute.xlu0 %166
  %168 = vrot.lane.b32.xlu0 %v65, 124
  %v169 = vpop.permute.xlu0 %168
  %170 = vrot.lane.b32.xlu0 %v66, 124
  %v171 = vpop.permute.xlu0 %170
  %172 = vrot.lane.b32.xlu0 %v67, 124
  %v173 = vpop.permute.xlu0 %172
  %vm174 = vcmask 1014784
  %v175 = vsel %vm174, %v161, %v163
  %v176 = vsel %vm174, %v163, %v165
  %v177 = vsel %vm174, %v165, %v167
  %v178 = vsel %vm174, %v167, %v169
  %v179 = vsel %vm174, %v169, %v171
  %v180 = vsel %vm174, %v171, %v173
  %189 = vrot.lane.b32.xlu0 %v61, 96
  %v190 = vpop.permute.xlu0 %189
  %191 = vrot.lane.b32.xlu0 %v62, 96
  %v192 = vpop.permute.xlu0 %191
  %193 = vrot.lane.b32.xlu0 %v63, 96
  %v194 = vpop.permute.xlu0 %193
  %195 = vrot.lane.b32.xlu0 %v64, 96
  %v196 = vpop.permute.xlu0 %195
  %197 = vrot.lane.b32.xlu0 %v65, 96
  %v198 = vpop.permute.xlu0 %197
  %199 = vrot.lane.b32.xlu0 %v66, 96
  %v200 = vpop.permute.xlu0 %199
  %201 = vrot.lane.b32.xlu0 %v67, 96
  %v202 = vpop.permute.xlu0 %201
  %203 = vrot.lane.b32.xlu0 %v68, 96
  %v204 = vpop.permute.xlu0 %203
  %vm205 = vcmask 785408
  %v206 = vsel %vm205, %v190, %v192
  %v207 = vsel %vm205, %v192, %v194
  %v208 = vsel %vm205, %v194, %v196
  %v209 = vsel %vm205, %v196, %v198
  %v210 = vsel %vm205, %v198, %v200
  %v211 = vsel %vm205, %v200, %v202
  %v212 = vsel %vm205, %v202, %v204
  %220 = vrot.lane.b32.xlu0 %v61, 95
  %v221 = vpop.permute.xlu0 %220
  %222 = vrot.lane.b32.xlu0 %v62, 95
  %v223 = vpop.permute.xlu0 %222
  %224 = vrot.lane.b32.xlu0 %v63, 95
  %v225 = vpop.permute.xlu0 %224
  %226 = vrot.lane.b32.xlu0 %v64, 95
  %v227 = vpop.permute.xlu0 %226
  %228 = vrot.lane.b32.xlu0 %v65, 95
  %v229 = vpop.permute.xlu0 %228
  %230 = vrot.lane.b32.xlu0 %v66, 95
  %v231 = vpop.permute.xlu0 %230
  %232 = vrot.lane.b32.xlu0 %v67, 95
  %v233 = vpop.permute.xlu0 %232
  %234 = vrot.lane.b32.xlu0 %v68, 95
  %v235 = vpop.permute.xlu0 %234
  %vm236 = vcmask 777216
  %v237 = vsel %vm236, %v221, %v223
  %v238 = vsel %vm236, %v223, %v225
  %v239 = vsel %vm236, %v225, %v227
  %v240 = vsel %vm236, %v227, %v229
  %v241 = vsel %vm236, %v229, %v231
  %v242 = vsel %vm236, %v231, %v233
  %v243 = vsel %vm236, %v233, %v235
  %251 = vrot.lane.b32.xlu0 %v61, 94
  %v252 = vpop.permute.xlu0 %251
  %253 = vrot.lane.b32.xlu0 %v62, 94
  %v254 = vpop.permute.xlu0 %253
  %255 = vrot.lane.b32.xlu0 %v63, 94
  %v256 = vpop.permute.xlu0 %255
  %257 = vrot.lane.b32.xlu0 %v64, 94
  %v258 = vpop.permute.xlu0 %257
  %259 = vrot.lane.b32.xlu0 %v65, 94
  %v260 = vpop.permute.xlu0 %259
  %261 = vrot.lane.b32.xlu0 %v66, 94
  %v262 = vpop.permute.xlu0 %261
  %263 = vrot.lane.b32.xlu0 %v67, 94
  %v264 = vpop.permute.xlu0 %263
  %265 = vrot.lane.b32.xlu0 %v68, 94
  %v266 = vpop.permute.xlu0 %265
  %vm267 = vcmask 769024
  %v268 = vsel %vm267, %v252, %v254
  %v269 = vsel %vm267, %v254, %v256
  %v270 = vsel %vm267, %v256, %v258
  %v271 = vsel %vm267, %v258, %v260
  %v272 = vsel %vm267, %v260, %v262
  %v273 = vsel %vm267, %v262, %v264
  %v274 = vsel %vm267, %v264, %v266
  %282 = vrot.lane.b32.xlu0 %v61, 93
  %v283 = vpop.permute.xlu0 %282
  %284 = vrot.lane.b32.xlu0 %v62, 93
  %v285 = vpop.permute.xlu0 %284
  %286 = vrot.lane.b32.xlu0 %v63, 93
  %v287 = vpop.permute.xlu0 %286
  %288 = vrot.lane.b32.xlu0 %v64, 93
  %v289 = vpop.permute.xlu0 %288
  %290 = vrot.lane.b32.xlu0 %v65, 93
  %v291 = vpop.permute.xlu0 %290
  %292 = vrot.lane.b32.xlu0 %v66, 93
  %v293 = vpop.permute.xlu0 %292
  %294 = vrot.lane.b32.xlu0 %v67, 93
  %v295 = vpop.permute.xlu0 %294
  %296 = vrot.lane.b32.xlu0 %v68, 93
  %v297 = vpop.permute.xlu0 %296
  %vm298 = vcmask 760832
  %v299 = vsel %vm298, %v283, %v285
  %v300 = vsel %vm298, %v285, %v287
  %v301 = vsel %vm298, %v287, %v289
  %v302 = vsel %vm298, %v289, %v291
  %v303 = vsel %vm298, %v291, %v293
  %v304 = vsel %vm298, %v293, %v295
  %v305 = vsel %vm298, %v295, %v297
  %313 = vrot.lane.b32.xlu0 %v61, 92
  %v314 = vpop.permute.xlu0 %313
  %315 = vrot.lane.b32.xlu0 %v62, 92
  %v316 = vpop.permute.xlu0 %315
  %317 = vrot.lane.b32.xlu0 %v63, 92
  %v318 = vpop.permute.xlu0 %317
  %319 = vrot.lane.b32.xlu0 %v64, 92
  %v320 = vpop.permute.xlu0 %319
  %321 = vrot.lane.b32.xlu0 %v65, 92
  %v322 = vpop.permute.xlu0 %321
  %323 = vrot.lane.b32.xlu0 %v66, 92
  %v324 = vpop.permute.xlu0 %323
  %325 = vrot.lane.b32.xlu0 %v67, 92
  %v326 = vpop.permute.xlu0 %325
  %327 = vrot.lane.b32.xlu0 %v68, 92
  %v328 = vpop.permute.xlu0 %327
  %vm329 = vcmask 752640
  %v330 = vsel %vm329, %v314, %v316
  %v331 = vsel %vm329, %v316, %v318
  %v332 = vsel %vm329, %v318, %v320
  %v333 = vsel %vm329, %v320, %v322
  %v334 = vsel %vm329, %v322, %v324
  %v335 = vsel %vm329, %v324, %v326
  %v336 = vsel %vm329, %v326, %v328
  %344 = vrot.lane.b32.xlu0 %v61, 64
  %v345 = vpop.permute.xlu0 %344
  %346 = vrot.lane.b32.xlu0 %v62, 64
  %v347 = vpop.permute.xlu0 %346
  %348 = vrot.lane.b32.xlu0 %v63, 64
  %v349 = vpop.permute.xlu0 %348
  %350 = vrot.lane.b32.xlu0 %v64, 64
  %v351 = vpop.permute.xlu0 %350
  %352 = vrot.lane.b32.xlu0 %v65, 64
  %v353 = vpop.permute.xlu0 %352
  %354 = vrot.lane.b32.xlu0 %v66, 64
  %v355 = vpop.permute.xlu0 %354
  %356 = vrot.lane.b32.xlu0 %v67, 64
  %v357 = vpop.permute.xlu0 %356
  %358 = vrot.lane.b32.xlu0 %v68, 64
  %v359 = vpop.permute.xlu0 %358
  %vm360 = vcmask 523264
  %v361 = vsel %vm360, %v345, %v347
  %v362 = vsel %vm360, %v347, %v349
  %v363 = vsel %vm360, %v349, %v351
  %v364 = vsel %vm360, %v351, %v353
  %v365 = vsel %vm360, %v353, %v355
  %v366 = vsel %vm360, %v355, %v357
  %v367 = vsel %vm360, %v357, %v359
  %375 = vrot.lane.b32.xlu0 %v61, 63
  %v376 = vpop.permute.xlu0 %375
  %377 = vrot.lane.b32.xlu0 %v62, 63
  %v378 = vpop.permute.xlu0 %377
  %379 = vrot.lane.b32.xlu0 %v63, 63
  %v380 = vpop.permute.xlu0 %379
  %381 = vrot.lane.b32.xlu0 %v64, 63
  %v382 = vpop.permute.xlu0 %381
  %383 = vrot.lane.b32.xlu0 %v65, 63
  %v384 = vpop.permute.xlu0 %383
  %385 = vrot.lane.b32.xlu0 %v66, 63
  %v386 = vpop.permute.xlu0 %385
  %387 = vrot.lane.b32.xlu0 %v67, 63
  %v388 = vpop.permute.xlu0 %387
  %389 = vrot.lane.b32.xlu0 %v68, 63
  %v390 = vpop.permute.xlu0 %389
  %vm391 = vcmask 515072
  %v392 = vsel %vm391, %v376, %v378
  %v393 = vsel %vm391, %v378, %v380
  %v394 = vsel %vm391, %v380, %v382
  %v395 = vsel %vm391, %v382, %v384
  %v396 = vsel %vm391, %v384, %v386
  %v397 = vsel %vm391, %v386, %v388
  %v398 = vsel %vm391, %v388, %v390
  %406 = vrot.lane.b32.xlu0 %v61, 62
  %v407 = vpop.permute.xlu0 %406
  %408 = vrot.lane.b32.xlu0 %v62, 62
  %v409 = vpop.permute.xlu0 %408
  %410 = vrot.lane.b32.xlu0 %v63, 62
  %v411 = vpop.permute.xlu0 %410
  %412 = vrot.lane.b32.xlu0 %v64, 62
  %v413 = vpop.permute.xlu0 %412
  %414 = vrot.lane.b32.xlu0 %v65, 62
  %v415 = vpop.permute.xlu0 %414
  %416 = vrot.lane.b32.xlu0 %v66, 62
  %v417 = vpop.permute.xlu0 %416
  %418 = vrot.lane.b32.xlu0 %v67, 62
  %v419 = vpop.permute.xlu0 %418
  %420 = vrot.lane.b32.xlu0 %v68, 62
  %v421 = vpop.permute.xlu0 %420
  %vm422 = vcmask 506880
  %v423 = vsel %vm422, %v407, %v409
  %v424 = vsel %vm422, %v409, %v411
  %v425 = vsel %vm422, %v411, %v413
  %v426 = vsel %vm422, %v413, %v415
  %v427 = vsel %vm422, %v415, %v417
  %v428 = vsel %vm422, %v417, %v419
  %v429 = vsel %vm422, %v419, %v421
  %437 = vrot.lane.b32.xlu0 %v61, 61
  %v438 = vpop.permute.xlu0 %437
  %439 = vrot.lane.b32.xlu0 %v62, 61
  %v440 = vpop.permute.xlu0 %439
  %441 = vrot.lane.b32.xlu0 %v63, 61
  %v442 = vpop.permute.xlu0 %441
  %443 = vrot.lane.b32.xlu0 %v64, 61
  %v444 = vpop.permute.xlu0 %443
  %445 = vrot.lane.b32.xlu0 %v65, 61
  %v446 = vpop.permute.xlu0 %445
  %447 = vrot.lane.b32.xlu0 %v66, 61
  %v448 = vpop.permute.xlu0 %447
  %449 = vrot.lane.b32.xlu0 %v67, 61
  %v450 = vpop.permute.xlu0 %449
  %451 = vrot.lane.b32.xlu0 %v68, 61
  %v452 = vpop.permute.xlu0 %451
  %vm453 = vcmask 498688
  %v454 = vsel %vm453, %v438, %v440
  %v455 = vsel %vm453, %v440, %v442
  %v456 = vsel %vm453, %v442, %v444
  %v457 = vsel %vm453, %v444, %v446
  %v458 = vsel %vm453, %v446, %v448
  %v459 = vsel %vm453, %v448, %v450
  %v460 = vsel %vm453, %v450, %v452
  %468 = vrot.lane.b32.xlu0 %v61, 60
  %v469 = vpop.permute.xlu0 %468
  %470 = vrot.lane.b32.xlu0 %v62, 60
  %v471 = vpop.permute.xlu0 %470
  %472 = vrot.lane.b32.xlu0 %v63, 60
  %v473 = vpop.permute.xlu0 %472
  %474 = vrot.lane.b32.xlu0 %v64, 60
  %v475 = vpop.permute.xlu0 %474
  %476 = vrot.lane.b32.xlu0 %v65, 60
  %v477 = vpop.permute.xlu0 %476
  %478 = vrot.lane.b32.xlu0 %v66, 60
  %v479 = vpop.permute.xlu0 %478
  %480 = vrot.lane.b32.xlu0 %v67, 60
  %v481 = vpop.permute.xlu0 %480
  %482 = vrot.lane.b32.xlu0 %v68, 60
  %v483 = vpop.permute.xlu0 %482
  %vm484 = vcmask 490496
  %v485 = vsel %vm484, %v469, %v471
  %v486 = vsel %vm484, %v471, %v473
  %v487 = vsel %vm484, %v473, %v475
  %v488 = vsel %vm484, %v475, %v477
  %v489 = vsel %vm484, %v477, %v479
  %v490 = vsel %vm484, %v479, %v481
  %v491 = vsel %vm484, %v481, %v483
  %499 = vrot.lane.b32.xlu0 %v61, 32
  %v500 = vpop.permute.xlu0 %499
  %501 = vrot.lane.b32.xlu0 %v62, 32
  %v502 = vpop.permute.xlu0 %501
  %503 = vrot.lane.b32.xlu0 %v63, 32
  %v504 = vpop.permute.xlu0 %503
  %505 = vrot.lane.b32.xlu0 %v64, 32
  %v506 = vpop.permute.xlu0 %505
  %507 = vrot.lane.b32.xlu0 %v65, 32
  %v508 = vpop.permute.xlu0 %507
  %509 = vrot.lane.b32.xlu0 %v66, 32
  %v510 = vpop.permute.xlu0 %509
  %511 = vrot.lane.b32.xlu0 %v67, 32
  %v512 = vpop.permute.xlu0 %511
  %513 = vrot.lane.b32.xlu0 %v68, 32
  %v514 = vpop.permute.xlu0 %513
  %vm515 = vcmask 261120
  %v516 = vsel %vm515, %v500, %v502
  %v517 = vsel %vm515, %v502, %v504
  %v518 = vsel %vm515, %v504, %v506
  %v519 = vsel %vm515, %v506, %v508
  %v520 = vsel %vm515, %v508, %v510
  %v521 = vsel %vm515, %v510, %v512
  %v522 = vsel %vm515, %v512, %v514
  %530 = vrot.lane.b32.xlu0 %v68, 127
  %v531 = vpop.permute.xlu0 %530
  %v532 = vsel %vm90, %v89, %v531
  %533 = vrot.lane.b32.xlu0 %v68, 126
  %v534 = vpop.permute.xlu0 %533
  %v535 = vsel %vm118, %v117, %v534
  %536 = vrot.lane.b32.xlu0 %v68, 125
  %v537 = vpop.permute.xlu0 %536
  %v538 = vsel %vm146, %v145, %v537
  %539 = vrot.lane.b32.xlu0 %v62, 97
  %v540 = vpop.permute.xlu0 %539
  %541 = vrot.lane.b32.xlu0 %v63, 97
  %v542 = vpop.permute.xlu0 %541
  %543 = vrot.lane.b32.xlu0 %v64, 97
  %v544 = vpop.permute.xlu0 %543
  %545 = vrot.lane.b32.xlu0 %v65, 97
  %v546 = vpop.permute.xlu0 %545
  %547 = vrot.lane.b32.xlu0 %v66, 97
  %v548 = vpop.permute.xlu0 %547
  %549 = vrot.lane.b32.xlu0 %v67, 97
  %v550 = vpop.permute.xlu0 %549
  %551 = vrot.lane.b32.xlu0 %v68, 97
  %v552 = vpop.permute.xlu0 %551
  %vm553 = vcmask 793600
  %v554 = vsel %vm553, %v540, %v542
  %v555 = vsel %vm553, %v542, %v544
  %v556 = vsel %vm553, %v544, %v546
  %v557 = vsel %vm553, %v546, %v548
  %v558 = vsel %vm553, %v548, %v550
  %v559 = vsel %vm553, %v550, %v552
  %560 = vrot.lane.b32.xlu0 %v61, 31
  %v561 = vpop.permute.xlu0 %560
  %562 = vrot.lane.b32.xlu0 %v62, 31
  %v563 = vpop.permute.xlu0 %562
  %564 = vrot.lane.b32.xlu0 %v63, 31
  %v565 = vpop.permute.xlu0 %564
  %566 = vrot.lane.b32.xlu0 %v64, 31
  %v567 = vpop.permute.xlu0 %566
  %568 = vrot.lane.b32.xlu0 %v65, 31
  %v569 = vpop.permute.xlu0 %568
  %570 = vrot.lane.b32.xlu0 %v66, 31
  %v571 = vpop.permute.xlu0 %570
  %572 = vrot.lane.b32.xlu0 %v67, 31
  %v573 = vpop.permute.xlu0 %572
  %574 = vrot.lane.b32.xlu0 %v68, 31
  %v575 = vpop.permute.xlu0 %574
  %576 = vrot.lane.b32.xlu0 %v91, 31
  %v577 = vpop.permute.xlu0 %576
  %578 = vrot.lane.b32.xlu0 %v92, 31
  %v579 = vpop.permute.xlu0 %578
  %580 = vrot.lane.b32.xlu0 %v93, 31
  %v581 = vpop.permute.xlu0 %580
  %582 = vrot.lane.b32.xlu0 %v94, 31
  %v583 = vpop.permute.xlu0 %582
  %584 = vrot.lane.b32.xlu0 %v95, 31
  %v585 = vpop.permute.xlu0 %584
  %586 = vrot.lane.b32.xlu0 %v96, 31
  %v587 = vpop.permute.xlu0 %586
  %588 = vrot.lane.b32.xlu0 %v532, 31
  %v589 = vpop.permute.xlu0 %588
  %590 = vrot.lane.b32.xlu0 %v531, 31
  %v591 = vpop.permute.xlu0 %590
  %592 = vrot.lane.b32.xlu0 %v119, 31
  %v593 = vpop.permute.xlu0 %592
  %594 = vrot.lane.b32.xlu0 %v120, 31
  %v595 = vpop.permute.xlu0 %594
  %596 = vrot.lane.b32.xlu0 %v121, 31
  %v597 = vpop.permute.xlu0 %596
  %598 = vrot.lane.b32.xlu0 %v122, 31
  %v599 = vpop.permute.xlu0 %598
  %600 = vrot.lane.b32.xlu0 %v123, 31
  %v601 = vpop.permute.xlu0 %600
  %602 = vrot.lane.b32.xlu0 %v124, 31
  %v603 = vpop.permute.xlu0 %602
  %604 = vrot.lane.b32.xlu0 %v535, 31
  %v605 = vpop.permute.xlu0 %604
  %606 = vrot.lane.b32.xlu0 %v534, 31
  %v607 = vpop.permute.xlu0 %606
  %608 = vrot.lane.b32.xlu0 %v147, 31
  %v609 = vpop.permute.xlu0 %608
  %610 = vrot.lane.b32.xlu0 %v148, 31
  %v611 = vpop.permute.xlu0 %610
  %612 = vrot.lane.b32.xlu0 %v149, 31
  %v613 = vpop.permute.xlu0 %612
  %614 = vrot.lane.b32.xlu0 %v150, 31
  %v615 = vpop.permute.xlu0 %614
  %616 = vrot.lane.b32.xlu0 %v151, 31
  %v617 = vpop.permute.xlu0 %616
  %618 = vrot.lane.b32.xlu0 %v152, 31
  %v619 = vpop.permute.xlu0 %618
  %620 = vrot.lane.b32.xlu0 %v538, 31
  %v621 = vpop.permute.xlu0 %620
  %622 = vrot.lane.b32.xlu0 %v537, 31
  %v623 = vpop.permute.xlu0 %622
  %624 = vrot.lane.b32.xlu0 %v540, 31
  %v625 = vpop.permute.xlu0 %624
  %626 = vrot.lane.b32.xlu0 %v554, 31
  %v627 = vpop.permute.xlu0 %626
  %628 = vrot.lane.b32.xlu0 %v555, 31
  %v629 = vpop.permute.xlu0 %628
  %630 = vrot.lane.b32.xlu0 %v556, 31
  %v631 = vpop.permute.xlu0 %630
  %632 = vrot.lane.b32.xlu0 %v557, 31
  %v633 = vpop.permute.xlu0 %632
  %634 = vrot.lane.b32.xlu0 %v558, 31
  %v635 = vpop.permute.xlu0 %634
  %636 = vrot.lane.b32.xlu0 %v559, 31
  %v637 = vpop.permute.xlu0 %636
  %638 = vrot.lane.b32.xlu0 %v552, 31
  %v639 = vpop.permute.xlu0 %638
  %640 = vrot.lane.b32.xlu0 %v192, 31
  %v641 = vpop.permute.xlu0 %640
  %642 = vrot.lane.b32.xlu0 %v207, 31
  %v643 = vpop.permute.xlu0 %642
  %644 = vrot.lane.b32.xlu0 %v208, 31
  %v645 = vpop.permute.xlu0 %644
  %646 = vrot.lane.b32.xlu0 %v209, 31
  %v647 = vpop.permute.xlu0 %646
  %648 = vrot.lane.b32.xlu0 %v210, 31
  %v649 = vpop.permute.xlu0 %648
  %650 = vrot.lane.b32.xlu0 %v211, 31
  %v651 = vpop.permute.xlu0 %650
  %652 = vrot.lane.b32.xlu0 %v212, 31
  %v653 = vpop.permute.xlu0 %652
  %654 = vrot.lane.b32.xlu0 %v204, 31
  %v655 = vpop.permute.xlu0 %654
  %656 = vrot.lane.b32.xlu0 %v223, 31
  %v657 = vpop.permute.xlu0 %656
  %658 = vrot.lane.b32.xlu0 %v238, 31
  %v659 = vpop.permute.xlu0 %658
  %660 = vrot.lane.b32.xlu0 %v239, 31
  %v661 = vpop.permute.xlu0 %660
  %662 = vrot.lane.b32.xlu0 %v240, 31
  %v663 = vpop.permute.xlu0 %662
  %664 = vrot.lane.b32.xlu0 %v241, 31
  %v665 = vpop.permute.xlu0 %664
  %666 = vrot.lane.b32.xlu0 %v242, 31
  %v667 = vpop.permute.xlu0 %666
  %668 = vrot.lane.b32.xlu0 %v243, 31
  %v669 = vpop.permute.xlu0 %668
  %670 = vrot.lane.b32.xlu0 %v235, 31
  %v671 = vpop.permute.xlu0 %670
  %672 = vrot.lane.b32.xlu0 %v254, 31
  %v673 = vpop.permute.xlu0 %672
  %674 = vrot.lane.b32.xlu0 %v269, 31
  %v675 = vpop.permute.xlu0 %674
  %676 = vrot.lane.b32.xlu0 %v270, 31
  %v677 = vpop.permute.xlu0 %676
  %678 = vrot.lane.b32.xlu0 %v271, 31
  %v679 = vpop.permute.xlu0 %678
  %680 = vrot.lane.b32.xlu0 %v272, 31
  %v681 = vpop.permute.xlu0 %680
  %682 = vrot.lane.b32.xlu0 %v273, 31
  %v683 = vpop.permute.xlu0 %682
  %684 = vrot.lane.b32.xlu0 %v274, 31
  %v685 = vpop.permute.xlu0 %684
  %686 = vrot.lane.b32.xlu0 %v266, 31
  %v687 = vpop.permute.xlu0 %686
  %688 = vrot.lane.b32.xlu0 %v285, 31
  %v689 = vpop.permute.xlu0 %688
  %690 = vrot.lane.b32.xlu0 %v300, 31
  %v691 = vpop.permute.xlu0 %690
  %692 = vrot.lane.b32.xlu0 %v301, 31
  %v693 = vpop.permute.xlu0 %692
  %694 = vrot.lane.b32.xlu0 %v302, 31
  %v695 = vpop.permute.xlu0 %694
  %696 = vrot.lane.b32.xlu0 %v303, 31
  %v697 = vpop.permute.xlu0 %696
  %698 = vrot.lane.b32.xlu0 %v304, 31
  %v699 = vpop.permute.xlu0 %698
  %700 = vrot.lane.b32.xlu0 %v305, 31
  %v701 = vpop.permute.xlu0 %700
  %702 = vrot.lane.b32.xlu0 %v297, 31
  %v703 = vpop.permute.xlu0 %702
  %vm704 = vcmask 252928
  %v705 = vsel %vm704, %v561, %v563
  %v706 = vsel %vm704, %v563, %v565
  %v707 = vsel %vm704, %v565, %v567
  %v708 = vsel %vm704, %v567, %v569
  %v709 = vsel %vm704, %v569, %v571
  %v710 = vsel %vm704, %v571, %v573
  %v711 = vsel %vm704, %v573, %v575
  %v712 = vsel %vm704, %v577, %v579
  %v713 = vsel %vm704, %v579, %v581
  %v714 = vsel %vm704, %v581, %v583
  %v715 = vsel %vm704, %v583, %v585
  %v716 = vsel %vm704, %v585, %v587
  %v717 = vsel %vm704, %v587, %v589
  %v718 = vsel %vm704, %v589, %v591
  %v719 = vsel %vm704, %v593, %v595
  %v720 = vsel %vm704, %v595, %v597
  %v721 = vsel %vm704, %v597, %v599
  %v722 = vsel %vm704, %v599, %v601
  %v723 = vsel %vm704, %v601, %v603
  %v724 = vsel %vm704, %v603, %v605
  %v725 = vsel %vm704, %v605, %v607
  %v726 = vsel %vm704, %v609, %v611
  %v727 = vsel %vm704, %v611, %v613
  %v728 = vsel %vm704, %v613, %v615
  %v729 = vsel %vm704, %v615, %v617
  %v730 = vsel %vm704, %v617, %v619
  %v731 = vsel %vm704, %v619, %v621
  %v732 = vsel %vm704, %v621, %v623
  %v733 = vsel %vm704, %v625, %v627
  %v734 = vsel %vm704, %v627, %v629
  %v735 = vsel %vm704, %v629, %v631
  %v736 = vsel %vm704, %v631, %v633
  %v737 = vsel %vm704, %v633, %v635
  %v738 = vsel %vm704, %v635, %v637
  %v739 = vsel %vm704, %v637, %v639
  %v740 = vsel %vm704, %v641, %v643
  %v741 = vsel %vm704, %v643, %v645
  %v742 = vsel %vm704, %v645, %v647
  %v743 = vsel %vm704, %v647, %v649
  %v744 = vsel %vm704, %v649, %v651
  %v745 = vsel %vm704, %v651, %v653
  %v746 = vsel %vm704, %v653, %v655
  %v747 = vsel %vm704, %v657, %v659
  %v748 = vsel %vm704, %v659, %v661
  %v749 = vsel %vm704, %v661, %v663
  %v750 = vsel %vm704, %v663, %v665
  %v751 = vsel %vm704, %v665, %v667
  %v752 = vsel %vm704, %v667, %v669
  %v753 = vsel %vm704, %v669, %v671
  %v754 = vsel %vm704, %v673, %v675
  %v755 = vsel %vm704, %v675, %v677
  %v756 = vsel %vm704, %v677, %v679
  %v757 = vsel %vm704, %v679, %v681
  %v758 = vsel %vm704, %v681, %v683
  %v759 = vsel %vm704, %v683, %v685
  %v760 = vsel %vm704, %v685, %v687
  %v761 = vsel %vm704, %v689, %v691
  %v762 = vsel %vm704, %v691, %v693
  %v763 = vsel %vm704, %v693, %v695
  %v764 = vsel %vm704, %v695, %v697
  %v765 = vsel %vm704, %v697, %v699
  %v766 = vsel %vm704, %v699, %v701
  %v767 = vsel %vm704, %v701, %v703
  %v831 = vld [vmem:[%s1] sm:$0xff]
  %v832 = vld [vmem:[%s1 + $0x8] sm:$0xff]
  %v833 = vld [vmem:[%s1 + $0x10] sm:$0xff]
  %v834 = vld [vmem:[%s1 + $0x18] sm:$0xff]
  %v835 = vld [vmem:[%s1 + $0x20] sm:$0xff]
  %v836 = vld [vmem:[%s1 + $0x28] sm:$0xff]
  %v837 = vld [vmem:[%s1 + $0x30] sm:$0xff]
  %v838 = vld [vmem:[%s1 + $0x38] sm:$0xff]
  %v839 = vld [vmem:[%s1 + $0x40] sm:$0xff]
  %v840 = vld [vmem:[%s1 + $0x48] sm:$0xff]
  %v841 = vld [vmem:[%s1 + $0x50] sm:$0xff]
  %v842 = vld [vmem:[%s1 + $0x58] sm:$0xff]
  %v843 = vld [vmem:[%s1 + $0x60] sm:$0xff]
  %v844 = vld [vmem:[%s1 + $0x68] sm:$0xff]
  %v845 = vld [vmem:[%s1 + $0x70] sm:$0xff]
  %v846 = vld [vmem:[%s1 + $0x78] sm:$0xff]
  %v847 = vld [vmem:[%s1 + $0x80] sm:$0xff]
  %v848 = vld [vmem:[%s1 + $0x88] sm:$0xff]
  %v849 = vld [vmem:[%s1 + $0x90] sm:$0xff]
  %v850 = vld [vmem:[%s1 + $0x98] sm:$0xff]
  %v851 = vld [vmem:[%s1 + $0xa0] sm:$0xff]
  %v852 = vld [vmem:[%s1 + $0xa8] sm:$0xff]
  %v853 = vld [vmem:[%s1 + $0xb0] sm:$0xff]
  %v854 = vld [vmem:[%s1 + $0xb8] sm:$0xff]
  %v855 = vld [vmem:[%s2] sm:$0xff]
  %v856 = vld [vmem:[%s2 + $0x8] sm:$0xff]
  %v857 = vld [vmem:[%s2 + $0x10] sm:$0xff]
  %v858 = vld [vmem:[%s2 + $0x18] sm:$0xff]
  %v859 = vld [vmem:[%s2 + $0x20] sm:$0xff]
  %v860 = vld [vmem:[%s2 + $0x28] sm:$0xff]
  %v861 = vld [vmem:[%s2 + $0x30] sm:$0xff]
  %v862 = vld [vmem:[%s2 + $0x38] sm:$0xff]
  %v863 = vld [vmem:[%s2 + $0x40] sm:$0xff]
  %v864 = vld [vmem:[%s2 + $0x48] sm:$0xff]
  %v865 = vld [vmem:[%s2 + $0x50] sm:$0xff]
  %v866 = vld [vmem:[%s2 + $0x58] sm:$0xff]
  %868 = vset.pattern.permute.xlu0 0
  %869 = vperm.xlu0 %868, %v855
  %v870 = vpop.permute.xlu0 %869
  %873 = vset.pattern.permute.xlu0 0
  %874 = vperm.xlu0 %873, %v856
  %v875 = vpop.permute.xlu0 %874
  %878 = vset.pattern.permute.xlu0 0
  %879 = vperm.xlu0 %878, %v857
  %v880 = vpop.permute.xlu0 %879
  %883 = vset.pattern.permute.xlu0 0
  %884 = vperm.xlu0 %883, %v858
  %v885 = vpop.permute.xlu0 %884
  %888 = vset.pattern.permute.xlu0 0
  %889 = vperm.xlu0 %888, %v859
  %v890 = vpop.permute.xlu0 %889
  %893 = vset.pattern.permute.xlu0 0
  %894 = vperm.xlu0 %893, %v860
  %v895 = vpop.permute.xlu0 %894
  %898 = vset.pattern.permute.xlu0 0
  %899 = vperm.xlu0 %898, %v861
  %v900 = vpop.permute.xlu0 %899
  %903 = vset.pattern.permute.xlu0 0
  %904 = vperm.xlu0 %903, %v862
  %v905 = vpop.permute.xlu0 %904
  %908 = vset.pattern.permute.xlu0 0
  %909 = vperm.xlu0 %908, %v863
  %v910 = vpop.permute.xlu0 %909
  %913 = vset.pattern.permute.xlu0 0
  %914 = vperm.xlu0 %913, %v864
  %v915 = vpop.permute.xlu0 %914
  %918 = vset.pattern.permute.xlu0 0
  %919 = vperm.xlu0 %918, %v865
  %v920 = vpop.permute.xlu0 %919
  %923 = vset.pattern.permute.xlu0 0
  %924 = vperm.xlu0 %923, %v866
  %v925 = vpop.permute.xlu0 %924
  %v951 = vunpack.c.l.b16 %v831
  %v952 = vunpack.c.h.b16 %v831
  %v953 = vunpack.c.l.b16 %v832
  %v954 = vunpack.c.h.b16 %v832
  %v955 = vunpack.c.l.b16 %v833
  %v956 = vunpack.c.h.b16 %v833
  %v957 = vunpack.c.l.b16 %v834
  %v958 = vunpack.c.h.b16 %v834
  %v959 = vunpack.c.l.b16 %v835
  %v960 = vunpack.c.h.b16 %v835
  %v961 = vunpack.c.l.b16 %v836
  %v962 = vunpack.c.h.b16 %v836
  %v963 = vunpack.c.l.b16 %v837
  %v964 = vunpack.c.h.b16 %v837
  %v965 = vunpack.c.l.b16 %v838
  %v966 = vunpack.c.h.b16 %v838
  %v967 = vunpack.c.l.b16 %v839
  %v968 = vunpack.c.h.b16 %v839
  %v969 = vunpack.c.l.b16 %v840
  %v970 = vunpack.c.h.b16 %v840
  %v971 = vunpack.c.l.b16 %v841
  %v972 = vunpack.c.h.b16 %v841
  %v973 = vunpack.c.l.b16 %v842
  %v974 = vunpack.c.h.b16 %v842
  %v975 = vunpack.c.l.b16 %v843
  %v976 = vunpack.c.h.b16 %v843
  %v977 = vunpack.c.l.b16 %v844
  %v978 = vunpack.c.h.b16 %v844
  %v979 = vunpack.c.l.b16 %v845
  %v980 = vunpack.c.h.b16 %v845
  %v981 = vunpack.c.l.b16 %v846
  %v982 = vunpack.c.h.b16 %v846
  %v983 = vunpack.c.l.b16 %v847
  %v984 = vunpack.c.h.b16 %v847
  %v985 = vunpack.c.l.b16 %v848
  %v986 = vunpack.c.h.b16 %v848
  %v987 = vunpack.c.l.b16 %v849
  %v988 = vunpack.c.h.b16 %v849
  %v989 = vunpack.c.l.b16 %v850
  %v990 = vunpack.c.h.b16 %v850
  %v991 = vunpack.c.l.b16 %v851
  %v992 = vunpack.c.h.b16 %v851
  %v993 = vunpack.c.l.b16 %v852
  %v994 = vunpack.c.h.b16 %v852
  %v995 = vunpack.c.l.b16 %v853
  %v996 = vunpack.c.h.b16 %v853
  %v997 = vunpack.c.l.b16 %v854
  %v998 = vunpack.c.h.b16 %v854
  %v999 = vpack.c.b16 %v955, %v951
  %v1000 = vpack.c.b16 %v956, %v952
  %v1001 = vpack.c.b16 %v957, %v953
  %v1002 = vpack.c.b16 %v958, %v954
  %v1003 = vpack.c.b16 %v963, %v959
  %v1004 = vpack.c.b16 %v964, %v960
  %v1005 = vpack.c.b16 %v965, %v961
  %v1006 = vpack.c.b16 %v966, %v962
  %v1007 = vpack.c.b16 %v971, %v967
  %v1008 = vpack.c.b16 %v972, %v968
  %v1009 = vpack.c.b16 %v973, %v969
  %v1010 = vpack.c.b16 %v974, %v970
  %v1011 = vpack.c.b16 %v979, %v975
  %v1012 = vpack.c.b16 %v980, %v976
  %v1013 = vpack.c.b16 %v981, %v977
  %v1014 = vpack.c.b16 %v982, %v978
  %v1015 = vpack.c.b16 %v987, %v983
  %v1016 = vpack.c.b16 %v988, %v984
  %v1017 = vpack.c.b16 %v989, %v985
  %v1018 = vpack.c.b16 %v990, %v986
  %v1019 = vpack.c.b16 %v995, %v991
  %v1020 = vpack.c.b16 %v996, %v992
  %v1021 = vpack.c.b16 %v997, %v993
  %v1022 = vpack.c.b16 %v998, %v994
  %vm1041 = vcmask 130048
  %v1043 = vsel %vm1041, %v1002, 0
  %v1046 = vsel %vm1041, %v1006, 0
  %v1049 = vsel %vm1041, %v1010, 0
  %v1052 = vsel %vm1041, %v1014, 0
  %v1055 = vsel %vm1041, %v1018, 0
  %v1058 = vsel %vm1041, %v1022, 0
  %1060 = vmatprep.subr.bf16.mxu0 %v269
  %1061 = vmatpush1.bf16.msra.mxu0 %v268
  %1062 = vmatprep.subr.bf16.mxu0 %v238
  %1063 = vmatpush1.bf16.msra.mxu0 %v237
  %1064 = vmatprep.subr.bf16.mxu0 %v207
  %1065 = vmatpush1.bf16.msra.mxu0 %v206
  %1066 = vmatprep.subr.bf16.mxu0 %v176
  %1067 = vmatpush1.bf16.msra.mxu0 %v175
  %1068 = vmatprep.subr.bf16.mxu0 %v148
  %1069 = vmatpush1.bf16.msra.mxu0 %v147
  %1070 = vmatprep.subr.bf16.mxu0 %v120
  %1071 = vmatpush1.bf16.msra.mxu0 %v119
  %1072 = vmatprep.subr.bf16.mxu0 %v92
  %1073 = vmatpush1.bf16.msra.mxu0 %v91
  %1074 = vmatprep.subr.bf16.mxu0 %v62
  %1075 = vmatpush1.bf16.msra.mxu0 %v61
  %1076 = vmatprep.subr.bf16.mxu0 %v517
  %1077 = vmatpush2.bf16.msra.mxu0 %v516
  %1078 = vmatprep.subr.bf16.mxu0 %v486
  %1079 = vmatpush2.bf16.msra.mxu0 %v485
  %1080 = vmatprep.subr.bf16.mxu0 %v455
  %1081 = vmatpush2.bf16.msra.mxu0 %v454
  %1082 = vmatprep.subr.bf16.mxu0 %v424
  %1083 = vmatpush2.bf16.msra.mxu0 %v423
  %1084 = vmatprep.subr.bf16.mxu0 %v393
  %1085 = vmatpush2.bf16.msra.mxu0 %v392
  %1086 = vmatprep.subr.bf16.mxu0 %v362
  %1087 = vmatpush2.bf16.msra.mxu0 %v361
  %1088 = vmatprep.subr.bf16.mxu0 %v331
  %1089 = vmatpush2.bf16.msra.mxu0 %v330
  %1090 = vmatprep.subr.bf16.mxu0 %v300
  %1091 = vmatpush2.bf16.msra.mxu0 %v299
  %1092 = vmatprep.mubr.bf16.mxu0 %v1000
  %1093 = vmatmul.mubr.bf16.gmra.mxu0 %v999
  %v1094 = vpop.f32.mrf.mxu0
  %v1095 = vadd.f32 %v870, %v1094
  %v1096 = vpop.f32.mrf.mxu0
  %v1097 = vadd.f32 %v870, %v1096
  %v1098 = vpop.f32.mrf.mxu0
  %v1099 = vadd.f32 %v875, %v1098
  %v1100 = vpop.f32.mrf.mxu0
  %v1101 = vadd.f32 %v875, %v1100
  %1102 = vmatprep.mubr.bf16.mxu0 %v1004
  %1103 = vmatmul.mubr.bf16.gmra.mxu0 %v1003
  %v1104 = vpop.f32.mrf.mxu0
  %v1105 = vadd.f32 %v880, %v1104
  %v1106 = vpop.f32.mrf.mxu0
  %v1107 = vadd.f32 %v880, %v1106
  %v1108 = vpop.f32.mrf.mxu0
  %v1109 = vadd.f32 %v885, %v1108
  %v1110 = vpop.f32.mrf.mxu0
  %v1111 = vadd.f32 %v885, %v1110
  %1112 = vmatprep.mubr.bf16.mxu0 %v1008
  %1113 = vmatmul.mubr.bf16.gmra.mxu0 %v1007
  %v1114 = vpop.f32.mrf.mxu0
  %v1115 = vadd.f32 %v890, %v1114
  %v1116 = vpop.f32.mrf.mxu0
  %v1117 = vadd.f32 %v890, %v1116
  %v1118 = vpop.f32.mrf.mxu0
  %v1119 = vadd.f32 %v895, %v1118
  %v1120 = vpop.f32.mrf.mxu0
  %v1121 = vadd.f32 %v895, %v1120
  %1122 = vmatprep.mubr.bf16.mxu0 %v1012
  %1123 = vmatmul.mubr.bf16.gmra.mxu0 %v1011
  %v1124 = vpop.f32.mrf.mxu0
  %v1125 = vadd.f32 %v900, %v1124
  %v1126 = vpop.f32.mrf.mxu0
  %v1127 = vadd.f32 %v900, %v1126
  %v1128 = vpop.f32.mrf.mxu0
  %v1129 = vadd.f32 %v905, %v1128
  %v1130 = vpop.f32.mrf.mxu0
  %v1131 = vadd.f32 %v905, %v1130
  %1132 = vmatprep.mubr.bf16.mxu0 %v1016
  %1133 = vmatmul.mubr.bf16.gmra.mxu0 %v1015
  %v1134 = vpop.f32.mrf.mxu0
  %v1135 = vadd.f32 %v910, %v1134
  %v1136 = vpop.f32.mrf.mxu0
  %v1137 = vadd.f32 %v910, %v1136
  %v1138 = vpop.f32.mrf.mxu0
  %v1139 = vadd.f32 %v915, %v1138
  %v1140 = vpop.f32.mrf.mxu0
  %v1141 = vadd.f32 %v915, %v1140
  %1142 = vmatprep.mubr.bf16.mxu0 %v1020
  %1143 = vmatmul.mubr.bf16.gmra.mxu0 %v1019
  %v1144 = vpop.f32.mrf.mxu0
  %v1145 = vadd.f32 %v920, %v1144
  %v1146 = vpop.f32.mrf.mxu0
  %v1147 = vadd.f32 %v920, %v1146
  %v1148 = vpop.f32.mrf.mxu0
  %v1149 = vadd.f32 %v925, %v1148
  %v1150 = vpop.f32.mrf.mxu0
  %v1151 = vadd.f32 %v925, %v1150
  %1152 = vdwg.mxu0
  %1153 = vmatprep.subr.bf16.mxu0 %v755
  %1154 = vmatpush1.bf16.msra.mxu0 %v754
  %1155 = vmatprep.subr.bf16.mxu0 %v748
  %1156 = vmatpush1.bf16.msra.mxu0 %v747
  %1157 = vmatprep.subr.bf16.mxu0 %v741
  %1158 = vmatpush1.bf16.msra.mxu0 %v740
  %1159 = vmatprep.subr.bf16.mxu0 %v734
  %1160 = vmatpush1.bf16.msra.mxu0 %v733
  %1161 = vmatprep.subr.bf16.mxu0 %v727
  %1162 = vmatpush1.bf16.msra.mxu0 %v726
  %1163 = vmatprep.subr.bf16.mxu0 %v720
  %1164 = vmatpush1.bf16.msra.mxu0 %v719
  %1165 = vmatprep.subr.bf16.mxu0 %v713
  %1166 = vmatpush1.bf16.msra.mxu0 %v712
  %1167 = vmatprep.subr.bf16.mxu0 %v706
  %1168 = vmatpush1.bf16.msra.mxu0 %v705
  %1169 = vmatprep.subr.bf16.mxu0 0
  %1170 = vmatpush2.bf16.msra.mxu0 0
  %1171 = vmatprep.subr.bf16.mxu0 0
  %1172 = vmatpush2.bf16.msra.mxu0 0
  %1173 = vmatprep.subr.bf16.mxu0 0
  %1174 = vmatpush2.bf16.msra.mxu0 0
  %1175 = vmatprep.subr.bf16.mxu0 0
  %1176 = vmatpush2.bf16.msra.mxu0 0
  %1177 = vmatprep.subr.bf16.mxu0 0
  %1178 = vmatpush2.bf16.msra.mxu0 0
  %1179 = vmatprep.subr.bf16.mxu0 0
  %1180 = vmatpush2.bf16.msra.mxu0 0
  %1181 = vmatprep.subr.bf16.mxu0 0
  %1182 = vmatpush2.bf16.msra.mxu0 0
  %1183 = vmatprep.subr.bf16.mxu0 %v762
  %1184 = vmatpush2.bf16.msra.mxu0 %v761
  %1185 = vmatprep.mubr.bf16.mxu0 %v1043
  %1186 = vmatmul.mubr.bf16.gmra.mxu0 %v1001
  %v1187 = vpop.f32.mrf.mxu0
  %v1188 = vadd.f32 %v1095, %v1187
  %v1189 = vpop.f32.mrf.mxu0
  %v1190 = vadd.f32 %v1097, %v1189
  %v1191 = vpop.f32.mrf.mxu0
  %v1192 = vadd.f32 %v1099, %v1191
  %v1193 = vpop.f32.mrf.mxu0
  %v1194 = vadd.f32 %v1101, %v1193
  %1195 = vmatprep.mubr.bf16.mxu0 %v1046
  %1196 = vmatmul.mubr.bf16.gmra.mxu0 %v1005
  %v1197 = vpop.f32.mrf.mxu0
  %v1198 = vadd.f32 %v1105, %v1197
  %v1199 = vpop.f32.mrf.mxu0
  %v1200 = vadd.f32 %v1107, %v1199
  %v1201 = vpop.f32.mrf.mxu0
  %v1202 = vadd.f32 %v1109, %v1201
  %v1203 = vpop.f32.mrf.mxu0
  %v1204 = vadd.f32 %v1111, %v1203
  %1205 = vmatprep.mubr.bf16.mxu0 %v1049
  %1206 = vmatmul.mubr.bf16.gmra.mxu0 %v1009
  %v1207 = vpop.f32.mrf.mxu0
  %v1208 = vadd.f32 %v1115, %v1207
  %v1209 = vpop.f32.mrf.mxu0
  %v1210 = vadd.f32 %v1117, %v1209
  %v1211 = vpop.f32.mrf.mxu0
  %v1212 = vadd.f32 %v1119, %v1211
  %v1213 = vpop.f32.mrf.mxu0
  %v1214 = vadd.f32 %v1121, %v1213
  %1215 = vmatprep.mubr.bf16.mxu0 %v1052
  %1216 = vmatmul.mubr.bf16.gmra.mxu0 %v1013
  %v1217 = vpop.f32.mrf.mxu0
  %v1218 = vadd.f32 %v1125, %v1217
  %v1219 = vpop.f32.mrf.mxu0
  %v1220 = vadd.f32 %v1127, %v1219
  %v1221 = vpop.f32.mrf.mxu0
  %v1222 = vadd.f32 %v1129, %v1221
  %v1223 = vpop.f32.mrf.mxu0
  %v1224 = vadd.f32 %v1131, %v1223
  %1225 = vmatprep.mubr.bf16.mxu0 %v1055
  %1226 = vmatmul.mubr.bf16.gmra.mxu0 %v1017
  %v1227 = vpop.f32.mrf.mxu0
  %v1228 = vadd.f32 %v1135, %v1227
  %v1229 = vpop.f32.mrf.mxu0
  %v1230 = vadd.f32 %v1137, %v1229
  %v1231 = vpop.f32.mrf.mxu0
  %v1232 = vadd.f32 %v1139, %v1231
  %v1233 = vpop.f32.mrf.mxu0
  %v1234 = vadd.f32 %v1141, %v1233
  %1235 = vmatprep.mubr.bf16.mxu0 %v1058
  %1236 = vmatmul.mubr.bf16.gmra.mxu0 %v1021
  %v1237 = vpop.f32.mrf.mxu0
  %v1238 = vadd.f32 %v1145, %v1237
  %v1239 = vpop.f32.mrf.mxu0
  %v1240 = vadd.f32 %v1147, %v1239
  %v1241 = vpop.f32.mrf.mxu0
  %v1242 = vadd.f32 %v1149, %v1241
  %v1243 = vpop.f32.mrf.mxu0
  %v1244 = vadd.f32 %v1151, %v1243
  %1245 = vdwg.mxu0
  %1246 = vmatprep.subr.bf16.mxu0 %v271
  %1247 = vmatpush1.bf16.msra.mxu0 %v270
  %1248 = vmatprep.subr.bf16.mxu0 %v240
  %1249 = vmatpush1.bf16.msra.mxu0 %v239
  %1250 = vmatprep.subr.bf16.mxu0 %v209
  %1251 = vmatpush1.bf16.msra.mxu0 %v208
  %1252 = vmatprep.subr.bf16.mxu0 %v178
  %1253 = vmatpush1.bf16.msra.mxu0 %v177
  %1254 = vmatprep.subr.bf16.mxu0 %v150
  %1255 = vmatpush1.bf16.msra.mxu0 %v149
  %1256 = vmatprep.subr.bf16.mxu0 %v122
  %1257 = vmatpush1.bf16.msra.mxu0 %v121
  %1258 = vmatprep.subr.bf16.mxu0 %v94
  %1259 = vmatpush1.bf16.msra.mxu0 %v93
  %1260 = vmatprep.subr.bf16.mxu0 %v64
  %1261 = vmatpush1.bf16.msra.mxu0 %v63
  %1262 = vmatprep.subr.bf16.mxu0 %v519
  %1263 = vmatpush2.bf16.msra.mxu0 %v518
  %1264 = vmatprep.subr.bf16.mxu0 %v488
  %1265 = vmatpush2.bf16.msra.mxu0 %v487
  %1266 = vmatprep.subr.bf16.mxu0 %v457
  %1267 = vmatpush2.bf16.msra.mxu0 %v456
  %1268 = vmatprep.subr.bf16.mxu0 %v426
  %1269 = vmatpush2.bf16.msra.mxu0 %v425
  %1270 = vmatprep.subr.bf16.mxu0 %v395
  %1271 = vmatpush2.bf16.msra.mxu0 %v394
  %1272 = vmatprep.subr.bf16.mxu0 %v364
  %1273 = vmatpush2.bf16.msra.mxu0 %v363
  %1274 = vmatprep.subr.bf16.mxu0 %v333
  %1275 = vmatpush2.bf16.msra.mxu0 %v332
  %1276 = vmatprep.subr.bf16.mxu0 %v302
  %1277 = vmatpush2.bf16.msra.mxu0 %v301
  %1278 = vmatprep.mubr.bf16.mxu0 %v1000
  %1279 = vmatmul.mubr.bf16.gmra.mxu0 %v999
  %v1280 = vpop.f32.mrf.mxu0
  %v1281 = vadd.f32 %v870, %v1280
  %v1282 = vpop.f32.mrf.mxu0
  %v1283 = vadd.f32 %v870, %v1282
  %v1284 = vpop.f32.mrf.mxu0
  %v1285 = vadd.f32 %v875, %v1284
  %v1286 = vpop.f32.mrf.mxu0
  %v1287 = vadd.f32 %v875, %v1286
  %1288 = vmatprep.mubr.bf16.mxu0 %v1004
  %1289 = vmatmul.mubr.bf16.gmra.mxu0 %v1003
  %v1290 = vpop.f32.mrf.mxu0
  %v1291 = vadd.f32 %v880, %v1290
  %v1292 = vpop.f32.mrf.mxu0
  %v1293 = vadd.f32 %v880, %v1292
  %v1294 = vpop.f32.mrf.mxu0
  %v1295 = vadd.f32 %v885, %v1294
  %v1296 = vpop.f32.mrf.mxu0
  %v1297 = vadd.f32 %v885, %v1296
  %1298 = vmatprep.mubr.bf16.mxu0 %v1008
  %1299 = vmatmul.mubr.bf16.gmra.mxu0 %v1007
  %v1300 = vpop.f32.mrf.mxu0
  %v1301 = vadd.f32 %v890, %v1300
  %v1302 = vpop.f32.mrf.mxu0
  %v1303 = vadd.f32 %v890, %v1302
  %v1304 = vpop.f32.mrf.mxu0
  %v1305 = vadd.f32 %v895, %v1304
  %v1306 = vpop.f32.mrf.mxu0
  %v1307 = vadd.f32 %v895, %v1306
  %1308 = vmatprep.mubr.bf16.mxu0 %v1012
  %1309 = vmatmul.mubr.bf16.gmra.mxu0 %v1011
  %v1310 = vpop.f32.mrf.mxu0
  %v1311 = vadd.f32 %v900, %v1310
  %v1312 = vpop.f32.mrf.mxu0
  %v1313 = vadd.f32 %v900, %v1312
  %v1314 = vpop.f32.mrf.mxu0
  %v1315 = vadd.f32 %v905, %v1314
  %v1316 = vpop.f32.mrf.mxu0
  %v1317 = vadd.f32 %v905, %v1316
  %1318 = vmatprep.mubr.bf16.mxu0 %v1016
  %1319 = vmatmul.mubr.bf16.gmra.mxu0 %v1015
  %v1320 = vpop.f32.mrf.mxu0
  %v1321 = vadd.f32 %v910, %v1320
  %v1322 = vpop.f32.mrf.mxu0
  %v1323 = vadd.f32 %v910, %v1322
  %v1324 = vpop.f32.mrf.mxu0
  %v1325 = vadd.f32 %v915, %v1324
  %v1326 = vpop.f32.mrf.mxu0
  %v1327 = vadd.f32 %v915, %v1326
  %1328 = vmatprep.mubr.bf16.mxu0 %v1020
  %1329 = vmatmul.mubr.bf16.gmra.mxu0 %v1019
  %v1330 = vpop.f32.mrf.mxu0
  %v1331 = vadd.f32 %v920, %v1330
  %v1332 = vpop.f32.mrf.mxu0
  %v1333 = vadd.f32 %v920, %v1332
  %v1334 = vpop.f32.mrf.mxu0
  %v1335 = vadd.f32 %v925, %v1334
  %v1336 = vpop.f32.mrf.mxu0
  %v1337 = vadd.f32 %v925, %v1336
  %1338 = vdwg.mxu0
  %1339 = vmatprep.subr.bf16.mxu0 %v757
  %1340 = vmatpush1.bf16.msra.mxu0 %v756
  %1341 = vmatprep.subr.bf16.mxu0 %v750
  %1342 = vmatpush1.bf16.msra.mxu0 %v749
  %1343 = vmatprep.subr.bf16.mxu0 %v743
  %1344 = vmatpush1.bf16.msra.mxu0 %v742
  %1345 = vmatprep.subr.bf16.mxu0 %v736
  %1346 = vmatpush1.bf16.msra.mxu0 %v735
  %1347 = vmatprep.subr.bf16.mxu0 %v729
  %1348 = vmatpush1.bf16.msra.mxu0 %v728
  %1349 = vmatprep.subr.bf16.mxu0 %v722
  %1350 = vmatpush1.bf16.msra.mxu0 %v721
  %1351 = vmatprep.subr.bf16.mxu0 %v715
  %1352 = vmatpush1.bf16.msra.mxu0 %v714
  %1353 = vmatprep.subr.bf16.mxu0 %v708
  %1354 = vmatpush1.bf16.msra.mxu0 %v707
  %1355 = vmatprep.subr.bf16.mxu0 0
  %1356 = vmatpush2.bf16.msra.mxu0 0
  %1357 = vmatprep.subr.bf16.mxu0 0
  %1358 = vmatpush2.bf16.msra.mxu0 0
  %1359 = vmatprep.subr.bf16.mxu0 0
  %1360 = vmatpush2.bf16.msra.mxu0 0
  %1361 = vmatprep.subr.bf16.mxu0 0
  %1362 = vmatpush2.bf16.msra.mxu0 0
  %1363 = vmatprep.subr.bf16.mxu0 0
  %1364 = vmatpush2.bf16.msra.mxu0 0
  %1365 = vmatprep.subr.bf16.mxu0 0
  %1366 = vmatpush2.bf16.msra.mxu0 0
  %1367 = vmatprep.subr.bf16.mxu0 0
  %1368 = vmatpush2.bf16.msra.mxu0 0
  %1369 = vmatprep.subr.bf16.mxu0 %v764
  %1370 = vmatpush2.bf16.msra.mxu0 %v763
  %1371 = vmatprep.mubr.bf16.mxu0 %v1043
  %1372 = vmatmul.mubr.bf16.gmra.mxu0 %v1001
  %v1373 = vpop.f32.mrf.mxu0
  %v1374 = vadd.f32 %v1281, %v1373
  %v1375 = vpop.f32.mrf.mxu0
  %v1376 = vadd.f32 %v1283, %v1375
  %v1377 = vpop.f32.mrf.mxu0
  %v1378 = vadd.f32 %v1285, %v1377
  %v1379 = vpop.f32.mrf.mxu0
  %v1380 = vadd.f32 %v1287, %v1379
  %1381 = vmatprep.mubr.bf16.mxu0 %v1046
  %1382 = vmatmul.mubr.bf16.gmra.mxu0 %v1005
  %v1383 = vpop.f32.mrf.mxu0
  %v1384 = vadd.f32 %v1291, %v1383
  %v1385 = vpop.f32.mrf.mxu0
  %v1386 = vadd.f32 %v1293, %v1385
  %v1387 = vpop.f32.mrf.mxu0
  %v1388 = vadd.f32 %v1295, %v1387
  %v1389 = vpop.f32.mrf.mxu0
  %v1390 = vadd.f32 %v1297, %v1389
  %1391 = vmatprep.mubr.bf16.mxu0 %v1049
  %1392 = vmatmul.mubr.bf16.gmra.mxu0 %v1009
  %v1393 = vpop.f32.mrf.mxu0
  %v1394 = vadd.f32 %v1301, %v1393
  %v1395 = vpop.f32.mrf.mxu0
  %v1396 = vadd.f32 %v1303, %v1395
  %v1397 = vpop.f32.mrf.mxu0
  %v1398 = vadd.f32 %v1305, %v1397
  %v1399 = vpop.f32.mrf.mxu0
  %v1400 = vadd.f32 %v1307, %v1399
  %1401 = vmatprep.mubr.bf16.mxu0 %v1052
  %1402 = vmatmul.mubr.bf16.gmra.mxu0 %v1013
  %v1403 = vpop.f32.mrf.mxu0
  %v1404 = vadd.f32 %v1311, %v1403
  %v1405 = vpop.f32.mrf.mxu0
  %v1406 = vadd.f32 %v1313, %v1405
  %v1407 = vpop.f32.mrf.mxu0
  %v1408 = vadd.f32 %v1315, %v1407
  %v1409 = vpop.f32.mrf.mxu0
  %v1410 = vadd.f32 %v1317, %v1409
  %1411 = vmatprep.mubr.bf16.mxu0 %v1055
  %1412 = vmatmul.mubr.bf16.gmra.mxu0 %v1017
  %v1413 = vpop.f32.mrf.mxu0
  %v1414 = vadd.f32 %v1321, %v1413
  %v1415 = vpop.f32.mrf.mxu0
  %v1416 = vadd.f32 %v1323, %v1415
  %v1417 = vpop.f32.mrf.mxu0
  %v1418 = vadd.f32 %v1325, %v1417
  %v1419 = vpop.f32.mrf.mxu0
  %v1420 = vadd.f32 %v1327, %v1419
  %1421 = vmatprep.mubr.bf16.mxu0 %v1058
  %1422 = vmatmul.mubr.bf16.gmra.mxu0 %v1021
  %v1423 = vpop.f32.mrf.mxu0
  %v1424 = vadd.f32 %v1331, %v1423
  %v1425 = vpop.f32.mrf.mxu0
  %v1426 = vadd.f32 %v1333, %v1425
  %v1427 = vpop.f32.mrf.mxu0
  %v1428 = vadd.f32 %v1335, %v1427
  %v1429 = vpop.f32.mrf.mxu0
  %v1430 = vadd.f32 %v1337, %v1429
  %1431 = vdwg.mxu0
  %1432 = vmatprep.subr.bf16.mxu0 %v273
  %1433 = vmatpush1.bf16.msra.mxu0 %v272
  %1434 = vmatprep.subr.bf16.mxu0 %v242
  %1435 = vmatpush1.bf16.msra.mxu0 %v241
  %1436 = vmatprep.subr.bf16.mxu0 %v211
  %1437 = vmatpush1.bf16.msra.mxu0 %v210
  %1438 = vmatprep.subr.bf16.mxu0 %v180
  %1439 = vmatpush1.bf16.msra.mxu0 %v179
  %1440 = vmatprep.subr.bf16.mxu0 %v152
  %1441 = vmatpush1.bf16.msra.mxu0 %v151
  %1442 = vmatprep.subr.bf16.mxu0 %v124
  %1443 = vmatpush1.bf16.msra.mxu0 %v123
  %1444 = vmatprep.subr.bf16.mxu0 %v96
  %1445 = vmatpush1.bf16.msra.mxu0 %v95
  %1446 = vmatprep.subr.bf16.mxu0 %v66
  %1447 = vmatpush1.bf16.msra.mxu0 %v65
  %1448 = vmatprep.subr.bf16.mxu0 %v521
  %1449 = vmatpush2.bf16.msra.mxu0 %v520
  %1450 = vmatprep.subr.bf16.mxu0 %v490
  %1451 = vmatpush2.bf16.msra.mxu0 %v489
  %1452 = vmatprep.subr.bf16.mxu0 %v459
  %1453 = vmatpush2.bf16.msra.mxu0 %v458
  %1454 = vmatprep.subr.bf16.mxu0 %v428
  %1455 = vmatpush2.bf16.msra.mxu0 %v427
  %1456 = vmatprep.subr.bf16.mxu0 %v397
  %1457 = vmatpush2.bf16.msra.mxu0 %v396
  %1458 = vmatprep.subr.bf16.mxu0 %v366
  %1459 = vmatpush2.bf16.msra.mxu0 %v365
  %1460 = vmatprep.subr.bf16.mxu0 %v335
  %1461 = vmatpush2.bf16.msra.mxu0 %v334
  %1462 = vmatprep.subr.bf16.mxu0 %v304
  %1463 = vmatpush2.bf16.msra.mxu0 %v303
  %1464 = vmatprep.mubr.bf16.mxu0 %v1000
  %1465 = vmatmul.mubr.bf16.gmra.mxu0 %v999
  %v1466 = vpop.f32.mrf.mxu0
  %v1467 = vadd.f32 %v870, %v1466
  %v1468 = vpop.f32.mrf.mxu0
  %v1469 = vadd.f32 %v870, %v1468
  %v1470 = vpop.f32.mrf.mxu0
  %v1471 = vadd.f32 %v875, %v1470
  %v1472 = vpop.f32.mrf.mxu0
  %v1473 = vadd.f32 %v875, %v1472
  %1474 = vmatprep.mubr.bf16.mxu0 %v1004
  %1475 = vmatmul.mubr.bf16.gmra.mxu0 %v1003
  %v1476 = vpop.f32.mrf.mxu0
  %v1477 = vadd.f32 %v880, %v1476
  %v1478 = vpop.f32.mrf.mxu0
  %v1479 = vadd.f32 %v880, %v1478
  %v1480 = vpop.f32.mrf.mxu0
  %v1481 = vadd.f32 %v885, %v1480
  %v1482 = vpop.f32.mrf.mxu0
  %v1483 = vadd.f32 %v885, %v1482
  %1484 = vmatprep.mubr.bf16.mxu0 %v1008
  %1485 = vmatmul.mubr.bf16.gmra.mxu0 %v1007
  %v1486 = vpop.f32.mrf.mxu0
  %v1487 = vadd.f32 %v890, %v1486
  %v1488 = vpop.f32.mrf.mxu0
  %v1489 = vadd.f32 %v890, %v1488
  %v1490 = vpop.f32.mrf.mxu0
  %v1491 = vadd.f32 %v895, %v1490
  %v1492 = vpop.f32.mrf.mxu0
  %v1493 = vadd.f32 %v895, %v1492
  %1494 = vmatprep.mubr.bf16.mxu0 %v1012
  %1495 = vmatmul.mubr.bf16.gmra.mxu0 %v1011
  %v1496 = vpop.f32.mrf.mxu0
  %v1497 = vadd.f32 %v900, %v1496
  %v1498 = vpop.f32.mrf.mxu0
  %v1499 = vadd.f32 %v900, %v1498
  %v1500 = vpop.f32.mrf.mxu0
  %v1501 = vadd.f32 %v905, %v1500
  %v1502 = vpop.f32.mrf.mxu0
  %v1503 = vadd.f32 %v905, %v1502
  %1504 = vmatprep.mubr.bf16.mxu0 %v1016
  %1505 = vmatmul.mubr.bf16.gmra.mxu0 %v1015
  %v1506 = vpop.f32.mrf.mxu0
  %v1507 = vadd.f32 %v910, %v1506
  %v1508 = vpop.f32.mrf.mxu0
  %v1509 = vadd.f32 %v910, %v1508
  %v1510 = vpop.f32.mrf.mxu0
  %v1511 = vadd.f32 %v915, %v1510
  %v1512 = vpop.f32.mrf.mxu0
  %v1513 = vadd.f32 %v915, %v1512
  %1514 = vmatprep.mubr.bf16.mxu0 %v1020
  %1515 = vmatmul.mubr.bf16.gmra.mxu0 %v1019
  %v1516 = vpop.f32.mrf.mxu0
  %v1517 = vadd.f32 %v920, %v1516
  %v1518 = vpop.f32.mrf.mxu0
  %v1519 = vadd.f32 %v920, %v1518
  %v1520 = vpop.f32.mrf.mxu0
  %v1521 = vadd.f32 %v925, %v1520
  %v1522 = vpop.f32.mrf.mxu0
  %v1523 = vadd.f32 %v925, %v1522
  %1524 = vdwg.mxu0
  %1525 = vmatprep.subr.bf16.mxu0 %v759
  %1526 = vmatpush1.bf16.msra.mxu0 %v758
  %1527 = vmatprep.subr.bf16.mxu0 %v752
  %1528 = vmatpush1.bf16.msra.mxu0 %v751
  %1529 = vmatprep.subr.bf16.mxu0 %v745
  %1530 = vmatpush1.bf16.msra.mxu0 %v744
  %1531 = vmatprep.subr.bf16.mxu0 %v738
  %1532 = vmatpush1.bf16.msra.mxu0 %v737
  %1533 = vmatprep.subr.bf16.mxu0 %v731
  %1534 = vmatpush1.bf16.msra.mxu0 %v730
  %1535 = vmatprep.subr.bf16.mxu0 %v724
  %1536 = vmatpush1.bf16.msra.mxu0 %v723
  %1537 = vmatprep.subr.bf16.mxu0 %v717
  %1538 = vmatpush1.bf16.msra.mxu0 %v716
  %1539 = vmatprep.subr.bf16.mxu0 %v710
  %1540 = vmatpush1.bf16.msra.mxu0 %v709
  %1541 = vmatprep.subr.bf16.mxu0 0
  %1542 = vmatpush2.bf16.msra.mxu0 0
  %1543 = vmatprep.subr.bf16.mxu0 0
  %1544 = vmatpush2.bf16.msra.mxu0 0
  %1545 = vmatprep.subr.bf16.mxu0 0
  %1546 = vmatpush2.bf16.msra.mxu0 0
  %1547 = vmatprep.subr.bf16.mxu0 0
  %1548 = vmatpush2.bf16.msra.mxu0 0
  %1549 = vmatprep.subr.bf16.mxu0 0
  %1550 = vmatpush2.bf16.msra.mxu0 0
  %1551 = vmatprep.subr.bf16.mxu0 0
  %1552 = vmatpush2.bf16.msra.mxu0 0
  %1553 = vmatprep.subr.bf16.mxu0 0
  %1554 = vmatpush2.bf16.msra.mxu0 0
  %1555 = vmatprep.subr.bf16.mxu0 %v766
  %1556 = vmatpush2.bf16.msra.mxu0 %v765
  %1557 = vmatprep.mubr.bf16.mxu0 %v1043
  %1558 = vmatmul.mubr.bf16.gmra.mxu0 %v1001
  %v1559 = vpop.f32.mrf.mxu0
  %v1560 = vadd.f32 %v1467, %v1559
  %v1561 = vpop.f32.mrf.mxu0
  %v1562 = vadd.f32 %v1469, %v1561
  %v1563 = vpop.f32.mrf.mxu0
  %v1564 = vadd.f32 %v1471, %v1563
  %v1565 = vpop.f32.mrf.mxu0
  %v1566 = vadd.f32 %v1473, %v1565
  %1567 = vmatprep.mubr.bf16.mxu0 %v1046
  %1568 = vmatmul.mubr.bf16.gmra.mxu0 %v1005
  %v1569 = vpop.f32.mrf.mxu0
  %v1570 = vadd.f32 %v1477, %v1569
  %v1571 = vpop.f32.mrf.mxu0
  %v1572 = vadd.f32 %v1479, %v1571
  %v1573 = vpop.f32.mrf.mxu0
  %v1574 = vadd.f32 %v1481, %v1573
  %v1575 = vpop.f32.mrf.mxu0
  %v1576 = vadd.f32 %v1483, %v1575
  %1577 = vmatprep.mubr.bf16.mxu0 %v1049
  %1578 = vmatmul.mubr.bf16.gmra.mxu0 %v1009
  %v1579 = vpop.f32.mrf.mxu0
  %v1580 = vadd.f32 %v1487, %v1579
  %v1581 = vpop.f32.mrf.mxu0
  %v1582 = vadd.f32 %v1489, %v1581
  %v1583 = vpop.f32.mrf.mxu0
  %v1584 = vadd.f32 %v1491, %v1583
  %v1585 = vpop.f32.mrf.mxu0
  %v1586 = vadd.f32 %v1493, %v1585
  %1587 = vmatprep.mubr.bf16.mxu0 %v1052
  %1588 = vmatmul.mubr.bf16.gmra.mxu0 %v1013
  %v1589 = vpop.f32.mrf.mxu0
  %v1590 = vadd.f32 %v1497, %v1589
  %v1591 = vpop.f32.mrf.mxu0
  %v1592 = vadd.f32 %v1499, %v1591
  %v1593 = vpop.f32.mrf.mxu0
  %v1594 = vadd.f32 %v1501, %v1593
  %v1595 = vpop.f32.mrf.mxu0
  %v1596 = vadd.f32 %v1503, %v1595
  %1597 = vmatprep.mubr.bf16.mxu0 %v1055
  %1598 = vmatmul.mubr.bf16.gmra.mxu0 %v1017
  %v1599 = vpop.f32.mrf.mxu0
  %v1600 = vadd.f32 %v1507, %v1599
  %v1601 = vpop.f32.mrf.mxu0
  %v1602 = vadd.f32 %v1509, %v1601
  %v1603 = vpop.f32.mrf.mxu0
  %v1604 = vadd.f32 %v1511, %v1603
  %v1605 = vpop.f32.mrf.mxu0
  %v1606 = vadd.f32 %v1513, %v1605
  %1607 = vmatprep.mubr.bf16.mxu0 %v1058
  %1608 = vmatmul.mubr.bf16.gmra.mxu0 %v1021
  %v1609 = vpop.f32.mrf.mxu0
  %v1610 = vadd.f32 %v1517, %v1609
  %v1611 = vpop.f32.mrf.mxu0
  %v1612 = vadd.f32 %v1519, %v1611
  %v1613 = vpop.f32.mrf.mxu0
  %v1614 = vadd.f32 %v1521, %v1613
  %v1615 = vpop.f32.mrf.mxu0
  %v1616 = vadd.f32 %v1523, %v1615
  %1617 = vdwg.mxu0
  %1618 = vmatprep.subr.bf16.mxu0 0
  %1619 = vmatpush1.bf16.msra.mxu0 %v274
  %1620 = vmatprep.subr.bf16.mxu0 0
  %1621 = vmatpush1.bf16.msra.mxu0 %v243
  %1622 = vmatprep.subr.bf16.mxu0 0
  %1623 = vmatpush1.bf16.msra.mxu0 %v212
  %1624 = vmatprep.subr.bf16.mxu0 0
  %1625 = vmatpush1.bf16.msra.mxu0 %v173
  %1626 = vmatprep.subr.bf16.mxu0 0
  %1627 = vmatpush1.bf16.msra.mxu0 %v145
  %1628 = vmatprep.subr.bf16.mxu0 0
  %1629 = vmatpush1.bf16.msra.mxu0 %v117
  %1630 = vmatprep.subr.bf16.mxu0 0
  %1631 = vmatpush1.bf16.msra.mxu0 %v89
  %1632 = vmatprep.subr.bf16.mxu0 0
  %1633 = vmatpush1.bf16.msra.mxu0 %v67
  %1634 = vmatprep.subr.bf16.mxu0 0
  %1635 = vmatpush2.bf16.msra.mxu0 %v522
  %1636 = vmatprep.subr.bf16.mxu0 0
  %1637 = vmatpush2.bf16.msra.mxu0 %v491
  %1638 = vmatprep.subr.bf16.mxu0 0
  %1639 = vmatpush2.bf16.msra.mxu0 %v460
  %1640 = vmatprep.subr.bf16.mxu0 0
  %1641 = vmatpush2.bf16.msra.mxu0 %v429
  %1642 = vmatprep.subr.bf16.mxu0 0
  %1643 = vmatpush2.bf16.msra.mxu0 %v398
  %1644 = vmatprep.subr.bf16.mxu0 0
  %1645 = vmatpush2.bf16.msra.mxu0 %v367
  %1646 = vmatprep.subr.bf16.mxu0 0
  %1647 = vmatpush2.bf16.msra.mxu0 %v336
  %1648 = vmatprep.subr.bf16.mxu0 0
  %1649 = vmatpush2.bf16.msra.mxu0 %v305
  %1650 = vmatprep.mubr.bf16.mxu0 %v1000
  %1651 = vmatmul.mubr.bf16.gmra.mxu0 %v999
  %v1652 = vpop.f32.mrf.mxu0
  %v1653 = vadd.f32 %v870, %v1652
  %v1654 = vpop.f32.mrf.mxu0
  %v1655 = vpop.f32.mrf.mxu0
  %v1656 = vadd.f32 %v875, %v1655
  %v1657 = vpop.f32.mrf.mxu0
  %1658 = vmatprep.mubr.bf16.mxu0 %v1004
  %1659 = vmatmul.mubr.bf16.gmra.mxu0 %v1003
  %v1660 = vpop.f32.mrf.mxu0
  %v1661 = vadd.f32 %v880, %v1660
  %v1662 = vpop.f32.mrf.mxu0
  %v1663 = vpop.f32.mrf.mxu0
  %v1664 = vadd.f32 %v885, %v1663
  %v1665 = vpop.f32.mrf.mxu0
  %1666 = vmatprep.mubr.bf16.mxu0 %v1008
  %1667 = vmatmul.mubr.bf16.gmra.mxu0 %v1007
  %v1668 = vpop.f32.mrf.mxu0
  %v1669 = vadd.f32 %v890, %v1668
  %v1670 = vpop.f32.mrf.mxu0
  %v1671 = vpop.f32.mrf.mxu0
  %v1672 = vadd.f32 %v895, %v1671
  %v1673 = vpop.f32.mrf.mxu0
  %1674 = vmatprep.mubr.bf16.mxu0 %v1012
  %1675 = vmatmul.mubr.bf16.gmra.mxu0 %v1011
  %v1676 = vpop.f32.mrf.mxu0
  %v1677 = vadd.f32 %v900, %v1676
  %v1678 = vpop.f32.mrf.mxu0
  %v1679 = vpop.f32.mrf.mxu0
  %v1680 = vadd.f32 %v905, %v1679
  %v1681 = vpop.f32.mrf.mxu0
  %1682 = vmatprep.mubr.bf16.mxu0 %v1016
  %1683 = vmatmul.mubr.bf16.gmra.mxu0 %v1015
  %v1684 = vpop.f32.mrf.mxu0
  %v1685 = vadd.f32 %v910, %v1684
  %v1686 = vpop.f32.mrf.mxu0
  %v1687 = vpop.f32.mrf.mxu0
  %v1688 = vadd.f32 %v915, %v1687
  %v1689 = vpop.f32.mrf.mxu0
  %1690 = vmatprep.mubr.bf16.mxu0 %v1020
  %1691 = vmatmul.mubr.bf16.gmra.mxu0 %v1019
  %v1692 = vpop.f32.mrf.mxu0
  %v1693 = vadd.f32 %v920, %v1692
  %v1694 = vpop.f32.mrf.mxu0
  %v1695 = vpop.f32.mrf.mxu0
  %v1696 = vadd.f32 %v925, %v1695
  %v1697 = vpop.f32.mrf.mxu0
  %1698 = vdwg.mxu0
  %1699 = vmatprep.subr.bf16.mxu0 0
  %1700 = vmatpush1.bf16.msra.mxu0 %v760
  %1701 = vmatprep.subr.bf16.mxu0 0
  %1702 = vmatpush1.bf16.msra.mxu0 %v753
  %1703 = vmatprep.subr.bf16.mxu0 0
  %1704 = vmatpush1.bf16.msra.mxu0 %v746
  %1705 = vmatprep.subr.bf16.mxu0 0
  %1706 = vmatpush1.bf16.msra.mxu0 %v739
  %1707 = vmatprep.subr.bf16.mxu0 0
  %1708 = vmatpush1.bf16.msra.mxu0 %v732
  %1709 = vmatprep.subr.bf16.mxu0 0
  %1710 = vmatpush1.bf16.msra.mxu0 %v725
  %1711 = vmatprep.subr.bf16.mxu0 0
  %1712 = vmatpush1.bf16.msra.mxu0 %v718
  %1713 = vmatprep.subr.bf16.mxu0 0
  %1714 = vmatpush1.bf16.msra.mxu0 %v711
  %1715 = vmatprep.subr.bf16.mxu0 0
  %1716 = vmatpush2.bf16.msra.mxu0 0
  %1717 = vmatprep.subr.bf16.mxu0 0
  %1718 = vmatpush2.bf16.msra.mxu0 0
  %1719 = vmatprep.subr.bf16.mxu0 0
  %1720 = vmatpush2.bf16.msra.mxu0 0
  %1721 = vmatprep.subr.bf16.mxu0 0
  %1722 = vmatpush2.bf16.msra.mxu0 0
  %1723 = vmatprep.subr.bf16.mxu0 0
  %1724 = vmatpush2.bf16.msra.mxu0 0
  %1725 = vmatprep.subr.bf16.mxu0 0
  %1726 = vmatpush2.bf16.msra.mxu0 0
  %1727 = vmatprep.subr.bf16.mxu0 0
  %1728 = vmatpush2.bf16.msra.mxu0 0
  %1729 = vmatprep.subr.bf16.mxu0 0
  %1730 = vmatpush2.bf16.msra.mxu0 %v767
  %1731 = vmatprep.mubr.bf16.mxu0 %v1043
  %1732 = vmatmul.mubr.bf16.gmra.mxu0 %v1001
  %v1733 = vpop.f32.mrf.mxu0
  %v1734 = vadd.f32 %v1653, %v1733
  %v1735 = vpop.f32.mrf.mxu0
  %v1736 = vpop.f32.mrf.mxu0
  %v1737 = vadd.f32 %v1656, %v1736
  %v1738 = vpop.f32.mrf.mxu0
  %1739 = vmatprep.mubr.bf16.mxu0 %v1046
  %1740 = vmatmul.mubr.bf16.gmra.mxu0 %v1005
  %v1741 = vpop.f32.mrf.mxu0
  %v1742 = vadd.f32 %v1661, %v1741
  %v1743 = vpop.f32.mrf.mxu0
  %v1744 = vpop.f32.mrf.mxu0
  %v1745 = vadd.f32 %v1664, %v1744
  %v1746 = vpop.f32.mrf.mxu0
  %1747 = vmatprep.mubr.bf16.mxu0 %v1049
  %1748 = vmatmul.mubr.bf16.gmra.mxu0 %v1009
  %v1749 = vpop.f32.mrf.mxu0
  %v1750 = vadd.f32 %v1669, %v1749
  %v1751 = vpop.f32.mrf.mxu0
  %v1752 = vpop.f32.mrf.mxu0
  %v1753 = vadd.f32 %v1672, %v1752
  %v1754 = vpop.f32.mrf.mxu0
  %1755 = vmatprep.mubr.bf16.mxu0 %v1052
  %1756 = vmatmul.mubr.bf16.gmra.mxu0 %v1013
  %v1757 = vpop.f32.mrf.mxu0
  %v1758 = vadd.f32 %v1677, %v1757
  %v1759 = vpop.f32.mrf.mxu0
  %v1760 = vpop.f32.mrf.mxu0
  %v1761 = vadd.f32 %v1680, %v1760
  %v1762 = vpop.f32.mrf.mxu0
  %1763 = vmatprep.mubr.bf16.mxu0 %v1055
  %1764 = vmatmul.mubr.bf16.gmra.mxu0 %v1017
  %v1765 = vpop.f32.mrf.mxu0
  %v1766 = vadd.f32 %v1685, %v1765
  %v1767 = vpop.f32.mrf.mxu0
  %v1768 = vpop.f32.mrf.mxu0
  %v1769 = vadd.f32 %v1688, %v1768
  %v1770 = vpop.f32.mrf.mxu0
  %1771 = vmatprep.mubr.bf16.mxu0 %v1058
  %1772 = vmatmul.mubr.bf16.gmra.mxu0 %v1021
  %v1773 = vpop.f32.mrf.mxu0
  %v1774 = vadd.f32 %v1693, %v1773
  %v1775 = vpop.f32.mrf.mxu0
  %v1776 = vpop.f32.mrf.mxu0
  %v1777 = vadd.f32 %v1696, %v1776
  %v1778 = vpop.f32.mrf.mxu0
  %1779 = vdwg.mxu0
  %v1780 = vsub.f32 0.0, %v1188
  %v1781 = vsub.f32 0.0, %v1190
  %v1782 = vsub.f32 0.0, %v1374
  %v1783 = vsub.f32 0.0, %v1376
  %v1784 = vsub.f32 0.0, %v1560
  %v1785 = vsub.f32 0.0, %v1562
  %v1786 = vsub.f32 0.0, %v1734
  %v1787 = vsub.f32 0.0, %v1192
  %v1788 = vsub.f32 0.0, %v1194
  %v1789 = vsub.f32 0.0, %v1378
  %v1790 = vsub.f32 0.0, %v1380
  %v1791 = vsub.f32 0.0, %v1564
  %v1792 = vsub.f32 0.0, %v1566
  %v1793 = vsub.f32 0.0, %v1737
  %v1794 = vsub.f32 0.0, %v1198
  %v1795 = vsub.f32 0.0, %v1200
  %v1796 = vsub.f32 0.0, %v1384
  %v1797 = vsub.f32 0.0, %v1386
  %v1798 = vsub.f32 0.0, %v1570
  %v1799 = vsub.f32 0.0, %v1572
  %v1800 = vsub.f32 0.0, %v1742
  %v1801 = vsub.f32 0.0, %v1202
  %v1802 = vsub.f32 0.0, %v1204
  %v1803 = vsub.f32 0.0, %v1388
  %v1804 = vsub.f32 0.0, %v1390
  %v1805 = vsub.f32 0.0, %v1574
  %v1806 = vsub.f32 0.0, %v1576
  %v1807 = vsub.f32 0.0, %v1745
  %v1808 = vsub.f32 0.0, %v1208
  %v1809 = vsub.f32 0.0, %v1210
  %v1810 = vsub.f32 0.0, %v1394
  %v1811 = vsub.f32 0.0, %v1396
  %v1812 = vsub.f32 0.0, %v1580
  %v1813 = vsub.f32 0.0, %v1582
  %v1814 = vsub.f32 0.0, %v1750
  %v1815 = vsub.f32 0.0, %v1212
  %v1816 = vsub.f32 0.0, %v1214
  %v1817 = vsub.f32 0.0, %v1398
  %v1818 = vsub.f32 0.0, %v1400
  %v1819 = vsub.f32 0.0, %v1584
  %v1820 = vsub.f32 0.0, %v1586
  %v1821 = vsub.f32 0.0, %v1753
  %v1822 = vsub.f32 0.0, %v1218
  %v1823 = vsub.f32 0.0, %v1220
  %v1824 = vsub.f32 0.0, %v1404
  %v1825 = vsub.f32 0.0, %v1406
  %v1826 = vsub.f32 0.0, %v1590
  %v1827 = vsub.f32 0.0, %v1592
  %v1828 = vsub.f32 0.0, %v1758
  %v1829 = vsub.f32 0.0, %v1222
  %v1830 = vsub.f32 0.0, %v1224
  %v1831 = vsub.f32 0.0, %v1408
  %v1832 = vsub.f32 0.0, %v1410
  %v1833 = vsub.f32 0.0, %v1594
  %v1834 = vsub.f32 0.0, %v1596
  %v1835 = vsub.f32 0.0, %v1761
  %v1836 = vsub.f32 0.0, %v1228
  %v1837 = vsub.f32 0.0, %v1230
  %v1838 = vsub.f32 0.0, %v1414
  %v1839 = vsub.f32 0.0, %v1416
  %v1840 = vsub.f32 0.0, %v1600
  %v1841 = vsub.f32 0.0, %v1602
  %v1842 = vsub.f32 0.0, %v1766
  %v1843 = vsub.f32 0.0, %v1232
  %v1844 = vsub.f32 0.0, %v1234
  %v1845 = vsub.f32 0.0, %v1418
  %v1846 = vsub.f32 0.0, %v1420
  %v1847 = vsub.f32 0.0, %v1604
  %v1848 = vsub.f32 0.0, %v1606
  %v1849 = vsub.f32 0.0, %v1769
  %v1850 = vsub.f32 0.0, %v1238
  %v1851 = vsub.f32 0.0, %v1240
  %v1852 = vsub.f32 0.0, %v1424
  %v1853 = vsub.f32 0.0, %v1426
  %v1854 = vsub.f32 0.0, %v1610
  %v1855 = vsub.f32 0.0, %v1612
  %v1856 = vsub.f32 0.0, %v1774
  %v1857 = vsub.f32 0.0, %v1242
  %v1858 = vsub.f32 0.0, %v1244
  %v1859 = vsub.f32 0.0, %v1428
  %v1860 = vsub.f32 0.0, %v1430
  %v1861 = vsub.f32 0.0, %v1614
  %v1862 = vsub.f32 0.0, %v1616
  %v1863 = vsub.f32 0.0, %v1777
  %v1864 = vmul.f32 %v1780, 1.442695
  %v1865 = vpow.pop %v1864
  %v1866 = vmul.f32 %v1781, 1.442695
  %v1867 = vpow.pop %v1866
  %v1868 = vmul.f32 %v1782, 1.442695
  %v1869 = vpow.pop %v1868
  %v1870 = vmul.f32 %v1783, 1.442695
  %v1871 = vpow.pop %v1870
  %v1872 = vmul.f32 %v1784, 1.442695
  %v1873 = vpow.pop %v1872
  %v1874 = vmul.f32 %v1785, 1.442695
  %v1875 = vpow.pop %v1874
  %v1876 = vmul.f32 %v1786, 1.442695
  %v1877 = vpow.pop %v1876
  %v1878 = vmul.f32 %v1787, 1.442695
  %v1879 = vpow.pop %v1878
  %v1880 = vmul.f32 %v1788, 1.442695
  %v1881 = vpow.pop %v1880
  %v1882 = vmul.f32 %v1789, 1.442695
  %v1883 = vpow.pop %v1882
  %v1884 = vmul.f32 %v1790, 1.442695
  %v1885 = vpow.pop %v1884
  %v1886 = vmul.f32 %v1791, 1.442695
  %v1887 = vpow.pop %v1886
  %v1888 = vmul.f32 %v1792, 1.442695
  %v1889 = vpow.pop %v1888
  %v1890 = vmul.f32 %v1793, 1.442695
  %v1891 = vpow.pop %v1890
  %v1892 = vmul.f32 %v1794, 1.442695
  %v1893 = vpow.pop %v1892
  %v1894 = vmul.f32 %v1795, 1.442695
  %v1895 = vpow.pop %v1894
  %v1896 = vmul.f32 %v1796, 1.442695
  %v1897 = vpow.pop %v1896
  %v1898 = vmul.f32 %v1797, 1.442695
  %v1899 = vpow.pop %v1898
  %v1900 = vmul.f32 %v1798, 1.442695
  %v1901 = vpow.pop %v1900
  %v1902 = vmul.f32 %v1799, 1.442695
  %v1903 = vpow.pop %v1902
  %v1904 = vmul.f32 %v1800, 1.442695
  %v1905 = vpow.pop %v1904
  %v1906 = vmul.f32 %v1801, 1.442695
  %v1907 = vpow.pop %v1906
  %v1908 = vmul.f32 %v1802, 1.442695
  %v1909 = vpow.pop %v1908
  %v1910 = vmul.f32 %v1803, 1.442695
  %v1911 = vpow.pop %v1910
  %v1912 = vmul.f32 %v1804, 1.442695
  %v1913 = vpow.pop %v1912
  %v1914 = vmul.f32 %v1805, 1.442695
  %v1915 = vpow.pop %v1914
  %v1916 = vmul.f32 %v1806, 1.442695
  %v1917 = vpow.pop %v1916
  %v1918 = vmul.f32 %v1807, 1.442695
  %v1919 = vpow.pop %v1918
  %v1920 = vmul.f32 %v1808, 1.442695
  %v1921 = vpow.pop %v1920
  %v1922 = vmul.f32 %v1809, 1.442695
  %v1923 = vpow.pop %v1922
  %v1924 = vmul.f32 %v1810, 1.442695
  %v1925 = vpow.pop %v1924
  %v1926 = vmul.f32 %v1811, 1.442695
  %v1927 = vpow.pop %v1926
  %v1928 = vmul.f32 %v1812, 1.442695
  %v1929 = vpow.pop %v1928
  %v1930 = vmul.f32 %v1813, 1.442695
  %v1931 = vpow.pop %v1930
  %v1932 = vmul.f32 %v1814, 1.442695
  %v1933 = vpow.pop %v1932
  %v1934 = vmul.f32 %v1815, 1.442695
  %v1935 = vpow.pop %v1934
  %v1936 = vmul.f32 %v1816, 1.442695
  %v1937 = vpow.pop %v1936
  %v1938 = vmul.f32 %v1817, 1.442695
  %v1939 = vpow.pop %v1938
  %v1940 = vmul.f32 %v1818, 1.442695
  %v1941 = vpow.pop %v1940
  %v1942 = vmul.f32 %v1819, 1.442695
  %v1943 = vpow.pop %v1942
  %v1944 = vmul.f32 %v1820, 1.442695
  %v1945 = vpow.pop %v1944
  %v1946 = vmul.f32 %v1821, 1.442695
  %v1947 = vpow.pop %v1946
  %v1948 = vmul.f32 %v1822, 1.442695
  %v1949 = vpow.pop %v1948
  %v1950 = vmul.f32 %v1823, 1.442695
  %v1951 = vpow.pop %v1950
  %v1952 = vmul.f32 %v1824, 1.442695
  %v1953 = vpow.pop %v1952
  %v1954 = vmul.f32 %v1825, 1.442695
  %v1955 = vpow.pop %v1954
  %v1956 = vmul.f32 %v1826, 1.442695
  %v1957 = vpow.pop %v1956
  %v1958 = vmul.f32 %v1827, 1.442695
  %v1959 = vpow.pop %v1958
  %v1960 = vmul.f32 %v1828, 1.442695
  %v1961 = vpow.pop %v1960
  %v1962 = vmul.f32 %v1829, 1.442695
  %v1963 = vpow.pop %v1962
  %v1964 = vmul.f32 %v1830, 1.442695
  %v1965 = vpow.pop %v1964
  %v1966 = vmul.f32 %v1831, 1.442695
  %v1967 = vpow.pop %v1966
  %v1968 = vmul.f32 %v1832, 1.442695
  %v1969 = vpow.pop %v1968
  %v1970 = vmul.f32 %v1833, 1.442695
  %v1971 = vpow.pop %v1970
  %v1972 = vmul.f32 %v1834, 1.442695
  %v1973 = vpow.pop %v1972
  %v1974 = vmul.f32 %v1835, 1.442695
  %v1975 = vpow.pop %v1974
  %v1976 = vmul.f32 %v1836, 1.442695
  %v1977 = vpow.pop %v1976
  %v1978 = vmul.f32 %v1837, 1.442695
  %v1979 = vpow.pop %v1978
  %v1980 = vmul.f32 %v1838, 1.442695
  %v1981 = vpow.pop %v1980
  %v1982 = vmul.f32 %v1839, 1.442695
  %v1983 = vpow.pop %v1982
  %v1984 = vmul.f32 %v1840, 1.442695
  %v1985 = vpow.pop %v1984
  %v1986 = vmul.f32 %v1841, 1.442695
  %v1987 = vpow.pop %v1986
  %v1988 = vmul.f32 %v1842, 1.442695
  %v1989 = vpow.pop %v1988
  %v1990 = vmul.f32 %v1843, 1.442695
  %v1991 = vpow.pop %v1990
  %v1992 = vmul.f32 %v1844, 1.442695
  %v1993 = vpow.pop %v1992
  %v1994 = vmul.f32 %v1845, 1.442695
  %v1995 = vpow.pop %v1994
  %v1996 = vmul.f32 %v1846, 1.442695
  %v1997 = vpow.pop %v1996
  %v1998 = vmul.f32 %v1847, 1.442695
  %v1999 = vpow.pop %v1998
  %v2000 = vmul.f32 %v1848, 1.442695
  %v2001 = vpow.pop %v2000
  %v2002 = vmul.f32 %v1849, 1.442695
  %v2003 = vpow.pop %v2002
  %v2004 = vmul.f32 %v1850, 1.442695
  %v2005 = vpow.pop %v2004
  %v2006 = vmul.f32 %v1851, 1.442695
  %v2007 = vpow.pop %v2006
  %v2008 = vmul.f32 %v1852, 1.442695
  %v2009 = vpow.pop %v2008
  %v2010 = vmul.f32 %v1853, 1.442695
  %v2011 = vpow.pop %v2010
  %v2012 = vmul.f32 %v1854, 1.442695
  %v2013 = vpow.pop %v2012
  %v2014 = vmul.f32 %v1855, 1.442695
  %v2015 = vpow.pop %v2014
  %v2016 = vmul.f32 %v1856, 1.442695
  %v2017 = vpow.pop %v2016
  %v2018 = vmul.f32 %v1857, 1.442695
  %v2019 = vpow.pop %v2018
  %v2020 = vmul.f32 %v1858, 1.442695
  %v2021 = vpow.pop %v2020
  %v2022 = vmul.f32 %v1859, 1.442695
  %v2023 = vpow.pop %v2022
  %v2024 = vmul.f32 %v1860, 1.442695
  %v2025 = vpow.pop %v2024
  %v2026 = vmul.f32 %v1861, 1.442695
  %v2027 = vpow.pop %v2026
  %v2028 = vmul.f32 %v1862, 1.442695
  %v2029 = vpow.pop %v2028
  %v2030 = vmul.f32 %v1863, 1.442695
  %v2031 = vpow.pop %v2030
  %v2032 = vadd.f32 %v1865, 1.0
  %v2033 = vadd.f32 %v1867, 1.0
  %v2034 = vadd.f32 %v1869, 1.0
  %v2035 = vadd.f32 %v1871, 1.0
  %v2036 = vadd.f32 %v1873, 1.0
  %v2037 = vadd.f32 %v1875, 1.0
  %v2038 = vadd.f32 %v1877, 1.0
  %v2039 = vadd.f32 %v1879, 1.0
  %v2040 = vadd.f32 %v1881, 1.0
  %v2041 = vadd.f32 %v1883, 1.0
  %v2042 = vadd.f32 %v1885, 1.0
  %v2043 = vadd.f32 %v1887, 1.0
  %v2044 = vadd.f32 %v1889, 1.0
  %v2045 = vadd.f32 %v1891, 1.0
  %v2046 = vadd.f32 %v1893, 1.0
  %v2047 = vadd.f32 %v1895, 1.0
  %v2048 = vadd.f32 %v1897, 1.0
  %v2049 = vadd.f32 %v1899, 1.0
  %v2050 = vadd.f32 %v1901, 1.0
  %v2051 = vadd.f32 %v1903, 1.0
  %v2052 = vadd.f32 %v1905, 1.0
  %v2053 = vadd.f32 %v1907, 1.0
  %v2054 = vadd.f32 %v1909, 1.0
  %v2055 = vadd.f32 %v1911, 1.0
  %v2056 = vadd.f32 %v1913, 1.0
  %v2057 = vadd.f32 %v1915, 1.0
  %v2058 = vadd.f32 %v1917, 1.0
  %v2059 = vadd.f32 %v1919, 1.0
  %v2060 = vadd.f32 %v1921, 1.0
  %v2061 = vadd.f32 %v1923, 1.0
  %v2062 = vadd.f32 %v1925, 1.0
  %v2063 = vadd.f32 %v1927, 1.0
  %v2064 = vadd.f32 %v1929, 1.0
  %v2065 = vadd.f32 %v1931, 1.0
  %v2066 = vadd.f32 %v1933, 1.0
  %v2067 = vadd.f32 %v1935, 1.0
  %v2068 = vadd.f32 %v1937, 1.0
  %v2069 = vadd.f32 %v1939, 1.0
  %v2070 = vadd.f32 %v1941, 1.0
  %v2071 = vadd.f32 %v1943, 1.0
  %v2072 = vadd.f32 %v1945, 1.0
  %v2073 = vadd.f32 %v1947, 1.0
  %v2074 = vadd.f32 %v1949, 1.0
  %v2075 = vadd.f32 %v1951, 1.0
  %v2076 = vadd.f32 %v1953, 1.0
  %v2077 = vadd.f32 %v1955, 1.0
  %v2078 = vadd.f32 %v1957, 1.0
  %v2079 = vadd.f32 %v1959, 1.0
  %v2080 = vadd.f32 %v1961, 1.0
  %v2081 = vadd.f32 %v1963, 1.0
  %v2082 = vadd.f32 %v1965, 1.0
  %v2083 = vadd.f32 %v1967, 1.0
  %v2084 = vadd.f32 %v1969, 1.0
  %v2085 = vadd.f32 %v1971, 1.0
  %v2086 = vadd.f32 %v1973, 1.0
  %v2087 = vadd.f32 %v1975, 1.0
  %v2088 = vadd.f32 %v1977, 1.0
  %v2089 = vadd.f32 %v1979, 1.0
  %v2090 = vadd.f32 %v1981, 1.0
  %v2091 = vadd.f32 %v1983, 1.0
  %v2092 = vadd.f32 %v1985, 1.0
  %v2093 = vadd.f32 %v1987, 1.0
  %v2094 = vadd.f32 %v1989, 1.0
  %v2095 = vadd.f32 %v1991, 1.0
  %v2096 = vadd.f32 %v1993, 1.0
  %v2097 = vadd.f32 %v1995, 1.0
  %v2098 = vadd.f32 %v1997, 1.0
  %v2099 = vadd.f32 %v1999, 1.0
  %v2100 = vadd.f32 %v2001, 1.0
  %v2101 = vadd.f32 %v2003, 1.0
  %v2102 = vadd.f32 %v2005, 1.0
  %v2103 = vadd.f32 %v2007, 1.0
  %v2104 = vadd.f32 %v2009, 1.0
  %v2105 = vadd.f32 %v2011, 1.0
  %v2106 = vadd.f32 %v2013, 1.0
  %v2107 = vadd.f32 %v2015, 1.0
  %v2108 = vadd.f32 %v2017, 1.0
  %v2109 = vadd.f32 %v2019, 1.0
  %v2110 = vadd.f32 %v2021, 1.0
  %v2111 = vadd.f32 %v2023, 1.0
  %v2112 = vadd.f32 %v2025, 1.0
  %v2113 = vadd.f32 %v2027, 1.0
  %v2114 = vadd.f32 %v2029, 1.0
  %v2115 = vadd.f32 %v2031, 1.0
  %v2116 = vrcp.pop %v2032
  %v2117 = vrcp.pop %v2033
  %v2118 = vrcp.pop %v2034
  %v2119 = vrcp.pop %v2035
  %v2120 = vrcp.pop %v2036
  %v2121 = vrcp.pop %v2037
  %v2122 = vrcp.pop %v2038
  %v2123 = vrcp.pop %v2039
  %v2124 = vrcp.pop %v2040
  %v2125 = vrcp.pop %v2041
  %v2126 = vrcp.pop %v2042
  %v2127 = vrcp.pop %v2043
  %v2128 = vrcp.pop %v2044
  %v2129 = vrcp.pop %v2045
  %v2130 = vrcp.pop %v2046
  %v2131 = vrcp.pop %v2047
  %v2132 = vrcp.pop %v2048
  %v2133 = vrcp.pop %v2049
  %v2134 = vrcp.pop %v2050
  %v2135 = vrcp.pop %v2051
  %v2136 = vrcp.pop %v2052
  %v2137 = vrcp.pop %v2053
  %v2138 = vrcp.pop %v2054
  %v2139 = vrcp.pop %v2055
  %v2140 = vrcp.pop %v2056
  %v2141 = vrcp.pop %v2057
  %v2142 = vrcp.pop %v2058
  %v2143 = vrcp.pop %v2059
  %v2144 = vrcp.pop %v2060
  %v2145 = vrcp.pop %v2061
  %v2146 = vrcp.pop %v2062
  %v2147 = vrcp.pop %v2063
  %v2148 = vrcp.pop %v2064
  %v2149 = vrcp.pop %v2065
  %v2150 = vrcp.pop %v2066
  %v2151 = vrcp.pop %v2067
  %v2152 = vrcp.pop %v2068
  %v2153 = vrcp.pop %v2069
  %v2154 = vrcp.pop %v2070
  %v2155 = vrcp.pop %v2071
  %v2156 = vrcp.pop %v2072
  %v2157 = vrcp.pop %v2073
  %v2158 = vrcp.pop %v2074
  %v2159 = vrcp.pop %v2075
  %v2160 = vrcp.pop %v2076
  %v2161 = vrcp.pop %v2077
  %v2162 = vrcp.pop %v2078
  %v2163 = vrcp.pop %v2079
  %v2164 = vrcp.pop %v2080
  %v2165 = vrcp.pop %v2081
  %v2166 = vrcp.pop %v2082
  %v2167 = vrcp.pop %v2083
  %v2168 = vrcp.pop %v2084
  %v2169 = vrcp.pop %v2085
  %v2170 = vrcp.pop %v2086
  %v2171 = vrcp.pop %v2087
  %v2172 = vrcp.pop %v2088
  %v2173 = vrcp.pop %v2089
  %v2174 = vrcp.pop %v2090
  %v2175 = vrcp.pop %v2091
  %v2176 = vrcp.pop %v2092
  %v2177 = vrcp.pop %v2093
  %v2178 = vrcp.pop %v2094
  %v2179 = vrcp.pop %v2095
  %v2180 = vrcp.pop %v2096
  %v2181 = vrcp.pop %v2097
  %v2182 = vrcp.pop %v2098
  %v2183 = vrcp.pop %v2099
  %v2184 = vrcp.pop %v2100
  %v2185 = vrcp.pop %v2101
  %v2186 = vrcp.pop %v2102
  %v2187 = vrcp.pop %v2103
  %v2188 = vrcp.pop %v2104
  %v2189 = vrcp.pop %v2105
  %v2190 = vrcp.pop %v2106
  %v2191 = vrcp.pop %v2107
  %v2192 = vrcp.pop %v2108
  %v2193 = vrcp.pop %v2109
  %v2194 = vrcp.pop %v2110
  %v2195 = vrcp.pop %v2111
  %v2196 = vrcp.pop %v2112
  %v2197 = vrcp.pop %v2113
  %v2198 = vrcp.pop %v2114
  %v2199 = vrcp.pop %v2115
  %v2200 = vpack.c.bf16 %v2123, %v2116
  %v2201 = vpack.c.bf16 %v2124, %v2117
  %v2202 = vpack.c.bf16 %v2125, %v2118
  %v2203 = vpack.c.bf16 %v2126, %v2119
  %v2204 = vpack.c.bf16 %v2127, %v2120
  %v2205 = vpack.c.bf16 %v2128, %v2121
  %v2206 = vpack.c.bf16 %v2129, %v2122
  %v2207 = vpack.c.bf16 %v2137, %v2130
  %v2208 = vpack.c.bf16 %v2138, %v2131
  %v2209 = vpack.c.bf16 %v2139, %v2132
  %v2210 = vpack.c.bf16 %v2140, %v2133
  %v2211 = vpack.c.bf16 %v2141, %v2134
  %v2212 = vpack.c.bf16 %v2142, %v2135
  %v2213 = vpack.c.bf16 %v2143, %v2136
  %v2214 = vpack.c.bf16 %v2151, %v2144
  %v2215 = vpack.c.bf16 %v2152, %v2145
  %v2216 = vpack.c.bf16 %v2153, %v2146
  %v2217 = vpack.c.bf16 %v2154, %v2147
  %v2218 = vpack.c.bf16 %v2155, %v2148
  %v2219 = vpack.c.bf16 %v2156, %v2149
  %v2220 = vpack.c.bf16 %v2157, %v2150
  %v2221 = vpack.c.bf16 %v2165, %v2158
  %v2222 = vpack.c.bf16 %v2166, %v2159
  %v2223 = vpack.c.bf16 %v2167, %v2160
  %v2224 = vpack.c.bf16 %v2168, %v2161
  %v2225 = vpack.c.bf16 %v2169, %v2162
  %v2226 = vpack.c.bf16 %v2170, %v2163
  %v2227 = vpack.c.bf16 %v2171, %v2164
  %v2228 = vpack.c.bf16 %v2179, %v2172
  %v2229 = vpack.c.bf16 %v2180, %v2173
  %v2230 = vpack.c.bf16 %v2181, %v2174
  %v2231 = vpack.c.bf16 %v2182, %v2175
  %v2232 = vpack.c.bf16 %v2183, %v2176
  %v2233 = vpack.c.bf16 %v2184, %v2177
  %v2234 = vpack.c.bf16 %v2185, %v2178
  %v2235 = vpack.c.bf16 %v2193, %v2186
  %v2236 = vpack.c.bf16 %v2194, %v2187
  %v2237 = vpack.c.bf16 %v2195, %v2188
  %v2238 = vpack.c.bf16 %v2196, %v2189
  %v2239 = vpack.c.bf16 %v2197, %v2190
  %v2240 = vpack.c.bf16 %v2198, %v2191
  %v2241 = vpack.c.bf16 %v2199, %v2192
  %v2242 = vld [vmem:[%s5] sm:$0xff]
  %v2243 = vld [vmem:[%s5 + $0x8] sm:$0xff]
  %v2244 = vld [vmem:[%s5 + $0x10] sm:$0xff]
  %v2245 = vld [vmem:[%s5 + $0x18] sm:$0xff]
  %v2246 = vld [vmem:[%s5 + $0x20] sm:$0xff]
  %v2247 = vld [vmem:[%s5 + $0x28] sm:$0xff]
  %v2248 = vld [vmem:[%s5 + $0x30] sm:$0xff]
  %v2249 = vld [vmem:[%s5 + $0x38] sm:$0xff]
  %v2250 = vld [vmem:[%s5 + $0x40] sm:$0xff]
  %v2251 = vld [vmem:[%s5 + $0x48] sm:$0xff]
  %v2252 = vld [vmem:[%s5 + $0x50] sm:$0xff]
  %v2253 = vld [vmem:[%s5 + $0x58] sm:$0xff]
  %v2254 = vld [vmem:[%s5 + $0x60] sm:$0xff]
  %v2255 = vld [vmem:[%s5 + $0x68] sm:$0xff]
  %v2256 = vld [vmem:[%s5 + $0x70] sm:$0xff]
  %v2257 = vld [vmem:[%s5 + $0x78] sm:$0xff]
  %v2258 = vld [vmem:[%s5 + $0x80] sm:$0xff]
  %v2259 = vld [vmem:[%s5 + $0x88] sm:$0xff]
  %v2260 = vld [vmem:[%s5 + $0x90] sm:$0xff]
  %v2261 = vld [vmem:[%s5 + $0x98] sm:$0xff]
  %v2262 = vld [vmem:[%s5 + $0xa0] sm:$0xff]
  %v2263 = vld [vmem:[%s5 + $0xa8] sm:$0xff]
  %v2264 = vld [vmem:[%s5 + $0xb0] sm:$0xff]
  %v2265 = vld [vmem:[%s5 + $0xb8] sm:$0xff]
  %v2266 = vld [vmem:[%s5 + $0xc0] sm:$0xff]
  %v2267 = vld [vmem:[%s5 + $0xc8] sm:$0xff]
  %v2268 = vld [vmem:[%s5 + $0xd0] sm:$0xff]
  %v2269 = vld [vmem:[%s5 + $0xd8] sm:$0xff]
  %v2270 = vld [vmem:[%s5 + $0xe0] sm:$0xff]
  %v2271 = vld [vmem:[%s5 + $0xe8] sm:$0xff]
  %v2272 = vld [vmem:[%s5 + $0xf0] sm:$0xff]
  %v2273 = vld [vmem:[%s5 + $0xf8] sm:$0xff]
  %v2274 = vld [vmem:[%s5 + $0x100] sm:$0xff]
  %v2275 = vld [vmem:[%s5 + $0x108] sm:$0xff]
  %v2276 = vld [vmem:[%s5 + $0x110] sm:$0xff]
  %v2277 = vld [vmem:[%s5 + $0x118] sm:$0xff]
  %v2278 = vld [vmem:[%s5 + $0x120] sm:$0xff]
  %v2279 = vld [vmem:[%s5 + $0x128] sm:$0xff]
  %v2280 = vld [vmem:[%s5 + $0x130] sm:$0xff]
  %v2281 = vld [vmem:[%s5 + $0x138] sm:$0xff]
  %v2282 = vld [vmem:[%s5 + $0x140] sm:$0xff]
  %v2283 = vld [vmem:[%s5 + $0x148] sm:$0xff]
  %v2284 = vld [vmem:[%s5 + $0x150] sm:$0xff]
  %v2285 = vld [vmem:[%s5 + $0x158] sm:$0xff]
  %v2286 = vld [vmem:[%s5 + $0x160] sm:$0xff]
  %v2287 = vld [vmem:[%s5 + $0x168] sm:$0xff]
  %v2288 = vld [vmem:[%s5 + $0x170] sm:$0xff]
  %v2289 = vld [vmem:[%s5 + $0x178] sm:$0xff]
  %v2290 = vld [vmem:[%s5 + $0x180] sm:$0xff]
  %v2291 = vld [vmem:[%s5 + $0x188] sm:$0xff]
  %v2292 = vld [vmem:[%s5 + $0x190] sm:$0xff]
  %v2293 = vld [vmem:[%s5 + $0x198] sm:$0xff]
  %v2294 = vld [vmem:[%s5 + $0x1a0] sm:$0xff]
  %v2295 = vld [vmem:[%s5 + $0x1a8] sm:$0xff]
  %v2296 = vld [vmem:[%s5 + $0x1b0] sm:$0xff]
  %v2297 = vld [vmem:[%s5 + $0x1b8] sm:$0xff]
  %v2298 = vld [vmem:[%s5 + $0x1c0] sm:$0xff]
  %v2299 = vld [vmem:[%s5 + $0x1c8] sm:$0xff]
  %v2300 = vld [vmem:[%s5 + $0x1d0] sm:$0xff]
  %v2301 = vld [vmem:[%s5 + $0x1d8] sm:$0xff]
  %v2302 = vld [vmem:[%s5 + $0x1e0] sm:$0xff]
  %v2303 = vld [vmem:[%s5 + $0x1e8] sm:$0xff]
  %v2304 = vld [vmem:[%s5 + $0x1f0] sm:$0xff]
  %v2305 = vld [vmem:[%s5 + $0x1f8] sm:$0xff]
  %v2306 = vld [vmem:[%s5 + $0x200] sm:$0xff]
  %v2307 = vld [vmem:[%s5 + $0x208] sm:$0xff]
  %v2308 = vld [vmem:[%s5 + $0x210] sm:$0xff]
  %v2309 = vld [vmem:[%s5 + $0x218] sm:$0xff]
  %v2310 = vld [vmem:[%s5 + $0x220] sm:$0xff]
  %v2311 = vld [vmem:[%s5 + $0x228] sm:$0xff]
  %v2312 = vld [vmem:[%s5 + $0x230] sm:$0xff]
  %v2313 = vld [vmem:[%s5 + $0x238] sm:$0xff]
  %v2314 = vld [vmem:[%s5 + $0x240] sm:$0xff]
  %v2315 = vld [vmem:[%s5 + $0x248] sm:$0xff]
  %v2316 = vld [vmem:[%s5 + $0x250] sm:$0xff]
  %v2317 = vld [vmem:[%s5 + $0x258] sm:$0xff]
  %v2318 = vld [vmem:[%s5 + $0x260] sm:$0xff]
  %v2319 = vld [vmem:[%s5 + $0x268] sm:$0xff]
  %v2320 = vld [vmem:[%s5 + $0x270] sm:$0xff]
  %v2321 = vld [vmem:[%s5 + $0x278] sm:$0xff]
  %v2322 = vld [vmem:[%s5 + $0x280] sm:$0xff]
  %v2323 = vld [vmem:[%s5 + $0x288] sm:$0xff]
  %v2324 = vld [vmem:[%s5 + $0x290] sm:$0xff]
  %v2325 = vld [vmem:[%s5 + $0x298] sm:$0xff]
  %v2326 = vld [vmem:[%s5 + $0x2a0] sm:$0xff]
  %v2327 = vld [vmem:[%s5 + $0x2a8] sm:$0xff]
  %v2328 = vld [vmem:[%s5 + $0x2b0] sm:$0xff]
  %v2329 = vld [vmem:[%s5 + $0x2b8] sm:$0xff]
  %v2330 = vld [vmem:[%s5 + $0x2c0] sm:$0xff]
  %v2331 = vld [vmem:[%s5 + $0x2c8] sm:$0xff]
  %v2332 = vld [vmem:[%s5 + $0x2d0] sm:$0xff]
  %v2333 = vld [vmem:[%s5 + $0x2d8] sm:$0xff]
  %v2334 = vld [vmem:[%s5 + $0x2e0] sm:$0xff]
  %v2335 = vld [vmem:[%s5 + $0x2e8] sm:$0xff]
  %v2336 = vld [vmem:[%s5 + $0x2f0] sm:$0xff]
  %v2337 = vld [vmem:[%s5 + $0x2f8] sm:$0xff]
  %v2338 = vld [vmem:[%s5 + $0x300] sm:$0xff]
  %v2339 = vld [vmem:[%s5 + $0x308] sm:$0xff]
  %v2340 = vld [vmem:[%s5 + $0x310] sm:$0xff]
  %v2341 = vld [vmem:[%s5 + $0x318] sm:$0xff]
  %v2342 = vld [vmem:[%s5 + $0x320] sm:$0xff]
  %v2343 = vld [vmem:[%s5 + $0x328] sm:$0xff]
  %v2344 = vld [vmem:[%s5 + $0x330] sm:$0xff]
  %v2345 = vld [vmem:[%s5 + $0x338] sm:$0xff]
  %v2346 = vld [vmem:[%s5 + $0x340] sm:$0xff]
  %v2347 = vld [vmem:[%s5 + $0x348] sm:$0xff]
  %v2348 = vld [vmem:[%s5 + $0x350] sm:$0xff]
  %v2349 = vld [vmem:[%s5 + $0x358] sm:$0xff]
  %v2350 = vld [vmem:[%s5 + $0x360] sm:$0xff]
  %v2351 = vld [vmem:[%s5 + $0x368] sm:$0xff]
  %v2352 = vld [vmem:[%s5 + $0x370] sm:$0xff]
  %v2353 = vld [vmem:[%s5 + $0x378] sm:$0x33]
  %v2466 = vunpack.c.l.b16 %v2242
  %v2467 = vunpack.c.h.b16 %v2242
  %v2468 = vunpack.c.l.b16 %v2243
  %v2469 = vunpack.c.h.b16 %v2243
  %v2470 = vunpack.c.l.b16 %v2244
  %v2471 = vunpack.c.h.b16 %v2244
  %v2472 = vunpack.c.l.b16 %v2245
  %v2473 = vunpack.c.h.b16 %v2245
  %v2474 = vunpack.c.l.b16 %v2246
  %v2475 = vunpack.c.h.b16 %v2246
  %v2476 = vunpack.c.l.b16 %v2247
  %v2477 = vunpack.c.h.b16 %v2247
  %v2478 = vunpack.c.l.b16 %v2248
  %v2479 = vunpack.c.h.b16 %v2248
  %v2480 = vunpack.c.l.b16 %v2249
  %v2481 = vunpack.c.h.b16 %v2249
  %v2482 = vunpack.c.l.b16 %v2250
  %v2483 = vunpack.c.h.b16 %v2250
  %v2484 = vunpack.c.l.b16 %v2251
  %v2485 = vunpack.c.h.b16 %v2251
  %v2486 = vunpack.c.l.b16 %v2252
  %v2487 = vunpack.c.h.b16 %v2252
  %v2488 = vunpack.c.l.b16 %v2253
  %v2489 = vunpack.c.h.b16 %v2253
  %v2490 = vunpack.c.l.b16 %v2254
  %v2491 = vunpack.c.h.b16 %v2254
  %v2492 = vunpack.c.l.b16 %v2255
  %v2493 = vunpack.c.h.b16 %v2255
  %v2494 = vunpack.c.l.b16 %v2256
  %v2495 = vunpack.c.h.b16 %v2256
  %v2496 = vunpack.c.l.b16 %v2257
  %v2497 = vunpack.c.h.b16 %v2257
  %v2498 = vunpack.c.l.b16 %v2258
  %v2499 = vunpack.c.h.b16 %v2258
  %v2500 = vunpack.c.l.b16 %v2259
  %v2501 = vunpack.c.h.b16 %v2259
  %v2502 = vunpack.c.l.b16 %v2260
  %v2503 = vunpack.c.h.b16 %v2260
  %v2504 = vunpack.c.l.b16 %v2261
  %v2505 = vunpack.c.h.b16 %v2261
  %v2506 = vunpack.c.l.b16 %v2262
  %v2507 = vunpack.c.h.b16 %v2262
  %v2508 = vunpack.c.l.b16 %v2263
  %v2509 = vunpack.c.h.b16 %v2263
  %v2510 = vunpack.c.l.b16 %v2264
  %v2511 = vunpack.c.h.b16 %v2264
  %v2512 = vunpack.c.l.b16 %v2265
  %v2513 = vunpack.c.h.b16 %v2265
  %v2514 = vunpack.c.l.b16 %v2266
  %v2515 = vunpack.c.h.b16 %v2266
  %v2516 = vunpack.c.l.b16 %v2267
  %v2517 = vunpack.c.h.b16 %v2267
  %v2518 = vunpack.c.l.b16 %v2268
  %v2519 = vunpack.c.h.b16 %v2268
  %v2520 = vunpack.c.l.b16 %v2269
  %v2521 = vunpack.c.h.b16 %v2269
  %v2522 = vunpack.c.l.b16 %v2270
  %v2523 = vunpack.c.h.b16 %v2270
  %v2524 = vunpack.c.l.b16 %v2271
  %v2525 = vunpack.c.h.b16 %v2271
  %v2526 = vunpack.c.l.b16 %v2272
  %v2527 = vunpack.c.h.b16 %v2272
  %v2528 = vunpack.c.l.b16 %v2273
  %v2529 = vunpack.c.h.b16 %v2273
  %v2530 = vunpack.c.l.b16 %v2274
  %v2531 = vunpack.c.h.b16 %v2274
  %v2532 = vunpack.c.l.b16 %v2275
  %v2533 = vunpack.c.h.b16 %v2275
  %v2534 = vunpack.c.l.b16 %v2276
  %v2535 = vunpack.c.h.b16 %v2276
  %v2536 = vunpack.c.l.b16 %v2277
  %v2537 = vunpack.c.h.b16 %v2277
  %v2538 = vunpack.c.l.b16 %v2278
  %v2539 = vunpack.c.h.b16 %v2278
  %v2540 = vunpack.c.l.b16 %v2279
  %v2541 = vunpack.c.h.b16 %v2279
  %v2542 = vunpack.c.l.b16 %v2280
  %v2543 = vunpack.c.h.b16 %v2280
  %v2544 = vunpack.c.l.b16 %v2281
  %v2545 = vunpack.c.h.b16 %v2281
  %v2546 = vunpack.c.l.b16 %v2282
  %v2547 = vunpack.c.h.b16 %v2282
  %v2548 = vunpack.c.l.b16 %v2283
  %v2549 = vunpack.c.h.b16 %v2283
  %v2550 = vunpack.c.l.b16 %v2284
  %v2551 = vunpack.c.h.b16 %v2284
  %v2552 = vunpack.c.l.b16 %v2285
  %v2553 = vunpack.c.h.b16 %v2285
  %v2554 = vunpack.c.l.b16 %v2286
  %v2555 = vunpack.c.h.b16 %v2286
  %v2556 = vunpack.c.l.b16 %v2287
  %v2557 = vunpack.c.h.b16 %v2287
  %v2558 = vunpack.c.l.b16 %v2288
  %v2559 = vunpack.c.h.b16 %v2288
  %v2560 = vunpack.c.l.b16 %v2289
  %v2561 = vunpack.c.h.b16 %v2289
  %v2562 = vunpack.c.l.b16 %v2290
  %v2563 = vunpack.c.h.b16 %v2290
  %v2564 = vunpack.c.l.b16 %v2291
  %v2565 = vunpack.c.h.b16 %v2291
  %v2566 = vunpack.c.l.b16 %v2292
  %v2567 = vunpack.c.h.b16 %v2292
  %v2568 = vunpack.c.l.b16 %v2293
  %v2569 = vunpack.c.h.b16 %v2293
  %v2570 = vunpack.c.l.b16 %v2294
  %v2571 = vunpack.c.h.b16 %v2294
  %v2572 = vunpack.c.l.b16 %v2295
  %v2573 = vunpack.c.h.b16 %v2295
  %v2574 = vunpack.c.l.b16 %v2296
  %v2575 = vunpack.c.h.b16 %v2296
  %v2576 = vunpack.c.l.b16 %v2297
  %v2577 = vunpack.c.h.b16 %v2297
  %v2578 = vunpack.c.l.b16 %v2298
  %v2579 = vunpack.c.h.b16 %v2298
  %v2580 = vunpack.c.l.b16 %v2299
  %v2581 = vunpack.c.h.b16 %v2299
  %v2582 = vunpack.c.l.b16 %v2300
  %v2583 = vunpack.c.h.b16 %v2300
  %v2584 = vunpack.c.l.b16 %v2301
  %v2585 = vunpack.c.h.b16 %v2301
  %v2586 = vunpack.c.l.b16 %v2302
  %v2587 = vunpack.c.h.b16 %v2302
  %v2588 = vunpack.c.l.b16 %v2303
  %v2589 = vunpack.c.h.b16 %v2303
  %v2590 = vunpack.c.l.b16 %v2304
  %v2591 = vunpack.c.h.b16 %v2304
  %v2592 = vunpack.c.l.b16 %v2305
  %v2593 = vunpack.c.h.b16 %v2305
  %v2594 = vunpack.c.l.b16 %v2306
  %v2595 = vunpack.c.h.b16 %v2306
  %v2596 = vunpack.c.l.b16 %v2307
  %v2597 = vunpack.c.h.b16 %v2307
  %v2598 = vunpack.c.l.b16 %v2308
  %v2599 = vunpack.c.h.b16 %v2308
  %v2600 = vunpack.c.l.b16 %v2309
  %v2601 = vunpack.c.h.b16 %v2309
  %v2602 = vunpack.c.l.b16 %v2310
  %v2603 = vunpack.c.h.b16 %v2310
  %v2604 = vunpack.c.l.b16 %v2311
  %v2605 = vunpack.c.h.b16 %v2311
  %v2606 = vunpack.c.l.b16 %v2312
  %v2607 = vunpack.c.h.b16 %v2312
  %v2608 = vunpack.c.l.b16 %v2313
  %v2609 = vunpack.c.h.b16 %v2313
  %v2610 = vunpack.c.l.b16 %v2314
  %v2611 = vunpack.c.h.b16 %v2314
  %v2612 = vunpack.c.l.b16 %v2315
  %v2613 = vunpack.c.h.b16 %v2315
  %v2614 = vunpack.c.l.b16 %v2316
  %v2615 = vunpack.c.h.b16 %v2316
  %v2616 = vunpack.c.l.b16 %v2317
  %v2617 = vunpack.c.h.b16 %v2317
  %v2618 = vunpack.c.l.b16 %v2318
  %v2619 = vunpack.c.h.b16 %v2318
  %v2620 = vunpack.c.l.b16 %v2319
  %v2621 = vunpack.c.h.b16 %v2319
  %v2622 = vunpack.c.l.b16 %v2320
  %v2623 = vunpack.c.h.b16 %v2320
  %v2624 = vunpack.c.l.b16 %v2321
  %v2625 = vunpack.c.h.b16 %v2321
  %v2626 = vunpack.c.l.b16 %v2322
  %v2627 = vunpack.c.h.b16 %v2322
  %v2628 = vunpack.c.l.b16 %v2323
  %v2629 = vunpack.c.h.b16 %v2323
  %v2630 = vunpack.c.l.b16 %v2324
  %v2631 = vunpack.c.h.b16 %v2324
  %v2632 = vunpack.c.l.b16 %v2325
  %v2633 = vunpack.c.h.b16 %v2325
  %v2634 = vunpack.c.l.b16 %v2326
  %v2635 = vunpack.c.h.b16 %v2326
  %v2636 = vunpack.c.l.b16 %v2327
  %v2637 = vunpack.c.h.b16 %v2327
  %v2638 = vunpack.c.l.b16 %v2328
  %v2639 = vunpack.c.h.b16 %v2328
  %v2640 = vunpack.c.l.b16 %v2329
  %v2641 = vunpack.c.h.b16 %v2329
  %v2642 = vunpack.c.l.b16 %v2330
  %v2643 = vunpack.c.h.b16 %v2330
  %v2644 = vunpack.c.l.b16 %v2331
  %v2645 = vunpack.c.h.b16 %v2331
  %v2646 = vunpack.c.l.b16 %v2332
  %v2647 = vunpack.c.h.b16 %v2332
  %v2648 = vunpack.c.l.b16 %v2333
  %v2649 = vunpack.c.h.b16 %v2333
  %v2650 = vunpack.c.l.b16 %v2334
  %v2651 = vunpack.c.h.b16 %v2334
  %v2652 = vunpack.c.l.b16 %v2335
  %v2653 = vunpack.c.h.b16 %v2335
  %v2654 = vunpack.c.l.b16 %v2336
  %v2655 = vunpack.c.h.b16 %v2336
  %v2656 = vunpack.c.l.b16 %v2337
  %v2657 = vunpack.c.h.b16 %v2337
  %v2658 = vunpack.c.l.b16 %v2338
  %v2659 = vunpack.c.h.b16 %v2338
  %v2660 = vunpack.c.l.b16 %v2339
  %v2661 = vunpack.c.h.b16 %v2339
  %v2662 = vunpack.c.l.b16 %v2340
  %v2663 = vunpack.c.h.b16 %v2340
  %v2664 = vunpack.c.l.b16 %v2341
  %v2665 = vunpack.c.h.b16 %v2341
  %v2666 = vunpack.c.l.b16 %v2342
  %v2667 = vunpack.c.h.b16 %v2342
  %v2668 = vunpack.c.l.b16 %v2343
  %v2669 = vunpack.c.h.b16 %v2343
  %v2670 = vunpack.c.l.b16 %v2344
  %v2671 = vunpack.c.h.b16 %v2344
  %v2672 = vunpack.c.l.b16 %v2345
  %v2673 = vunpack.c.h.b16 %v2345
  %v2674 = vunpack.c.l.b16 %v2346
  %v2675 = vunpack.c.h.b16 %v2346
  %v2676 = vunpack.c.l.b16 %v2347
  %v2677 = vunpack.c.h.b16 %v2347
  %v2678 = vunpack.c.l.b16 %v2348
  %v2679 = vunpack.c.h.b16 %v2348
  %v2680 = vunpack.c.l.b16 %v2349
  %v2681 = vunpack.c.h.b16 %v2349
  %v2682 = vunpack.c.l.b16 %v2350
  %v2683 = vunpack.c.h.b16 %v2350
  %v2684 = vunpack.c.l.b16 %v2351
  %v2685 = vunpack.c.h.b16 %v2351
  %v2686 = vunpack.c.l.b16 %v2352
  %v2687 = vunpack.c.h.b16 %v2352
  %v2688 = vunpack.c.l.b16 %v2353
  %v2689 = vunpack.c.h.b16 %v2353
  %v2690 = vpack.c.b16 %v2468, %v2466
  %v2691 = vpack.c.b16 %v2469, %v2467
  %v2692 = vpack.c.b16 %v2472, %v2470
  %v2693 = vpack.c.b16 %v2473, %v2471
  %v2694 = vpack.c.b16 %v2476, %v2474
  %v2695 = vpack.c.b16 %v2477, %v2475
  %v2696 = vpack.c.b16 %v2480, %v2478
  %v2697 = vpack.c.b16 %v2481, %v2479
  %v2698 = vpack.c.b16 %v2484, %v2482
  %v2699 = vpack.c.b16 %v2485, %v2483
  %v2700 = vpack.c.b16 %v2488, %v2486
  %v2701 = vpack.c.b16 %v2489, %v2487
  %v2702 = vpack.c.b16 %v2492, %v2490
  %v2703 = vpack.c.b16 %v2493, %v2491
  %v2704 = vpack.c.b16 %v2496, %v2494
  %v2705 = vpack.c.b16 %v2497, %v2495
  %v2706 = vpack.c.b16 %v2500, %v2498
  %v2707 = vpack.c.b16 %v2501, %v2499
  %v2708 = vpack.c.b16 %v2504, %v2502
  %v2709 = vpack.c.b16 %v2505, %v2503
  %v2710 = vpack.c.b16 %v2508, %v2506
  %v2711 = vpack.c.b16 %v2509, %v2507
  %v2712 = vpack.c.b16 %v2512, %v2510
  %v2713 = vpack.c.b16 %v2513, %v2511
  %v2714 = vpack.c.b16 %v2516, %v2514
  %v2715 = vpack.c.b16 %v2517, %v2515
  %v2716 = vpack.c.b16 %v2520, %v2518
  %v2717 = vpack.c.b16 %v2521, %v2519
  %v2718 = vpack.c.b16 %v2524, %v2522
  %v2719 = vpack.c.b16 %v2525, %v2523
  %v2720 = vpack.c.b16 %v2528, %v2526
  %v2721 = vpack.c.b16 %v2529, %v2527
  %v2722 = vpack.c.b16 %v2532, %v2530
  %v2723 = vpack.c.b16 %v2533, %v2531
  %v2724 = vpack.c.b16 %v2536, %v2534
  %v2725 = vpack.c.b16 %v2537, %v2535
  %v2726 = vpack.c.b16 %v2540, %v2538
  %v2727 = vpack.c.b16 %v2541, %v2539
  %v2728 = vpack.c.b16 %v2544, %v2542
  %v2729 = vpack.c.b16 %v2545, %v2543
  %v2730 = vpack.c.b16 %v2548, %v2546
  %v2731 = vpack.c.b16 %v2549, %v2547
  %v2732 = vpack.c.b16 %v2552, %v2550
  %v2733 = vpack.c.b16 %v2553, %v2551
  %v2734 = vpack.c.b16 %v2556, %v2554
  %v2735 = vpack.c.b16 %v2557, %v2555
  %v2736 = vpack.c.b16 %v2560, %v2558
  %v2737 = vpack.c.b16 %v2561, %v2559
  %v2738 = vpack.c.b16 %v2564, %v2562
  %v2739 = vpack.c.b16 %v2565, %v2563
  %v2740 = vpack.c.b16 %v2568, %v2566
  %v2741 = vpack.c.b16 %v2569, %v2567
  %v2742 = vpack.c.b16 %v2572, %v2570
  %v2743 = vpack.c.b16 %v2573, %v2571
  %v2744 = vpack.c.b16 %v2576, %v2574
  %v2745 = vpack.c.b16 %v2577, %v2575
  %v2746 = vpack.c.b16 %v2580, %v2578
  %v2747 = vpack.c.b16 %v2581, %v2579
  %v2748 = vpack.c.b16 %v2584, %v2582
  %v2749 = vpack.c.b16 %v2585, %v2583
  %v2750 = vpack.c.b16 %v2588, %v2586
  %v2751 = vpack.c.b16 %v2589, %v2587
  %v2752 = vpack.c.b16 %v2592, %v2590
  %v2753 = vpack.c.b16 %v2593, %v2591
  %v2754 = vpack.c.b16 %v2596, %v2594
  %v2755 = vpack.c.b16 %v2597, %v2595
  %v2756 = vpack.c.b16 %v2600, %v2598
  %v2757 = vpack.c.b16 %v2601, %v2599
  %v2758 = vpack.c.b16 %v2604, %v2602
  %v2759 = vpack.c.b16 %v2605, %v2603
  %v2760 = vpack.c.b16 %v2608, %v2606
  %v2761 = vpack.c.b16 %v2609, %v2607
  %v2762 = vpack.c.b16 %v2612, %v2610
  %v2763 = vpack.c.b16 %v2613, %v2611
  %v2764 = vpack.c.b16 %v2616, %v2614
  %v2765 = vpack.c.b16 %v2617, %v2615
  %v2766 = vpack.c.b16 %v2620, %v2618
  %v2767 = vpack.c.b16 %v2621, %v2619
  %v2768 = vpack.c.b16 %v2624, %v2622
  %v2769 = vpack.c.b16 %v2625, %v2623
  %v2770 = vpack.c.b16 %v2628, %v2626
  %v2771 = vpack.c.b16 %v2629, %v2627
  %v2772 = vpack.c.b16 %v2632, %v2630
  %v2773 = vpack.c.b16 %v2633, %v2631
  %v2774 = vpack.c.b16 %v2636, %v2634
  %v2775 = vpack.c.b16 %v2637, %v2635
  %v2776 = vpack.c.b16 %v2640, %v2638
  %v2777 = vpack.c.b16 %v2641, %v2639
  %v2778 = vpack.c.b16 %v2644, %v2642
  %v2779 = vpack.c.b16 %v2645, %v2643
  %v2780 = vpack.c.b16 %v2648, %v2646
  %v2781 = vpack.c.b16 %v2649, %v2647
  %v2782 = vpack.c.b16 %v2652, %v2650
  %v2783 = vpack.c.b16 %v2653, %v2651
  %v2784 = vpack.c.b16 %v2656, %v2654
  %v2785 = vpack.c.b16 %v2657, %v2655
  %v2786 = vpack.c.b16 %v2660, %v2658
  %v2787 = vpack.c.b16 %v2661, %v2659
  %v2788 = vpack.c.b16 %v2664, %v2662
  %v2789 = vpack.c.b16 %v2665, %v2663
  %v2790 = vpack.c.b16 %v2668, %v2666
  %v2791 = vpack.c.b16 %v2669, %v2667
  %v2792 = vpack.c.b16 %v2672, %v2670
  %v2793 = vpack.c.b16 %v2673, %v2671
  %v2794 = vpack.c.b16 %v2676, %v2674
  %v2795 = vpack.c.b16 %v2677, %v2675
  %v2796 = vpack.c.b16 %v2680, %v2678
  %v2797 = vpack.c.b16 %v2681, %v2679
  %v2798 = vpack.c.b16 %v2684, %v2682
  %v2799 = vpack.c.b16 %v2685, %v2683
  %v2800 = vpack.c.b16 %v2688, %v2686
  %v2801 = vpack.c.b16 %v2689, %v2687
  %vm2912 = vcmask 1014784
  %v2914 = vsel %vm2912, %v2206, 0
  %v2917 = vsel %vm2912, %v2213, 0
  %v2920 = vsel %vm2912, %v2220, 0
  %v2923 = vsel %vm2912, %v2227, 0
  %v2926 = vsel %vm2912, %v2234, 0
  %v2929 = vsel %vm2912, %v2241, 0
  %vm2931 = vcmask 1045504
  %v2933 = vsel %vm2931, %v2800, 0
  %v2936 = vsel %vm2931, %v2801, 0
  %2938 = vmatprep.subr.bf16.mxu0 %v2705
  %2939 = vmatpush1.bf16.msra.mxu0 %v2704
  %2940 = vmatprep.subr.bf16.mxu0 %v2703
  %2941 = vmatpush1.bf16.msra.mxu0 %v2702
  %2942 = vmatprep.subr.bf16.mxu0 %v2701
  %2943 = vmatpush1.bf16.msra.mxu0 %v2700
  %2944 = vmatprep.subr.bf16.mxu0 %v2699
  %2945 = vmatpush1.bf16.msra.mxu0 %v2698
  %2946 = vmatprep.subr.bf16.mxu0 %v2697
  %2947 = vmatpush1.bf16.msra.mxu0 %v2696
  %2948 = vmatprep.subr.bf16.mxu0 %v2695
  %2949 = vmatpush1.bf16.msra.mxu0 %v2694
  %2950 = vmatprep.subr.bf16.mxu0 %v2693
  %2951 = vmatpush1.bf16.msra.mxu0 %v2692
  %2952 = vmatprep.subr.bf16.mxu0 %v2691
  %2953 = vmatpush1.bf16.msra.mxu0 %v2690
  %2954 = vmatprep.subr.bf16.mxu0 %v2721
  %2955 = vmatpush2.bf16.msra.mxu0 %v2720
  %2956 = vmatprep.subr.bf16.mxu0 %v2719
  %2957 = vmatpush2.bf16.msra.mxu0 %v2718
  %2958 = vmatprep.subr.bf16.mxu0 %v2717
  %2959 = vmatpush2.bf16.msra.mxu0 %v2716
  %2960 = vmatprep.subr.bf16.mxu0 %v2715
  %2961 = vmatpush2.bf16.msra.mxu0 %v2714
  %2962 = vmatprep.subr.bf16.mxu0 %v2713
  %2963 = vmatpush2.bf16.msra.mxu0 %v2712
  %2964 = vmatprep.subr.bf16.mxu0 %v2711
  %2965 = vmatpush2.bf16.msra.mxu0 %v2710
  %2966 = vmatprep.subr.bf16.mxu0 %v2709
  %2967 = vmatpush2.bf16.msra.mxu0 %v2708
  %2968 = vmatprep.subr.bf16.mxu0 %v2707
  %2969 = vmatpush2.bf16.msra.mxu0 %v2706
  %2970 = vmatprep.mubr.bf16.mxu0 %v2201
  %2971 = vmatmul.mubr.bf16.gmra.mxu0 %v2200
  %v2972 = vpop.f32.mrf.mxu0
  %v2973 = vadd.f32 0.0, %v2972
  %v2974 = vpop.f32.mrf.mxu0
  %v2975 = vadd.f32 0.0, %v2974
  %v2976 = vpop.f32.mrf.mxu0
  %v2977 = vadd.f32 0.0, %v2976
  %v2978 = vpop.f32.mrf.mxu0
  %v2979 = vadd.f32 0.0, %v2978
  %2980 = vmatprep.mubr.bf16.mxu0 %v2208
  %2981 = vmatmul.mubr.bf16.gmra.mxu0 %v2207
  %v2982 = vpop.f32.mrf.mxu0
  %v2983 = vadd.f32 0.0, %v2982
  %v2984 = vpop.f32.mrf.mxu0
  %v2985 = vadd.f32 0.0, %v2984
  %v2986 = vpop.f32.mrf.mxu0
  %v2987 = vadd.f32 0.0, %v2986
  %v2988 = vpop.f32.mrf.mxu0
  %v2989 = vadd.f32 0.0, %v2988
  %2990 = vmatprep.mubr.bf16.mxu0 %v2215
  %2991 = vmatmul.mubr.bf16.gmra.mxu0 %v2214
  %v2992 = vpop.f32.mrf.mxu0
  %v2993 = vadd.f32 0.0, %v2992
  %v2994 = vpop.f32.mrf.mxu0
  %v2995 = vadd.f32 0.0, %v2994
  %v2996 = vpop.f32.mrf.mxu0
  %v2997 = vadd.f32 0.0, %v2996
  %v2998 = vpop.f32.mrf.mxu0
  %v2999 = vadd.f32 0.0, %v2998
  %3000 = vmatprep.mubr.bf16.mxu0 %v2222
  %3001 = vmatmul.mubr.bf16.gmra.mxu0 %v2221
  %v3002 = vpop.f32.mrf.mxu0
  %v3003 = vadd.f32 0.0, %v3002
  %v3004 = vpop.f32.mrf.mxu0
  %v3005 = vadd.f32 0.0, %v3004
  %v3006 = vpop.f32.mrf.mxu0
  %v3007 = vadd.f32 0.0, %v3006
  %v3008 = vpop.f32.mrf.mxu0
  %v3009 = vadd.f32 0.0, %v3008
  %3010 = vmatprep.mubr.bf16.mxu0 %v2229
  %3011 = vmatmul.mubr.bf16.gmra.mxu0 %v2228
  %v3012 = vpop.f32.mrf.mxu0
  %v3013 = vadd.f32 0.0, %v3012
  %v3014 = vpop.f32.mrf.mxu0
  %v3015 = vadd.f32 0.0, %v3014
  %v3016 = vpop.f32.mrf.mxu0
  %v3017 = vadd.f32 0.0, %v3016
  %v3018 = vpop.f32.mrf.mxu0
  %v3019 = vadd.f32 0.0, %v3018
  %3020 = vmatprep.mubr.bf16.mxu0 %v2236
  %3021 = vmatmul.mubr.bf16.gmra.mxu0 %v2235
  %v3022 = vpop.f32.mrf.mxu0
  %v3023 = vadd.f32 0.0, %v3022
  %v3024 = vpop.f32.mrf.mxu0
  %v3025 = vadd.f32 0.0, %v3024
  %v3026 = vpop.f32.mrf.mxu0
  %v3027 = vadd.f32 0.0, %v3026
  %v3028 = vpop.f32.mrf.mxu0
  %v3029 = vadd.f32 0.0, %v3028
  %3030 = vdwg.mxu0
  %3031 = vmatprep.subr.bf16.mxu0 %v2737
  %3032 = vmatpush1.bf16.msra.mxu0 %v2736
  %3033 = vmatprep.subr.bf16.mxu0 %v2735
  %3034 = vmatpush1.bf16.msra.mxu0 %v2734
  %3035 = vmatprep.subr.bf16.mxu0 %v2733
  %3036 = vmatpush1.bf16.msra.mxu0 %v2732
  %3037 = vmatprep.subr.bf16.mxu0 %v2731
  %3038 = vmatpush1.bf16.msra.mxu0 %v2730
  %3039 = vmatprep.subr.bf16.mxu0 %v2729
  %3040 = vmatpush1.bf16.msra.mxu0 %v2728
  %3041 = vmatprep.subr.bf16.mxu0 %v2727
  %3042 = vmatpush1.bf16.msra.mxu0 %v2726
  %3043 = vmatprep.subr.bf16.mxu0 %v2725
  %3044 = vmatpush1.bf16.msra.mxu0 %v2724
  %3045 = vmatprep.subr.bf16.mxu0 %v2723
  %3046 = vmatpush1.bf16.msra.mxu0 %v2722
  %3047 = vmatprep.subr.bf16.mxu0 %v2753
  %3048 = vmatpush2.bf16.msra.mxu0 %v2752
  %3049 = vmatprep.subr.bf16.mxu0 %v2751
  %3050 = vmatpush2.bf16.msra.mxu0 %v2750
  %3051 = vmatprep.subr.bf16.mxu0 %v2749
  %3052 = vmatpush2.bf16.msra.mxu0 %v2748
  %3053 = vmatprep.subr.bf16.mxu0 %v2747
  %3054 = vmatpush2.bf16.msra.mxu0 %v2746
  %3055 = vmatprep.subr.bf16.mxu0 %v2745
  %3056 = vmatpush2.bf16.msra.mxu0 %v2744
  %3057 = vmatprep.subr.bf16.mxu0 %v2743
  %3058 = vmatpush2.bf16.msra.mxu0 %v2742
  %3059 = vmatprep.subr.bf16.mxu0 %v2741
  %3060 = vmatpush2.bf16.msra.mxu0 %v2740
  %3061 = vmatprep.subr.bf16.mxu0 %v2739
  %3062 = vmatpush2.bf16.msra.mxu0 %v2738
  %3063 = vmatprep.mubr.bf16.mxu0 %v2203
  %3064 = vmatmul.mubr.bf16.gmra.mxu0 %v2202
  %v3065 = vpop.f32.mrf.mxu0
  %v3066 = vadd.f32 %v2973, %v3065
  %v3067 = vpop.f32.mrf.mxu0
  %v3068 = vadd.f32 %v2975, %v3067
  %v3069 = vpop.f32.mrf.mxu0
  %v3070 = vadd.f32 %v2977, %v3069
  %v3071 = vpop.f32.mrf.mxu0
  %v3072 = vadd.f32 %v2979, %v3071
  %3073 = vmatprep.mubr.bf16.mxu0 %v2210
  %3074 = vmatmul.mubr.bf16.gmra.mxu0 %v2209
  %v3075 = vpop.f32.mrf.mxu0
  %v3076 = vadd.f32 %v2983, %v3075
  %v3077 = vpop.f32.mrf.mxu0
  %v3078 = vadd.f32 %v2985, %v3077
  %v3079 = vpop.f32.mrf.mxu0
  %v3080 = vadd.f32 %v2987, %v3079
  %v3081 = vpop.f32.mrf.mxu0
  %v3082 = vadd.f32 %v2989, %v3081
  %3083 = vmatprep.mubr.bf16.mxu0 %v2217
  %3084 = vmatmul.mubr.bf16.gmra.mxu0 %v2216
  %v3085 = vpop.f32.mrf.mxu0
  %v3086 = vadd.f32 %v2993, %v3085
  %v3087 = vpop.f32.mrf.mxu0
  %v3088 = vadd.f32 %v2995, %v3087
  %v3089 = vpop.f32.mrf.mxu0
  %v3090 = vadd.f32 %v2997, %v3089
  %v3091 = vpop.f32.mrf.mxu0
  %v3092 = vadd.f32 %v2999, %v3091
  %3093 = vmatprep.mubr.bf16.mxu0 %v2224
  %3094 = vmatmul.mubr.bf16.gmra.mxu0 %v2223
  %v3095 = vpop.f32.mrf.mxu0
  %v3096 = vadd.f32 %v3003, %v3095
  %v3097 = vpop.f32.mrf.mxu0
  %v3098 = vadd.f32 %v3005, %v3097
  %v3099 = vpop.f32.mrf.mxu0
  %v3100 = vadd.f32 %v3007, %v3099
  %v3101 = vpop.f32.mrf.mxu0
  %v3102 = vadd.f32 %v3009, %v3101
  %3103 = vmatprep.mubr.bf16.mxu0 %v2231
  %3104 = vmatmul.mubr.bf16.gmra.mxu0 %v2230
  %v3105 = vpop.f32.mrf.mxu0
  %v3106 = vadd.f32 %v3013, %v3105
  %v3107 = vpop.f32.mrf.mxu0
  %v3108 = vadd.f32 %v3015, %v3107
  %v3109 = vpop.f32.mrf.mxu0
  %v3110 = vadd.f32 %v3017, %v3109
  %v3111 = vpop.f32.mrf.mxu0
  %v3112 = vadd.f32 %v3019, %v3111
  %3113 = vmatprep.mubr.bf16.mxu0 %v2238
  %3114 = vmatmul.mubr.bf16.gmra.mxu0 %v2237
  %v3115 = vpop.f32.mrf.mxu0
  %v3116 = vadd.f32 %v3023, %v3115
  %v3117 = vpop.f32.mrf.mxu0
  %v3118 = vadd.f32 %v3025, %v3117
  %v3119 = vpop.f32.mrf.mxu0
  %v3120 = vadd.f32 %v3027, %v3119
  %v3121 = vpop.f32.mrf.mxu0
  %v3122 = vadd.f32 %v3029, %v3121
  %3123 = vdwg.mxu0
  %3124 = vmatprep.subr.bf16.mxu0 %v2769
  %3125 = vmatpush1.bf16.msra.mxu0 %v2768
  %3126 = vmatprep.subr.bf16.mxu0 %v2767
  %3127 = vmatpush1.bf16.msra.mxu0 %v2766
  %3128 = vmatprep.subr.bf16.mxu0 %v2765
  %3129 = vmatpush1.bf16.msra.mxu0 %v2764
  %3130 = vmatprep.subr.bf16.mxu0 %v2763
  %3131 = vmatpush1.bf16.msra.mxu0 %v2762
  %3132 = vmatprep.subr.bf16.mxu0 %v2761
  %3133 = vmatpush1.bf16.msra.mxu0 %v2760
  %3134 = vmatprep.subr.bf16.mxu0 %v2759
  %3135 = vmatpush1.bf16.msra.mxu0 %v2758
  %3136 = vmatprep.subr.bf16.mxu0 %v2757
  %3137 = vmatpush1.bf16.msra.mxu0 %v2756
  %3138 = vmatprep.subr.bf16.mxu0 %v2755
  %3139 = vmatpush1.bf16.msra.mxu0 %v2754
  %3140 = vmatprep.subr.bf16.mxu0 %v2785
  %3141 = vmatpush2.bf16.msra.mxu0 %v2784
  %3142 = vmatprep.subr.bf16.mxu0 %v2783
  %3143 = vmatpush2.bf16.msra.mxu0 %v2782
  %3144 = vmatprep.subr.bf16.mxu0 %v2781
  %3145 = vmatpush2.bf16.msra.mxu0 %v2780
  %3146 = vmatprep.subr.bf16.mxu0 %v2779
  %3147 = vmatpush2.bf16.msra.mxu0 %v2778
  %3148 = vmatprep.subr.bf16.mxu0 %v2777
  %3149 = vmatpush2.bf16.msra.mxu0 %v2776
  %3150 = vmatprep.subr.bf16.mxu0 %v2775
  %3151 = vmatpush2.bf16.msra.mxu0 %v2774
  %3152 = vmatprep.subr.bf16.mxu0 %v2773
  %3153 = vmatpush2.bf16.msra.mxu0 %v2772
  %3154 = vmatprep.subr.bf16.mxu0 %v2771
  %3155 = vmatpush2.bf16.msra.mxu0 %v2770
  %3156 = vmatprep.mubr.bf16.mxu0 %v2205
  %3157 = vmatmul.mubr.bf16.gmra.mxu0 %v2204
  %v3158 = vpop.f32.mrf.mxu0
  %v3159 = vadd.f32 %v3066, %v3158
  %v3160 = vpop.f32.mrf.mxu0
  %v3161 = vadd.f32 %v3068, %v3160
  %v3162 = vpop.f32.mrf.mxu0
  %v3163 = vadd.f32 %v3070, %v3162
  %v3164 = vpop.f32.mrf.mxu0
  %v3165 = vadd.f32 %v3072, %v3164
  %3166 = vmatprep.mubr.bf16.mxu0 %v2212
  %3167 = vmatmul.mubr.bf16.gmra.mxu0 %v2211
  %v3168 = vpop.f32.mrf.mxu0
  %v3169 = vadd.f32 %v3076, %v3168
  %v3170 = vpop.f32.mrf.mxu0
  %v3171 = vadd.f32 %v3078, %v3170
  %v3172 = vpop.f32.mrf.mxu0
  %v3173 = vadd.f32 %v3080, %v3172
  %v3174 = vpop.f32.mrf.mxu0
  %v3175 = vadd.f32 %v3082, %v3174
  %3176 = vmatprep.mubr.bf16.mxu0 %v2219
  %3177 = vmatmul.mubr.bf16.gmra.mxu0 %v2218
  %v3178 = vpop.f32.mrf.mxu0
  %v3179 = vadd.f32 %v3086, %v3178
  %v3180 = vpop.f32.mrf.mxu0
  %v3181 = vadd.f32 %v3088, %v3180
  %v3182 = vpop.f32.mrf.mxu0
  %v3183 = vadd.f32 %v3090, %v3182
  %v3184 = vpop.f32.mrf.mxu0
  %v3185 = vadd.f32 %v3092, %v3184
  %3186 = vmatprep.mubr.bf16.mxu0 %v2226
  %3187 = vmatmul.mubr.bf16.gmra.mxu0 %v2225
  %v3188 = vpop.f32.mrf.mxu0
  %v3189 = vadd.f32 %v3096, %v3188
  %v3190 = vpop.f32.mrf.mxu0
  %v3191 = vadd.f32 %v3098, %v3190
  %v3192 = vpop.f32.mrf.mxu0
  %v3193 = vadd.f32 %v3100, %v3192
  %v3194 = vpop.f32.mrf.mxu0
  %v3195 = vadd.f32 %v3102, %v3194
  %3196 = vmatprep.mubr.bf16.mxu0 %v2233
  %3197 = vmatmul.mubr.bf16.gmra.mxu0 %v2232
  %v3198 = vpop.f32.mrf.mxu0
  %v3199 = vadd.f32 %v3106, %v3198
  %v3200 = vpop.f32.mrf.mxu0
  %v3201 = vadd.f32 %v3108, %v3200
  %v3202 = vpop.f32.mrf.mxu0
  %v3203 = vadd.f32 %v3110, %v3202
  %v3204 = vpop.f32.mrf.mxu0
  %v3205 = vadd.f32 %v3112, %v3204
  %3206 = vmatprep.mubr.bf16.mxu0 %v2240
  %3207 = vmatmul.mubr.bf16.gmra.mxu0 %v2239
  %v3208 = vpop.f32.mrf.mxu0
  %v3209 = vadd.f32 %v3116, %v3208
  %v3210 = vpop.f32.mrf.mxu0
  %v3211 = vadd.f32 %v3118, %v3210
  %v3212 = vpop.f32.mrf.mxu0
  %v3213 = vadd.f32 %v3120, %v3212
  %v3214 = vpop.f32.mrf.mxu0
  %v3215 = vadd.f32 %v3122, %v3214
  %3216 = vdwg.mxu0
  %3217 = vmatprep.subr.bf16.mxu0 %v2936
  %3218 = vmatpush1.bf16.msra.mxu0 %v2933
  %3219 = vmatprep.subr.bf16.mxu0 %v2799
  %3220 = vmatpush1.bf16.msra.mxu0 %v2798
  %3221 = vmatprep.subr.bf16.mxu0 %v2797
  %3222 = vmatpush1.bf16.msra.mxu0 %v2796
  %3223 = vmatprep.subr.bf16.mxu0 %v2795
  %3224 = vmatpush1.bf16.msra.mxu0 %v2794
  %3225 = vmatprep.subr.bf16.mxu0 %v2793
  %3226 = vmatpush1.bf16.msra.mxu0 %v2792
  %3227 = vmatprep.subr.bf16.mxu0 %v2791
  %3228 = vmatpush1.bf16.msra.mxu0 %v2790
  %3229 = vmatprep.subr.bf16.mxu0 %v2789
  %3230 = vmatpush1.bf16.msra.mxu0 %v2788
  %3231 = vmatprep.subr.bf16.mxu0 %v2787
  %3232 = vmatpush1.bf16.msra.mxu0 %v2786
  %3233 = vmatprep.subr.bf16.mxu0 0
  %3234 = vmatpush2.bf16.msra.mxu0 0
  %3235 = vmatprep.subr.bf16.mxu0 0
  %3236 = vmatpush2.bf16.msra.mxu0 0
  %3237 = vmatprep.subr.bf16.mxu0 0
  %3238 = vmatpush2.bf16.msra.mxu0 0
  %3239 = vmatprep.subr.bf16.mxu0 0
  %3240 = vmatpush2.bf16.msra.mxu0 0
  %3241 = vmatprep.subr.bf16.mxu0 0
  %3242 = vmatpush2.bf16.msra.mxu0 0
  %3243 = vmatprep.subr.bf16.mxu0 0
  %3244 = vmatpush2.bf16.msra.mxu0 0
  %3245 = vmatprep.subr.bf16.mxu0 0
  %3246 = vmatpush2.bf16.msra.mxu0 0
  %3247 = vmatprep.subr.bf16.mxu0 0
  %3248 = vmatpush2.bf16.msra.mxu0 0
  %3249 = vmatprep.mubr.bf16.mxu0 0
  %3250 = vmatmul.mubr.bf16.gmra.mxu0 %v2914
  %v3251 = vpop.f32.mrf.mxu0
  %v3252 = vadd.f32 %v3159, %v3251
  %v3253 = vpop.f32.mrf.mxu0
  %v3254 = vadd.f32 %v3161, %v3253
  %v3255 = vpop.f32.mrf.mxu0
  %v3256 = vadd.f32 %v3163, %v3255
  %v3257 = vpop.f32.mrf.mxu0
  %v3258 = vadd.f32 %v3165, %v3257
  %3259 = vmatprep.mubr.bf16.mxu0 0
  %3260 = vmatmul.mubr.bf16.gmra.mxu0 %v2917
  %v3261 = vpop.f32.mrf.mxu0
  %v3262 = vadd.f32 %v3169, %v3261
  %v3263 = vpop.f32.mrf.mxu0
  %v3264 = vadd.f32 %v3171, %v3263
  %v3265 = vpop.f32.mrf.mxu0
  %v3266 = vadd.f32 %v3173, %v3265
  %v3267 = vpop.f32.mrf.mxu0
  %v3268 = vadd.f32 %v3175, %v3267
  %3269 = vmatprep.mubr.bf16.mxu0 0
  %3270 = vmatmul.mubr.bf16.gmra.mxu0 %v2920
  %v3271 = vpop.f32.mrf.mxu0
  %v3272 = vadd.f32 %v3179, %v3271
  %v3273 = vpop.f32.mrf.mxu0
  %v3274 = vadd.f32 %v3181, %v3273
  %v3275 = vpop.f32.mrf.mxu0
  %v3276 = vadd.f32 %v3183, %v3275
  %v3277 = vpop.f32.mrf.mxu0
  %v3278 = vadd.f32 %v3185, %v3277
  %3279 = vmatprep.mubr.bf16.mxu0 0
  %3280 = vmatmul.mubr.bf16.gmra.mxu0 %v2923
  %v3281 = vpop.f32.mrf.mxu0
  %v3282 = vadd.f32 %v3189, %v3281
  %v3283 = vpop.f32.mrf.mxu0
  %v3284 = vadd.f32 %v3191, %v3283
  %v3285 = vpop.f32.mrf.mxu0
  %v3286 = vadd.f32 %v3193, %v3285
  %v3287 = vpop.f32.mrf.mxu0
  %v3288 = vadd.f32 %v3195, %v3287
  %3289 = vmatprep.mubr.bf16.mxu0 0
  %3290 = vmatmul.mubr.bf16.gmra.mxu0 %v2926
  %v3291 = vpop.f32.mrf.mxu0
  %v3292 = vadd.f32 %v3199, %v3291
  %v3293 = vpop.f32.mrf.mxu0
  %v3294 = vadd.f32 %v3201, %v3293
  %v3295 = vpop.f32.mrf.mxu0
  %v3296 = vadd.f32 %v3203, %v3295
  %v3297 = vpop.f32.mrf.mxu0
  %v3298 = vadd.f32 %v3205, %v3297
  %3299 = vmatprep.mubr.bf16.mxu0 0
  %3300 = vmatmul.mubr.bf16.gmra.mxu0 %v2929
  %v3301 = vpop.f32.mrf.mxu0
  %v3302 = vadd.f32 %v3209, %v3301
  %v3303 = vpop.f32.mrf.mxu0
  %v3304 = vadd.f32 %v3211, %v3303
  %v3305 = vpop.f32.mrf.mxu0
  %v3306 = vadd.f32 %v3213, %v3305
  %v3307 = vpop.f32.mrf.mxu0
  %v3308 = vadd.f32 %v3215, %v3307
  %3309 = vdwg.mxu0
  %v3310 = vpack.c.bf16 %v3256, %v3252
  %v3311 = vpack.c.bf16 %v3258, %v3254
  %v3312 = vpack.c.bf16 %v3266, %v3262
  %v3313 = vpack.c.bf16 %v3268, %v3264
  %v3314 = vpack.c.bf16 %v3276, %v3272
  %v3315 = vpack.c.bf16 %v3278, %v3274
  %v3316 = vpack.c.bf16 %v3286, %v3282
  %v3317 = vpack.c.bf16 %v3288, %v3284
  %v3318 = vpack.c.bf16 %v3296, %v3292
  %v3319 = vpack.c.bf16 %v3298, %v3294
  %v3320 = vpack.c.bf16 %v3306, %v3302
  %v3321 = vpack.c.bf16 %v3308, %v3304
  %3334 = vrot.lane.b32.xlu0 %v3310, 127
  %v3335 = vpop.permute.xlu0 %3334
  %3336 = vrot.lane.b32.xlu0 %v3311, 127
  %v3337 = vpop.permute.xlu0 %3336
  %3338 = vrot.lane.b32.xlu0 %v3312, 127
  %v3339 = vpop.permute.xlu0 %3338
  %3340 = vrot.lane.b32.xlu0 %v3313, 127
  %v3341 = vpop.permute.xlu0 %3340
  %3342 = vrot.lane.b32.xlu0 %v3314, 127
  %v3343 = vpop.permute.xlu0 %3342
  %3344 = vrot.lane.b32.xlu0 %v3315, 127
  %v3345 = vpop.permute.xlu0 %3344
  %3346 = vrot.lane.b32.xlu0 %v3316, 127
  %v3347 = vpop.permute.xlu0 %3346
  %3348 = vrot.lane.b32.xlu0 %v3317, 127
  %v3349 = vpop.permute.xlu0 %3348
  %3350 = vrot.lane.b32.xlu0 %v3318, 127
  %v3351 = vpop.permute.xlu0 %3350
  %3352 = vrot.lane.b32.xlu0 %v3319, 127
  %v3353 = vpop.permute.xlu0 %3352
  %3354 = vrot.lane.b32.xlu0 %v3320, 127
  %v3355 = vpop.permute.xlu0 %3354
  %3356 = vrot.lane.b32.xlu0 %v3321, 127
  %v3357 = vpop.permute.xlu0 %3356
  %v3358 = vsel %vm90, %v3335, %v3337
  %v3359 = vsel %vm90, %v3339, %v3341
  %v3360 = vsel %vm90, %v3343, %v3345
  %v3361 = vsel %vm90, %v3347, %v3349
  %v3362 = vsel %vm90, %v3351, %v3353
  %v3363 = vsel %vm90, %v3355, %v3357
  %3376 = vrot.lane.b32.xlu0 %v3310, 126
  %v3377 = vpop.permute.xlu0 %3376
  %3378 = vrot.lane.b32.xlu0 %v3311, 126
  %v3379 = vpop.permute.xlu0 %3378
  %3380 = vrot.lane.b32.xlu0 %v3312, 126
  %v3381 = vpop.permute.xlu0 %3380
  %3382 = vrot.lane.b32.xlu0 %v3313, 126
  %v3383 = vpop.permute.xlu0 %3382
  %3384 = vrot.lane.b32.xlu0 %v3314, 126
  %v3385 = vpop.permute.xlu0 %3384
  %3386 = vrot.lane.b32.xlu0 %v3315, 126
  %v3387 = vpop.permute.xlu0 %3386
  %3388 = vrot.lane.b32.xlu0 %v3316, 126
  %v3389 = vpop.permute.xlu0 %3388
  %3390 = vrot.lane.b32.xlu0 %v3317, 126
  %v3391 = vpop.permute.xlu0 %3390
  %3392 = vrot.lane.b32.xlu0 %v3318, 126
  %v3393 = vpop.permute.xlu0 %3392
  %3394 = vrot.lane.b32.xlu0 %v3319, 126
  %v3395 = vpop.permute.xlu0 %3394
  %3396 = vrot.lane.b32.xlu0 %v3320, 126
  %v3397 = vpop.permute.xlu0 %3396
  %3398 = vrot.lane.b32.xlu0 %v3321, 126
  %v3399 = vpop.permute.xlu0 %3398
  %v3400 = vsel %vm118, %v3377, %v3379
  %v3401 = vsel %vm118, %v3381, %v3383
  %v3402 = vsel %vm118, %v3385, %v3387
  %v3403 = vsel %vm118, %v3389, %v3391
  %v3404 = vsel %vm118, %v3393, %v3395
  %v3405 = vsel %vm118, %v3397, %v3399
  %3418 = vrot.lane.b32.xlu0 %v3310, 125
  %v3419 = vpop.permute.xlu0 %3418
  %3420 = vrot.lane.b32.xlu0 %v3311, 125
  %v3421 = vpop.permute.xlu0 %3420
  %3422 = vrot.lane.b32.xlu0 %v3312, 125
  %v3423 = vpop.permute.xlu0 %3422
  %3424 = vrot.lane.b32.xlu0 %v3313, 125
  %v3425 = vpop.permute.xlu0 %3424
  %3426 = vrot.lane.b32.xlu0 %v3314, 125
  %v3427 = vpop.permute.xlu0 %3426
  %3428 = vrot.lane.b32.xlu0 %v3315, 125
  %v3429 = vpop.permute.xlu0 %3428
  %3430 = vrot.lane.b32.xlu0 %v3316, 125
  %v3431 = vpop.permute.xlu0 %3430
  %3432 = vrot.lane.b32.xlu0 %v3317, 125
  %v3433 = vpop.permute.xlu0 %3432
  %3434 = vrot.lane.b32.xlu0 %v3318, 125
  %v3435 = vpop.permute.xlu0 %3434
  %3436 = vrot.lane.b32.xlu0 %v3319, 125
  %v3437 = vpop.permute.xlu0 %3436
  %3438 = vrot.lane.b32.xlu0 %v3320, 125
  %v3439 = vpop.permute.xlu0 %3438
  %3440 = vrot.lane.b32.xlu0 %v3321, 125
  %v3441 = vpop.permute.xlu0 %3440
  %v3442 = vsel %vm146, %v3419, %v3421
  %v3443 = vsel %vm146, %v3423, %v3425
  %v3444 = vsel %vm146, %v3427, %v3429
  %v3445 = vsel %vm146, %v3431, %v3433
  %v3446 = vsel %vm146, %v3435, %v3437
  %v3447 = vsel %vm146, %v3439, %v3441
  %3460 = vrot.lane.b32.xlu0 %v3310, 124
  %v3461 = vpop.permute.xlu0 %3460
  %3462 = vrot.lane.b32.xlu0 %v3311, 124
  %v3463 = vpop.permute.xlu0 %3462
  %3464 = vrot.lane.b32.xlu0 %v3312, 124
  %v3465 = vpop.permute.xlu0 %3464
  %3466 = vrot.lane.b32.xlu0 %v3313, 124
  %v3467 = vpop.permute.xlu0 %3466
  %3468 = vrot.lane.b32.xlu0 %v3314, 124
  %v3469 = vpop.permute.xlu0 %3468
  %3470 = vrot.lane.b32.xlu0 %v3315, 124
  %v3471 = vpop.permute.xlu0 %3470
  %3472 = vrot.lane.b32.xlu0 %v3316, 124
  %v3473 = vpop.permute.xlu0 %3472
  %3474 = vrot.lane.b32.xlu0 %v3317, 124
  %v3475 = vpop.permute.xlu0 %3474
  %3476 = vrot.lane.b32.xlu0 %v3318, 124
  %v3477 = vpop.permute.xlu0 %3476
  %3478 = vrot.lane.b32.xlu0 %v3319, 124
  %v3479 = vpop.permute.xlu0 %3478
  %3480 = vrot.lane.b32.xlu0 %v3320, 124
  %v3481 = vpop.permute.xlu0 %3480
  %3482 = vrot.lane.b32.xlu0 %v3321, 124
  %v3483 = vpop.permute.xlu0 %3482
  %v3484 = vsel %vm174, %v3461, %v3463
  %v3485 = vsel %vm174, %v3465, %v3467
  %v3486 = vsel %vm174, %v3469, %v3471
  %v3487 = vsel %vm174, %v3473, %v3475
  %v3488 = vsel %vm174, %v3477, %v3479
  %v3489 = vsel %vm174, %v3481, %v3483
  %3502 = vrot.lane.b32.xlu0 %v3310, 114
  %v3503 = vpop.permute.xlu0 %3502
  %3504 = vrot.lane.b32.xlu0 %v3311, 114
  %v3505 = vpop.permute.xlu0 %3504
  %3506 = vrot.lane.b32.xlu0 %v3312, 114
  %v3507 = vpop.permute.xlu0 %3506
  %3508 = vrot.lane.b32.xlu0 %v3313, 114
  %v3509 = vpop.permute.xlu0 %3508
  %3510 = vrot.lane.b32.xlu0 %v3314, 114
  %v3511 = vpop.permute.xlu0 %3510
  %3512 = vrot.lane.b32.xlu0 %v3315, 114
  %v3513 = vpop.permute.xlu0 %3512
  %3514 = vrot.lane.b32.xlu0 %v3316, 114
  %v3515 = vpop.permute.xlu0 %3514
  %3516 = vrot.lane.b32.xlu0 %v3317, 114
  %v3517 = vpop.permute.xlu0 %3516
  %3518 = vrot.lane.b32.xlu0 %v3318, 114
  %v3519 = vpop.permute.xlu0 %3518
  %3520 = vrot.lane.b32.xlu0 %v3319, 114
  %v3521 = vpop.permute.xlu0 %3520
  %3522 = vrot.lane.b32.xlu0 %v3320, 114
  %v3523 = vpop.permute.xlu0 %3522
  %3524 = vrot.lane.b32.xlu0 %v3321, 114
  %v3525 = vpop.permute.xlu0 %3524
  %vm3526 = vcmask 932864
  %v3527 = vsel %vm3526, %v3503, %v3505
  %v3528 = vsel %vm3526, %v3507, %v3509
  %v3529 = vsel %vm3526, %v3511, %v3513
  %v3530 = vsel %vm3526, %v3515, %v3517
  %v3531 = vsel %vm3526, %v3519, %v3521
  %v3532 = vsel %vm3526, %v3523, %v3525
  %3545 = vrot.lane.b32.xlu0 %v3310, 113
  %v3546 = vpop.permute.xlu0 %3545
  %3547 = vrot.lane.b32.xlu0 %v3311, 113
  %v3548 = vpop.permute.xlu0 %3547
  %3549 = vrot.lane.b32.xlu0 %v3312, 113
  %v3550 = vpop.permute.xlu0 %3549
  %3551 = vrot.lane.b32.xlu0 %v3313, 113
  %v3552 = vpop.permute.xlu0 %3551
  %3553 = vrot.lane.b32.xlu0 %v3314, 113
  %v3554 = vpop.permute.xlu0 %3553
  %3555 = vrot.lane.b32.xlu0 %v3315, 113
  %v3556 = vpop.permute.xlu0 %3555
  %3557 = vrot.lane.b32.xlu0 %v3316, 113
  %v3558 = vpop.permute.xlu0 %3557
  %3559 = vrot.lane.b32.xlu0 %v3317, 113
  %v3560 = vpop.permute.xlu0 %3559
  %3561 = vrot.lane.b32.xlu0 %v3318, 113
  %v3562 = vpop.permute.xlu0 %3561
  %3563 = vrot.lane.b32.xlu0 %v3319, 113
  %v3564 = vpop.permute.xlu0 %3563
  %3565 = vrot.lane.b32.xlu0 %v3320, 113
  %v3566 = vpop.permute.xlu0 %3565
  %3567 = vrot.lane.b32.xlu0 %v3321, 113
  %v3568 = vpop.permute.xlu0 %3567
  %vm3569 = vcmask 924672
  %v3570 = vsel %vm3569, %v3546, %v3548
  %v3571 = vsel %vm3569, %v3550, %v3552
  %v3572 = vsel %vm3569, %v3554, %v3556
  %v3573 = vsel %vm3569, %v3558, %v3560
  %v3574 = vsel %vm3569, %v3562, %v3564
  %v3575 = vsel %vm3569, %v3566, %v3568
  %3588 = vrot.lane.b32.xlu0 %v3310, 112
  %v3589 = vpop.permute.xlu0 %3588
  %3590 = vrot.lane.b32.xlu0 %v3311, 112
  %v3591 = vpop.permute.xlu0 %3590
  %3592 = vrot.lane.b32.xlu0 %v3312, 112
  %v3593 = vpop.permute.xlu0 %3592
  %3594 = vrot.lane.b32.xlu0 %v3313, 112
  %v3595 = vpop.permute.xlu0 %3594
  %3596 = vrot.lane.b32.xlu0 %v3314, 112
  %v3597 = vpop.permute.xlu0 %3596
  %3598 = vrot.lane.b32.xlu0 %v3315, 112
  %v3599 = vpop.permute.xlu0 %3598
  %3600 = vrot.lane.b32.xlu0 %v3316, 112
  %v3601 = vpop.permute.xlu0 %3600
  %3602 = vrot.lane.b32.xlu0 %v3317, 112
  %v3603 = vpop.permute.xlu0 %3602
  %3604 = vrot.lane.b32.xlu0 %v3318, 112
  %v3605 = vpop.permute.xlu0 %3604
  %3606 = vrot.lane.b32.xlu0 %v3319, 112
  %v3607 = vpop.permute.xlu0 %3606
  %3608 = vrot.lane.b32.xlu0 %v3320, 112
  %v3609 = vpop.permute.xlu0 %3608
  %3610 = vrot.lane.b32.xlu0 %v3321, 112
  %v3611 = vpop.permute.xlu0 %3610
  %vm3612 = vcmask 916480
  %v3613 = vsel %vm3612, %v3589, %v3591
  %v3614 = vsel %vm3612, %v3593, %v3595
  %v3615 = vsel %vm3612, %v3597, %v3599
  %v3616 = vsel %vm3612, %v3601, %v3603
  %v3617 = vsel %vm3612, %v3605, %v3607
  %v3618 = vsel %vm3612, %v3609, %v3611
  %3631 = vrot.lane.b32.xlu0 %v3310, 111
  %v3632 = vpop.permute.xlu0 %3631
  %3633 = vrot.lane.b32.xlu0 %v3311, 111
  %v3634 = vpop.permute.xlu0 %3633
  %3635 = vrot.lane.b32.xlu0 %v3312, 111
  %v3636 = vpop.permute.xlu0 %3635
  %3637 = vrot.lane.b32.xlu0 %v3313, 111
  %v3638 = vpop.permute.xlu0 %3637
  %3639 = vrot.lane.b32.xlu0 %v3314, 111
  %v3640 = vpop.permute.xlu0 %3639
  %3641 = vrot.lane.b32.xlu0 %v3315, 111
  %v3642 = vpop.permute.xlu0 %3641
  %3643 = vrot.lane.b32.xlu0 %v3316, 111
  %v3644 = vpop.permute.xlu0 %3643
  %3645 = vrot.lane.b32.xlu0 %v3317, 111
  %v3646 = vpop.permute.xlu0 %3645
  %3647 = vrot.lane.b32.xlu0 %v3318, 111
  %v3648 = vpop.permute.xlu0 %3647
  %3649 = vrot.lane.b32.xlu0 %v3319, 111
  %v3650 = vpop.permute.xlu0 %3649
  %3651 = vrot.lane.b32.xlu0 %v3320, 111
  %v3652 = vpop.permute.xlu0 %3651
  %3653 = vrot.lane.b32.xlu0 %v3321, 111
  %v3654 = vpop.permute.xlu0 %3653
  %vm3655 = vcmask 908288
  %v3656 = vsel %vm3655, %v3632, %v3634
  %v3657 = vsel %vm3655, %v3636, %v3638
  %v3658 = vsel %vm3655, %v3640, %v3642
  %v3659 = vsel %vm3655, %v3644, %v3646
  %v3660 = vsel %vm3655, %v3648, %v3650
  %v3661 = vsel %vm3655, %v3652, %v3654
  %3674 = vrot.lane.b32.xlu0 %v3310, 110
  %v3675 = vpop.permute.xlu0 %3674
  %3676 = vrot.lane.b32.xlu0 %v3311, 110
  %v3677 = vpop.permute.xlu0 %3676
  %3678 = vrot.lane.b32.xlu0 %v3312, 110
  %v3679 = vpop.permute.xlu0 %3678
  %3680 = vrot.lane.b32.xlu0 %v3313, 110
  %v3681 = vpop.permute.xlu0 %3680
  %3682 = vrot.lane.b32.xlu0 %v3314, 110
  %v3683 = vpop.permute.xlu0 %3682
  %3684 = vrot.lane.b32.xlu0 %v3315, 110
  %v3685 = vpop.permute.xlu0 %3684
  %3686 = vrot.lane.b32.xlu0 %v3316, 110
  %v3687 = vpop.permute.xlu0 %3686
  %3688 = vrot.lane.b32.xlu0 %v3317, 110
  %v3689 = vpop.permute.xlu0 %3688
  %3690 = vrot.lane.b32.xlu0 %v3318, 110
  %v3691 = vpop.permute.xlu0 %3690
  %3692 = vrot.lane.b32.xlu0 %v3319, 110
  %v3693 = vpop.permute.xlu0 %3692
  %3694 = vrot.lane.b32.xlu0 %v3320, 110
  %v3695 = vpop.permute.xlu0 %3694
  %3696 = vrot.lane.b32.xlu0 %v3321, 110
  %v3697 = vpop.permute.xlu0 %3696
  %vm3698 = vcmask 900096
  %v3699 = vsel %vm3698, %v3675, %v3677
  %v3700 = vsel %vm3698, %v3679, %v3681
  %v3701 = vsel %vm3698, %v3683, %v3685
  %v3702 = vsel %vm3698, %v3687, %v3689
  %v3703 = vsel %vm3698, %v3691, %v3693
  %v3704 = vsel %vm3698, %v3695, %v3697
  %3717 = vrot.lane.b32.xlu0 %v3310, 100
  %v3718 = vpop.permute.xlu0 %3717
  %3719 = vrot.lane.b32.xlu0 %v3311, 100
  %v3720 = vpop.permute.xlu0 %3719
  %3721 = vrot.lane.b32.xlu0 %v3312, 100
  %v3722 = vpop.permute.xlu0 %3721
  %3723 = vrot.lane.b32.xlu0 %v3313, 100
  %v3724 = vpop.permute.xlu0 %3723
  %3725 = vrot.lane.b32.xlu0 %v3314, 100
  %v3726 = vpop.permute.xlu0 %3725
  %3727 = vrot.lane.b32.xlu0 %v3315, 100
  %v3728 = vpop.permute.xlu0 %3727
  %3729 = vrot.lane.b32.xlu0 %v3316, 100
  %v3730 = vpop.permute.xlu0 %3729
  %3731 = vrot.lane.b32.xlu0 %v3317, 100
  %v3732 = vpop.permute.xlu0 %3731
  %3733 = vrot.lane.b32.xlu0 %v3318, 100
  %v3734 = vpop.permute.xlu0 %3733
  %3735 = vrot.lane.b32.xlu0 %v3319, 100
  %v3736 = vpop.permute.xlu0 %3735
  %3737 = vrot.lane.b32.xlu0 %v3320, 100
  %v3738 = vpop.permute.xlu0 %3737
  %3739 = vrot.lane.b32.xlu0 %v3321, 100
  %v3740 = vpop.permute.xlu0 %3739
  %vm3741 = vcmask 818176
  %v3742 = vsel %vm3741, %v3718, %v3720
  %v3743 = vsel %vm3741, %v3722, %v3724
  %v3744 = vsel %vm3741, %v3726, %v3728
  %v3745 = vsel %vm3741, %v3730, %v3732
  %v3746 = vsel %vm3741, %v3734, %v3736
  %v3747 = vsel %vm3741, %v3738, %v3740
  %3760 = vrot.lane.b32.xlu0 %v3310, 99
  %v3761 = vpop.permute.xlu0 %3760
  %3762 = vrot.lane.b32.xlu0 %v3311, 99
  %v3763 = vpop.permute.xlu0 %3762
  %3764 = vrot.lane.b32.xlu0 %v3312, 99
  %v3765 = vpop.permute.xlu0 %3764
  %3766 = vrot.lane.b32.xlu0 %v3313, 99
  %v3767 = vpop.permute.xlu0 %3766
  %3768 = vrot.lane.b32.xlu0 %v3314, 99
  %v3769 = vpop.permute.xlu0 %3768
  %3770 = vrot.lane.b32.xlu0 %v3315, 99
  %v3771 = vpop.permute.xlu0 %3770
  %3772 = vrot.lane.b32.xlu0 %v3316, 99
  %v3773 = vpop.permute.xlu0 %3772
  %3774 = vrot.lane.b32.xlu0 %v3317, 99
  %v3775 = vpop.permute.xlu0 %3774
  %3776 = vrot.lane.b32.xlu0 %v3318, 99
  %v3777 = vpop.permute.xlu0 %3776
  %3778 = vrot.lane.b32.xlu0 %v3319, 99
  %v3779 = vpop.permute.xlu0 %3778
  %3780 = vrot.lane.b32.xlu0 %v3320, 99
  %v3781 = vpop.permute.xlu0 %3780
  %3782 = vrot.lane.b32.xlu0 %v3321, 99
  %v3783 = vpop.permute.xlu0 %3782
  %vm3784 = vcmask 809984
  %v3785 = vsel %vm3784, %v3761, %v3763
  %v3786 = vsel %vm3784, %v3765, %v3767
  %v3787 = vsel %vm3784, %v3769, %v3771
  %v3788 = vsel %vm3784, %v3773, %v3775
  %v3789 = vsel %vm3784, %v3777, %v3779
  %v3790 = vsel %vm3784, %v3781, %v3783
  %3803 = vrot.lane.b32.xlu0 %v3310, 98
  %v3804 = vpop.permute.xlu0 %3803
  %3805 = vrot.lane.b32.xlu0 %v3311, 98
  %v3806 = vpop.permute.xlu0 %3805
  %3807 = vrot.lane.b32.xlu0 %v3312, 98
  %v3808 = vpop.permute.xlu0 %3807
  %3809 = vrot.lane.b32.xlu0 %v3313, 98
  %v3810 = vpop.permute.xlu0 %3809
  %3811 = vrot.lane.b32.xlu0 %v3314, 98
  %v3812 = vpop.permute.xlu0 %3811
  %3813 = vrot.lane.b32.xlu0 %v3315, 98
  %v3814 = vpop.permute.xlu0 %3813
  %3815 = vrot.lane.b32.xlu0 %v3316, 98
  %v3816 = vpop.permute.xlu0 %3815
  %3817 = vrot.lane.b32.xlu0 %v3317, 98
  %v3818 = vpop.permute.xlu0 %3817
  %3819 = vrot.lane.b32.xlu0 %v3318, 98
  %v3820 = vpop.permute.xlu0 %3819
  %3821 = vrot.lane.b32.xlu0 %v3319, 98
  %v3822 = vpop.permute.xlu0 %3821
  %3823 = vrot.lane.b32.xlu0 %v3320, 98
  %v3824 = vpop.permute.xlu0 %3823
  %3825 = vrot.lane.b32.xlu0 %v3321, 98
  %v3826 = vpop.permute.xlu0 %3825
  %vm3827 = vcmask 801792
  %v3828 = vsel %vm3827, %v3804, %v3806
  %v3829 = vsel %vm3827, %v3808, %v3810
  %v3830 = vsel %vm3827, %v3812, %v3814
  %v3831 = vsel %vm3827, %v3816, %v3818
  %v3832 = vsel %vm3827, %v3820, %v3822
  %v3833 = vsel %vm3827, %v3824, %v3826
  %3846 = vrot.lane.b32.xlu0 %v3310, 97
  %v3847 = vpop.permute.xlu0 %3846
  %3848 = vrot.lane.b32.xlu0 %v3311, 97
  %v3849 = vpop.permute.xlu0 %3848
  %3850 = vrot.lane.b32.xlu0 %v3312, 97
  %v3851 = vpop.permute.xlu0 %3850
  %3852 = vrot.lane.b32.xlu0 %v3313, 97
  %v3853 = vpop.permute.xlu0 %3852
  %3854 = vrot.lane.b32.xlu0 %v3314, 97
  %v3855 = vpop.permute.xlu0 %3854
  %3856 = vrot.lane.b32.xlu0 %v3315, 97
  %v3857 = vpop.permute.xlu0 %3856
  %3858 = vrot.lane.b32.xlu0 %v3316, 97
  %v3859 = vpop.permute.xlu0 %3858
  %3860 = vrot.lane.b32.xlu0 %v3317, 97
  %v3861 = vpop.permute.xlu0 %3860
  %3862 = vrot.lane.b32.xlu0 %v3318, 97
  %v3863 = vpop.permute.xlu0 %3862
  %3864 = vrot.lane.b32.xlu0 %v3319, 97
  %v3865 = vpop.permute.xlu0 %3864
  %3866 = vrot.lane.b32.xlu0 %v3320, 97
  %v3867 = vpop.permute.xlu0 %3866
  %3868 = vrot.lane.b32.xlu0 %v3321, 97
  %v3869 = vpop.permute.xlu0 %3868
  %v3870 = vsel %vm553, %v3847, %v3849
  %v3871 = vsel %vm553, %v3851, %v3853
  %v3872 = vsel %vm553, %v3855, %v3857
  %v3873 = vsel %vm553, %v3859, %v3861
  %v3874 = vsel %vm553, %v3863, %v3865
  %v3875 = vsel %vm553, %v3867, %v3869
  %3888 = vrot.lane.b32.xlu0 %v3310, 96
  %v3889 = vpop.permute.xlu0 %3888
  %3890 = vrot.lane.b32.xlu0 %v3311, 96
  %v3891 = vpop.permute.xlu0 %3890
  %3892 = vrot.lane.b32.xlu0 %v3312, 96
  %v3893 = vpop.permute.xlu0 %3892
  %3894 = vrot.lane.b32.xlu0 %v3313, 96
  %v3895 = vpop.permute.xlu0 %3894
  %3896 = vrot.lane.b32.xlu0 %v3314, 96
  %v3897 = vpop.permute.xlu0 %3896
  %3898 = vrot.lane.b32.xlu0 %v3315, 96
  %v3899 = vpop.permute.xlu0 %3898
  %3900 = vrot.lane.b32.xlu0 %v3316, 96
  %v3901 = vpop.permute.xlu0 %3900
  %3902 = vrot.lane.b32.xlu0 %v3317, 96
  %v3903 = vpop.permute.xlu0 %3902
  %3904 = vrot.lane.b32.xlu0 %v3318, 96
  %v3905 = vpop.permute.xlu0 %3904
  %3906 = vrot.lane.b32.xlu0 %v3319, 96
  %v3907 = vpop.permute.xlu0 %3906
  %3908 = vrot.lane.b32.xlu0 %v3320, 96
  %v3909 = vpop.permute.xlu0 %3908
  %3910 = vrot.lane.b32.xlu0 %v3321, 96
  %v3911 = vpop.permute.xlu0 %3910
  %v3912 = vsel %vm205, %v3889, %v3891
  %v3913 = vsel %vm205, %v3893, %v3895
  %v3914 = vsel %vm205, %v3897, %v3899
  %v3915 = vsel %vm205, %v3901, %v3903
  %v3916 = vsel %vm205, %v3905, %v3907
  %v3917 = vsel %vm205, %v3909, %v3911
  %3930 = vrot.lane.b32.xlu0 %v3310, 86
  %v3931 = vpop.permute.xlu0 %3930
  %3932 = vrot.lane.b32.xlu0 %v3311, 86
  %v3933 = vpop.permute.xlu0 %3932
  %3934 = vrot.lane.b32.xlu0 %v3312, 86
  %v3935 = vpop.permute.xlu0 %3934
  %3936 = vrot.lane.b32.xlu0 %v3313, 86
  %v3937 = vpop.permute.xlu0 %3936
  %3938 = vrot.lane.b32.xlu0 %v3314, 86
  %v3939 = vpop.permute.xlu0 %3938
  %3940 = vrot.lane.b32.xlu0 %v3315, 86
  %v3941 = vpop.permute.xlu0 %3940
  %3942 = vrot.lane.b32.xlu0 %v3316, 86
  %v3943 = vpop.permute.xlu0 %3942
  %3944 = vrot.lane.b32.xlu0 %v3317, 86
  %v3945 = vpop.permute.xlu0 %3944
  %3946 = vrot.lane.b32.xlu0 %v3318, 86
  %v3947 = vpop.permute.xlu0 %3946
  %3948 = vrot.lane.b32.xlu0 %v3319, 86
  %v3949 = vpop.permute.xlu0 %3948
  %3950 = vrot.lane.b32.xlu0 %v3320, 86
  %v3951 = vpop.permute.xlu0 %3950
  %3952 = vrot.lane.b32.xlu0 %v3321, 86
  %v3953 = vpop.permute.xlu0 %3952
  %vm3954 = vcmask 703488
  %v3955 = vsel %vm3954, %v3931, %v3933
  %v3956 = vsel %vm3954, %v3935, %v3937
  %v3957 = vsel %vm3954, %v3939, %v3941
  %v3958 = vsel %vm3954, %v3943, %v3945
  %v3959 = vsel %vm3954, %v3947, %v3949
  %v3960 = vsel %vm3954, %v3951, %v3953
  %3973 = vrot.lane.b32.xlu0 %v3310, 115
  %v3974 = vpop.permute.xlu0 %3973
  %3975 = vrot.lane.b32.xlu0 %v3311, 115
  %v3976 = vpop.permute.xlu0 %3975
  %3977 = vrot.lane.b32.xlu0 %v3312, 115
  %v3978 = vpop.permute.xlu0 %3977
  %3979 = vrot.lane.b32.xlu0 %v3313, 115
  %v3980 = vpop.permute.xlu0 %3979
  %3981 = vrot.lane.b32.xlu0 %v3314, 115
  %v3982 = vpop.permute.xlu0 %3981
  %3983 = vrot.lane.b32.xlu0 %v3315, 115
  %v3984 = vpop.permute.xlu0 %3983
  %3985 = vrot.lane.b32.xlu0 %v3316, 115
  %v3986 = vpop.permute.xlu0 %3985
  %3987 = vrot.lane.b32.xlu0 %v3317, 115
  %v3988 = vpop.permute.xlu0 %3987
  %3989 = vrot.lane.b32.xlu0 %v3318, 115
  %v3990 = vpop.permute.xlu0 %3989
  %3991 = vrot.lane.b32.xlu0 %v3319, 115
  %v3992 = vpop.permute.xlu0 %3991
  %3993 = vrot.lane.b32.xlu0 %v3320, 115
  %v3994 = vpop.permute.xlu0 %3993
  %3995 = vrot.lane.b32.xlu0 %v3321, 115
  %v3996 = vpop.permute.xlu0 %3995
  %vm3997 = vcmask 941056
  %v3998 = vsel %vm3997, %v3974, %v3976
  %v3999 = vsel %vm3997, %v3978, %v3980
  %v4000 = vsel %vm3997, %v3982, %v3984
  %v4001 = vsel %vm3997, %v3986, %v3988
  %v4002 = vsel %vm3997, %v3990, %v3992
  %v4003 = vsel %vm3997, %v3994, %v3996
  %4004 = vrot.lane.b32.xlu0 %v3310, 85
  %v4005 = vpop.permute.xlu0 %4004
  %4006 = vrot.lane.b32.xlu0 %v3311, 85
  %v4007 = vpop.permute.xlu0 %4006
  %4008 = vrot.lane.b32.xlu0 %v3312, 85
  %v4009 = vpop.permute.xlu0 %4008
  %4010 = vrot.lane.b32.xlu0 %v3313, 85
  %v4011 = vpop.permute.xlu0 %4010
  %4012 = vrot.lane.b32.xlu0 %v3314, 85
  %v4013 = vpop.permute.xlu0 %4012
  %4014 = vrot.lane.b32.xlu0 %v3315, 85
  %v4015 = vpop.permute.xlu0 %4014
  %4016 = vrot.lane.b32.xlu0 %v3316, 85
  %v4017 = vpop.permute.xlu0 %4016
  %4018 = vrot.lane.b32.xlu0 %v3317, 85
  %v4019 = vpop.permute.xlu0 %4018
  %4020 = vrot.lane.b32.xlu0 %v3318, 85
  %v4021 = vpop.permute.xlu0 %4020
  %4022 = vrot.lane.b32.xlu0 %v3319, 85
  %v4023 = vpop.permute.xlu0 %4022
  %4024 = vrot.lane.b32.xlu0 %v3320, 85
  %v4025 = vpop.permute.xlu0 %4024
  %4026 = vrot.lane.b32.xlu0 %v3321, 85
  %v4027 = vpop.permute.xlu0 %4026
  %4028 = vrot.lane.b32.xlu0 %v3358, 85
  %v4029 = vpop.permute.xlu0 %4028
  %4030 = vrot.lane.b32.xlu0 %v3337, 85
  %v4031 = vpop.permute.xlu0 %4030
  %4032 = vrot.lane.b32.xlu0 %v3359, 85
  %v4033 = vpop.permute.xlu0 %4032
  %4034 = vrot.lane.b32.xlu0 %v3341, 85
  %v4035 = vpop.permute.xlu0 %4034
  %4036 = vrot.lane.b32.xlu0 %v3360, 85
  %v4037 = vpop.permute.xlu0 %4036
  %4038 = vrot.lane.b32.xlu0 %v3345, 85
  %v4039 = vpop.permute.xlu0 %4038
  %4040 = vrot.lane.b32.xlu0 %v3361, 85
  %v4041 = vpop.permute.xlu0 %4040
  %4042 = vrot.lane.b32.xlu0 %v3349, 85
  %v4043 = vpop.permute.xlu0 %4042
  %4044 = vrot.lane.b32.xlu0 %v3362, 85
  %v4045 = vpop.permute.xlu0 %4044
  %4046 = vrot.lane.b32.xlu0 %v3353, 85
  %v4047 = vpop.permute.xlu0 %4046
  %4048 = vrot.lane.b32.xlu0 %v3363, 85
  %v4049 = vpop.permute.xlu0 %4048
  %4050 = vrot.lane.b32.xlu0 %v3357, 85
  %v4051 = vpop.permute.xlu0 %4050
  %4052 = vrot.lane.b32.xlu0 %v3400, 85
  %v4053 = vpop.permute.xlu0 %4052
  %4054 = vrot.lane.b32.xlu0 %v3379, 85
  %v4055 = vpop.permute.xlu0 %4054
  %4056 = vrot.lane.b32.xlu0 %v3401, 85
  %v4057 = vpop.permute.xlu0 %4056
  %4058 = vrot.lane.b32.xlu0 %v3383, 85
  %v4059 = vpop.permute.xlu0 %4058
  %4060 = vrot.lane.b32.xlu0 %v3402, 85
  %v4061 = vpop.permute.xlu0 %4060
  %4062 = vrot.lane.b32.xlu0 %v3387, 85
  %v4063 = vpop.permute.xlu0 %4062
  %4064 = vrot.lane.b32.xlu0 %v3403, 85
  %v4065 = vpop.permute.xlu0 %4064
  %4066 = vrot.lane.b32.xlu0 %v3391, 85
  %v4067 = vpop.permute.xlu0 %4066
  %4068 = vrot.lane.b32.xlu0 %v3404, 85
  %v4069 = vpop.permute.xlu0 %4068
  %4070 = vrot.lane.b32.xlu0 %v3395, 85
  %v4071 = vpop.permute.xlu0 %4070
  %4072 = vrot.lane.b32.xlu0 %v3405, 85
  %v4073 = vpop.permute.xlu0 %4072
  %4074 = vrot.lane.b32.xlu0 %v3399, 85
  %v4075 = vpop.permute.xlu0 %4074
  %4076 = vrot.lane.b32.xlu0 %v3442, 85
  %v4077 = vpop.permute.xlu0 %4076
  %4078 = vrot.lane.b32.xlu0 %v3421, 85
  %v4079 = vpop.permute.xlu0 %4078
  %4080 = vrot.lane.b32.xlu0 %v3443, 85
  %v4081 = vpop.permute.xlu0 %4080
  %4082 = vrot.lane.b32.xlu0 %v3425, 85
  %v4083 = vpop.permute.xlu0 %4082
  %4084 = vrot.lane.b32.xlu0 %v3444, 85
  %v4085 = vpop.permute.xlu0 %4084
  %4086 = vrot.lane.b32.xlu0 %v3429, 85
  %v4087 = vpop.permute.xlu0 %4086
  %4088 = vrot.lane.b32.xlu0 %v3445, 85
  %v4089 = vpop.permute.xlu0 %4088
  %4090 = vrot.lane.b32.xlu0 %v3433, 85
  %v4091 = vpop.permute.xlu0 %4090
  %4092 = vrot.lane.b32.xlu0 %v3446, 85
  %v4093 = vpop.permute.xlu0 %4092
  %4094 = vrot.lane.b32.xlu0 %v3437, 85
  %v4095 = vpop.permute.xlu0 %4094
  %4096 = vrot.lane.b32.xlu0 %v3447, 85
  %v4097 = vpop.permute.xlu0 %4096
  %4098 = vrot.lane.b32.xlu0 %v3441, 85
  %v4099 = vpop.permute.xlu0 %4098
  %4100 = vrot.lane.b32.xlu0 %v3998, 85
  %v4101 = vpop.permute.xlu0 %4100
  %4102 = vrot.lane.b32.xlu0 %v3976, 85
  %v4103 = vpop.permute.xlu0 %4102
  %4104 = vrot.lane.b32.xlu0 %v3999, 85
  %v4105 = vpop.permute.xlu0 %4104
  %4106 = vrot.lane.b32.xlu0 %v3980, 85
  %v4107 = vpop.permute.xlu0 %4106
  %4108 = vrot.lane.b32.xlu0 %v4000, 85
  %v4109 = vpop.permute.xlu0 %4108
  %4110 = vrot.lane.b32.xlu0 %v3984, 85
  %v4111 = vpop.permute.xlu0 %4110
  %4112 = vrot.lane.b32.xlu0 %v4001, 85
  %v4113 = vpop.permute.xlu0 %4112
  %4114 = vrot.lane.b32.xlu0 %v3988, 85
  %v4115 = vpop.permute.xlu0 %4114
  %4116 = vrot.lane.b32.xlu0 %v4002, 85
  %v4117 = vpop.permute.xlu0 %4116
  %4118 = vrot.lane.b32.xlu0 %v3992, 85
  %v4119 = vpop.permute.xlu0 %4118
  %4120 = vrot.lane.b32.xlu0 %v4003, 85
  %v4121 = vpop.permute.xlu0 %4120
  %4122 = vrot.lane.b32.xlu0 %v3996, 85
  %v4123 = vpop.permute.xlu0 %4122
  %4124 = vrot.lane.b32.xlu0 %v3527, 85
  %v4125 = vpop.permute.xlu0 %4124
  %4126 = vrot.lane.b32.xlu0 %v3505, 85
  %v4127 = vpop.permute.xlu0 %4126
  %4128 = vrot.lane.b32.xlu0 %v3528, 85
  %v4129 = vpop.permute.xlu0 %4128
  %4130 = vrot.lane.b32.xlu0 %v3509, 85
  %v4131 = vpop.permute.xlu0 %4130
  %4132 = vrot.lane.b32.xlu0 %v3529, 85
  %v4133 = vpop.permute.xlu0 %4132
  %4134 = vrot.lane.b32.xlu0 %v3513, 85
  %v4135 = vpop.permute.xlu0 %4134
  %4136 = vrot.lane.b32.xlu0 %v3530, 85
  %v4137 = vpop.permute.xlu0 %4136
  %4138 = vrot.lane.b32.xlu0 %v3517, 85
  %v4139 = vpop.permute.xlu0 %4138
  %4140 = vrot.lane.b32.xlu0 %v3531, 85
  %v4141 = vpop.permute.xlu0 %4140
  %4142 = vrot.lane.b32.xlu0 %v3521, 85
  %v4143 = vpop.permute.xlu0 %4142
  %4144 = vrot.lane.b32.xlu0 %v3532, 85
  %v4145 = vpop.permute.xlu0 %4144
  %4146 = vrot.lane.b32.xlu0 %v3525, 85
  %v4147 = vpop.permute.xlu0 %4146
  %4148 = vrot.lane.b32.xlu0 %v3570, 85
  %v4149 = vpop.permute.xlu0 %4148
  %4150 = vrot.lane.b32.xlu0 %v3548, 85
  %v4151 = vpop.permute.xlu0 %4150
  %4152 = vrot.lane.b32.xlu0 %v3571, 85
  %v4153 = vpop.permute.xlu0 %4152
  %4154 = vrot.lane.b32.xlu0 %v3552, 85
  %v4155 = vpop.permute.xlu0 %4154
  %4156 = vrot.lane.b32.xlu0 %v3572, 85
  %v4157 = vpop.permute.xlu0 %4156
  %4158 = vrot.lane.b32.xlu0 %v3556, 85
  %v4159 = vpop.permute.xlu0 %4158
  %4160 = vrot.lane.b32.xlu0 %v3573, 85
  %v4161 = vpop.permute.xlu0 %4160
  %4162 = vrot.lane.b32.xlu0 %v3560, 85
  %v4163 = vpop.permute.xlu0 %4162
  %4164 = vrot.lane.b32.xlu0 %v3574, 85
  %v4165 = vpop.permute.xlu0 %4164
  %4166 = vrot.lane.b32.xlu0 %v3564, 85
  %v4167 = vpop.permute.xlu0 %4166
  %4168 = vrot.lane.b32.xlu0 %v3575, 85
  %v4169 = vpop.permute.xlu0 %4168
  %4170 = vrot.lane.b32.xlu0 %v3568, 85
  %v4171 = vpop.permute.xlu0 %4170
  %4172 = vrot.lane.b32.xlu0 %v3613, 85
  %v4173 = vpop.permute.xlu0 %4172
  %4174 = vrot.lane.b32.xlu0 %v3591, 85
  %v4175 = vpop.permute.xlu0 %4174
  %4176 = vrot.lane.b32.xlu0 %v3614, 85
  %v4177 = vpop.permute.xlu0 %4176
  %4178 = vrot.lane.b32.xlu0 %v3595, 85
  %v4179 = vpop.permute.xlu0 %4178
  %4180 = vrot.lane.b32.xlu0 %v3615, 85
  %v4181 = vpop.permute.xlu0 %4180
  %4182 = vrot.lane.b32.xlu0 %v3599, 85
  %v4183 = vpop.permute.xlu0 %4182
  %4184 = vrot.lane.b32.xlu0 %v3616, 85
  %v4185 = vpop.permute.xlu0 %4184
  %4186 = vrot.lane.b32.xlu0 %v3603, 85
  %v4187 = vpop.permute.xlu0 %4186
  %4188 = vrot.lane.b32.xlu0 %v3617, 85
  %v4189 = vpop.permute.xlu0 %4188
  %4190 = vrot.lane.b32.xlu0 %v3607, 85
  %v4191 = vpop.permute.xlu0 %4190
  %4192 = vrot.lane.b32.xlu0 %v3618, 85
  %v4193 = vpop.permute.xlu0 %4192
  %4194 = vrot.lane.b32.xlu0 %v3611, 85
  %v4195 = vpop.permute.xlu0 %4194
  %4196 = vrot.lane.b32.xlu0 %v3656, 85
  %v4197 = vpop.permute.xlu0 %4196
  %4198 = vrot.lane.b32.xlu0 %v3634, 85
  %v4199 = vpop.permute.xlu0 %4198
  %4200 = vrot.lane.b32.xlu0 %v3657, 85
  %v4201 = vpop.permute.xlu0 %4200
  %4202 = vrot.lane.b32.xlu0 %v3638, 85
  %v4203 = vpop.permute.xlu0 %4202
  %4204 = vrot.lane.b32.xlu0 %v3658, 85
  %v4205 = vpop.permute.xlu0 %4204
  %4206 = vrot.lane.b32.xlu0 %v3642, 85
  %v4207 = vpop.permute.xlu0 %4206
  %4208 = vrot.lane.b32.xlu0 %v3659, 85
  %v4209 = vpop.permute.xlu0 %4208
  %4210 = vrot.lane.b32.xlu0 %v3646, 85
  %v4211 = vpop.permute.xlu0 %4210
  %4212 = vrot.lane.b32.xlu0 %v3660, 85
  %v4213 = vpop.permute.xlu0 %4212
  %4214 = vrot.lane.b32.xlu0 %v3650, 85
  %v4215 = vpop.permute.xlu0 %4214
  %4216 = vrot.lane.b32.xlu0 %v3661, 85
  %v4217 = vpop.permute.xlu0 %4216
  %4218 = vrot.lane.b32.xlu0 %v3654, 85
  %v4219 = vpop.permute.xlu0 %4218
  %vm4220 = vcmask 695296
  %v4221 = vsel %vm4220, %v4005, %v4007
  %v4222 = vsel %vm4220, %v4009, %v4011
  %v4223 = vsel %vm4220, %v4013, %v4015
  %v4224 = vsel %vm4220, %v4017, %v4019
  %v4225 = vsel %vm4220, %v4021, %v4023
  %v4226 = vsel %vm4220, %v4025, %v4027
  %v4227 = vsel %vm4220, %v4029, %v4031
  %v4228 = vsel %vm4220, %v4033, %v4035
  %v4229 = vsel %vm4220, %v4037, %v4039
  %v4230 = vsel %vm4220, %v4041, %v4043
  %v4231 = vsel %vm4220, %v4045, %v4047
  %v4232 = vsel %vm4220, %v4049, %v4051
  %v4233 = vsel %vm4220, %v4053, %v4055
  %v4234 = vsel %vm4220, %v4057, %v4059
  %v4235 = vsel %vm4220, %v4061, %v4063
  %v4236 = vsel %vm4220, %v4065, %v4067
  %v4237 = vsel %vm4220, %v4069, %v4071
  %v4238 = vsel %vm4220, %v4073, %v4075
  %v4239 = vsel %vm4220, %v4077, %v4079
  %v4240 = vsel %vm4220, %v4081, %v4083
  %v4241 = vsel %vm4220, %v4085, %v4087
  %v4242 = vsel %vm4220, %v4089, %v4091
  %v4243 = vsel %vm4220, %v4093, %v4095
  %v4244 = vsel %vm4220, %v4097, %v4099
  %v4245 = vsel %vm4220, %v4101, %v4103
  %v4246 = vsel %vm4220, %v4105, %v4107
  %v4247 = vsel %vm4220, %v4109, %v4111
  %v4248 = vsel %vm4220, %v4113, %v4115
  %v4249 = vsel %vm4220, %v4117, %v4119
  %v4250 = vsel %vm4220, %v4121, %v4123
  %v4251 = vsel %vm4220, %v4125, %v4127
  %v4252 = vsel %vm4220, %v4129, %v4131
  %v4253 = vsel %vm4220, %v4133, %v4135
  %v4254 = vsel %vm4220, %v4137, %v4139
  %v4255 = vsel %vm4220, %v4141, %v4143
  %v4256 = vsel %vm4220, %v4145, %v4147
  %v4257 = vsel %vm4220, %v4149, %v4151
  %v4258 = vsel %vm4220, %v4153, %v4155
  %v4259 = vsel %vm4220, %v4157, %v4159
  %v4260 = vsel %vm4220, %v4161, %v4163
  %v4261 = vsel %vm4220, %v4165, %v4167
  %v4262 = vsel %vm4220, %v4169, %v4171
  %v4263 = vsel %vm4220, %v4173, %v4175
  %v4264 = vsel %vm4220, %v4177, %v4179
  %v4265 = vsel %vm4220, %v4181, %v4183
  %v4266 = vsel %vm4220, %v4185, %v4187
  %v4267 = vsel %vm4220, %v4189, %v4191
  %v4268 = vsel %vm4220, %v4193, %v4195
  %v4269 = vsel %vm4220, %v4197, %v4199
  %v4270 = vsel %vm4220, %v4201, %v4203
  %v4271 = vsel %vm4220, %v4205, %v4207
  %v4272 = vsel %vm4220, %v4209, %v4211
  %v4273 = vsel %vm4220, %v4213, %v4215
  %v4274 = vsel %vm4220, %v4217, %v4219
  %v4383 = vld [vmem:[%s3] sm:$0xff]
  %v4384 = vld [vmem:[%s3 + $0x8] sm:$0xff]
  %v4385 = vld [vmem:[%s3 + $0x10] sm:$0xff]
  %v4386 = vld [vmem:[%s3 + $0x18] sm:$0xff]
  %v4387 = vld [vmem:[%s3 + $0x20] sm:$0xff]
  %v4388 = vld [vmem:[%s3 + $0x28] sm:$0xff]
  %v4389 = vld [vmem:[%s3 + $0x30] sm:$0xff]
  %v4390 = vld [vmem:[%s3 + $0x38] sm:$0xff]
  %v4391 = vld [vmem:[%s3 + $0x40] sm:$0xff]
  %v4392 = vld [vmem:[%s3 + $0x48] sm:$0xf]
  %v4393 = vld [vmem:[%s3 + $0x4c] sm:$0xff]
  %v4394 = vld [vmem:[%s3 + $0x54] sm:$0xff]
  %v4395 = vld [vmem:[%s3 + $0x5c] sm:$0xff]
  %v4396 = vld [vmem:[%s3 + $0x64] sm:$0xff]
  %v4397 = vld [vmem:[%s3 + $0x6c] sm:$0xff]
  %v4398 = vld [vmem:[%s3 + $0x74] sm:$0xff]
  %v4399 = vld [vmem:[%s3 + $0x7c] sm:$0xff]
  %v4400 = vld [vmem:[%s3 + $0x84] sm:$0xff]
  %v4401 = vld [vmem:[%s3 + $0x8c] sm:$0xff]
  %v4402 = vld [vmem:[%s3 + $0x94] sm:$0xf]
  %v4403 = vld [vmem:[%s3 + $0x98] sm:$0xff]
  %v4404 = vld [vmem:[%s3 + $0xa0] sm:$0xff]
  %v4405 = vld [vmem:[%s3 + $0xa8] sm:$0xff]
  %v4406 = vld [vmem:[%s3 + $0xb0] sm:$0xff]
  %v4407 = vld [vmem:[%s3 + $0xb8] sm:$0xff]
  %v4408 = vld [vmem:[%s3 + $0xc0] sm:$0xff]
  %v4409 = vld [vmem:[%s3 + $0xc8] sm:$0xff]
  %v4410 = vld [vmem:[%s3 + $0xd0] sm:$0xff]
  %v4411 = vld [vmem:[%s3 + $0xd8] sm:$0xff]
  %v4412 = vld [vmem:[%s3 + $0xe0] sm:$0xf]
  %v4413 = vld [vmem:[%s3 + $0xe4] sm:$0xff]
  %v4414 = vld [vmem:[%s3 + $0xec] sm:$0xff]
  %v4415 = vld [vmem:[%s3 + $0xf4] sm:$0xff]
  %v4416 = vld [vmem:[%s3 + $0xfc] sm:$0xff]
  %v4417 = vld [vmem:[%s3 + $0x104] sm:$0xff]
  %v4418 = vld [vmem:[%s3 + $0x10c] sm:$0xff]
  %v4419 = vld [vmem:[%s3 + $0x114] sm:$0xff]
  %v4420 = vld [vmem:[%s3 + $0x11c] sm:$0xff]
  %v4421 = vld [vmem:[%s3 + $0x124] sm:$0xff]
  %v4422 = vld [vmem:[%s3 + $0x12c] sm:$0xf]
  %v4423 = vld [vmem:[%s3 + $0x130] sm:$0xff]
  %v4424 = vld [vmem:[%s3 + $0x138] sm:$0xff]
  %v4425 = vld [vmem:[%s3 + $0x140] sm:$0xff]
  %v4426 = vld [vmem:[%s3 + $0x148] sm:$0xff]
  %v4427 = vld [vmem:[%s3 + $0x150] sm:$0xff]
  %v4428 = vld [vmem:[%s3 + $0x158] sm:$0xff]
  %v4429 = vld [vmem:[%s3 + $0x160] sm:$0xff]
  %v4430 = vld [vmem:[%s3 + $0x168] sm:$0xff]
  %v4431 = vld [vmem:[%s3 + $0x170] sm:$0xff]
  %v4432 = vld [vmem:[%s3 + $0x178] sm:$0xf]
  %v4433 = vld [vmem:[%s3 + $0x17c] sm:$0xff]
  %v4434 = vld [vmem:[%s3 + $0x184] sm:$0xff]
  %v4435 = vld [vmem:[%s3 + $0x18c] sm:$0xff]
  %v4436 = vld [vmem:[%s3 + $0x194] sm:$0xff]
  %v4437 = vld [vmem:[%s3 + $0x19c] sm:$0xff]
  %v4438 = vld [vmem:[%s3 + $0x1a4] sm:$0xff]
  %v4439 = vld [vmem:[%s3 + $0x1ac] sm:$0xff]
  %v4440 = vld [vmem:[%s3 + $0x1b4] sm:$0xff]
  %v4441 = vld [vmem:[%s3 + $0x1bc] sm:$0xff]
  %v4442 = vld [vmem:[%s3 + $0x1c4] sm:$0xf]
  %v4443 = vld [vmem:[%s3 + $0x1c8] sm:$0xff]
  %v4444 = vld [vmem:[%s3 + $0x1d0] sm:$0xff]
  %v4445 = vld [vmem:[%s3 + $0x1d8] sm:$0xff]
  %v4446 = vld [vmem:[%s3 + $0x1e0] sm:$0xff]
  %v4447 = vld [vmem:[%s3 + $0x1e8] sm:$0xff]
  %v4448 = vld [vmem:[%s3 + $0x1f0] sm:$0xff]
  %v4449 = vld [vmem:[%s3 + $0x1f8] sm:$0xff]
  %v4450 = vld [vmem:[%s3 + $0x200] sm:$0xff]
  %v4451 = vld [vmem:[%s3 + $0x208] sm:$0xff]
  %v4452 = vld [vmem:[%s3 + $0x210] sm:$0xf]
  %v4453 = vld [vmem:[%s3 + $0x214] sm:$0xff]
  %v4454 = vld [vmem:[%s3 + $0x21c] sm:$0xff]
  %v4455 = vld [vmem:[%s3 + $0x224] sm:$0xff]
  %v4456 = vld [vmem:[%s3 + $0x22c] sm:$0xff]
  %v4457 = vld [vmem:[%s3 + $0x234] sm:$0xff]
  %v4458 = vld [vmem:[%s3 + $0x23c] sm:$0xff]
  %v4459 = vld [vmem:[%s3 + $0x244] sm:$0xff]
  %v4460 = vld [vmem:[%s3 + $0x24c] sm:$0xff]
  %v4461 = vld [vmem:[%s3 + $0x254] sm:$0xff]
  %v4462 = vld [vmem:[%s3 + $0x25c] sm:$0xf]
  %v4463 = vld [vmem:[%s3 + $0x260] sm:$0xff]
  %v4464 = vld [vmem:[%s3 + $0x268] sm:$0xff]
  %v4465 = vld [vmem:[%s3 + $0x270] sm:$0xff]
  %v4466 = vld [vmem:[%s3 + $0x278] sm:$0xff]
  %v4467 = vld [vmem:[%s3 + $0x280] sm:$0xff]
  %v4468 = vld [vmem:[%s3 + $0x288] sm:$0xff]
  %v4469 = vld [vmem:[%s3 + $0x290] sm:$0xff]
  %v4470 = vld [vmem:[%s3 + $0x298] sm:$0xff]
  %v4471 = vld [vmem:[%s3 + $0x2a0] sm:$0xff]
  %v4472 = vld [vmem:[%s3 + $0x2a8] sm:$0xf]
  %v4473 = vld [vmem:[%s3 + $0x2ac] sm:$0xff]
  %v4474 = vld [vmem:[%s3 + $0x2b4] sm:$0xff]
  %v4475 = vld [vmem:[%s3 + $0x2bc] sm:$0xff]
  %v4476 = vld [vmem:[%s3 + $0x2c4] sm:$0xff]
  %v4477 = vld [vmem:[%s3 + $0x2cc] sm:$0xff]
  %v4478 = vld [vmem:[%s3 + $0x2d4] sm:$0xff]
  %v4479 = vld [vmem:[%s3 + $0x2dc] sm:$0xff]
  %v4480 = vld [vmem:[%s3 + $0x2e4] sm:$0xff]
  %v4481 = vld [vmem:[%s3 + $0x2ec] sm:$0xff]
  %v4482 = vld [vmem:[%s3 + $0x2f4] sm:$0xf]
  %v4483 = vld [vmem:[%s3 + $0x2f8] sm:$0xff]
  %v4484 = vld [vmem:[%s3 + $0x300] sm:$0xff]
  %v4485 = vld [vmem:[%s3 + $0x308] sm:$0xff]
  %v4486 = vld [vmem:[%s3 + $0x310] sm:$0xff]
  %v4487 = vld [vmem:[%s3 + $0x318] sm:$0xff]
  %v4488 = vld [vmem:[%s3 + $0x320] sm:$0xff]
  %v4489 = vld [vmem:[%s3 + $0x328] sm:$0xff]
  %v4490 = vld [vmem:[%s3 + $0x330] sm:$0xff]
  %v4491 = vld [vmem:[%s3 + $0x338] sm:$0xff]
  %v4492 = vld [vmem:[%s3 + $0x340] sm:$0xf]
  %v4493 = vld [vmem:[%s3 + $0x344] sm:$0xff]
  %v4494 = vld [vmem:[%s3 + $0x34c] sm:$0xff]
  %v4495 = vld [vmem:[%s3 + $0x354] sm:$0xff]
  %v4496 = vld [vmem:[%s3 + $0x35c] sm:$0xff]
  %v4497 = vld [vmem:[%s3 + $0x364] sm:$0xff]
  %v4498 = vld [vmem:[%s3 + $0x36c] sm:$0xff]
  %v4499 = vld [vmem:[%s3 + $0x374] sm:$0xff]
  %v4500 = vld [vmem:[%s3 + $0x37c] sm:$0xff]
  %v4501 = vld [vmem:[%s3 + $0x384] sm:$0xff]
  %v4502 = vld [vmem:[%s3 + $0x38c] sm:$0xf]
  %v4503 = vld [vmem:[%s3 + $0x390] sm:$0xff]
  %v4504 = vld [vmem:[%s3 + $0x398] sm:$0xff]
  %v4505 = vld [vmem:[%s3 + $0x3a0] sm:$0xff]
  %v4506 = vld [vmem:[%s3 + $0x3a8] sm:$0xff]
  %v4507 = vld [vmem:[%s3 + $0x3b0] sm:$0xff]
  %v4508 = vld [vmem:[%s3 + $0x3b8] sm:$0xff]
  %v4509 = vld [vmem:[%s3 + $0x3c0] sm:$0xff]
  %v4510 = vld [vmem:[%s3 + $0x3c8] sm:$0xff]
  %v4511 = vld [vmem:[%s3 + $0x3d0] sm:$0xff]
  %v4512 = vld [vmem:[%s3 + $0x3d8] sm:$0xf]
  %v4513 = vld [vmem:[%s3 + $0x3dc] sm:$0xff]
  %v4514 = vld [vmem:[%s3 + $0x3e4] sm:$0xff]
  %v4515 = vld [vmem:[%s3 + $0x3ec] sm:$0xff]
  %v4516 = vld [vmem:[%s3 + $0x3f4] sm:$0xff]
  %v4517 = vld [vmem:[%s3 + $0x3fc] sm:$0xff]
  %v4518 = vld [vmem:[%s3 + $0x404] sm:$0xff]
  %v4519 = vld [vmem:[%s3 + $0x40c] sm:$0xff]
  %v4520 = vld [vmem:[%s3 + $0x414] sm:$0xff]
  %v4521 = vld [vmem:[%s3 + $0x41c] sm:$0xff]
  %v4522 = vld [vmem:[%s3 + $0x424] sm:$0xf]
  %v4523 = vld [vmem:[%s3 + $0x428] sm:$0xff]
  %v4524 = vld [vmem:[%s3 + $0x430] sm:$0xff]
  %v4525 = vld [vmem:[%s3 + $0x438] sm:$0xff]
  %v4526 = vld [vmem:[%s3 + $0x440] sm:$0xff]
  %v4527 = vld [vmem:[%s3 + $0x448] sm:$0xff]
  %v4528 = vld [vmem:[%s3 + $0x450] sm:$0xff]
  %v4529 = vld [vmem:[%s3 + $0x458] sm:$0xff]
  %v4530 = vld [vmem:[%s3 + $0x460] sm:$0xff]
  %v4531 = vld [vmem:[%s3 + $0x468] sm:$0xff]
  %v4532 = vld [vmem:[%s3 + $0x470] sm:$0xf]
  %v4533 = vld [vmem:[%s3 + $0x474] sm:$0xff]
  %v4534 = vld [vmem:[%s3 + $0x47c] sm:$0xff]
  %v4535 = vld [vmem:[%s3 + $0x484] sm:$0xff]
  %v4536 = vld [vmem:[%s3 + $0x48c] sm:$0xff]
  %v4537 = vld [vmem:[%s3 + $0x494] sm:$0xff]
  %v4538 = vld [vmem:[%s3 + $0x49c] sm:$0xff]
  %v4539 = vld [vmem:[%s3 + $0x4a4] sm:$0xff]
  %v4540 = vld [vmem:[%s3 + $0x4ac] sm:$0xff]
  %v4541 = vld [vmem:[%s3 + $0x4b4] sm:$0xff]
  %v4542 = vld [vmem:[%s3 + $0x4bc] sm:$0xf]
  %v4543 = vld [vmem:[%s3 + $0x4c0] sm:$0xff]
  %v4544 = vld [vmem:[%s3 + $0x4c8] sm:$0xff]
  %v4545 = vld [vmem:[%s3 + $0x4d0] sm:$0xff]
  %v4546 = vld [vmem:[%s3 + $0x4d8] sm:$0xff]
  %v4547 = vld [vmem:[%s3 + $0x4e0] sm:$0xff]
  %v4548 = vld [vmem:[%s3 + $0x4e8] sm:$0xff]
  %v4549 = vld [vmem:[%s3 + $0x4f0] sm:$0xff]
  %v4550 = vld [vmem:[%s3 + $0x4f8] sm:$0xff]
  %v4551 = vld [vmem:[%s3 + $0x500] sm:$0xff]
  %v4552 = vld [vmem:[%s3 + $0x508] sm:$0xf]
  %v4553 = vld [vmem:[%s3 + $0x50c] sm:$0xff]
  %v4554 = vld [vmem:[%s3 + $0x514] sm:$0xff]
  %v4555 = vld [vmem:[%s3 + $0x51c] sm:$0xff]
  %v4556 = vld [vmem:[%s3 + $0x524] sm:$0xff]
  %v4557 = vld [vmem:[%s3 + $0x52c] sm:$0xff]
  %v4558 = vld [vmem:[%s3 + $0x534] sm:$0xff]
  %v4559 = vld [vmem:[%s3 + $0x53c] sm:$0xff]
  %v4560 = vld [vmem:[%s3 + $0x544] sm:$0xff]
  %v4561 = vld [vmem:[%s3 + $0x54c] sm:$0xff]
  %v4562 = vld [vmem:[%s3 + $0x554] sm:$0xf]
  %v4563 = vld [vmem:[%s3 + $0x558] sm:$0xff]
  %v4564 = vld [vmem:[%s3 + $0x560] sm:$0xff]
  %v4565 = vld [vmem:[%s3 + $0x568] sm:$0xff]
  %v4566 = vld [vmem:[%s3 + $0x570] sm:$0xff]
  %v4567 = vld [vmem:[%s3 + $0x578] sm:$0xff]
  %v4568 = vld [vmem:[%s3 + $0x580] sm:$0xff]
  %v4569 = vld [vmem:[%s3 + $0x588] sm:$0xff]
  %v4570 = vld [vmem:[%s3 + $0x590] sm:$0xff]
  %v4571 = vld [vmem:[%s3 + $0x598] sm:$0xff]
  %v4572 = vld [vmem:[%s3 + $0x5a0] sm:$0xf]
  %v4573 = vld [vmem:[%s3 + $0x5a4] sm:$0xff]
  %v4574 = vld [vmem:[%s3 + $0x5ac] sm:$0xff]
  %v4575 = vld [vmem:[%s3 + $0x5b4] sm:$0xff]
  %v4576 = vld [vmem:[%s3 + $0x5bc] sm:$0xff]
  %v4577 = vld [vmem:[%s3 + $0x5c4] sm:$0xff]
  %v4578 = vld [vmem:[%s3 + $0x5cc] sm:$0xff]
  %v4579 = vld [vmem:[%s3 + $0x5d4] sm:$0xff]
  %v4580 = vld [vmem:[%s3 + $0x5dc] sm:$0xff]
  %v4581 = vld [vmem:[%s3 + $0x5e4] sm:$0xff]
  %v4582 = vld [vmem:[%s3 + $0x5ec] sm:$0xf]
  %v4583 = vld [vmem:[%s3 + $0x5f0] sm:$0xff]
  %v4584 = vld [vmem:[%s3 + $0x5f8] sm:$0xff]
  %v4585 = vld [vmem:[%s3 + $0x600] sm:$0xff]
  %v4586 = vld [vmem:[%s3 + $0x608] sm:$0xff]
  %v4587 = vld [vmem:[%s3 + $0x610] sm:$0xff]
  %v4588 = vld [vmem:[%s3 + $0x618] sm:$0xff]
  %v4589 = vld [vmem:[%s3 + $0x620] sm:$0xff]
  %v4590 = vld [vmem:[%s3 + $0x628] sm:$0xff]
  %v4591 = vld [vmem:[%s3 + $0x630] sm:$0xff]
  %v4592 = vld [vmem:[%s3 + $0x638] sm:$0xf]
  %v4593 = vld [vmem:[%s3 + $0x63c] sm:$0xff]
  %v4594 = vld [vmem:[%s3 + $0x644] sm:$0xff]
  %v4595 = vld [vmem:[%s3 + $0x64c] sm:$0xff]
  %v4596 = vld [vmem:[%s3 + $0x654] sm:$0xff]
  %v4597 = vld [vmem:[%s3 + $0x65c] sm:$0xff]
  %v4598 = vld [vmem:[%s3 + $0x664] sm:$0xff]
  %v4599 = vld [vmem:[%s3 + $0x66c] sm:$0xff]
  %v4600 = vld [vmem:[%s3 + $0x674] sm:$0xff]
  %v4601 = vld [vmem:[%s3 + $0x67c] sm:$0xff]
  %v4602 = vld [vmem:[%s3 + $0x684] sm:$0xf]
  %v4603 = vld [vmem:[%s3 + $0x688] sm:$0xff]
  %v4604 = vld [vmem:[%s3 + $0x690] sm:$0xff]
  %v4605 = vld [vmem:[%s3 + $0x698] sm:$0xff]
  %v4606 = vld [vmem:[%s3 + $0x6a0] sm:$0xff]
  %v4607 = vld [vmem:[%s3 + $0x6a8] sm:$0xff]
  %v4608 = vld [vmem:[%s3 + $0x6b0] sm:$0xff]
  %v4609 = vld [vmem:[%s3 + $0x6b8] sm:$0xff]
  %v4610 = vld [vmem:[%s3 + $0x6c0] sm:$0xff]
  %v4611 = vld [vmem:[%s3 + $0x6c8] sm:$0xff]
  %v4612 = vld [vmem:[%s3 + $0x6d0] sm:$0xf]
  %v4613 = vld [vmem:[%s3 + $0x6d4] sm:$0xff]
  %v4614 = vld [vmem:[%s3 + $0x6dc] sm:$0xff]
  %v4615 = vld [vmem:[%s3 + $0x6e4] sm:$0xff]
  %v4616 = vld [vmem:[%s3 + $0x6ec] sm:$0xff]
  %v4617 = vld [vmem:[%s3 + $0x6f4] sm:$0xff]
  %v4618 = vld [vmem:[%s3 + $0x6fc] sm:$0xff]
  %v4619 = vld [vmem:[%s3 + $0x704] sm:$0xff]
  %v4620 = vld [vmem:[%s3 + $0x70c] sm:$0xff]
  %v4621 = vld [vmem:[%s3 + $0x714] sm:$0xff]
  %v4622 = vld [vmem:[%s3 + $0x71c] sm:$0xf]
  %v4623 = vld [vmem:[%s3 + $0x720] sm:$0xff]
  %v4624 = vld [vmem:[%s3 + $0x728] sm:$0xff]
  %v4625 = vld [vmem:[%s3 + $0x730] sm:$0xff]
  %v4626 = vld [vmem:[%s3 + $0x738] sm:$0xff]
  %v4627 = vld [vmem:[%s3 + $0x740] sm:$0xff]
  %v4628 = vld [vmem:[%s3 + $0x748] sm:$0xff]
  %v4629 = vld [vmem:[%s3 + $0x750] sm:$0xff]
  %v4630 = vld [vmem:[%s3 + $0x758] sm:$0xff]
  %v4631 = vld [vmem:[%s3 + $0x760] sm:$0xff]
  %v4632 = vld [vmem:[%s3 + $0x768] sm:$0xf]
  %v4633 = vld [vmem:[%s3 + $0x76c] sm:$0xff]
  %v4634 = vld [vmem:[%s3 + $0x774] sm:$0xff]
  %v4635 = vld [vmem:[%s3 + $0x77c] sm:$0xff]
  %v4636 = vld [vmem:[%s3 + $0x784] sm:$0xff]
  %v4637 = vld [vmem:[%s3 + $0x78c] sm:$0xff]
  %v4638 = vld [vmem:[%s3 + $0x794] sm:$0xff]
  %v4639 = vld [vmem:[%s3 + $0x79c] sm:$0xff]
  %v4640 = vld [vmem:[%s3 + $0x7a4] sm:$0xff]
  %v4641 = vld [vmem:[%s3 + $0x7ac] sm:$0xff]
  %v4642 = vld [vmem:[%s3 + $0x7b4] sm:$0xf]
  %v4643 = vld [vmem:[%s3 + $0x7b8] sm:$0xff]
  %v4644 = vld [vmem:[%s3 + $0x7c0] sm:$0xff]
  %v4645 = vld [vmem:[%s3 + $0x7c8] sm:$0xff]
  %v4646 = vld [vmem:[%s3 + $0x7d0] sm:$0xff]
  %v4647 = vld [vmem:[%s3 + $0x7d8] sm:$0xff]
  %v4648 = vld [vmem:[%s3 + $0x7e0] sm:$0xff]
  %v4649 = vld [vmem:[%s3 + $0x7e8] sm:$0xff]
  %v4650 = vld [vmem:[%s3 + $0x7f0] sm:$0xff]
  %v4651 = vld [vmem:[%s3 + $0x7f8] sm:$0xff]
  %v4652 = vld [vmem:[%s3 + $0x800] sm:$0xf]
  %v4653 = vld [vmem:[%s3 + $0x804] sm:$0xff]
  %v4654 = vld [vmem:[%s3 + $0x80c] sm:$0xff]
  %v4655 = vld [vmem:[%s3 + $0x814] sm:$0xff]
  %v4656 = vld [vmem:[%s3 + $0x81c] sm:$0xff]
  %v4657 = vld [vmem:[%s3 + $0x824] sm:$0xff]
  %v4658 = vld [vmem:[%s3 + $0x82c] sm:$0xff]
  %v4659 = vld [vmem:[%s3 + $0x834] sm:$0xff]
  %v4660 = vld [vmem:[%s3 + $0x83c] sm:$0xff]
  %v4661 = vld [vmem:[%s3 + $0x844] sm:$0xff]
  %v4662 = vld [vmem:[%s3 + $0x84c] sm:$0xf]
  %v4663 = vld [vmem:[%s3 + $0x850] sm:$0xff]
  %v4664 = vld [vmem:[%s3 + $0x858] sm:$0xff]
  %v4665 = vld [vmem:[%s3 + $0x860] sm:$0xff]
  %v4666 = vld [vmem:[%s3 + $0x868] sm:$0xff]
  %v4667 = vld [vmem:[%s3 + $0x870] sm:$0xff]
  %v4668 = vld [vmem:[%s3 + $0x878] sm:$0xff]
  %v4669 = vld [vmem:[%s3 + $0x880] sm:$0xff]
  %v4670 = vld [vmem:[%s3 + $0x888] sm:$0xff]
  %v4671 = vld [vmem:[%s3 + $0x890] sm:$0xff]
  %v4672 = vld [vmem:[%s3 + $0x898] sm:$0xf]
  %v4673 = vld [vmem:[%s3 + $0x89c] sm:$0xff]
  %v4674 = vld [vmem:[%s3 + $0x8a4] sm:$0xff]
  %v4675 = vld [vmem:[%s3 + $0x8ac] sm:$0xff]
  %v4676 = vld [vmem:[%s3 + $0x8b4] sm:$0xff]
  %v4677 = vld [vmem:[%s3 + $0x8bc] sm:$0xff]
  %v4678 = vld [vmem:[%s3 + $0x8c4] sm:$0xff]
  %v4679 = vld [vmem:[%s3 + $0x8cc] sm:$0xff]
  %v4680 = vld [vmem:[%s3 + $0x8d4] sm:$0xff]
  %v4681 = vld [vmem:[%s3 + $0x8dc] sm:$0xff]
  %v4682 = vld [vmem:[%s3 + $0x8e4] sm:$0xf]
  %v4683 = vld [vmem:[%s3 + $0x8e8] sm:$0xff]
  %v4684 = vld [vmem:[%s3 + $0x8f0] sm:$0xff]
  %v4685 = vld [vmem:[%s3 + $0x8f8] sm:$0xff]
  %v4686 = vld [vmem:[%s3 + $0x900] sm:$0xff]
  %v4687 = vld [vmem:[%s3 + $0x908] sm:$0xff]
  %v4688 = vld [vmem:[%s3 + $0x910] sm:$0xff]
  %v4689 = vld [vmem:[%s3 + $0x918] sm:$0xff]
  %v4690 = vld [vmem:[%s3 + $0x920] sm:$0xff]
  %v4691 = vld [vmem:[%s3 + $0x928] sm:$0xff]
  %v4692 = vld [vmem:[%s3 + $0x930] sm:$0xf]
  %v4693 = vld [vmem:[%s3 + $0x934] sm:$0xff]
  %v4694 = vld [vmem:[%s3 + $0x93c] sm:$0xff]
  %v4695 = vld [vmem:[%s3 + $0x944] sm:$0xff]
  %v4696 = vld [vmem:[%s3 + $0x94c] sm:$0xff]
  %v4697 = vld [vmem:[%s3 + $0x954] sm:$0xff]
  %v4698 = vld [vmem:[%s3 + $0x95c] sm:$0xff]
  %v4699 = vld [vmem:[%s3 + $0x964] sm:$0xff]
  %v4700 = vld [vmem:[%s3 + $0x96c] sm:$0xff]
  %v4701 = vld [vmem:[%s3 + $0x974] sm:$0xff]
  %v4702 = vld [vmem:[%s3 + $0x97c] sm:$0xf]
  %v4703 = vld [vmem:[%s4] sm:$0xff]
  %v4704 = vld [vmem:[%s4 + $0x8] sm:$0xff]
  %v4705 = vld [vmem:[%s4 + $0x10] sm:$0xff]
  %v4706 = vld [vmem:[%s4 + $0x18] sm:$0xff]
  %v4707 = vld [vmem:[%s4 + $0x20] sm:$0xff]
  %v4708 = vld [vmem:[%s4 + $0x28] sm:$0xff]
  %v4709 = vld [vmem:[%s4 + $0x30] sm:$0xff]
  %v4710 = vld [vmem:[%s4 + $0x38] sm:$0xff]
  %v4711 = vld [vmem:[%s4 + $0x40] sm:$0xff]
  %v4712 = vld [vmem:[%s4 + $0x48] sm:$0xff]
  %v4713 = vld [vmem:[%s4 + $0x50] sm:$0xff]
  %v4714 = vld [vmem:[%s4 + $0x58] sm:$0xff]
  %v4715 = vld [vmem:[%s4 + $0x60] sm:$0xff]
  %v4716 = vld [vmem:[%s4 + $0x68] sm:$0xff]
  %v4717 = vld [vmem:[%s4 + $0x70] sm:$0xff]
  %v4718 = vld [vmem:[%s4 + $0x78] sm:$0xff]
  %v4719 = vld [vmem:[%s4 + $0x80] sm:$0xff]
  %v4720 = vld [vmem:[%s4 + $0x88] sm:$0xff]
  %v4721 = vld [vmem:[%s4 + $0x90] sm:$0xff]
  %v4722 = vld [vmem:[%s4 + $0x98] sm:$0xff]
  %v4723 = vld [vmem:[%s4 + $0xa0] sm:$0xff]
  %v4724 = vld [vmem:[%s4 + $0xa8] sm:$0xff]
  %v4725 = vld [vmem:[%s4 + $0xb0] sm:$0xff]
  %v4726 = vld [vmem:[%s4 + $0xb8] sm:$0xff]
  %v4727 = vld [vmem:[%s4 + $0xc0] sm:$0xff]
  %v4728 = vld [vmem:[%s4 + $0xc8] sm:$0xff]
  %v4729 = vld [vmem:[%s4 + $0xd0] sm:$0xff]
  %v4730 = vld [vmem:[%s4 + $0xd8] sm:$0xff]
  %v4731 = vld [vmem:[%s4 + $0xe0] sm:$0xff]
  %v4732 = vld [vmem:[%s4 + $0xe8] sm:$0xff]
  %v4733 = vld [vmem:[%s4 + $0xf0] sm:$0xff]
  %v4734 = vld [vmem:[%s4 + $0xf8] sm:$0xff]
  %4736 = vset.pattern.permute.xlu0 0
  %4737 = vperm.xlu0 %4736, %v4703
  %v4738 = vpop.permute.xlu0 %4737
  %4741 = vset.pattern.permute.xlu0 0
  %4742 = vperm.xlu0 %4741, %v4704
  %v4743 = vpop.permute.xlu0 %4742
  %4746 = vset.pattern.permute.xlu0 0
  %4747 = vperm.xlu0 %4746, %v4705
  %v4748 = vpop.permute.xlu0 %4747
  %4751 = vset.pattern.permute.xlu0 0
  %4752 = vperm.xlu0 %4751, %v4706
  %v4753 = vpop.permute.xlu0 %4752
  %4756 = vset.pattern.permute.xlu0 0
  %4757 = vperm.xlu0 %4756, %v4707
  %v4758 = vpop.permute.xlu0 %4757
  %4761 = vset.pattern.permute.xlu0 0
  %4762 = vperm.xlu0 %4761, %v4708
  %v4763 = vpop.permute.xlu0 %4762
  %4766 = vset.pattern.permute.xlu0 0
  %4767 = vperm.xlu0 %4766, %v4709
  %v4768 = vpop.permute.xlu0 %4767
  %4771 = vset.pattern.permute.xlu0 0
  %4772 = vperm.xlu0 %4771, %v4710
  %v4773 = vpop.permute.xlu0 %4772
  %4776 = vset.pattern.permute.xlu0 0
  %4777 = vperm.xlu0 %4776, %v4711
  %v4778 = vpop.permute.xlu0 %4777
  %4781 = vset.pattern.permute.xlu0 0
  %4782 = vperm.xlu0 %4781, %v4712
  %v4783 = vpop.permute.xlu0 %4782
  %4786 = vset.pattern.permute.xlu0 0
  %4787 = vperm.xlu0 %4786, %v4713
  %v4788 = vpop.permute.xlu0 %4787
  %4791 = vset.pattern.permute.xlu0 0
  %4792 = vperm.xlu0 %4791, %v4714
  %v4793 = vpop.permute.xlu0 %4792
  %4796 = vset.pattern.permute.xlu0 0
  %4797 = vperm.xlu0 %4796, %v4715
  %v4798 = vpop.permute.xlu0 %4797
  %4801 = vset.pattern.permute.xlu0 0
  %4802 = vperm.xlu0 %4801, %v4716
  %v4803 = vpop.permute.xlu0 %4802
  %4806 = vset.pattern.permute.xlu0 0
  %4807 = vperm.xlu0 %4806, %v4717
  %v4808 = vpop.permute.xlu0 %4807
  %4811 = vset.pattern.permute.xlu0 0
  %4812 = vperm.xlu0 %4811, %v4718
  %v4813 = vpop.permute.xlu0 %4812
  %4816 = vset.pattern.permute.xlu0 0
  %4817 = vperm.xlu0 %4816, %v4719
  %v4818 = vpop.permute.xlu0 %4817
  %4821 = vset.pattern.permute.xlu0 0
  %4822 = vperm.xlu0 %4821, %v4720
  %v4823 = vpop.permute.xlu0 %4822
  %4826 = vset.pattern.permute.xlu0 0
  %4827 = vperm.xlu0 %4826, %v4721
  %v4828 = vpop.permute.xlu0 %4827
  %4831 = vset.pattern.permute.xlu0 0
  %4832 = vperm.xlu0 %4831, %v4722
  %v4833 = vpop.permute.xlu0 %4832
  %4836 = vset.pattern.permute.xlu0 0
  %4837 = vperm.xlu0 %4836, %v4723
  %v4838 = vpop.permute.xlu0 %4837
  %4841 = vset.pattern.permute.xlu0 0
  %4842 = vperm.xlu0 %4841, %v4724
  %v4843 = vpop.permute.xlu0 %4842
  %4846 = vset.pattern.permute.xlu0 0
  %4847 = vperm.xlu0 %4846, %v4725
  %v4848 = vpop.permute.xlu0 %4847
  %4851 = vset.pattern.permute.xlu0 0
  %4852 = vperm.xlu0 %4851, %v4726
  %v4853 = vpop.permute.xlu0 %4852
  %4856 = vset.pattern.permute.xlu0 0
  %4857 = vperm.xlu0 %4856, %v4727
  %v4858 = vpop.permute.xlu0 %4857
  %4861 = vset.pattern.permute.xlu0 0
  %4862 = vperm.xlu0 %4861, %v4728
  %v4863 = vpop.permute.xlu0 %4862
  %4866 = vset.pattern.permute.xlu0 0
  %4867 = vperm.xlu0 %4866, %v4729
  %v4868 = vpop.permute.xlu0 %4867
  %4871 = vset.pattern.permute.xlu0 0
  %4872 = vperm.xlu0 %4871, %v4730
  %v4873 = vpop.permute.xlu0 %4872
  %4876 = vset.pattern.permute.xlu0 0
  %4877 = vperm.xlu0 %4876, %v4731
  %v4878 = vpop.permute.xlu0 %4877
  %4881 = vset.pattern.permute.xlu0 0
  %4882 = vperm.xlu0 %4881, %v4732
  %v4883 = vpop.permute.xlu0 %4882
  %4886 = vset.pattern.permute.xlu0 0
  %4887 = vperm.xlu0 %4886, %v4733
  %v4888 = vpop.permute.xlu0 %4887
  %4891 = vset.pattern.permute.xlu0 0
  %4892 = vperm.xlu0 %4891, %v4734
  %v4893 = vpop.permute.xlu0 %4892
  %v5215 = vunpack.c.l.b16 %v4383
  %v5216 = vunpack.c.h.b16 %v4383
  %v5217 = vunpack.c.l.b16 %v4384
  %v5218 = vunpack.c.h.b16 %v4384
  %v5219 = vunpack.c.l.b16 %v4385
  %v5220 = vunpack.c.h.b16 %v4385
  %v5221 = vunpack.c.l.b16 %v4386
  %v5222 = vunpack.c.h.b16 %v4386
  %v5223 = vunpack.c.l.b16 %v4387
  %v5224 = vunpack.c.h.b16 %v4387
  %v5225 = vunpack.c.l.b16 %v4388
  %v5226 = vunpack.c.h.b16 %v4388
  %v5227 = vunpack.c.l.b16 %v4389
  %v5228 = vunpack.c.h.b16 %v4389
  %v5229 = vunpack.c.l.b16 %v4390
  %v5230 = vunpack.c.h.b16 %v4390
  %v5231 = vunpack.c.l.b16 %v4391
  %v5232 = vunpack.c.h.b16 %v4391
  %v5233 = vunpack.c.l.b16 %v4392
  %v5234 = vunpack.c.l.b16 %v4393
  %v5235 = vunpack.c.h.b16 %v4393
  %v5236 = vunpack.c.l.b16 %v4394
  %v5237 = vunpack.c.h.b16 %v4394
  %v5238 = vunpack.c.l.b16 %v4395
  %v5239 = vunpack.c.h.b16 %v4395
  %v5240 = vunpack.c.l.b16 %v4396
  %v5241 = vunpack.c.h.b16 %v4396
  %v5242 = vunpack.c.l.b16 %v4397
  %v5243 = vunpack.c.h.b16 %v4397
  %v5244 = vunpack.c.l.b16 %v4398
  %v5245 = vunpack.c.h.b16 %v4398
  %v5246 = vunpack.c.l.b16 %v4399
  %v5247 = vunpack.c.h.b16 %v4399
  %v5248 = vunpack.c.l.b16 %v4400
  %v5249 = vunpack.c.h.b16 %v4400
  %v5250 = vunpack.c.l.b16 %v4401
  %v5251 = vunpack.c.h.b16 %v4401
  %v5252 = vunpack.c.l.b16 %v4402
  %v5253 = vunpack.c.l.b16 %v4403
  %v5254 = vunpack.c.h.b16 %v4403
  %v5255 = vunpack.c.l.b16 %v4404
  %v5256 = vunpack.c.h.b16 %v4404
  %v5257 = vunpack.c.l.b16 %v4405
  %v5258 = vunpack.c.h.b16 %v4405
  %v5259 = vunpack.c.l.b16 %v4406
  %v5260 = vunpack.c.h.b16 %v4406
  %v5261 = vunpack.c.l.b16 %v4407
  %v5262 = vunpack.c.h.b16 %v4407
  %v5263 = vunpack.c.l.b16 %v4408
  %v5264 = vunpack.c.h.b16 %v4408
  %v5265 = vunpack.c.l.b16 %v4409
  %v5266 = vunpack.c.h.b16 %v4409
  %v5267 = vunpack.c.l.b16 %v4410
  %v5268 = vunpack.c.h.b16 %v4410
  %v5269 = vunpack.c.l.b16 %v4411
  %v5270 = vunpack.c.h.b16 %v4411
  %v5271 = vunpack.c.l.b16 %v4412
  %v5272 = vunpack.c.l.b16 %v4413
  %v5273 = vunpack.c.h.b16 %v4413
  %v5274 = vunpack.c.l.b16 %v4414
  %v5275 = vunpack.c.h.b16 %v4414
  %v5276 = vunpack.c.l.b16 %v4415
  %v5277 = vunpack.c.h.b16 %v4415
  %v5278 = vunpack.c.l.b16 %v4416
  %v5279 = vunpack.c.h.b16 %v4416
  %v5280 = vunpack.c.l.b16 %v4417
  %v5281 = vunpack.c.h.b16 %v4417
  %v5282 = vunpack.c.l.b16 %v4418
  %v5283 = vunpack.c.h.b16 %v4418
  %v5284 = vunpack.c.l.b16 %v4419
  %v5285 = vunpack.c.h.b16 %v4419
  %v5286 = vunpack.c.l.b16 %v4420
  %v5287 = vunpack.c.h.b16 %v4420
  %v5288 = vunpack.c.l.b16 %v4421
  %v5289 = vunpack.c.h.b16 %v4421
  %v5290 = vunpack.c.l.b16 %v4422
  %v5291 = vunpack.c.l.b16 %v4423
  %v5292 = vunpack.c.h.b16 %v4423
  %v5293 = vunpack.c.l.b16 %v4424
  %v5294 = vunpack.c.h.b16 %v4424
  %v5295 = vunpack.c.l.b16 %v4425
  %v5296 = vunpack.c.h.b16 %v4425
  %v5297 = vunpack.c.l.b16 %v4426
  %v5298 = vunpack.c.h.b16 %v4426
  %v5299 = vunpack.c.l.b16 %v4427
  %v5300 = vunpack.c.h.b16 %v4427
  %v5301 = vunpack.c.l.b16 %v4428
  %v5302 = vunpack.c.h.b16 %v4428
  %v5303 = vunpack.c.l.b16 %v4429
  %v5304 = vunpack.c.h.b16 %v4429
  %v5305 = vunpack.c.l.b16 %v4430
  %v5306 = vunpack.c.h.b16 %v4430
  %v5307 = vunpack.c.l.b16 %v4431
  %v5308 = vunpack.c.h.b16 %v4431
  %v5309 = vunpack.c.l.b16 %v4432
  %v5310 = vunpack.c.l.b16 %v4433
  %v5311 = vunpack.c.h.b16 %v4433
  %v5312 = vunpack.c.l.b16 %v4434
  %v5313 = vunpack.c.h.b16 %v4434
  %v5314 = vunpack.c.l.b16 %v4435
  %v5315 = vunpack.c.h.b16 %v4435
  %v5316 = vunpack.c.l.b16 %v4436
  %v5317 = vunpack.c.h.b16 %v4436
  %v5318 = vunpack.c.l.b16 %v4437
  %v5319 = vunpack.c.h.b16 %v4437
  %v5320 = vunpack.c.l.b16 %v4438
  %v5321 = vunpack.c.h.b16 %v4438
  %v5322 = vunpack.c.l.b16 %v4439
  %v5323 = vunpack.c.h.b16 %v4439
  %v5324 = vunpack.c.l.b16 %v4440
  %v5325 = vunpack.c.h.b16 %v4440
  %v5326 = vunpack.c.l.b16 %v4441
  %v5327 = vunpack.c.h.b16 %v4441
  %v5328 = vunpack.c.l.b16 %v4442
  %v5329 = vunpack.c.l.b16 %v4443
  %v5330 = vunpack.c.h.b16 %v4443
  %v5331 = vunpack.c.l.b16 %v4444
  %v5332 = vunpack.c.h.b16 %v4444
  %v5333 = vunpack.c.l.b16 %v4445
  %v5334 = vunpack.c.h.b16 %v4445
  %v5335 = vunpack.c.l.b16 %v4446
  %v5336 = vunpack.c.h.b16 %v4446
  %v5337 = vunpack.c.l.b16 %v4447
  %v5338 = vunpack.c.h.b16 %v4447
  %v5339 = vunpack.c.l.b16 %v4448
  %v5340 = vunpack.c.h.b16 %v4448
  %v5341 = vunpack.c.l.b16 %v4449
  %v5342 = vunpack.c.h.b16 %v4449
  %v5343 = vunpack.c.l.b16 %v4450
  %v5344 = vunpack.c.h.b16 %v4450
  %v5345 = vunpack.c.l.b16 %v4451
  %v5346 = vunpack.c.h.b16 %v4451
  %v5347 = vunpack.c.l.b16 %v4452
  %v5348 = vunpack.c.l.b16 %v4453
  %v5349 = vunpack.c.h.b16 %v4453
  %v5350 = vunpack.c.l.b16 %v4454
  %v5351 = vunpack.c.h.b16 %v4454
  %v5352 = vunpack.c.l.b16 %v4455
  %v5353 = vunpack.c.h.b16 %v4455
  %v5354 = vunpack.c.l.b16 %v4456
  %v5355 = vunpack.c.h.b16 %v4456
  %v5356 = vunpack.c.l.b16 %v4457
  %v5357 = vunpack.c.h.b16 %v4457
  %v5358 = vunpack.c.l.b16 %v4458
  %v5359 = vunpack.c.h.b16 %v4458
  %v5360 = vunpack.c.l.b16 %v4459
  %v5361 = vunpack.c.h.b16 %v4459
  %v5362 = vunpack.c.l.b16 %v4460
  %v5363 = vunpack.c.h.b16 %v4460
  %v5364 = vunpack.c.l.b16 %v4461
  %v5365 = vunpack.c.h.b16 %v4461
  %v5366 = vunpack.c.l.b16 %v4462
  %v5367 = vunpack.c.l.b16 %v4463
  %v5368 = vunpack.c.h.b16 %v4463
  %v5369 = vunpack.c.l.b16 %v4464
  %v5370 = vunpack.c.h.b16 %v4464
  %v5371 = vunpack.c.l.b16 %v4465
  %v5372 = vunpack.c.h.b16 %v4465
  %v5373 = vunpack.c.l.b16 %v4466
  %v5374 = vunpack.c.h.b16 %v4466
  %v5375 = vunpack.c.l.b16 %v4467
  %v5376 = vunpack.c.h.b16 %v4467
  %v5377 = vunpack.c.l.b16 %v4468
  %v5378 = vunpack.c.h.b16 %v4468
  %v5379 = vunpack.c.l.b16 %v4469
  %v5380 = vunpack.c.h.b16 %v4469
  %v5381 = vunpack.c.l.b16 %v4470
  %v5382 = vunpack.c.h.b16 %v4470
  %v5383 = vunpack.c.l.b16 %v4471
  %v5384 = vunpack.c.h.b16 %v4471
  %v5385 = vunpack.c.l.b16 %v4472
  %v5386 = vunpack.c.l.b16 %v4473
  %v5387 = vunpack.c.h.b16 %v4473
  %v5388 = vunpack.c.l.b16 %v4474
  %v5389 = vunpack.c.h.b16 %v4474
  %v5390 = vunpack.c.l.b16 %v4475
  %v5391 = vunpack.c.h.b16 %v4475
  %v5392 = vunpack.c.l.b16 %v4476
  %v5393 = vunpack.c.h.b16 %v4476
  %v5394 = vunpack.c.l.b16 %v4477
  %v5395 = vunpack.c.h.b16 %v4477
  %v5396 = vunpack.c.l.b16 %v4478
  %v5397 = vunpack.c.h.b16 %v4478
  %v5398 = vunpack.c.l.b16 %v4479
  %v5399 = vunpack.c.h.b16 %v4479
  %v5400 = vunpack.c.l.b16 %v4480
  %v5401 = vunpack.c.h.b16 %v4480
  %v5402 = vunpack.c.l.b16 %v4481
  %v5403 = vunpack.c.h.b16 %v4481
  %v5404 = vunpack.c.l.b16 %v4482
  %v5405 = vunpack.c.l.b16 %v4483
  %v5406 = vunpack.c.h.b16 %v4483
  %v5407 = vunpack.c.l.b16 %v4484
  %v5408 = vunpack.c.h.b16 %v4484
  %v5409 = vunpack.c.l.b16 %v4485
  %v5410 = vunpack.c.h.b16 %v4485
  %v5411 = vunpack.c.l.b16 %v4486
  %v5412 = vunpack.c.h.b16 %v4486
  %v5413 = vunpack.c.l.b16 %v4487
  %v5414 = vunpack.c.h.b16 %v4487
  %v5415 = vunpack.c.l.b16 %v4488
  %v5416 = vunpack.c.h.b16 %v4488
  %v5417 = vunpack.c.l.b16 %v4489
  %v5418 = vunpack.c.h.b16 %v4489
  %v5419 = vunpack.c.l.b16 %v4490
  %v5420 = vunpack.c.h.b16 %v4490
  %v5421 = vunpack.c.l.b16 %v4491
  %v5422 = vunpack.c.h.b16 %v4491
  %v5423 = vunpack.c.l.b16 %v4492
  %v5424 = vunpack.c.l.b16 %v4493
  %v5425 = vunpack.c.h.b16 %v4493
  %v5426 = vunpack.c.l.b16 %v4494
  %v5427 = vunpack.c.h.b16 %v4494
  %v5428 = vunpack.c.l.b16 %v4495
  %v5429 = vunpack.c.h.b16 %v4495
  %v5430 = vunpack.c.l.b16 %v4496
  %v5431 = vunpack.c.h.b16 %v4496
  %v5432 = vunpack.c.l.b16 %v4497
  %v5433 = vunpack.c.h.b16 %v4497
  %v5434 = vunpack.c.l.b16 %v4498
  %v5435 = vunpack.c.h.b16 %v4498
  %v5436 = vunpack.c.l.b16 %v4499
  %v5437 = vunpack.c.h.b16 %v4499
  %v5438 = vunpack.c.l.b16 %v4500
  %v5439 = vunpack.c.h.b16 %v4500
  %v5440 = vunpack.c.l.b16 %v4501
  %v5441 = vunpack.c.h.b16 %v4501
  %v5442 = vunpack.c.l.b16 %v4502
  %v5443 = vunpack.c.l.b16 %v4503
  %v5444 = vunpack.c.h.b16 %v4503
  %v5445 = vunpack.c.l.b16 %v4504
  %v5446 = vunpack.c.h.b16 %v4504
  %v5447 = vunpack.c.l.b16 %v4505
  %v5448 = vunpack.c.h.b16 %v4505
  %v5449 = vunpack.c.l.b16 %v4506
  %v5450 = vunpack.c.h.b16 %v4506
  %v5451 = vunpack.c.l.b16 %v4507
  %v5452 = vunpack.c.h.b16 %v4507
  %v5453 = vunpack.c.l.b16 %v4508
  %v5454 = vunpack.c.h.b16 %v4508
  %v5455 = vunpack.c.l.b16 %v4509
  %v5456 = vunpack.c.h.b16 %v4509
  %v5457 = vunpack.c.l.b16 %v4510
  %v5458 = vunpack.c.h.b16 %v4510
  %v5459 = vunpack.c.l.b16 %v4511
  %v5460 = vunpack.c.h.b16 %v4511
  %v5461 = vunpack.c.l.b16 %v4512
  %v5462 = vunpack.c.l.b16 %v4513
  %v5463 = vunpack.c.h.b16 %v4513
  %v5464 = vunpack.c.l.b16 %v4514
  %v5465 = vunpack.c.h.b16 %v4514
  %v5466 = vunpack.c.l.b16 %v4515
  %v5467 = vunpack.c.h.b16 %v4515
  %v5468 = vunpack.c.l.b16 %v4516
  %v5469 = vunpack.c.h.b16 %v4516
  %v5470 = vunpack.c.l.b16 %v4517
  %v5471 = vunpack.c.h.b16 %v4517
  %v5472 = vunpack.c.l.b16 %v4518
  %v5473 = vunpack.c.h.b16 %v4518
  %v5474 = vunpack.c.l.b16 %v4519
  %v5475 = vunpack.c.h.b16 %v4519
  %v5476 = vunpack.c.l.b16 %v4520
  %v5477 = vunpack.c.h.b16 %v4520
  %v5478 = vunpack.c.l.b16 %v4521
  %v5479 = vunpack.c.h.b16 %v4521
  %v5480 = vunpack.c.l.b16 %v4522
  %v5481 = vunpack.c.l.b16 %v4523
  %v5482 = vunpack.c.h.b16 %v4523
  %v5483 = vunpack.c.l.b16 %v4524
  %v5484 = vunpack.c.h.b16 %v4524
  %v5485 = vunpack.c.l.b16 %v4525
  %v5486 = vunpack.c.h.b16 %v4525
  %v5487 = vunpack.c.l.b16 %v4526
  %v5488 = vunpack.c.h.b16 %v4526
  %v5489 = vunpack.c.l.b16 %v4527
  %v5490 = vunpack.c.h.b16 %v4527
  %v5491 = vunpack.c.l.b16 %v4528
  %v5492 = vunpack.c.h.b16 %v4528
  %v5493 = vunpack.c.l.b16 %v4529
  %v5494 = vunpack.c.h.b16 %v4529
  %v5495 = vunpack.c.l.b16 %v4530
  %v5496 = vunpack.c.h.b16 %v4530
  %v5497 = vunpack.c.l.b16 %v4531
  %v5498 = vunpack.c.h.b16 %v4531
  %v5499 = vunpack.c.l.b16 %v4532
  %v5500 = vunpack.c.l.b16 %v4533
  %v5501 = vunpack.c.h.b16 %v4533
  %v5502 = vunpack.c.l.b16 %v4534
  %v5503 = vunpack.c.h.b16 %v4534
  %v5504 = vunpack.c.l.b16 %v4535
  %v5505 = vunpack.c.h.b16 %v4535
  %v5506 = vunpack.c.l.b16 %v4536
  %v5507 = vunpack.c.h.b16 %v4536
  %v5508 = vunpack.c.l.b16 %v4537
  %v5509 = vunpack.c.h.b16 %v4537
  %v5510 = vunpack.c.l.b16 %v4538
  %v5511 = vunpack.c.h.b16 %v4538
  %v5512 = vunpack.c.l.b16 %v4539
  %v5513 = vunpack.c.h.b16 %v4539
  %v5514 = vunpack.c.l.b16 %v4540
  %v5515 = vunpack.c.h.b16 %v4540
  %v5516 = vunpack.c.l.b16 %v4541
  %v5517 = vunpack.c.h.b16 %v4541
  %v5518 = vunpack.c.l.b16 %v4542
  %v5519 = vunpack.c.l.b16 %v4543
  %v5520 = vunpack.c.h.b16 %v4543
  %v5521 = vunpack.c.l.b16 %v4544
  %v5522 = vunpack.c.h.b16 %v4544
  %v5523 = vunpack.c.l.b16 %v4545
  %v5524 = vunpack.c.h.b16 %v4545
  %v5525 = vunpack.c.l.b16 %v4546
  %v5526 = vunpack.c.h.b16 %v4546
  %v5527 = vunpack.c.l.b16 %v4547
  %v5528 = vunpack.c.h.b16 %v4547
  %v5529 = vunpack.c.l.b16 %v4548
  %v5530 = vunpack.c.h.b16 %v4548
  %v5531 = vunpack.c.l.b16 %v4549
  %v5532 = vunpack.c.h.b16 %v4549
  %v5533 = vunpack.c.l.b16 %v4550
  %v5534 = vunpack.c.h.b16 %v4550
  %v5535 = vunpack.c.l.b16 %v4551
  %v5536 = vunpack.c.h.b16 %v4551
  %v5537 = vunpack.c.l.b16 %v4552
  %v5538 = vunpack.c.l.b16 %v4553
  %v5539 = vunpack.c.h.b16 %v4553
  %v5540 = vunpack.c.l.b16 %v4554
  %v5541 = vunpack.c.h.b16 %v4554
  %v5542 = vunpack.c.l.b16 %v4555
  %v5543 = vunpack.c.h.b16 %v4555
  %v5544 = vunpack.c.l.b16 %v4556
  %v5545 = vunpack.c.h.b16 %v4556
  %v5546 = vunpack.c.l.b16 %v4557
  %v5547 = vunpack.c.h.b16 %v4557
  %v5548 = vunpack.c.l.b16 %v4558
  %v5549 = vunpack.c.h.b16 %v4558
  %v5550 = vunpack.c.l.b16 %v4559
  %v5551 = vunpack.c.h.b16 %v4559
  %v5552 = vunpack.c.l.b16 %v4560
  %v5553 = vunpack.c.h.b16 %v4560
  %v5554 = vunpack.c.l.b16 %v4561
  %v5555 = vunpack.c.h.b16 %v4561
  %v5556 = vunpack.c.l.b16 %v4562
  %v5557 = vunpack.c.l.b16 %v4563
  %v5558 = vunpack.c.h.b16 %v4563
  %v5559 = vunpack.c.l.b16 %v4564
  %v5560 = vunpack.c.h.b16 %v4564
  %v5561 = vunpack.c.l.b16 %v4565
  %v5562 = vunpack.c.h.b16 %v4565
  %v5563 = vunpack.c.l.b16 %v4566
  %v5564 = vunpack.c.h.b16 %v4566
  %v5565 = vunpack.c.l.b16 %v4567
  %v5566 = vunpack.c.h.b16 %v4567
  %v5567 = vunpack.c.l.b16 %v4568
  %v5568 = vunpack.c.h.b16 %v4568
  %v5569 = vunpack.c.l.b16 %v4569
  %v5570 = vunpack.c.h.b16 %v4569
  %v5571 = vunpack.c.l.b16 %v4570
  %v5572 = vunpack.c.h.b16 %v4570
  %v5573 = vunpack.c.l.b16 %v4571
  %v5574 = vunpack.c.h.b16 %v4571
  %v5575 = vunpack.c.l.b16 %v4572
  %v5576 = vunpack.c.l.b16 %v4573
  %v5577 = vunpack.c.h.b16 %v4573
  %v5578 = vunpack.c.l.b16 %v4574
  %v5579 = vunpack.c.h.b16 %v4574
  %v5580 = vunpack.c.l.b16 %v4575
  %v5581 = vunpack.c.h.b16 %v4575
  %v5582 = vunpack.c.l.b16 %v4576
  %v5583 = vunpack.c.h.b16 %v4576
  %v5584 = vunpack.c.l.b16 %v4577
  %v5585 = vunpack.c.h.b16 %v4577
  %v5586 = vunpack.c.l.b16 %v4578
  %v5587 = vunpack.c.h.b16 %v4578
  %v5588 = vunpack.c.l.b16 %v4579
  %v5589 = vunpack.c.h.b16 %v4579
  %v5590 = vunpack.c.l.b16 %v4580
  %v5591 = vunpack.c.h.b16 %v4580
  %v5592 = vunpack.c.l.b16 %v4581
  %v5593 = vunpack.c.h.b16 %v4581
  %v5594 = vunpack.c.l.b16 %v4582
  %v5595 = vunpack.c.l.b16 %v4583
  %v5596 = vunpack.c.h.b16 %v4583
  %v5597 = vunpack.c.l.b16 %v4584
  %v5598 = vunpack.c.h.b16 %v4584
  %v5599 = vunpack.c.l.b16 %v4585
  %v5600 = vunpack.c.h.b16 %v4585
  %v5601 = vunpack.c.l.b16 %v4586
  %v5602 = vunpack.c.h.b16 %v4586
  %v5603 = vunpack.c.l.b16 %v4587
  %v5604 = vunpack.c.h.b16 %v4587
  %v5605 = vunpack.c.l.b16 %v4588
  %v5606 = vunpack.c.h.b16 %v4588
  %v5607 = vunpack.c.l.b16 %v4589
  %v5608 = vunpack.c.h.b16 %v4589
  %v5609 = vunpack.c.l.b16 %v4590
  %v5610 = vunpack.c.h.b16 %v4590
  %v5611 = vunpack.c.l.b16 %v4591
  %v5612 = vunpack.c.h.b16 %v4591
  %v5613 = vunpack.c.l.b16 %v4592
  %v5614 = vunpack.c.l.b16 %v4593
  %v5615 = vunpack.c.h.b16 %v4593
  %v5616 = vunpack.c.l.b16 %v4594
  %v5617 = vunpack.c.h.b16 %v4594
  %v5618 = vunpack.c.l.b16 %v4595
  %v5619 = vunpack.c.h.b16 %v4595
  %v5620 = vunpack.c.l.b16 %v4596
  %v5621 = vunpack.c.h.b16 %v4596
  %v5622 = vunpack.c.l.b16 %v4597
  %v5623 = vunpack.c.h.b16 %v4597
  %v5624 = vunpack.c.l.b16 %v4598
  %v5625 = vunpack.c.h.b16 %v4598
  %v5626 = vunpack.c.l.b16 %v4599
  %v5627 = vunpack.c.h.b16 %v4599
  %v5628 = vunpack.c.l.b16 %v4600
  %v5629 = vunpack.c.h.b16 %v4600
  %v5630 = vunpack.c.l.b16 %v4601
  %v5631 = vunpack.c.h.b16 %v4601
  %v5632 = vunpack.c.l.b16 %v4602
  %v5633 = vunpack.c.l.b16 %v4603
  %v5634 = vunpack.c.h.b16 %v4603
  %v5635 = vunpack.c.l.b16 %v4604
  %v5636 = vunpack.c.h.b16 %v4604
  %v5637 = vunpack.c.l.b16 %v4605
  %v5638 = vunpack.c.h.b16 %v4605
  %v5639 = vunpack.c.l.b16 %v4606
  %v5640 = vunpack.c.h.b16 %v4606
  %v5641 = vunpack.c.l.b16 %v4607
  %v5642 = vunpack.c.h.b16 %v4607
  %v5643 = vunpack.c.l.b16 %v4608
  %v5644 = vunpack.c.h.b16 %v4608
  %v5645 = vunpack.c.l.b16 %v4609
  %v5646 = vunpack.c.h.b16 %v4609
  %v5647 = vunpack.c.l.b16 %v4610
  %v5648 = vunpack.c.h.b16 %v4610
  %v5649 = vunpack.c.l.b16 %v4611
  %v5650 = vunpack.c.h.b16 %v4611
  %v5651 = vunpack.c.l.b16 %v4612
  %v5652 = vunpack.c.l.b16 %v4613
  %v5653 = vunpack.c.h.b16 %v4613
  %v5654 = vunpack.c.l.b16 %v4614
  %v5655 = vunpack.c.h.b16 %v4614
  %v5656 = vunpack.c.l.b16 %v4615
  %v5657 = vunpack.c.h.b16 %v4615
  %v5658 = vunpack.c.l.b16 %v4616
  %v5659 = vunpack.c.h.b16 %v4616
  %v5660 = vunpack.c.l.b16 %v4617
  %v5661 = vunpack.c.h.b16 %v4617
  %v5662 = vunpack.c.l.b16 %v4618
  %v5663 = vunpack.c.h.b16 %v4618
  %v5664 = vunpack.c.l.b16 %v4619
  %v5665 = vunpack.c.h.b16 %v4619
  %v5666 = vunpack.c.l.b16 %v4620
  %v5667 = vunpack.c.h.b16 %v4620
  %v5668 = vunpack.c.l.b16 %v4621
  %v5669 = vunpack.c.h.b16 %v4621
  %v5670 = vunpack.c.l.b16 %v4622
  %v5671 = vunpack.c.l.b16 %v4623
  %v5672 = vunpack.c.h.b16 %v4623
  %v5673 = vunpack.c.l.b16 %v4624
  %v5674 = vunpack.c.h.b16 %v4624
  %v5675 = vunpack.c.l.b16 %v4625
  %v5676 = vunpack.c.h.b16 %v4625
  %v5677 = vunpack.c.l.b16 %v4626
  %v5678 = vunpack.c.h.b16 %v4626
  %v5679 = vunpack.c.l.b16 %v4627
  %v5680 = vunpack.c.h.b16 %v4627
  %v5681 = vunpack.c.l.b16 %v4628
  %v5682 = vunpack.c.h.b16 %v4628
  %v5683 = vunpack.c.l.b16 %v4629
  %v5684 = vunpack.c.h.b16 %v4629
  %v5685 = vunpack.c.l.b16 %v4630
  %v5686 = vunpack.c.h.b16 %v4630
  %v5687 = vunpack.c.l.b16 %v4631
  %v5688 = vunpack.c.h.b16 %v4631
  %v5689 = vunpack.c.l.b16 %v4632
  %v5690 = vunpack.c.l.b16 %v4633
  %v5691 = vunpack.c.h.b16 %v4633
  %v5692 = vunpack.c.l.b16 %v4634
  %v5693 = vunpack.c.h.b16 %v4634
  %v5694 = vunpack.c.l.b16 %v4635
  %v5695 = vunpack.c.h.b16 %v4635
  %v5696 = vunpack.c.l.b16 %v4636
  %v5697 = vunpack.c.h.b16 %v4636
  %v5698 = vunpack.c.l.b16 %v4637
  %v5699 = vunpack.c.h.b16 %v4637
  %v5700 = vunpack.c.l.b16 %v4638
  %v5701 = vunpack.c.h.b16 %v4638
  %v5702 = vunpack.c.l.b16 %v4639
  %v5703 = vunpack.c.h.b16 %v4639
  %v5704 = vunpack.c.l.b16 %v4640
  %v5705 = vunpack.c.h.b16 %v4640
  %v5706 = vunpack.c.l.b16 %v4641
  %v5707 = vunpack.c.h.b16 %v4641
  %v5708 = vunpack.c.l.b16 %v4642
  %v5709 = vunpack.c.l.b16 %v4643
  %v5710 = vunpack.c.h.b16 %v4643
  %v5711 = vunpack.c.l.b16 %v4644
  %v5712 = vunpack.c.h.b16 %v4644
  %v5713 = vunpack.c.l.b16 %v4645
  %v5714 = vunpack.c.h.b16 %v4645
  %v5715 = vunpack.c.l.b16 %v4646
  %v5716 = vunpack.c.h.b16 %v4646
  %v5717 = vunpack.c.l.b16 %v4647
  %v5718 = vunpack.c.h.b16 %v4647
  %v5719 = vunpack.c.l.b16 %v4648
  %v5720 = vunpack.c.h.b16 %v4648
  %v5721 = vunpack.c.l.b16 %v4649
  %v5722 = vunpack.c.h.b16 %v4649
  %v5723 = vunpack.c.l.b16 %v4650
  %v5724 = vunpack.c.h.b16 %v4650
  %v5725 = vunpack.c.l.b16 %v4651
  %v5726 = vunpack.c.h.b16 %v4651
  %v5727 = vunpack.c.l.b16 %v4652
  %v5728 = vunpack.c.l.b16 %v4653
  %v5729 = vunpack.c.h.b16 %v4653
  %v5730 = vunpack.c.l.b16 %v4654
  %v5731 = vunpack.c.h.b16 %v4654
  %v5732 = vunpack.c.l.b16 %v4655
  %v5733 = vunpack.c.h.b16 %v4655
  %v5734 = vunpack.c.l.b16 %v4656
  %v5735 = vunpack.c.h.b16 %v4656
  %v5736 = vunpack.c.l.b16 %v4657
  %v5737 = vunpack.c.h.b16 %v4657
  %v5738 = vunpack.c.l.b16 %v4658
  %v5739 = vunpack.c.h.b16 %v4658
  %v5740 = vunpack.c.l.b16 %v4659
  %v5741 = vunpack.c.h.b16 %v4659
  %v5742 = vunpack.c.l.b16 %v4660
  %v5743 = vunpack.c.h.b16 %v4660
  %v5744 = vunpack.c.l.b16 %v4661
  %v5745 = vunpack.c.h.b16 %v4661
  %v5746 = vunpack.c.l.b16 %v4662
  %v5747 = vunpack.c.l.b16 %v4663
  %v5748 = vunpack.c.h.b16 %v4663
  %v5749 = vunpack.c.l.b16 %v4664
  %v5750 = vunpack.c.h.b16 %v4664
  %v5751 = vunpack.c.l.b16 %v4665
  %v5752 = vunpack.c.h.b16 %v4665
  %v5753 = vunpack.c.l.b16 %v4666
  %v5754 = vunpack.c.h.b16 %v4666
  %v5755 = vunpack.c.l.b16 %v4667
  %v5756 = vunpack.c.h.b16 %v4667
  %v5757 = vunpack.c.l.b16 %v4668
  %v5758 = vunpack.c.h.b16 %v4668
  %v5759 = vunpack.c.l.b16 %v4669
  %v5760 = vunpack.c.h.b16 %v4669
  %v5761 = vunpack.c.l.b16 %v4670
  %v5762 = vunpack.c.h.b16 %v4670
  %v5763 = vunpack.c.l.b16 %v4671
  %v5764 = vunpack.c.h.b16 %v4671
  %v5765 = vunpack.c.l.b16 %v4672
  %v5766 = vunpack.c.l.b16 %v4673
  %v5767 = vunpack.c.h.b16 %v4673
  %v5768 = vunpack.c.l.b16 %v4674
  %v5769 = vunpack.c.h.b16 %v4674
  %v5770 = vunpack.c.l.b16 %v4675
  %v5771 = vunpack.c.h.b16 %v4675
  %v5772 = vunpack.c.l.b16 %v4676
  %v5773 = vunpack.c.h.b16 %v4676
  %v5774 = vunpack.c.l.b16 %v4677
  %v5775 = vunpack.c.h.b16 %v4677
  %v5776 = vunpack.c.l.b16 %v4678
  %v5777 = vunpack.c.h.b16 %v4678
  %v5778 = vunpack.c.l.b16 %v4679
  %v5779 = vunpack.c.h.b16 %v4679
  %v5780 = vunpack.c.l.b16 %v4680
  %v5781 = vunpack.c.h.b16 %v4680
  %v5782 = vunpack.c.l.b16 %v4681
  %v5783 = vunpack.c.h.b16 %v4681
  %v5784 = vunpack.c.l.b16 %v4682
  %v5785 = vunpack.c.l.b16 %v4683
  %v5786 = vunpack.c.h.b16 %v4683
  %v5787 = vunpack.c.l.b16 %v4684
  %v5788 = vunpack.c.h.b16 %v4684
  %v5789 = vunpack.c.l.b16 %v4685
  %v5790 = vunpack.c.h.b16 %v4685
  %v5791 = vunpack.c.l.b16 %v4686
  %v5792 = vunpack.c.h.b16 %v4686
  %v5793 = vunpack.c.l.b16 %v4687
  %v5794 = vunpack.c.h.b16 %v4687
  %v5795 = vunpack.c.l.b16 %v4688
  %v5796 = vunpack.c.h.b16 %v4688
  %v5797 = vunpack.c.l.b16 %v4689
  %v5798 = vunpack.c.h.b16 %v4689
  %v5799 = vunpack.c.l.b16 %v4690
  %v5800 = vunpack.c.h.b16 %v4690
  %v5801 = vunpack.c.l.b16 %v4691
  %v5802 = vunpack.c.h.b16 %v4691
  %v5803 = vunpack.c.l.b16 %v4692
  %v5804 = vunpack.c.l.b16 %v4693
  %v5805 = vunpack.c.h.b16 %v4693
  %v5806 = vunpack.c.l.b16 %v4694
  %v5807 = vunpack.c.h.b16 %v4694
  %v5808 = vunpack.c.l.b16 %v4695
  %v5809 = vunpack.c.h.b16 %v4695
  %v5810 = vunpack.c.l.b16 %v4696
  %v5811 = vunpack.c.h.b16 %v4696
  %v5812 = vunpack.c.l.b16 %v4697
  %v5813 = vunpack.c.h.b16 %v4697
  %v5814 = vunpack.c.l.b16 %v4698
  %v5815 = vunpack.c.h.b16 %v4698
  %v5816 = vunpack.c.l.b16 %v4699
  %v5817 = vunpack.c.h.b16 %v4699
  %v5818 = vunpack.c.l.b16 %v4700
  %v5819 = vunpack.c.h.b16 %v4700
  %v5820 = vunpack.c.l.b16 %v4701
  %v5821 = vunpack.c.h.b16 %v4701
  %v5822 = vunpack.c.l.b16 %v4702
  %v5823 = vpack.c.b16 %v5234, %v5215
  %v5824 = vpack.c.b16 %v5235, %v5216
  %v5825 = vpack.c.b16 %v5236, %v5217
  %v5826 = vpack.c.b16 %v5237, %v5218
  %v5827 = vpack.c.b16 %v5238, %v5219
  %v5828 = vpack.c.b16 %v5239, %v5220
  %v5829 = vpack.c.b16 %v5240, %v5221
  %v5830 = vpack.c.b16 %v5241, %v5222
  %v5831 = vpack.c.b16 %v5242, %v5223
  %v5832 = vpack.c.b16 %v5243, %v5224
  %v5833 = vpack.c.b16 %v5244, %v5225
  %v5834 = vpack.c.b16 %v5245, %v5226
  %v5835 = vpack.c.b16 %v5246, %v5227
  %v5836 = vpack.c.b16 %v5247, %v5228
  %v5837 = vpack.c.b16 %v5248, %v5229
  %v5838 = vpack.c.b16 %v5249, %v5230
  %v5839 = vpack.c.b16 %v5250, %v5231
  %v5840 = vpack.c.b16 %v5251, %v5232
  %v5841 = vpack.c.b16 %v5252, %v5233
  %v5842 = vpack.c.b16 %v5272, %v5253
  %v5843 = vpack.c.b16 %v5273, %v5254
  %v5844 = vpack.c.b16 %v5274, %v5255
  %v5845 = vpack.c.b16 %v5275, %v5256
  %v5846 = vpack.c.b16 %v5276, %v5257
  %v5847 = vpack.c.b16 %v5277, %v5258
  %v5848 = vpack.c.b16 %v5278, %v5259
  %v5849 = vpack.c.b16 %v5279, %v5260
  %v5850 = vpack.c.b16 %v5280, %v5261
  %v5851 = vpack.c.b16 %v5281, %v5262
  %v5852 = vpack.c.b16 %v5282, %v5263
  %v5853 = vpack.c.b16 %v5283, %v5264
  %v5854 = vpack.c.b16 %v5284, %v5265
  %v5855 = vpack.c.b16 %v5285, %v5266
  %v5856 = vpack.c.b16 %v5286, %v5267
  %v5857 = vpack.c.b16 %v5287, %v5268
  %v5858 = vpack.c.b16 %v5288, %v5269
  %v5859 = vpack.c.b16 %v5289, %v5270
  %v5860 = vpack.c.b16 %v5290, %v5271
  %v5861 = vpack.c.b16 %v5310, %v5291
  %v5862 = vpack.c.b16 %v5311, %v5292
  %v5863 = vpack.c.b16 %v5312, %v5293
  %v5864 = vpack.c.b16 %v5313, %v5294
  %v5865 = vpack.c.b16 %v5314, %v5295
  %v5866 = vpack.c.b16 %v5315, %v5296
  %v5867 = vpack.c.b16 %v5316, %v5297
  %v5868 = vpack.c.b16 %v5317, %v5298
  %v5869 = vpack.c.b16 %v5318, %v5299
  %v5870 = vpack.c.b16 %v5319, %v5300
  %v5871 = vpack.c.b16 %v5320, %v5301
  %v5872 = vpack.c.b16 %v5321, %v5302
  %v5873 = vpack.c.b16 %v5322, %v5303
  %v5874 = vpack.c.b16 %v5323, %v5304
  %v5875 = vpack.c.b16 %v5324, %v5305
  %v5876 = vpack.c.b16 %v5325, %v5306
  %v5877 = vpack.c.b16 %v5326, %v5307
  %v5878 = vpack.c.b16 %v5327, %v5308
  %v5879 = vpack.c.b16 %v5328, %v5309
  %v5880 = vpack.c.b16 %v5348, %v5329
  %v5881 = vpack.c.b16 %v5349, %v5330
  %v5882 = vpack.c.b16 %v5350, %v5331
  %v5883 = vpack.c.b16 %v5351, %v5332
  %v5884 = vpack.c.b16 %v5352, %v5333
  %v5885 = vpack.c.b16 %v5353, %v5334
  %v5886 = vpack.c.b16 %v5354, %v5335
  %v5887 = vpack.c.b16 %v5355, %v5336
  %v5888 = vpack.c.b16 %v5356, %v5337
  %v5889 = vpack.c.b16 %v5357, %v5338
  %v5890 = vpack.c.b16 %v5358, %v5339
  %v5891 = vpack.c.b16 %v5359, %v5340
  %v5892 = vpack.c.b16 %v5360, %v5341
  %v5893 = vpack.c.b16 %v5361, %v5342
  %v5894 = vpack.c.b16 %v5362, %v5343
  %v5895 = vpack.c.b16 %v5363, %v5344
  %v5896 = vpack.c.b16 %v5364, %v5345
  %v5897 = vpack.c.b16 %v5365, %v5346
  %v5898 = vpack.c.b16 %v5366, %v5347
  %v5899 = vpack.c.b16 %v5386, %v5367
  %v5900 = vpack.c.b16 %v5387, %v5368
  %v5901 = vpack.c.b16 %v5388, %v5369
  %v5902 = vpack.c.b16 %v5389, %v5370
  %v5903 = vpack.c.b16 %v5390, %v5371
  %v5904 = vpack.c.b16 %v5391, %v5372
  %v5905 = vpack.c.b16 %v5392, %v5373
  %v5906 = vpack.c.b16 %v5393, %v5374
  %v5907 = vpack.c.b16 %v5394, %v5375
  %v5908 = vpack.c.b16 %v5395, %v5376
  %v5909 = vpack.c.b16 %v5396, %v5377
  %v5910 = vpack.c.b16 %v5397, %v5378
  %v5911 = vpack.c.b16 %v5398, %v5379
  %v5912 = vpack.c.b16 %v5399, %v5380
  %v5913 = vpack.c.b16 %v5400, %v5381
  %v5914 = vpack.c.b16 %v5401, %v5382
  %v5915 = vpack.c.b16 %v5402, %v5383
  %v5916 = vpack.c.b16 %v5403, %v5384
  %v5917 = vpack.c.b16 %v5404, %v5385
  %v5918 = vpack.c.b16 %v5424, %v5405
  %v5919 = vpack.c.b16 %v5425, %v5406
  %v5920 = vpack.c.b16 %v5426, %v5407
  %v5921 = vpack.c.b16 %v5427, %v5408
  %v5922 = vpack.c.b16 %v5428, %v5409
  %v5923 = vpack.c.b16 %v5429, %v5410
  %v5924 = vpack.c.b16 %v5430, %v5411
  %v5925 = vpack.c.b16 %v5431, %v5412
  %v5926 = vpack.c.b16 %v5432, %v5413
  %v5927 = vpack.c.b16 %v5433, %v5414
  %v5928 = vpack.c.b16 %v5434, %v5415
  %v5929 = vpack.c.b16 %v5435, %v5416
  %v5930 = vpack.c.b16 %v5436, %v5417
  %v5931 = vpack.c.b16 %v5437, %v5418
  %v5932 = vpack.c.b16 %v5438, %v5419
  %v5933 = vpack.c.b16 %v5439, %v5420
  %v5934 = vpack.c.b16 %v5440, %v5421
  %v5935 = vpack.c.b16 %v5441, %v5422
  %v5936 = vpack.c.b16 %v5442, %v5423
  %v5937 = vpack.c.b16 %v5462, %v5443
  %v5938 = vpack.c.b16 %v5463, %v5444
  %v5939 = vpack.c.b16 %v5464, %v5445
  %v5940 = vpack.c.b16 %v5465, %v5446
  %v5941 = vpack.c.b16 %v5466, %v5447
  %v5942 = vpack.c.b16 %v5467, %v5448
  %v5943 = vpack.c.b16 %v5468, %v5449
  %v5944 = vpack.c.b16 %v5469, %v5450
  %v5945 = vpack.c.b16 %v5470, %v5451
  %v5946 = vpack.c.b16 %v5471, %v5452
  %v5947 = vpack.c.b16 %v5472, %v5453
  %v5948 = vpack.c.b16 %v5473, %v5454
  %v5949 = vpack.c.b16 %v5474, %v5455
  %v5950 = vpack.c.b16 %v5475, %v5456
  %v5951 = vpack.c.b16 %v5476, %v5457
  %v5952 = vpack.c.b16 %v5477, %v5458
  %v5953 = vpack.c.b16 %v5478, %v5459
  %v5954 = vpack.c.b16 %v5479, %v5460
  %v5955 = vpack.c.b16 %v5480, %v5461
  %v5956 = vpack.c.b16 %v5500, %v5481
  %v5957 = vpack.c.b16 %v5501, %v5482
  %v5958 = vpack.c.b16 %v5502, %v5483
  %v5959 = vpack.c.b16 %v5503, %v5484
  %v5960 = vpack.c.b16 %v5504, %v5485
  %v5961 = vpack.c.b16 %v5505, %v5486
  %v5962 = vpack.c.b16 %v5506, %v5487
  %v5963 = vpack.c.b16 %v5507, %v5488
  %v5964 = vpack.c.b16 %v5508, %v5489
  %v5965 = vpack.c.b16 %v5509, %v5490
  %v5966 = vpack.c.b16 %v5510, %v5491
  %v5967 = vpack.c.b16 %v5511, %v5492
  %v5968 = vpack.c.b16 %v5512, %v5493
  %v5969 = vpack.c.b16 %v5513, %v5494
  %v5970 = vpack.c.b16 %v5514, %v5495
  %v5971 = vpack.c.b16 %v5515, %v5496
  %v5972 = vpack.c.b16 %v5516, %v5497
  %v5973 = vpack.c.b16 %v5517, %v5498
  %v5974 = vpack.c.b16 %v5518, %v5499
  %v5975 = vpack.c.b16 %v5538, %v5519
  %v5976 = vpack.c.b16 %v5539, %v5520
  %v5977 = vpack.c.b16 %v5540, %v5521
  %v5978 = vpack.c.b16 %v5541, %v5522
  %v5979 = vpack.c.b16 %v5542, %v5523
  %v5980 = vpack.c.b16 %v5543, %v5524
  %v5981 = vpack.c.b16 %v5544, %v5525
  %v5982 = vpack.c.b16 %v5545, %v5526
  %v5983 = vpack.c.b16 %v5546, %v5527
  %v5984 = vpack.c.b16 %v5547, %v5528
  %v5985 = vpack.c.b16 %v5548, %v5529
  %v5986 = vpack.c.b16 %v5549, %v5530
  %v5987 = vpack.c.b16 %v5550, %v5531
  %v5988 = vpack.c.b16 %v5551, %v5532
  %v5989 = vpack.c.b16 %v5552, %v5533
  %v5990 = vpack.c.b16 %v5553, %v5534
  %v5991 = vpack.c.b16 %v5554, %v5535
  %v5992 = vpack.c.b16 %v5555, %v5536
  %v5993 = vpack.c.b16 %v5556, %v5537
  %v5994 = vpack.c.b16 %v5576, %v5557
  %v5995 = vpack.c.b16 %v5577, %v5558
  %v5996 = vpack.c.b16 %v5578, %v5559
  %v5997 = vpack.c.b16 %v5579, %v5560
  %v5998 = vpack.c.b16 %v5580, %v5561
  %v5999 = vpack.c.b16 %v5581, %v5562
  %v6000 = vpack.c.b16 %v5582, %v5563
  %v6001 = vpack.c.b16 %v5583, %v5564
  %v6002 = vpack.c.b16 %v5584, %v5565
  %v6003 = vpack.c.b16 %v5585, %v5566
  %v6004 = vpack.c.b16 %v5586, %v5567
  %v6005 = vpack.c.b16 %v5587, %v5568
  %v6006 = vpack.c.b16 %v5588, %v5569
  %v6007 = vpack.c.b16 %v5589, %v5570
  %v6008 = vpack.c.b16 %v5590, %v5571
  %v6009 = vpack.c.b16 %v5591, %v5572
  %v6010 = vpack.c.b16 %v5592, %v5573
  %v6011 = vpack.c.b16 %v5593, %v5574
  %v6012 = vpack.c.b16 %v5594, %v5575
  %v6013 = vpack.c.b16 %v5614, %v5595
  %v6014 = vpack.c.b16 %v5615, %v5596
  %v6015 = vpack.c.b16 %v5616, %v5597
  %v6016 = vpack.c.b16 %v5617, %v5598
  %v6017 = vpack.c.b16 %v5618, %v5599
  %v6018 = vpack.c.b16 %v5619, %v5600
  %v6019 = vpack.c.b16 %v5620, %v5601
  %v6020 = vpack.c.b16 %v5621, %v5602
  %v6021 = vpack.c.b16 %v5622, %v5603
  %v6022 = vpack.c.b16 %v5623, %v5604
  %v6023 = vpack.c.b16 %v5624, %v5605
  %v6024 = vpack.c.b16 %v5625, %v5606
  %v6025 = vpack.c.b16 %v5626, %v5607
  %v6026 = vpack.c.b16 %v5627, %v5608
  %v6027 = vpack.c.b16 %v5628, %v5609
  %v6028 = vpack.c.b16 %v5629, %v5610
  %v6029 = vpack.c.b16 %v5630, %v5611
  %v6030 = vpack.c.b16 %v5631, %v5612
  %v6031 = vpack.c.b16 %v5632, %v5613
  %v6032 = vpack.c.b16 %v5652, %v5633
  %v6033 = vpack.c.b16 %v5653, %v5634
  %v6034 = vpack.c.b16 %v5654, %v5635
  %v6035 = vpack.c.b16 %v5655, %v5636
  %v6036 = vpack.c.b16 %v5656, %v5637
  %v6037 = vpack.c.b16 %v5657, %v5638
  %v6038 = vpack.c.b16 %v5658, %v5639
  %v6039 = vpack.c.b16 %v5659, %v5640
  %v6040 = vpack.c.b16 %v5660, %v5641
  %v6041 = vpack.c.b16 %v5661, %v5642
  %v6042 = vpack.c.b16 %v5662, %v5643
  %v6043 = vpack.c.b16 %v5663, %v5644
  %v6044 = vpack.c.b16 %v5664, %v5645
  %v6045 = vpack.c.b16 %v5665, %v5646
  %v6046 = vpack.c.b16 %v5666, %v5647
  %v6047 = vpack.c.b16 %v5667, %v5648
  %v6048 = vpack.c.b16 %v5668, %v5649
  %v6049 = vpack.c.b16 %v5669, %v5650
  %v6050 = vpack.c.b16 %v5670, %v5651
  %v6051 = vpack.c.b16 %v5690, %v5671
  %v6052 = vpack.c.b16 %v5691, %v5672
  %v6053 = vpack.c.b16 %v5692, %v5673
  %v6054 = vpack.c.b16 %v5693, %v5674
  %v6055 = vpack.c.b16 %v5694, %v5675
  %v6056 = vpack.c.b16 %v5695, %v5676
  %v6057 = vpack.c.b16 %v5696, %v5677
  %v6058 = vpack.c.b16 %v5697, %v5678
  %v6059 = vpack.c.b16 %v5698, %v5679
  %v6060 = vpack.c.b16 %v5699, %v5680
  %v6061 = vpack.c.b16 %v5700, %v5681
  %v6062 = vpack.c.b16 %v5701, %v5682
  %v6063 = vpack.c.b16 %v5702, %v5683
  %v6064 = vpack.c.b16 %v5703, %v5684
  %v6065 = vpack.c.b16 %v5704, %v5685
  %v6066 = vpack.c.b16 %v5705, %v5686
  %v6067 = vpack.c.b16 %v5706, %v5687
  %v6068 = vpack.c.b16 %v5707, %v5688
  %v6069 = vpack.c.b16 %v5708, %v5689
  %v6070 = vpack.c.b16 %v5728, %v5709
  %v6071 = vpack.c.b16 %v5729, %v5710
  %v6072 = vpack.c.b16 %v5730, %v5711
  %v6073 = vpack.c.b16 %v5731, %v5712
  %v6074 = vpack.c.b16 %v5732, %v5713
  %v6075 = vpack.c.b16 %v5733, %v5714
  %v6076 = vpack.c.b16 %v5734, %v5715
  %v6077 = vpack.c.b16 %v5735, %v5716
  %v6078 = vpack.c.b16 %v5736, %v5717
  %v6079 = vpack.c.b16 %v5737, %v5718
  %v6080 = vpack.c.b16 %v5738, %v5719
  %v6081 = vpack.c.b16 %v5739, %v5720
  %v6082 = vpack.c.b16 %v5740, %v5721
  %v6083 = vpack.c.b16 %v5741, %v5722
  %v6084 = vpack.c.b16 %v5742, %v5723
  %v6085 = vpack.c.b16 %v5743, %v5724
  %v6086 = vpack.c.b16 %v5744, %v5725
  %v6087 = vpack.c.b16 %v5745, %v5726
  %v6088 = vpack.c.b16 %v5746, %v5727
  %v6089 = vpack.c.b16 %v5766, %v5747
  %v6090 = vpack.c.b16 %v5767, %v5748
  %v6091 = vpack.c.b16 %v5768, %v5749
  %v6092 = vpack.c.b16 %v5769, %v5750
  %v6093 = vpack.c.b16 %v5770, %v5751
  %v6094 = vpack.c.b16 %v5771, %v5752
  %v6095 = vpack.c.b16 %v5772, %v5753
  %v6096 = vpack.c.b16 %v5773, %v5754
  %v6097 = vpack.c.b16 %v5774, %v5755
  %v6098 = vpack.c.b16 %v5775, %v5756
  %v6099 = vpack.c.b16 %v5776, %v5757
  %v6100 = vpack.c.b16 %v5777, %v5758
  %v6101 = vpack.c.b16 %v5778, %v5759
  %v6102 = vpack.c.b16 %v5779, %v5760
  %v6103 = vpack.c.b16 %v5780, %v5761
  %v6104 = vpack.c.b16 %v5781, %v5762
  %v6105 = vpack.c.b16 %v5782, %v5763
  %v6106 = vpack.c.b16 %v5783, %v5764
  %v6107 = vpack.c.b16 %v5784, %v5765
  %v6108 = vpack.c.b16 %v5804, %v5785
  %v6109 = vpack.c.b16 %v5805, %v5786
  %v6110 = vpack.c.b16 %v5806, %v5787
  %v6111 = vpack.c.b16 %v5807, %v5788
  %v6112 = vpack.c.b16 %v5808, %v5789
  %v6113 = vpack.c.b16 %v5809, %v5790
  %v6114 = vpack.c.b16 %v5810, %v5791
  %v6115 = vpack.c.b16 %v5811, %v5792
  %v6116 = vpack.c.b16 %v5812, %v5793
  %v6117 = vpack.c.b16 %v5813, %v5794
  %v6118 = vpack.c.b16 %v5814, %v5795
  %v6119 = vpack.c.b16 %v5815, %v5796
  %v6120 = vpack.c.b16 %v5816, %v5797
  %v6121 = vpack.c.b16 %v5817, %v5798
  %v6122 = vpack.c.b16 %v5818, %v5799
  %v6123 = vpack.c.b16 %v5819, %v5800
  %v6124 = vpack.c.b16 %v5820, %v5801
  %v6125 = vpack.c.b16 %v5821, %v5802
  %v6126 = vpack.c.b16 %v5822, %v5803
  %vm6415 = vcmask 785408
  %v6417 = vsel %vm6415, %v5841, 0
  %v6420 = vsel %vm6415, %v5860, 0
  %v6423 = vsel %vm6415, %v5879, 0
  %v6426 = vsel %vm6415, %v5898, 0
  %v6429 = vsel %vm6415, %v5917, 0
  %v6432 = vsel %vm6415, %v5936, 0
  %v6435 = vsel %vm6415, %v5955, 0
  %v6438 = vsel %vm6415, %v5974, 0
  %v6441 = vsel %vm6415, %v5993, 0
  %v6444 = vsel %vm6415, %v6012, 0
  %v6447 = vsel %vm6415, %v6031, 0
  %v6450 = vsel %vm6415, %v6050, 0
  %v6453 = vsel %vm6415, %v6069, 0
  %v6456 = vsel %vm6415, %v6088, 0
  %v6459 = vsel %vm6415, %v6107, 0
  %v6462 = vsel %vm6415, %v6126, 0
  %6464 = vmatprep.subr.bf16.mxu0 %v3341
  %6465 = vmatpush1.bf16.msra.mxu0 %v3359
  %6466 = vmatprep.subr.bf16.mxu0 %v3337
  %6467 = vmatpush1.bf16.msra.mxu0 %v3358
  %6468 = vmatprep.subr.bf16.mxu0 %v3321
  %6469 = vmatpush1.bf16.msra.mxu0 %v3320
  %6470 = vmatprep.subr.bf16.mxu0 %v3319
  %6471 = vmatpush1.bf16.msra.mxu0 %v3318
  %6472 = vmatprep.subr.bf16.mxu0 %v3317
  %6473 = vmatpush1.bf16.msra.mxu0 %v3316
  %6474 = vmatprep.subr.bf16.mxu0 %v3315
  %6475 = vmatpush1.bf16.msra.mxu0 %v3314
  %6476 = vmatprep.subr.bf16.mxu0 %v3313
  %6477 = vmatpush1.bf16.msra.mxu0 %v3312
  %6478 = vmatprep.subr.bf16.mxu0 %v3311
  %6479 = vmatpush1.bf16.msra.mxu0 %v3310
  %6480 = vmatprep.subr.bf16.mxu0 %v3391
  %6481 = vmatpush2.bf16.msra.mxu0 %v3403
  %6482 = vmatprep.subr.bf16.mxu0 %v3387
  %6483 = vmatpush2.bf16.msra.mxu0 %v3402
  %6484 = vmatprep.subr.bf16.mxu0 %v3383
  %6485 = vmatpush2.bf16.msra.mxu0 %v3401
  %6486 = vmatprep.subr.bf16.mxu0 %v3379
  %6487 = vmatpush2.bf16.msra.mxu0 %v3400
  %6488 = vmatprep.subr.bf16.mxu0 %v3357
  %6489 = vmatpush2.bf16.msra.mxu0 %v3363
  %6490 = vmatprep.subr.bf16.mxu0 %v3353
  %6491 = vmatpush2.bf16.msra.mxu0 %v3362
  %6492 = vmatprep.subr.bf16.mxu0 %v3349
  %6493 = vmatpush2.bf16.msra.mxu0 %v3361
  %6494 = vmatprep.subr.bf16.mxu0 %v3345
  %6495 = vmatpush2.bf16.msra.mxu0 %v3360
  %6496 = vmatprep.mubr.bf16.mxu0 %v5824
  %6497 = vmatmul.mubr.bf16.gmra.mxu0 %v5823
  %v6498 = vpop.f32.mrf.mxu0
  %v6499 = vadd.f32 %v4738, %v6498
  %v6500 = vpop.f32.mrf.mxu0
  %v6501 = vadd.f32 %v4738, %v6500
  %v6502 = vpop.f32.mrf.mxu0
  %v6503 = vadd.f32 %v4743, %v6502
  %v6504 = vpop.f32.mrf.mxu0
  %v6505 = vadd.f32 %v4743, %v6504
  %6506 = vmatprep.mubr.bf16.mxu0 %v5843
  %6507 = vmatmul.mubr.bf16.gmra.mxu0 %v5842
  %v6508 = vpop.f32.mrf.mxu0
  %v6509 = vadd.f32 %v4748, %v6508
  %v6510 = vpop.f32.mrf.mxu0
  %v6511 = vadd.f32 %v4748, %v6510
  %v6512 = vpop.f32.mrf.mxu0
  %v6513 = vadd.f32 %v4753, %v6512
  %v6514 = vpop.f32.mrf.mxu0
  %v6515 = vadd.f32 %v4753, %v6514
  %6516 = vmatprep.mubr.bf16.mxu0 %v5862
  %6517 = vmatmul.mubr.bf16.gmra.mxu0 %v5861
  %v6518 = vpop.f32.mrf.mxu0
  %v6519 = vadd.f32 %v4758, %v6518
  %v6520 = vpop.f32.mrf.mxu0
  %v6521 = vadd.f32 %v4758, %v6520
  %v6522 = vpop.f32.mrf.mxu0
  %v6523 = vadd.f32 %v4763, %v6522
  %v6524 = vpop.f32.mrf.mxu0
  %v6525 = vadd.f32 %v4763, %v6524
  %6526 = vmatprep.mubr.bf16.mxu0 %v5881
  %6527 = vmatmul.mubr.bf16.gmra.mxu0 %v5880
  %v6528 = vpop.f32.mrf.mxu0
  %v6529 = vadd.f32 %v4768, %v6528
  %v6530 = vpop.f32.mrf.mxu0
  %v6531 = vadd.f32 %v4768, %v6530
  %v6532 = vpop.f32.mrf.mxu0
  %v6533 = vadd.f32 %v4773, %v6532
  %v6534 = vpop.f32.mrf.mxu0
  %v6535 = vadd.f32 %v4773, %v6534
  %6536 = vmatprep.mubr.bf16.mxu0 %v5900
  %6537 = vmatmul.mubr.bf16.gmra.mxu0 %v5899
  %v6538 = vpop.f32.mrf.mxu0
  %v6539 = vadd.f32 %v4778, %v6538
  %v6540 = vpop.f32.mrf.mxu0
  %v6541 = vadd.f32 %v4778, %v6540
  %v6542 = vpop.f32.mrf.mxu0
  %v6543 = vadd.f32 %v4783, %v6542
  %v6544 = vpop.f32.mrf.mxu0
  %v6545 = vadd.f32 %v4783, %v6544
  %6546 = vmatprep.mubr.bf16.mxu0 %v5919
  %6547 = vmatmul.mubr.bf16.gmra.mxu0 %v5918
  %v6548 = vpop.f32.mrf.mxu0
  %v6549 = vadd.f32 %v4788, %v6548
  %v6550 = vpop.f32.mrf.mxu0
  %v6551 = vadd.f32 %v4788, %v6550
  %v6552 = vpop.f32.mrf.mxu0
  %v6553 = vadd.f32 %v4793, %v6552
  %v6554 = vpop.f32.mrf.mxu0
  %v6555 = vadd.f32 %v4793, %v6554
  %6556 = vmatprep.mubr.bf16.mxu0 %v5938
  %6557 = vmatmul.mubr.bf16.gmra.mxu0 %v5937
  %v6558 = vpop.f32.mrf.mxu0
  %v6559 = vadd.f32 %v4798, %v6558
  %v6560 = vpop.f32.mrf.mxu0
  %v6561 = vadd.f32 %v4798, %v6560
  %v6562 = vpop.f32.mrf.mxu0
  %v6563 = vadd.f32 %v4803, %v6562
  %v6564 = vpop.f32.mrf.mxu0
  %v6565 = vadd.f32 %v4803, %v6564
  %6566 = vmatprep.mubr.bf16.mxu0 %v5957
  %6567 = vmatmul.mubr.bf16.gmra.mxu0 %v5956
  %v6568 = vpop.f32.mrf.mxu0
  %v6569 = vadd.f32 %v4808, %v6568
  %v6570 = vpop.f32.mrf.mxu0
  %v6571 = vadd.f32 %v4808, %v6570
  %v6572 = vpop.f32.mrf.mxu0
  %v6573 = vadd.f32 %v4813, %v6572
  %v6574 = vpop.f32.mrf.mxu0
  %v6575 = vadd.f32 %v4813, %v6574
  %6576 = vmatprep.mubr.bf16.mxu0 %v5976
  %6577 = vmatmul.mubr.bf16.gmra.mxu0 %v5975
  %v6578 = vpop.f32.mrf.mxu0
  %v6579 = vadd.f32 %v4818, %v6578
  %v6580 = vpop.f32.mrf.mxu0
  %v6581 = vadd.f32 %v4818, %v6580
  %v6582 = vpop.f32.mrf.mxu0
  %v6583 = vadd.f32 %v4823, %v6582
  %v6584 = vpop.f32.mrf.mxu0
  %v6585 = vadd.f32 %v4823, %v6584
  %6586 = vmatprep.mubr.bf16.mxu0 %v5995
  %6587 = vmatmul.mubr.bf16.gmra.mxu0 %v5994
  %v6588 = vpop.f32.mrf.mxu0
  %v6589 = vadd.f32 %v4828, %v6588
  %v6590 = vpop.f32.mrf.mxu0
  %v6591 = vadd.f32 %v4828, %v6590
  %v6592 = vpop.f32.mrf.mxu0
  %v6593 = vadd.f32 %v4833, %v6592
  %v6594 = vpop.f32.mrf.mxu0
  %v6595 = vadd.f32 %v4833, %v6594
  %6596 = vmatprep.mubr.bf16.mxu0 %v6014
  %6597 = vmatmul.mubr.bf16.gmra.mxu0 %v6013
  %v6598 = vpop.f32.mrf.mxu0
  %v6599 = vadd.f32 %v4838, %v6598
  %v6600 = vpop.f32.mrf.mxu0
  %v6601 = vadd.f32 %v4838, %v6600
  %v6602 = vpop.f32.mrf.mxu0
  %v6603 = vadd.f32 %v4843, %v6602
  %v6604 = vpop.f32.mrf.mxu0
  %v6605 = vadd.f32 %v4843, %v6604
  %6606 = vmatprep.mubr.bf16.mxu0 %v6033
  %6607 = vmatmul.mubr.bf16.gmra.mxu0 %v6032
  %v6608 = vpop.f32.mrf.mxu0
  %v6609 = vadd.f32 %v4848, %v6608
  %v6610 = vpop.f32.mrf.mxu0
  %v6611 = vadd.f32 %v4848, %v6610
  %v6612 = vpop.f32.mrf.mxu0
  %v6613 = vadd.f32 %v4853, %v6612
  %v6614 = vpop.f32.mrf.mxu0
  %v6615 = vadd.f32 %v4853, %v6614
  %6616 = vmatprep.mubr.bf16.mxu0 %v6052
  %6617 = vmatmul.mubr.bf16.gmra.mxu0 %v6051
  %v6618 = vpop.f32.mrf.mxu0
  %v6619 = vadd.f32 %v4858, %v6618
  %v6620 = vpop.f32.mrf.mxu0
  %v6621 = vadd.f32 %v4858, %v6620
  %v6622 = vpop.f32.mrf.mxu0
  %v6623 = vadd.f32 %v4863, %v6622
  %v6624 = vpop.f32.mrf.mxu0
  %v6625 = vadd.f32 %v4863, %v6624
  %6626 = vmatprep.mubr.bf16.mxu0 %v6071
  %6627 = vmatmul.mubr.bf16.gmra.mxu0 %v6070
  %v6628 = vpop.f32.mrf.mxu0
  %v6629 = vadd.f32 %v4868, %v6628
  %v6630 = vpop.f32.mrf.mxu0
  %v6631 = vadd.f32 %v4868, %v6630
  %v6632 = vpop.f32.mrf.mxu0
  %v6633 = vadd.f32 %v4873, %v6632
  %v6634 = vpop.f32.mrf.mxu0
  %v6635 = vadd.f32 %v4873, %v6634
  %6636 = vmatprep.mubr.bf16.mxu0 %v6090
  %6637 = vmatmul.mubr.bf16.gmra.mxu0 %v6089
  %v6638 = vpop.f32.mrf.mxu0
  %v6639 = vadd.f32 %v4878, %v6638
  %v6640 = vpop.f32.mrf.mxu0
  %v6641 = vadd.f32 %v4878, %v6640
  %v6642 = vpop.f32.mrf.mxu0
  %v6643 = vadd.f32 %v4883, %v6642
  %v6644 = vpop.f32.mrf.mxu0
  %v6645 = vadd.f32 %v4883, %v6644
  %6646 = vmatprep.mubr.bf16.mxu0 %v6109
  %6647 = vmatmul.mubr.bf16.gmra.mxu0 %v6108
  %v6648 = vpop.f32.mrf.mxu0
  %v6649 = vadd.f32 %v4888, %v6648
  %v6650 = vpop.f32.mrf.mxu0
  %v6651 = vadd.f32 %v4888, %v6650
  %v6652 = vpop.f32.mrf.mxu0
  %v6653 = vadd.f32 %v4893, %v6652
  %v6654 = vpop.f32.mrf.mxu0
  %v6655 = vadd.f32 %v4893, %v6654
  %6656 = vdwg.mxu0
  %6657 = vmatprep.subr.bf16.mxu0 %v3441
  %6658 = vmatpush1.bf16.msra.mxu0 %v3447
  %6659 = vmatprep.subr.bf16.mxu0 %v3437
  %6660 = vmatpush1.bf16.msra.mxu0 %v3446
  %6661 = vmatprep.subr.bf16.mxu0 %v3433
  %6662 = vmatpush1.bf16.msra.mxu0 %v3445
  %6663 = vmatprep.subr.bf16.mxu0 %v3429
  %6664 = vmatpush1.bf16.msra.mxu0 %v3444
  %6665 = vmatprep.subr.bf16.mxu0 %v3425
  %6666 = vmatpush1.bf16.msra.mxu0 %v3443
  %6667 = vmatprep.subr.bf16.mxu0 %v3421
  %6668 = vmatpush1.bf16.msra.mxu0 %v3442
  %6669 = vmatprep.subr.bf16.mxu0 %v3399
  %6670 = vmatpush1.bf16.msra.mxu0 %v3405
  %6671 = vmatprep.subr.bf16.mxu0 %v3395
  %6672 = vmatpush1.bf16.msra.mxu0 %v3404
  %6673 = vmatprep.subr.bf16.mxu0 %v3509
  %6674 = vmatpush2.bf16.msra.mxu0 %v3528
  %6675 = vmatprep.subr.bf16.mxu0 %v3505
  %6676 = vmatpush2.bf16.msra.mxu0 %v3527
  %6677 = vmatprep.subr.bf16.mxu0 %v3483
  %6678 = vmatpush2.bf16.msra.mxu0 %v3489
  %6679 = vmatprep.subr.bf16.mxu0 %v3479
  %6680 = vmatpush2.bf16.msra.mxu0 %v3488
  %6681 = vmatprep.subr.bf16.mxu0 %v3475
  %6682 = vmatpush2.bf16.msra.mxu0 %v3487
  %6683 = vmatprep.subr.bf16.mxu0 %v3471
  %6684 = vmatpush2.bf16.msra.mxu0 %v3486
  %6685 = vmatprep.subr.bf16.mxu0 %v3467
  %6686 = vmatpush2.bf16.msra.mxu0 %v3485
  %6687 = vmatprep.subr.bf16.mxu0 %v3463
  %6688 = vmatpush2.bf16.msra.mxu0 %v3484
  %6689 = vmatprep.mubr.bf16.mxu0 %v5826
  %6690 = vmatmul.mubr.bf16.gmra.mxu0 %v5825
  %v6691 = vpop.f32.mrf.mxu0
  %v6692 = vadd.f32 %v6499, %v6691
  %v6693 = vpop.f32.mrf.mxu0
  %v6694 = vadd.f32 %v6501, %v6693
  %v6695 = vpop.f32.mrf.mxu0
  %v6696 = vadd.f32 %v6503, %v6695
  %v6697 = vpop.f32.mrf.mxu0
  %v6698 = vadd.f32 %v6505, %v6697
  %6699 = vmatprep.mubr.bf16.mxu0 %v5845
  %6700 = vmatmul.mubr.bf16.gmra.mxu0 %v5844
  %v6701 = vpop.f32.mrf.mxu0
  %v6702 = vadd.f32 %v6509, %v6701
  %v6703 = vpop.f32.mrf.mxu0
  %v6704 = vadd.f32 %v6511, %v6703
  %v6705 = vpop.f32.mrf.mxu0
  %v6706 = vadd.f32 %v6513, %v6705
  %v6707 = vpop.f32.mrf.mxu0
  %v6708 = vadd.f32 %v6515, %v6707
  %6709 = vmatprep.mubr.bf16.mxu0 %v5864
  %6710 = vmatmul.mubr.bf16.gmra.mxu0 %v5863
  %v6711 = vpop.f32.mrf.mxu0
  %v6712 = vadd.f32 %v6519, %v6711
  %v6713 = vpop.f32.mrf.mxu0
  %v6714 = vadd.f32 %v6521, %v6713
  %v6715 = vpop.f32.mrf.mxu0
  %v6716 = vadd.f32 %v6523, %v6715
  %v6717 = vpop.f32.mrf.mxu0
  %v6718 = vadd.f32 %v6525, %v6717
  %6719 = vmatprep.mubr.bf16.mxu0 %v5883
  %6720 = vmatmul.mubr.bf16.gmra.mxu0 %v5882
  %v6721 = vpop.f32.mrf.mxu0
  %v6722 = vadd.f32 %v6529, %v6721
  %v6723 = vpop.f32.mrf.mxu0
  %v6724 = vadd.f32 %v6531, %v6723
  %v6725 = vpop.f32.mrf.mxu0
  %v6726 = vadd.f32 %v6533, %v6725
  %v6727 = vpop.f32.mrf.mxu0
  %v6728 = vadd.f32 %v6535, %v6727
  %6729 = vmatprep.mubr.bf16.mxu0 %v5902
  %6730 = vmatmul.mubr.bf16.gmra.mxu0 %v5901
  %v6731 = vpop.f32.mrf.mxu0
  %v6732 = vadd.f32 %v6539, %v6731
  %v6733 = vpop.f32.mrf.mxu0
  %v6734 = vadd.f32 %v6541, %v6733
  %v6735 = vpop.f32.mrf.mxu0
  %v6736 = vadd.f32 %v6543, %v6735
  %v6737 = vpop.f32.mrf.mxu0
  %v6738 = vadd.f32 %v6545, %v6737
  %6739 = vmatprep.mubr.bf16.mxu0 %v5921
  %6740 = vmatmul.mubr.bf16.gmra.mxu0 %v5920
  %v6741 = vpop.f32.mrf.mxu0
  %v6742 = vadd.f32 %v6549, %v6741
  %v6743 = vpop.f32.mrf.mxu0
  %v6744 = vadd.f32 %v6551, %v6743
  %v6745 = vpop.f32.mrf.mxu0
  %v6746 = vadd.f32 %v6553, %v6745
  %v6747 = vpop.f32.mrf.mxu0
  %v6748 = vadd.f32 %v6555, %v6747
  %6749 = vmatprep.mubr.bf16.mxu0 %v5940
  %6750 = vmatmul.mubr.bf16.gmra.mxu0 %v5939
  %v6751 = vpop.f32.mrf.mxu0
  %v6752 = vadd.f32 %v6559, %v6751
  %v6753 = vpop.f32.mrf.mxu0
  %v6754 = vadd.f32 %v6561, %v6753
  %v6755 = vpop.f32.mrf.mxu0
  %v6756 = vadd.f32 %v6563, %v6755
  %v6757 = vpop.f32.mrf.mxu0
  %v6758 = vadd.f32 %v6565, %v6757
  %6759 = vmatprep.mubr.bf16.mxu0 %v5959
  %6760 = vmatmul.mubr.bf16.gmra.mxu0 %v5958
  %v6761 = vpop.f32.mrf.mxu0
  %v6762 = vadd.f32 %v6569, %v6761
  %v6763 = vpop.f32.mrf.mxu0
  %v6764 = vadd.f32 %v6571, %v6763
  %v6765 = vpop.f32.mrf.mxu0
  %v6766 = vadd.f32 %v6573, %v6765
  %v6767 = vpop.f32.mrf.mxu0
  %v6768 = vadd.f32 %v6575, %v6767
  %6769 = vmatprep.mubr.bf16.mxu0 %v5978
  %6770 = vmatmul.mubr.bf16.gmra.mxu0 %v5977
  %v6771 = vpop.f32.mrf.mxu0
  %v6772 = vadd.f32 %v6579, %v6771
  %v6773 = vpop.f32.mrf.mxu0
  %v6774 = vadd.f32 %v6581, %v6773
  %v6775 = vpop.f32.mrf.mxu0
  %v6776 = vadd.f32 %v6583, %v6775
  %v6777 = vpop.f32.mrf.mxu0
  %v6778 = vadd.f32 %v6585, %v6777
  %6779 = vmatprep.mubr.bf16.mxu0 %v5997
  %6780 = vmatmul.mubr.bf16.gmra.mxu0 %v5996
  %v6781 = vpop.f32.mrf.mxu0
  %v6782 = vadd.f32 %v6589, %v6781
  %v6783 = vpop.f32.mrf.mxu0
  %v6784 = vadd.f32 %v6591, %v6783
  %v6785 = vpop.f32.mrf.mxu0
  %v6786 = vadd.f32 %v6593, %v6785
  %v6787 = vpop.f32.mrf.mxu0
  %v6788 = vadd.f32 %v6595, %v6787
  %6789 = vmatprep.mubr.bf16.mxu0 %v6016
  %6790 = vmatmul.mubr.bf16.gmra.mxu0 %v6015
  %v6791 = vpop.f32.mrf.mxu0
  %v6792 = vadd.f32 %v6599, %v6791
  %v6793 = vpop.f32.mrf.mxu0
  %v6794 = vadd.f32 %v6601, %v6793
  %v6795 = vpop.f32.mrf.mxu0
  %v6796 = vadd.f32 %v6603, %v6795
  %v6797 = vpop.f32.mrf.mxu0
  %v6798 = vadd.f32 %v6605, %v6797
  %6799 = vmatprep.mubr.bf16.mxu0 %v6035
  %6800 = vmatmul.mubr.bf16.gmra.mxu0 %v6034
  %v6801 = vpop.f32.mrf.mxu0
  %v6802 = vadd.f32 %v6609, %v6801
  %v6803 = vpop.f32.mrf.mxu0
  %v6804 = vadd.f32 %v6611, %v6803
  %v6805 = vpop.f32.mrf.mxu0
  %v6806 = vadd.f32 %v6613, %v6805
  %v6807 = vpop.f32.mrf.mxu0
  %v6808 = vadd.f32 %v6615, %v6807
  %6809 = vmatprep.mubr.bf16.mxu0 %v6054
  %6810 = vmatmul.mubr.bf16.gmra.mxu0 %v6053
  %v6811 = vpop.f32.mrf.mxu0
  %v6812 = vadd.f32 %v6619, %v6811
  %v6813 = vpop.f32.mrf.mxu0
  %v6814 = vadd.f32 %v6621, %v6813
  %v6815 = vpop.f32.mrf.mxu0
  %v6816 = vadd.f32 %v6623, %v6815
  %v6817 = vpop.f32.mrf.mxu0
  %v6818 = vadd.f32 %v6625, %v6817
  %6819 = vmatprep.mubr.bf16.mxu0 %v6073
  %6820 = vmatmul.mubr.bf16.gmra.mxu0 %v6072
  %v6821 = vpop.f32.mrf.mxu0
  %v6822 = vadd.f32 %v6629, %v6821
  %v6823 = vpop.f32.mrf.mxu0
  %v6824 = vadd.f32 %v6631, %v6823
  %v6825 = vpop.f32.mrf.mxu0
  %v6826 = vadd.f32 %v6633, %v6825
  %v6827 = vpop.f32.mrf.mxu0
  %v6828 = vadd.f32 %v6635, %v6827
  %6829 = vmatprep.mubr.bf16.mxu0 %v6092
  %6830 = vmatmul.mubr.bf16.gmra.mxu0 %v6091
  %v6831 = vpop.f32.mrf.mxu0
  %v6832 = vadd.f32 %v6639, %v6831
  %v6833 = vpop.f32.mrf.mxu0
  %v6834 = vadd.f32 %v6641, %v6833
  %v6835 = vpop.f32.mrf.mxu0
  %v6836 = vadd.f32 %v6643, %v6835
  %v6837 = vpop.f32.mrf.mxu0
  %v6838 = vadd.f32 %v6645, %v6837
  %6839 = vmatprep.mubr.bf16.mxu0 %v6111
  %6840 = vmatmul.mubr.bf16.gmra.mxu0 %v6110
  %v6841 = vpop.f32.mrf.mxu0
  %v6842 = vadd.f32 %v6649, %v6841
  %v6843 = vpop.f32.mrf.mxu0
  %v6844 = vadd.f32 %v6651, %v6843
  %v6845 = vpop.f32.mrf.mxu0
  %v6846 = vadd.f32 %v6653, %v6845
  %v6847 = vpop.f32.mrf.mxu0
  %v6848 = vadd.f32 %v6655, %v6847
  %6849 = vdwg.mxu0
  %6850 = vmatprep.subr.bf16.mxu0 %v3560
  %6851 = vmatpush1.bf16.msra.mxu0 %v3573
  %6852 = vmatprep.subr.bf16.mxu0 %v3556
  %6853 = vmatpush1.bf16.msra.mxu0 %v3572
  %6854 = vmatprep.subr.bf16.mxu0 %v3552
  %6855 = vmatpush1.bf16.msra.mxu0 %v3571
  %6856 = vmatprep.subr.bf16.mxu0 %v3548
  %6857 = vmatpush1.bf16.msra.mxu0 %v3570
  %6858 = vmatprep.subr.bf16.mxu0 %v3525
  %6859 = vmatpush1.bf16.msra.mxu0 %v3532
  %6860 = vmatprep.subr.bf16.mxu0 %v3521
  %6861 = vmatpush1.bf16.msra.mxu0 %v3531
  %6862 = vmatprep.subr.bf16.mxu0 %v3517
  %6863 = vmatpush1.bf16.msra.mxu0 %v3530
  %6864 = vmatprep.subr.bf16.mxu0 %v3513
  %6865 = vmatpush1.bf16.msra.mxu0 %v3529
  %6866 = vmatprep.subr.bf16.mxu0 %v3611
  %6867 = vmatpush2.bf16.msra.mxu0 %v3618
  %6868 = vmatprep.subr.bf16.mxu0 %v3607
  %6869 = vmatpush2.bf16.msra.mxu0 %v3617
  %6870 = vmatprep.subr.bf16.mxu0 %v3603
  %6871 = vmatpush2.bf16.msra.mxu0 %v3616
  %6872 = vmatprep.subr.bf16.mxu0 %v3599
  %6873 = vmatpush2.bf16.msra.mxu0 %v3615
  %6874 = vmatprep.subr.bf16.mxu0 %v3595
  %6875 = vmatpush2.bf16.msra.mxu0 %v3614
  %6876 = vmatprep.subr.bf16.mxu0 %v3591
  %6877 = vmatpush2.bf16.msra.mxu0 %v3613
  %6878 = vmatprep.subr.bf16.mxu0 %v3568
  %6879 = vmatpush2.bf16.msra.mxu0 %v3575
  %6880 = vmatprep.subr.bf16.mxu0 %v3564
  %6881 = vmatpush2.bf16.msra.mxu0 %v3574
  %6882 = vmatprep.mubr.bf16.mxu0 %v5828
  %6883 = vmatmul.mubr.bf16.gmra.mxu0 %v5827
  %v6884 = vpop.f32.mrf.mxu0
  %v6885 = vadd.f32 %v6692, %v6884
  %v6886 = vpop.f32.mrf.mxu0
  %v6887 = vadd.f32 %v6694, %v6886
  %v6888 = vpop.f32.mrf.mxu0
  %v6889 = vadd.f32 %v6696, %v6888
  %v6890 = vpop.f32.mrf.mxu0
  %v6891 = vadd.f32 %v6698, %v6890
  %6892 = vmatprep.mubr.bf16.mxu0 %v5847
  %6893 = vmatmul.mubr.bf16.gmra.mxu0 %v5846
  %v6894 = vpop.f32.mrf.mxu0
  %v6895 = vadd.f32 %v6702, %v6894
  %v6896 = vpop.f32.mrf.mxu0
  %v6897 = vadd.f32 %v6704, %v6896
  %v6898 = vpop.f32.mrf.mxu0
  %v6899 = vadd.f32 %v6706, %v6898
  %v6900 = vpop.f32.mrf.mxu0
  %v6901 = vadd.f32 %v6708, %v6900
  %6902 = vmatprep.mubr.bf16.mxu0 %v5866
  %6903 = vmatmul.mubr.bf16.gmra.mxu0 %v5865
  %v6904 = vpop.f32.mrf.mxu0
  %v6905 = vadd.f32 %v6712, %v6904
  %v6906 = vpop.f32.mrf.mxu0
  %v6907 = vadd.f32 %v6714, %v6906
  %v6908 = vpop.f32.mrf.mxu0
  %v6909 = vadd.f32 %v6716, %v6908
  %v6910 = vpop.f32.mrf.mxu0
  %v6911 = vadd.f32 %v6718, %v6910
  %6912 = vmatprep.mubr.bf16.mxu0 %v5885
  %6913 = vmatmul.mubr.bf16.gmra.mxu0 %v5884
  %v6914 = vpop.f32.mrf.mxu0
  %v6915 = vadd.f32 %v6722, %v6914
  %v6916 = vpop.f32.mrf.mxu0
  %v6917 = vadd.f32 %v6724, %v6916
  %v6918 = vpop.f32.mrf.mxu0
  %v6919 = vadd.f32 %v6726, %v6918
  %v6920 = vpop.f32.mrf.mxu0
  %v6921 = vadd.f32 %v6728, %v6920
  %6922 = vmatprep.mubr.bf16.mxu0 %v5904
  %6923 = vmatmul.mubr.bf16.gmra.mxu0 %v5903
  %v6924 = vpop.f32.mrf.mxu0
  %v6925 = vadd.f32 %v6732, %v6924
  %v6926 = vpop.f32.mrf.mxu0
  %v6927 = vadd.f32 %v6734, %v6926
  %v6928 = vpop.f32.mrf.mxu0
  %v6929 = vadd.f32 %v6736, %v6928
  %v6930 = vpop.f32.mrf.mxu0
  %v6931 = vadd.f32 %v6738, %v6930
  %6932 = vmatprep.mubr.bf16.mxu0 %v5923
  %6933 = vmatmul.mubr.bf16.gmra.mxu0 %v5922
  %v6934 = vpop.f32.mrf.mxu0
  %v6935 = vadd.f32 %v6742, %v6934
  %v6936 = vpop.f32.mrf.mxu0
  %v6937 = vadd.f32 %v6744, %v6936
  %v6938 = vpop.f32.mrf.mxu0
  %v6939 = vadd.f32 %v6746, %v6938
  %v6940 = vpop.f32.mrf.mxu0
  %v6941 = vadd.f32 %v6748, %v6940
  %6942 = vmatprep.mubr.bf16.mxu0 %v5942
  %6943 = vmatmul.mubr.bf16.gmra.mxu0 %v5941
  %v6944 = vpop.f32.mrf.mxu0
  %v6945 = vadd.f32 %v6752, %v6944
  %v6946 = vpop.f32.mrf.mxu0
  %v6947 = vadd.f32 %v6754, %v6946
  %v6948 = vpop.f32.mrf.mxu0
  %v6949 = vadd.f32 %v6756, %v6948
  %v6950 = vpop.f32.mrf.mxu0
  %v6951 = vadd.f32 %v6758, %v6950
  %6952 = vmatprep.mubr.bf16.mxu0 %v5961
  %6953 = vmatmul.mubr.bf16.gmra.mxu0 %v5960
  %v6954 = vpop.f32.mrf.mxu0
  %v6955 = vadd.f32 %v6762, %v6954
  %v6956 = vpop.f32.mrf.mxu0
  %v6957 = vadd.f32 %v6764, %v6956
  %v6958 = vpop.f32.mrf.mxu0
  %v6959 = vadd.f32 %v6766, %v6958
  %v6960 = vpop.f32.mrf.mxu0
  %v6961 = vadd.f32 %v6768, %v6960
  %6962 = vmatprep.mubr.bf16.mxu0 %v5980
  %6963 = vmatmul.mubr.bf16.gmra.mxu0 %v5979
  %v6964 = vpop.f32.mrf.mxu0
  %v6965 = vadd.f32 %v6772, %v6964
  %v6966 = vpop.f32.mrf.mxu0
  %v6967 = vadd.f32 %v6774, %v6966
  %v6968 = vpop.f32.mrf.mxu0
  %v6969 = vadd.f32 %v6776, %v6968
  %v6970 = vpop.f32.mrf.mxu0
  %v6971 = vadd.f32 %v6778, %v6970
  %6972 = vmatprep.mubr.bf16.mxu0 %v5999
  %6973 = vmatmul.mubr.bf16.gmra.mxu0 %v5998
  %v6974 = vpop.f32.mrf.mxu0
  %v6975 = vadd.f32 %v6782, %v6974
  %v6976 = vpop.f32.mrf.mxu0
  %v6977 = vadd.f32 %v6784, %v6976
  %v6978 = vpop.f32.mrf.mxu0
  %v6979 = vadd.f32 %v6786, %v6978
  %v6980 = vpop.f32.mrf.mxu0
  %v6981 = vadd.f32 %v6788, %v6980
  %6982 = vmatprep.mubr.bf16.mxu0 %v6018
  %6983 = vmatmul.mubr.bf16.gmra.mxu0 %v6017
  %v6984 = vpop.f32.mrf.mxu0
  %v6985 = vadd.f32 %v6792, %v6984
  %v6986 = vpop.f32.mrf.mxu0
  %v6987 = vadd.f32 %v6794, %v6986
  %v6988 = vpop.f32.mrf.mxu0
  %v6989 = vadd.f32 %v6796, %v6988
  %v6990 = vpop.f32.mrf.mxu0
  %v6991 = vadd.f32 %v6798, %v6990
  %6992 = vmatprep.mubr.bf16.mxu0 %v6037
  %6993 = vmatmul.mubr.bf16.gmra.mxu0 %v6036
  %v6994 = vpop.f32.mrf.mxu0
  %v6995 = vadd.f32 %v6802, %v6994
  %v6996 = vpop.f32.mrf.mxu0
  %v6997 = vadd.f32 %v6804, %v6996
  %v6998 = vpop.f32.mrf.mxu0
  %v6999 = vadd.f32 %v6806, %v6998
  %v7000 = vpop.f32.mrf.mxu0
  %v7001 = vadd.f32 %v6808, %v7000
  %7002 = vmatprep.mubr.bf16.mxu0 %v6056
  %7003 = vmatmul.mubr.bf16.gmra.mxu0 %v6055
  %v7004 = vpop.f32.mrf.mxu0
  %v7005 = vadd.f32 %v6812, %v7004
  %v7006 = vpop.f32.mrf.mxu0
  %v7007 = vadd.f32 %v6814, %v7006
  %v7008 = vpop.f32.mrf.mxu0
  %v7009 = vadd.f32 %v6816, %v7008
  %v7010 = vpop.f32.mrf.mxu0
  %v7011 = vadd.f32 %v6818, %v7010
  %7012 = vmatprep.mubr.bf16.mxu0 %v6075
  %7013 = vmatmul.mubr.bf16.gmra.mxu0 %v6074
  %v7014 = vpop.f32.mrf.mxu0
  %v7015 = vadd.f32 %v6822, %v7014
  %v7016 = vpop.f32.mrf.mxu0
  %v7017 = vadd.f32 %v6824, %v7016
  %v7018 = vpop.f32.mrf.mxu0
  %v7019 = vadd.f32 %v6826, %v7018
  %v7020 = vpop.f32.mrf.mxu0
  %v7021 = vadd.f32 %v6828, %v7020
  %7022 = vmatprep.mubr.bf16.mxu0 %v6094
  %7023 = vmatmul.mubr.bf16.gmra.mxu0 %v6093
  %v7024 = vpop.f32.mrf.mxu0
  %v7025 = vadd.f32 %v6832, %v7024
  %v7026 = vpop.f32.mrf.mxu0
  %v7027 = vadd.f32 %v6834, %v7026
  %v7028 = vpop.f32.mrf.mxu0
  %v7029 = vadd.f32 %v6836, %v7028
  %v7030 = vpop.f32.mrf.mxu0
  %v7031 = vadd.f32 %v6838, %v7030
  %7032 = vmatprep.mubr.bf16.mxu0 %v6113
  %7033 = vmatmul.mubr.bf16.gmra.mxu0 %v6112
  %v7034 = vpop.f32.mrf.mxu0
  %v7035 = vadd.f32 %v6842, %v7034
  %v7036 = vpop.f32.mrf.mxu0
  %v7037 = vadd.f32 %v6844, %v7036
  %v7038 = vpop.f32.mrf.mxu0
  %v7039 = vadd.f32 %v6846, %v7038
  %v7040 = vpop.f32.mrf.mxu0
  %v7041 = vadd.f32 %v6848, %v7040
  %7042 = vdwg.mxu0
  %7043 = vmatprep.subr.bf16.mxu0 %v3681
  %7044 = vmatpush1.bf16.msra.mxu0 %v3700
  %7045 = vmatprep.subr.bf16.mxu0 %v3677
  %7046 = vmatpush1.bf16.msra.mxu0 %v3699
  %7047 = vmatprep.subr.bf16.mxu0 %v3654
  %7048 = vmatpush1.bf16.msra.mxu0 %v3661
  %7049 = vmatprep.subr.bf16.mxu0 %v3650
  %7050 = vmatpush1.bf16.msra.mxu0 %v3660
  %7051 = vmatprep.subr.bf16.mxu0 %v3646
  %7052 = vmatpush1.bf16.msra.mxu0 %v3659
  %7053 = vmatprep.subr.bf16.mxu0 %v3642
  %7054 = vmatpush1.bf16.msra.mxu0 %v3658
  %7055 = vmatprep.subr.bf16.mxu0 %v3638
  %7056 = vmatpush1.bf16.msra.mxu0 %v3657
  %7057 = vmatprep.subr.bf16.mxu0 %v3634
  %7058 = vmatpush1.bf16.msra.mxu0 %v3656
  %7059 = vmatprep.subr.bf16.mxu0 %v3732
  %7060 = vmatpush2.bf16.msra.mxu0 %v3745
  %7061 = vmatprep.subr.bf16.mxu0 %v3728
  %7062 = vmatpush2.bf16.msra.mxu0 %v3744
  %7063 = vmatprep.subr.bf16.mxu0 %v3724
  %7064 = vmatpush2.bf16.msra.mxu0 %v3743
  %7065 = vmatprep.subr.bf16.mxu0 %v3720
  %7066 = vmatpush2.bf16.msra.mxu0 %v3742
  %7067 = vmatprep.subr.bf16.mxu0 %v3697
  %7068 = vmatpush2.bf16.msra.mxu0 %v3704
  %7069 = vmatprep.subr.bf16.mxu0 %v3693
  %7070 = vmatpush2.bf16.msra.mxu0 %v3703
  %7071 = vmatprep.subr.bf16.mxu0 %v3689
  %7072 = vmatpush2.bf16.msra.mxu0 %v3702
  %7073 = vmatprep.subr.bf16.mxu0 %v3685
  %7074 = vmatpush2.bf16.msra.mxu0 %v3701
  %7075 = vmatprep.mubr.bf16.mxu0 %v5830
  %7076 = vmatmul.mubr.bf16.gmra.mxu0 %v5829
  %v7077 = vpop.f32.mrf.mxu0
  %v7078 = vadd.f32 %v6885, %v7077
  %v7079 = vpop.f32.mrf.mxu0
  %v7080 = vadd.f32 %v6887, %v7079
  %v7081 = vpop.f32.mrf.mxu0
  %v7082 = vadd.f32 %v6889, %v7081
  %v7083 = vpop.f32.mrf.mxu0
  %v7084 = vadd.f32 %v6891, %v7083
  %7085 = vmatprep.mubr.bf16.mxu0 %v5849
  %7086 = vmatmul.mubr.bf16.gmra.mxu0 %v5848
  %v7087 = vpop.f32.mrf.mxu0
  %v7088 = vadd.f32 %v6895, %v7087
  %v7089 = vpop.f32.mrf.mxu0
  %v7090 = vadd.f32 %v6897, %v7089
  %v7091 = vpop.f32.mrf.mxu0
  %v7092 = vadd.f32 %v6899, %v7091
  %v7093 = vpop.f32.mrf.mxu0
  %v7094 = vadd.f32 %v6901, %v7093
  %7095 = vmatprep.mubr.bf16.mxu0 %v5868
  %7096 = vmatmul.mubr.bf16.gmra.mxu0 %v5867
  %v7097 = vpop.f32.mrf.mxu0
  %v7098 = vadd.f32 %v6905, %v7097
  %v7099 = vpop.f32.mrf.mxu0
  %v7100 = vadd.f32 %v6907, %v7099
  %v7101 = vpop.f32.mrf.mxu0
  %v7102 = vadd.f32 %v6909, %v7101
  %v7103 = vpop.f32.mrf.mxu0
  %v7104 = vadd.f32 %v6911, %v7103
  %7105 = vmatprep.mubr.bf16.mxu0 %v5887
  %7106 = vmatmul.mubr.bf16.gmra.mxu0 %v5886
  %v7107 = vpop.f32.mrf.mxu0
  %v7108 = vadd.f32 %v6915, %v7107
  %v7109 = vpop.f32.mrf.mxu0
  %v7110 = vadd.f32 %v6917, %v7109
  %v7111 = vpop.f32.mrf.mxu0
  %v7112 = vadd.f32 %v6919, %v7111
  %v7113 = vpop.f32.mrf.mxu0
  %v7114 = vadd.f32 %v6921, %v7113
  %7115 = vmatprep.mubr.bf16.mxu0 %v5906
  %7116 = vmatmul.mubr.bf16.gmra.mxu0 %v5905
  %v7117 = vpop.f32.mrf.mxu0
  %v7118 = vadd.f32 %v6925, %v7117
  %v7119 = vpop.f32.mrf.mxu0
  %v7120 = vadd.f32 %v6927, %v7119
  %v7121 = vpop.f32.mrf.mxu0
  %v7122 = vadd.f32 %v6929, %v7121
  %v7123 = vpop.f32.mrf.mxu0
  %v7124 = vadd.f32 %v6931, %v7123
  %7125 = vmatprep.mubr.bf16.mxu0 %v5925
  %7126 = vmatmul.mubr.bf16.gmra.mxu0 %v5924
  %v7127 = vpop.f32.mrf.mxu0
  %v7128 = vadd.f32 %v6935, %v7127
  %v7129 = vpop.f32.mrf.mxu0
  %v7130 = vadd.f32 %v6937, %v7129
  %v7131 = vpop.f32.mrf.mxu0
  %v7132 = vadd.f32 %v6939, %v7131
  %v7133 = vpop.f32.mrf.mxu0
  %v7134 = vadd.f32 %v6941, %v7133
  %7135 = vmatprep.mubr.bf16.mxu0 %v5944
  %7136 = vmatmul.mubr.bf16.gmra.mxu0 %v5943
  %v7137 = vpop.f32.mrf.mxu0
  %v7138 = vadd.f32 %v6945, %v7137
  %v7139 = vpop.f32.mrf.mxu0
  %v7140 = vadd.f32 %v6947, %v7139
  %v7141 = vpop.f32.mrf.mxu0
  %v7142 = vadd.f32 %v6949, %v7141
  %v7143 = vpop.f32.mrf.mxu0
  %v7144 = vadd.f32 %v6951, %v7143
  %7145 = vmatprep.mubr.bf16.mxu0 %v5963
  %7146 = vmatmul.mubr.bf16.gmra.mxu0 %v5962
  %v7147 = vpop.f32.mrf.mxu0
  %v7148 = vadd.f32 %v6955, %v7147
  %v7149 = vpop.f32.mrf.mxu0
  %v7150 = vadd.f32 %v6957, %v7149
  %v7151 = vpop.f32.mrf.mxu0
  %v7152 = vadd.f32 %v6959, %v7151
  %v7153 = vpop.f32.mrf.mxu0
  %v7154 = vadd.f32 %v6961, %v7153
  %7155 = vmatprep.mubr.bf16.mxu0 %v5982
  %7156 = vmatmul.mubr.bf16.gmra.mxu0 %v5981
  %v7157 = vpop.f32.mrf.mxu0
  %v7158 = vadd.f32 %v6965, %v7157
  %v7159 = vpop.f32.mrf.mxu0
  %v7160 = vadd.f32 %v6967, %v7159
  %v7161 = vpop.f32.mrf.mxu0
  %v7162 = vadd.f32 %v6969, %v7161
  %v7163 = vpop.f32.mrf.mxu0
  %v7164 = vadd.f32 %v6971, %v7163
  %7165 = vmatprep.mubr.bf16.mxu0 %v6001
  %7166 = vmatmul.mubr.bf16.gmra.mxu0 %v6000
  %v7167 = vpop.f32.mrf.mxu0
  %v7168 = vadd.f32 %v6975, %v7167
  %v7169 = vpop.f32.mrf.mxu0
  %v7170 = vadd.f32 %v6977, %v7169
  %v7171 = vpop.f32.mrf.mxu0
  %v7172 = vadd.f32 %v6979, %v7171
  %v7173 = vpop.f32.mrf.mxu0
  %v7174 = vadd.f32 %v6981, %v7173
  %7175 = vmatprep.mubr.bf16.mxu0 %v6020
  %7176 = vmatmul.mubr.bf16.gmra.mxu0 %v6019
  %v7177 = vpop.f32.mrf.mxu0
  %v7178 = vadd.f32 %v6985, %v7177
  %v7179 = vpop.f32.mrf.mxu0
  %v7180 = vadd.f32 %v6987, %v7179
  %v7181 = vpop.f32.mrf.mxu0
  %v7182 = vadd.f32 %v6989, %v7181
  %v7183 = vpop.f32.mrf.mxu0
  %v7184 = vadd.f32 %v6991, %v7183
  %7185 = vmatprep.mubr.bf16.mxu0 %v6039
  %7186 = vmatmul.mubr.bf16.gmra.mxu0 %v6038
  %v7187 = vpop.f32.mrf.mxu0
  %v7188 = vadd.f32 %v6995, %v7187
  %v7189 = vpop.f32.mrf.mxu0
  %v7190 = vadd.f32 %v6997, %v7189
  %v7191 = vpop.f32.mrf.mxu0
  %v7192 = vadd.f32 %v6999, %v7191
  %v7193 = vpop.f32.mrf.mxu0
  %v7194 = vadd.f32 %v7001, %v7193
  %7195 = vmatprep.mubr.bf16.mxu0 %v6058
  %7196 = vmatmul.mubr.bf16.gmra.mxu0 %v6057
  %v7197 = vpop.f32.mrf.mxu0
  %v7198 = vadd.f32 %v7005, %v7197
  %v7199 = vpop.f32.mrf.mxu0
  %v7200 = vadd.f32 %v7007, %v7199
  %v7201 = vpop.f32.mrf.mxu0
  %v7202 = vadd.f32 %v7009, %v7201
  %v7203 = vpop.f32.mrf.mxu0
  %v7204 = vadd.f32 %v7011, %v7203
  %7205 = vmatprep.mubr.bf16.mxu0 %v6077
  %7206 = vmatmul.mubr.bf16.gmra.mxu0 %v6076
  %v7207 = vpop.f32.mrf.mxu0
  %v7208 = vadd.f32 %v7015, %v7207
  %v7209 = vpop.f32.mrf.mxu0
  %v7210 = vadd.f32 %v7017, %v7209
  %v7211 = vpop.f32.mrf.mxu0
  %v7212 = vadd.f32 %v7019, %v7211
  %v7213 = vpop.f32.mrf.mxu0
  %v7214 = vadd.f32 %v7021, %v7213
  %7215 = vmatprep.mubr.bf16.mxu0 %v6096
  %7216 = vmatmul.mubr.bf16.gmra.mxu0 %v6095
  %v7217 = vpop.f32.mrf.mxu0
  %v7218 = vadd.f32 %v7025, %v7217
  %v7219 = vpop.f32.mrf.mxu0
  %v7220 = vadd.f32 %v7027, %v7219
  %v7221 = vpop.f32.mrf.mxu0
  %v7222 = vadd.f32 %v7029, %v7221
  %v7223 = vpop.f32.mrf.mxu0
  %v7224 = vadd.f32 %v7031, %v7223
  %7225 = vmatprep.mubr.bf16.mxu0 %v6115
  %7226 = vmatmul.mubr.bf16.gmra.mxu0 %v6114
  %v7227 = vpop.f32.mrf.mxu0
  %v7228 = vadd.f32 %v7035, %v7227
  %v7229 = vpop.f32.mrf.mxu0
  %v7230 = vadd.f32 %v7037, %v7229
  %v7231 = vpop.f32.mrf.mxu0
  %v7232 = vadd.f32 %v7039, %v7231
  %v7233 = vpop.f32.mrf.mxu0
  %v7234 = vadd.f32 %v7041, %v7233
  %7235 = vdwg.mxu0
  %7236 = vmatprep.subr.bf16.mxu0 %v3783
  %7237 = vmatpush1.bf16.msra.mxu0 %v3790
  %7238 = vmatprep.subr.bf16.mxu0 %v3779
  %7239 = vmatpush1.bf16.msra.mxu0 %v3789
  %7240 = vmatprep.subr.bf16.mxu0 %v3775
  %7241 = vmatpush1.bf16.msra.mxu0 %v3788
  %7242 = vmatprep.subr.bf16.mxu0 %v3771
  %7243 = vmatpush1.bf16.msra.mxu0 %v3787
  %7244 = vmatprep.subr.bf16.mxu0 %v3767
  %7245 = vmatpush1.bf16.msra.mxu0 %v3786
  %7246 = vmatprep.subr.bf16.mxu0 %v3763
  %7247 = vmatpush1.bf16.msra.mxu0 %v3785
  %7248 = vmatprep.subr.bf16.mxu0 %v3740
  %7249 = vmatpush1.bf16.msra.mxu0 %v3747
  %7250 = vmatprep.subr.bf16.mxu0 %v3736
  %7251 = vmatpush1.bf16.msra.mxu0 %v3746
  %7252 = vmatprep.subr.bf16.mxu0 %v3853
  %7253 = vmatpush2.bf16.msra.mxu0 %v3871
  %7254 = vmatprep.subr.bf16.mxu0 %v3849
  %7255 = vmatpush2.bf16.msra.mxu0 %v3870
  %7256 = vmatprep.subr.bf16.mxu0 %v3826
  %7257 = vmatpush2.bf16.msra.mxu0 %v3833
  %7258 = vmatprep.subr.bf16.mxu0 %v3822
  %7259 = vmatpush2.bf16.msra.mxu0 %v3832
  %7260 = vmatprep.subr.bf16.mxu0 %v3818
  %7261 = vmatpush2.bf16.msra.mxu0 %v3831
  %7262 = vmatprep.subr.bf16.mxu0 %v3814
  %7263 = vmatpush2.bf16.msra.mxu0 %v3830
  %7264 = vmatprep.subr.bf16.mxu0 %v3810
  %7265 = vmatpush2.bf16.msra.mxu0 %v3829
  %7266 = vmatprep.subr.bf16.mxu0 %v3806
  %7267 = vmatpush2.bf16.msra.mxu0 %v3828
  %7268 = vmatprep.mubr.bf16.mxu0 %v5832
  %7269 = vmatmul.mubr.bf16.gmra.mxu0 %v5831
  %v7270 = vpop.f32.mrf.mxu0
  %v7271 = vadd.f32 %v7078, %v7270
  %v7272 = vpop.f32.mrf.mxu0
  %v7273 = vadd.f32 %v7080, %v7272
  %v7274 = vpop.f32.mrf.mxu0
  %v7275 = vadd.f32 %v7082, %v7274
  %v7276 = vpop.f32.mrf.mxu0
  %v7277 = vadd.f32 %v7084, %v7276
  %7278 = vmatprep.mubr.bf16.mxu0 %v5851
  %7279 = vmatmul.mubr.bf16.gmra.mxu0 %v5850
  %v7280 = vpop.f32.mrf.mxu0
  %v7281 = vadd.f32 %v7088, %v7280
  %v7282 = vpop.f32.mrf.mxu0
  %v7283 = vadd.f32 %v7090, %v7282
  %v7284 = vpop.f32.mrf.mxu0
  %v7285 = vadd.f32 %v7092, %v7284
  %v7286 = vpop.f32.mrf.mxu0
  %v7287 = vadd.f32 %v7094, %v7286
  %7288 = vmatprep.mubr.bf16.mxu0 %v5870
  %7289 = vmatmul.mubr.bf16.gmra.mxu0 %v5869
  %v7290 = vpop.f32.mrf.mxu0
  %v7291 = vadd.f32 %v7098, %v7290
  %v7292 = vpop.f32.mrf.mxu0
  %v7293 = vadd.f32 %v7100, %v7292
  %v7294 = vpop.f32.mrf.mxu0
  %v7295 = vadd.f32 %v7102, %v7294
  %v7296 = vpop.f32.mrf.mxu0
  %v7297 = vadd.f32 %v7104, %v7296
  %7298 = vmatprep.mubr.bf16.mxu0 %v5889
  %7299 = vmatmul.mubr.bf16.gmra.mxu0 %v5888
  %v7300 = vpop.f32.mrf.mxu0
  %v7301 = vadd.f32 %v7108, %v7300
  %v7302 = vpop.f32.mrf.mxu0
  %v7303 = vadd.f32 %v7110, %v7302
  %v7304 = vpop.f32.mrf.mxu0
  %v7305 = vadd.f32 %v7112, %v7304
  %v7306 = vpop.f32.mrf.mxu0
  %v7307 = vadd.f32 %v7114, %v7306
  %7308 = vmatprep.mubr.bf16.mxu0 %v5908
  %7309 = vmatmul.mubr.bf16.gmra.mxu0 %v5907
  %v7310 = vpop.f32.mrf.mxu0
  %v7311 = vadd.f32 %v7118, %v7310
  %v7312 = vpop.f32.mrf.mxu0
  %v7313 = vadd.f32 %v7120, %v7312
  %v7314 = vpop.f32.mrf.mxu0
  %v7315 = vadd.f32 %v7122, %v7314
  %v7316 = vpop.f32.mrf.mxu0
  %v7317 = vadd.f32 %v7124, %v7316
  %7318 = vmatprep.mubr.bf16.mxu0 %v5927
  %7319 = vmatmul.mubr.bf16.gmra.mxu0 %v5926
  %v7320 = vpop.f32.mrf.mxu0
  %v7321 = vadd.f32 %v7128, %v7320
  %v7322 = vpop.f32.mrf.mxu0
  %v7323 = vadd.f32 %v7130, %v7322
  %v7324 = vpop.f32.mrf.mxu0
  %v7325 = vadd.f32 %v7132, %v7324
  %v7326 = vpop.f32.mrf.mxu0
  %v7327 = vadd.f32 %v7134, %v7326
  %7328 = vmatprep.mubr.bf16.mxu0 %v5946
  %7329 = vmatmul.mubr.bf16.gmra.mxu0 %v5945
  %v7330 = vpop.f32.mrf.mxu0
  %v7331 = vadd.f32 %v7138, %v7330
  %v7332 = vpop.f32.mrf.mxu0
  %v7333 = vadd.f32 %v7140, %v7332
  %v7334 = vpop.f32.mrf.mxu0
  %v7335 = vadd.f32 %v7142, %v7334
  %v7336 = vpop.f32.mrf.mxu0
  %v7337 = vadd.f32 %v7144, %v7336
  %7338 = vmatprep.mubr.bf16.mxu0 %v5965
  %7339 = vmatmul.mubr.bf16.gmra.mxu0 %v5964
  %v7340 = vpop.f32.mrf.mxu0
  %v7341 = vadd.f32 %v7148, %v7340
  %v7342 = vpop.f32.mrf.mxu0
  %v7343 = vadd.f32 %v7150, %v7342
  %v7344 = vpop.f32.mrf.mxu0
  %v7345 = vadd.f32 %v7152, %v7344
  %v7346 = vpop.f32.mrf.mxu0
  %v7347 = vadd.f32 %v7154, %v7346
  %7348 = vmatprep.mubr.bf16.mxu0 %v5984
  %7349 = vmatmul.mubr.bf16.gmra.mxu0 %v5983
  %v7350 = vpop.f32.mrf.mxu0
  %v7351 = vadd.f32 %v7158, %v7350
  %v7352 = vpop.f32.mrf.mxu0
  %v7353 = vadd.f32 %v7160, %v7352
  %v7354 = vpop.f32.mrf.mxu0
  %v7355 = vadd.f32 %v7162, %v7354
  %v7356 = vpop.f32.mrf.mxu0
  %v7357 = vadd.f32 %v7164, %v7356
  %7358 = vmatprep.mubr.bf16.mxu0 %v6003
  %7359 = vmatmul.mubr.bf16.gmra.mxu0 %v6002
  %v7360 = vpop.f32.mrf.mxu0
  %v7361 = vadd.f32 %v7168, %v7360
  %v7362 = vpop.f32.mrf.mxu0
  %v7363 = vadd.f32 %v7170, %v7362
  %v7364 = vpop.f32.mrf.mxu0
  %v7365 = vadd.f32 %v7172, %v7364
  %v7366 = vpop.f32.mrf.mxu0
  %v7367 = vadd.f32 %v7174, %v7366
  %7368 = vmatprep.mubr.bf16.mxu0 %v6022
  %7369 = vmatmul.mubr.bf16.gmra.mxu0 %v6021
  %v7370 = vpop.f32.mrf.mxu0
  %v7371 = vadd.f32 %v7178, %v7370
  %v7372 = vpop.f32.mrf.mxu0
  %v7373 = vadd.f32 %v7180, %v7372
  %v7374 = vpop.f32.mrf.mxu0
  %v7375 = vadd.f32 %v7182, %v7374
  %v7376 = vpop.f32.mrf.mxu0
  %v7377 = vadd.f32 %v7184, %v7376
  %7378 = vmatprep.mubr.bf16.mxu0 %v6041
  %7379 = vmatmul.mubr.bf16.gmra.mxu0 %v6040
  %v7380 = vpop.f32.mrf.mxu0
  %v7381 = vadd.f32 %v7188, %v7380
  %v7382 = vpop.f32.mrf.mxu0
  %v7383 = vadd.f32 %v7190, %v7382
  %v7384 = vpop.f32.mrf.mxu0
  %v7385 = vadd.f32 %v7192, %v7384
  %v7386 = vpop.f32.mrf.mxu0
  %v7387 = vadd.f32 %v7194, %v7386
  %7388 = vmatprep.mubr.bf16.mxu0 %v6060
  %7389 = vmatmul.mubr.bf16.gmra.mxu0 %v6059
  %v7390 = vpop.f32.mrf.mxu0
  %v7391 = vadd.f32 %v7198, %v7390
  %v7392 = vpop.f32.mrf.mxu0
  %v7393 = vadd.f32 %v7200, %v7392
  %v7394 = vpop.f32.mrf.mxu0
  %v7395 = vadd.f32 %v7202, %v7394
  %v7396 = vpop.f32.mrf.mxu0
  %v7397 = vadd.f32 %v7204, %v7396
  %7398 = vmatprep.mubr.bf16.mxu0 %v6079
  %7399 = vmatmul.mubr.bf16.gmra.mxu0 %v6078
  %v7400 = vpop.f32.mrf.mxu0
  %v7401 = vadd.f32 %v7208, %v7400
  %v7402 = vpop.f32.mrf.mxu0
  %v7403 = vadd.f32 %v7210, %v7402
  %v7404 = vpop.f32.mrf.mxu0
  %v7405 = vadd.f32 %v7212, %v7404
  %v7406 = vpop.f32.mrf.mxu0
  %v7407 = vadd.f32 %v7214, %v7406
  %7408 = vmatprep.mubr.bf16.mxu0 %v6098
  %7409 = vmatmul.mubr.bf16.gmra.mxu0 %v6097
  %v7410 = vpop.f32.mrf.mxu0
  %v7411 = vadd.f32 %v7218, %v7410
  %v7412 = vpop.f32.mrf.mxu0
  %v7413 = vadd.f32 %v7220, %v7412
  %v7414 = vpop.f32.mrf.mxu0
  %v7415 = vadd.f32 %v7222, %v7414
  %v7416 = vpop.f32.mrf.mxu0
  %v7417 = vadd.f32 %v7224, %v7416
  %7418 = vmatprep.mubr.bf16.mxu0 %v6117
  %7419 = vmatmul.mubr.bf16.gmra.mxu0 %v6116
  %v7420 = vpop.f32.mrf.mxu0
  %v7421 = vadd.f32 %v7228, %v7420
  %v7422 = vpop.f32.mrf.mxu0
  %v7423 = vadd.f32 %v7230, %v7422
  %v7424 = vpop.f32.mrf.mxu0
  %v7425 = vadd.f32 %v7232, %v7424
  %v7426 = vpop.f32.mrf.mxu0
  %v7427 = vadd.f32 %v7234, %v7426
  %7428 = vdwg.mxu0
  %7429 = vmatprep.subr.bf16.mxu0 %v3903
  %7430 = vmatpush1.bf16.msra.mxu0 %v3915
  %7431 = vmatprep.subr.bf16.mxu0 %v3899
  %7432 = vmatpush1.bf16.msra.mxu0 %v3914
  %7433 = vmatprep.subr.bf16.mxu0 %v3895
  %7434 = vmatpush1.bf16.msra.mxu0 %v3913
  %7435 = vmatprep.subr.bf16.mxu0 %v3891
  %7436 = vmatpush1.bf16.msra.mxu0 %v3912
  %7437 = vmatprep.subr.bf16.mxu0 %v3869
  %7438 = vmatpush1.bf16.msra.mxu0 %v3875
  %7439 = vmatprep.subr.bf16.mxu0 %v3865
  %7440 = vmatpush1.bf16.msra.mxu0 %v3874
  %7441 = vmatprep.subr.bf16.mxu0 %v3861
  %7442 = vmatpush1.bf16.msra.mxu0 %v3873
  %7443 = vmatprep.subr.bf16.mxu0 %v3857
  %7444 = vmatpush1.bf16.msra.mxu0 %v3872
  %7445 = vmatprep.subr.bf16.mxu0 %v3953
  %7446 = vmatpush2.bf16.msra.mxu0 %v3960
  %7447 = vmatprep.subr.bf16.mxu0 %v3949
  %7448 = vmatpush2.bf16.msra.mxu0 %v3959
  %7449 = vmatprep.subr.bf16.mxu0 %v3945
  %7450 = vmatpush2.bf16.msra.mxu0 %v3958
  %7451 = vmatprep.subr.bf16.mxu0 %v3941
  %7452 = vmatpush2.bf16.msra.mxu0 %v3957
  %7453 = vmatprep.subr.bf16.mxu0 %v3937
  %7454 = vmatpush2.bf16.msra.mxu0 %v3956
  %7455 = vmatprep.subr.bf16.mxu0 %v3933
  %7456 = vmatpush2.bf16.msra.mxu0 %v3955
  %7457 = vmatprep.subr.bf16.mxu0 %v3911
  %7458 = vmatpush2.bf16.msra.mxu0 %v3917
  %7459 = vmatprep.subr.bf16.mxu0 %v3907
  %7460 = vmatpush2.bf16.msra.mxu0 %v3916
  %7461 = vmatprep.mubr.bf16.mxu0 %v5834
  %7462 = vmatmul.mubr.bf16.gmra.mxu0 %v5833
  %v7463 = vpop.f32.mrf.mxu0
  %v7464 = vadd.f32 %v7271, %v7463
  %v7465 = vpop.f32.mrf.mxu0
  %v7466 = vadd.f32 %v7273, %v7465
  %v7467 = vpop.f32.mrf.mxu0
  %v7468 = vadd.f32 %v7275, %v7467
  %v7469 = vpop.f32.mrf.mxu0
  %v7470 = vadd.f32 %v7277, %v7469
  %7471 = vmatprep.mubr.bf16.mxu0 %v5853
  %7472 = vmatmul.mubr.bf16.gmra.mxu0 %v5852
  %v7473 = vpop.f32.mrf.mxu0
  %v7474 = vadd.f32 %v7281, %v7473
  %v7475 = vpop.f32.mrf.mxu0
  %v7476 = vadd.f32 %v7283, %v7475
  %v7477 = vpop.f32.mrf.mxu0
  %v7478 = vadd.f32 %v7285, %v7477
  %v7479 = vpop.f32.mrf.mxu0
  %v7480 = vadd.f32 %v7287, %v7479
  %7481 = vmatprep.mubr.bf16.mxu0 %v5872
  %7482 = vmatmul.mubr.bf16.gmra.mxu0 %v5871
  %v7483 = vpop.f32.mrf.mxu0
  %v7484 = vadd.f32 %v7291, %v7483
  %v7485 = vpop.f32.mrf.mxu0
  %v7486 = vadd.f32 %v7293, %v7485
  %v7487 = vpop.f32.mrf.mxu0
  %v7488 = vadd.f32 %v7295, %v7487
  %v7489 = vpop.f32.mrf.mxu0
  %v7490 = vadd.f32 %v7297, %v7489
  %7491 = vmatprep.mubr.bf16.mxu0 %v5891
  %7492 = vmatmul.mubr.bf16.gmra.mxu0 %v5890
  %v7493 = vpop.f32.mrf.mxu0
  %v7494 = vadd.f32 %v7301, %v7493
  %v7495 = vpop.f32.mrf.mxu0
  %v7496 = vadd.f32 %v7303, %v7495
  %v7497 = vpop.f32.mrf.mxu0
  %v7498 = vadd.f32 %v7305, %v7497
  %v7499 = vpop.f32.mrf.mxu0
  %v7500 = vadd.f32 %v7307, %v7499
  %7501 = vmatprep.mubr.bf16.mxu0 %v5910
  %7502 = vmatmul.mubr.bf16.gmra.mxu0 %v5909
  %v7503 = vpop.f32.mrf.mxu0
  %v7504 = vadd.f32 %v7311, %v7503
  %v7505 = vpop.f32.mrf.mxu0
  %v7506 = vadd.f32 %v7313, %v7505
  %v7507 = vpop.f32.mrf.mxu0
  %v7508 = vadd.f32 %v7315, %v7507
  %v7509 = vpop.f32.mrf.mxu0
  %v7510 = vadd.f32 %v7317, %v7509
  %7511 = vmatprep.mubr.bf16.mxu0 %v5929
  %7512 = vmatmul.mubr.bf16.gmra.mxu0 %v5928
  %v7513 = vpop.f32.mrf.mxu0
  %v7514 = vadd.f32 %v7321, %v7513
  %v7515 = vpop.f32.mrf.mxu0
  %v7516 = vadd.f32 %v7323, %v7515
  %v7517 = vpop.f32.mrf.mxu0
  %v7518 = vadd.f32 %v7325, %v7517
  %v7519 = vpop.f32.mrf.mxu0
  %v7520 = vadd.f32 %v7327, %v7519
  %7521 = vmatprep.mubr.bf16.mxu0 %v5948
  %7522 = vmatmul.mubr.bf16.gmra.mxu0 %v5947
  %v7523 = vpop.f32.mrf.mxu0
  %v7524 = vadd.f32 %v7331, %v7523
  %v7525 = vpop.f32.mrf.mxu0
  %v7526 = vadd.f32 %v7333, %v7525
  %v7527 = vpop.f32.mrf.mxu0
  %v7528 = vadd.f32 %v7335, %v7527
  %v7529 = vpop.f32.mrf.mxu0
  %v7530 = vadd.f32 %v7337, %v7529
  %7531 = vmatprep.mubr.bf16.mxu0 %v5967
  %7532 = vmatmul.mubr.bf16.gmra.mxu0 %v5966
  %v7533 = vpop.f32.mrf.mxu0
  %v7534 = vadd.f32 %v7341, %v7533
  %v7535 = vpop.f32.mrf.mxu0
  %v7536 = vadd.f32 %v7343, %v7535
  %v7537 = vpop.f32.mrf.mxu0
  %v7538 = vadd.f32 %v7345, %v7537
  %v7539 = vpop.f32.mrf.mxu0
  %v7540 = vadd.f32 %v7347, %v7539
  %7541 = vmatprep.mubr.bf16.mxu0 %v5986
  %7542 = vmatmul.mubr.bf16.gmra.mxu0 %v5985
  %v7543 = vpop.f32.mrf.mxu0
  %v7544 = vadd.f32 %v7351, %v7543
  %v7545 = vpop.f32.mrf.mxu0
  %v7546 = vadd.f32 %v7353, %v7545
  %v7547 = vpop.f32.mrf.mxu0
  %v7548 = vadd.f32 %v7355, %v7547
  %v7549 = vpop.f32.mrf.mxu0
  %v7550 = vadd.f32 %v7357, %v7549
  %7551 = vmatprep.mubr.bf16.mxu0 %v6005
  %7552 = vmatmul.mubr.bf16.gmra.mxu0 %v6004
  %v7553 = vpop.f32.mrf.mxu0
  %v7554 = vadd.f32 %v7361, %v7553
  %v7555 = vpop.f32.mrf.mxu0
  %v7556 = vadd.f32 %v7363, %v7555
  %v7557 = vpop.f32.mrf.mxu0
  %v7558 = vadd.f32 %v7365, %v7557
  %v7559 = vpop.f32.mrf.mxu0
  %v7560 = vadd.f32 %v7367, %v7559
  %7561 = vmatprep.mubr.bf16.mxu0 %v6024
  %7562 = vmatmul.mubr.bf16.gmra.mxu0 %v6023
  %v7563 = vpop.f32.mrf.mxu0
  %v7564 = vadd.f32 %v7371, %v7563
  %v7565 = vpop.f32.mrf.mxu0
  %v7566 = vadd.f32 %v7373, %v7565
  %v7567 = vpop.f32.mrf.mxu0
  %v7568 = vadd.f32 %v7375, %v7567
  %v7569 = vpop.f32.mrf.mxu0
  %v7570 = vadd.f32 %v7377, %v7569
  %7571 = vmatprep.mubr.bf16.mxu0 %v6043
  %7572 = vmatmul.mubr.bf16.gmra.mxu0 %v6042
  %v7573 = vpop.f32.mrf.mxu0
  %v7574 = vadd.f32 %v7381, %v7573
  %v7575 = vpop.f32.mrf.mxu0
  %v7576 = vadd.f32 %v7383, %v7575
  %v7577 = vpop.f32.mrf.mxu0
  %v7578 = vadd.f32 %v7385, %v7577
  %v7579 = vpop.f32.mrf.mxu0
  %v7580 = vadd.f32 %v7387, %v7579
  %7581 = vmatprep.mubr.bf16.mxu0 %v6062
  %7582 = vmatmul.mubr.bf16.gmra.mxu0 %v6061
  %v7583 = vpop.f32.mrf.mxu0
  %v7584 = vadd.f32 %v7391, %v7583
  %v7585 = vpop.f32.mrf.mxu0
  %v7586 = vadd.f32 %v7393, %v7585
  %v7587 = vpop.f32.mrf.mxu0
  %v7588 = vadd.f32 %v7395, %v7587
  %v7589 = vpop.f32.mrf.mxu0
  %v7590 = vadd.f32 %v7397, %v7589
  %7591 = vmatprep.mubr.bf16.mxu0 %v6081
  %7592 = vmatmul.mubr.bf16.gmra.mxu0 %v6080
  %v7593 = vpop.f32.mrf.mxu0
  %v7594 = vadd.f32 %v7401, %v7593
  %v7595 = vpop.f32.mrf.mxu0
  %v7596 = vadd.f32 %v7403, %v7595
  %v7597 = vpop.f32.mrf.mxu0
  %v7598 = vadd.f32 %v7405, %v7597
  %v7599 = vpop.f32.mrf.mxu0
  %v7600 = vadd.f32 %v7407, %v7599
  %7601 = vmatprep.mubr.bf16.mxu0 %v6100
  %7602 = vmatmul.mubr.bf16.gmra.mxu0 %v6099
  %v7603 = vpop.f32.mrf.mxu0
  %v7604 = vadd.f32 %v7411, %v7603
  %v7605 = vpop.f32.mrf.mxu0
  %v7606 = vadd.f32 %v7413, %v7605
  %v7607 = vpop.f32.mrf.mxu0
  %v7608 = vadd.f32 %v7415, %v7607
  %v7609 = vpop.f32.mrf.mxu0
  %v7610 = vadd.f32 %v7417, %v7609
  %7611 = vmatprep.mubr.bf16.mxu0 %v6119
  %7612 = vmatmul.mubr.bf16.gmra.mxu0 %v6118
  %v7613 = vpop.f32.mrf.mxu0
  %v7614 = vadd.f32 %v7421, %v7613
  %v7615 = vpop.f32.mrf.mxu0
  %v7616 = vadd.f32 %v7423, %v7615
  %v7617 = vpop.f32.mrf.mxu0
  %v7618 = vadd.f32 %v7425, %v7617
  %v7619 = vpop.f32.mrf.mxu0
  %v7620 = vadd.f32 %v7427, %v7619
  %7621 = vdwg.mxu0
  %7622 = vmatprep.subr.bf16.mxu0 %v4035
  %7623 = vmatpush1.bf16.msra.mxu0 %v4228
  %7624 = vmatprep.subr.bf16.mxu0 %v4031
  %7625 = vmatpush1.bf16.msra.mxu0 %v4227
  %7626 = vmatprep.subr.bf16.mxu0 %v4027
  %7627 = vmatpush1.bf16.msra.mxu0 %v4226
  %7628 = vmatprep.subr.bf16.mxu0 %v4023
  %7629 = vmatpush1.bf16.msra.mxu0 %v4225
  %7630 = vmatprep.subr.bf16.mxu0 %v4019
  %7631 = vmatpush1.bf16.msra.mxu0 %v4224
  %7632 = vmatprep.subr.bf16.mxu0 %v4015
  %7633 = vmatpush1.bf16.msra.mxu0 %v4223
  %7634 = vmatprep.subr.bf16.mxu0 %v4011
  %7635 = vmatpush1.bf16.msra.mxu0 %v4222
  %7636 = vmatprep.subr.bf16.mxu0 %v4007
  %7637 = vmatpush1.bf16.msra.mxu0 %v4221
  %7638 = vmatprep.subr.bf16.mxu0 %v4067
  %7639 = vmatpush2.bf16.msra.mxu0 %v4236
  %7640 = vmatprep.subr.bf16.mxu0 %v4063
  %7641 = vmatpush2.bf16.msra.mxu0 %v4235
  %7642 = vmatprep.subr.bf16.mxu0 %v4059
  %7643 = vmatpush2.bf16.msra.mxu0 %v4234
  %7644 = vmatprep.subr.bf16.mxu0 %v4055
  %7645 = vmatpush2.bf16.msra.mxu0 %v4233
  %7646 = vmatprep.subr.bf16.mxu0 %v4051
  %7647 = vmatpush2.bf16.msra.mxu0 %v4232
  %7648 = vmatprep.subr.bf16.mxu0 %v4047
  %7649 = vmatpush2.bf16.msra.mxu0 %v4231
  %7650 = vmatprep.subr.bf16.mxu0 %v4043
  %7651 = vmatpush2.bf16.msra.mxu0 %v4230
  %7652 = vmatprep.subr.bf16.mxu0 %v4039
  %7653 = vmatpush2.bf16.msra.mxu0 %v4229
  %7654 = vmatprep.mubr.bf16.mxu0 %v5836
  %7655 = vmatmul.mubr.bf16.gmra.mxu0 %v5835
  %v7656 = vpop.f32.mrf.mxu0
  %v7657 = vadd.f32 %v7464, %v7656
  %v7658 = vpop.f32.mrf.mxu0
  %v7659 = vadd.f32 %v7466, %v7658
  %v7660 = vpop.f32.mrf.mxu0
  %v7661 = vadd.f32 %v7468, %v7660
  %v7662 = vpop.f32.mrf.mxu0
  %v7663 = vadd.f32 %v7470, %v7662
  %7664 = vmatprep.mubr.bf16.mxu0 %v5855
  %7665 = vmatmul.mubr.bf16.gmra.mxu0 %v5854
  %v7666 = vpop.f32.mrf.mxu0
  %v7667 = vadd.f32 %v7474, %v7666
  %v7668 = vpop.f32.mrf.mxu0
  %v7669 = vadd.f32 %v7476, %v7668
  %v7670 = vpop.f32.mrf.mxu0
  %v7671 = vadd.f32 %v7478, %v7670
  %v7672 = vpop.f32.mrf.mxu0
  %v7673 = vadd.f32 %v7480, %v7672
  %7674 = vmatprep.mubr.bf16.mxu0 %v5874
  %7675 = vmatmul.mubr.bf16.gmra.mxu0 %v5873
  %v7676 = vpop.f32.mrf.mxu0
  %v7677 = vadd.f32 %v7484, %v7676
  %v7678 = vpop.f32.mrf.mxu0
  %v7679 = vadd.f32 %v7486, %v7678
  %v7680 = vpop.f32.mrf.mxu0
  %v7681 = vadd.f32 %v7488, %v7680
  %v7682 = vpop.f32.mrf.mxu0
  %v7683 = vadd.f32 %v7490, %v7682
  %7684 = vmatprep.mubr.bf16.mxu0 %v5893
  %7685 = vmatmul.mubr.bf16.gmra.mxu0 %v5892
  %v7686 = vpop.f32.mrf.mxu0
  %v7687 = vadd.f32 %v7494, %v7686
  %v7688 = vpop.f32.mrf.mxu0
  %v7689 = vadd.f32 %v7496, %v7688
  %v7690 = vpop.f32.mrf.mxu0
  %v7691 = vadd.f32 %v7498, %v7690
  %v7692 = vpop.f32.mrf.mxu0
  %v7693 = vadd.f32 %v7500, %v7692
  %7694 = vmatprep.mubr.bf16.mxu0 %v5912
  %7695 = vmatmul.mubr.bf16.gmra.mxu0 %v5911
  %v7696 = vpop.f32.mrf.mxu0
  %v7697 = vadd.f32 %v7504, %v7696
  %v7698 = vpop.f32.mrf.mxu0
  %v7699 = vadd.f32 %v7506, %v7698
  %v7700 = vpop.f32.mrf.mxu0
  %v7701 = vadd.f32 %v7508, %v7700
  %v7702 = vpop.f32.mrf.mxu0
  %v7703 = vadd.f32 %v7510, %v7702
  %7704 = vmatprep.mubr.bf16.mxu0 %v5931
  %7705 = vmatmul.mubr.bf16.gmra.mxu0 %v5930
  %v7706 = vpop.f32.mrf.mxu0
  %v7707 = vadd.f32 %v7514, %v7706
  %v7708 = vpop.f32.mrf.mxu0
  %v7709 = vadd.f32 %v7516, %v7708
  %v7710 = vpop.f32.mrf.mxu0
  %v7711 = vadd.f32 %v7518, %v7710
  %v7712 = vpop.f32.mrf.mxu0
  %v7713 = vadd.f32 %v7520, %v7712
  %7714 = vmatprep.mubr.bf16.mxu0 %v5950
  %7715 = vmatmul.mubr.bf16.gmra.mxu0 %v5949
  %v7716 = vpop.f32.mrf.mxu0
  %v7717 = vadd.f32 %v7524, %v7716
  %v7718 = vpop.f32.mrf.mxu0
  %v7719 = vadd.f32 %v7526, %v7718
  %v7720 = vpop.f32.mrf.mxu0
  %v7721 = vadd.f32 %v7528, %v7720
  %v7722 = vpop.f32.mrf.mxu0
  %v7723 = vadd.f32 %v7530, %v7722
  %7724 = vmatprep.mubr.bf16.mxu0 %v5969
  %7725 = vmatmul.mubr.bf16.gmra.mxu0 %v5968
  %v7726 = vpop.f32.mrf.mxu0
  %v7727 = vadd.f32 %v7534, %v7726
  %v7728 = vpop.f32.mrf.mxu0
  %v7729 = vadd.f32 %v7536, %v7728
  %v7730 = vpop.f32.mrf.mxu0
  %v7731 = vadd.f32 %v7538, %v7730
  %v7732 = vpop.f32.mrf.mxu0
  %v7733 = vadd.f32 %v7540, %v7732
  %7734 = vmatprep.mubr.bf16.mxu0 %v5988
  %7735 = vmatmul.mubr.bf16.gmra.mxu0 %v5987
  %v7736 = vpop.f32.mrf.mxu0
  %v7737 = vadd.f32 %v7544, %v7736
  %v7738 = vpop.f32.mrf.mxu0
  %v7739 = vadd.f32 %v7546, %v7738
  %v7740 = vpop.f32.mrf.mxu0
  %v7741 = vadd.f32 %v7548, %v7740
  %v7742 = vpop.f32.mrf.mxu0
  %v7743 = vadd.f32 %v7550, %v7742
  %7744 = vmatprep.mubr.bf16.mxu0 %v6007
  %7745 = vmatmul.mubr.bf16.gmra.mxu0 %v6006
  %v7746 = vpop.f32.mrf.mxu0
  %v7747 = vadd.f32 %v7554, %v7746
  %v7748 = vpop.f32.mrf.mxu0
  %v7749 = vadd.f32 %v7556, %v7748
  %v7750 = vpop.f32.mrf.mxu0
  %v7751 = vadd.f32 %v7558, %v7750
  %v7752 = vpop.f32.mrf.mxu0
  %v7753 = vadd.f32 %v7560, %v7752
  %7754 = vmatprep.mubr.bf16.mxu0 %v6026
  %7755 = vmatmul.mubr.bf16.gmra.mxu0 %v6025
  %v7756 = vpop.f32.mrf.mxu0
  %v7757 = vadd.f32 %v7564, %v7756
  %v7758 = vpop.f32.mrf.mxu0
  %v7759 = vadd.f32 %v7566, %v7758
  %v7760 = vpop.f32.mrf.mxu0
  %v7761 = vadd.f32 %v7568, %v7760
  %v7762 = vpop.f32.mrf.mxu0
  %v7763 = vadd.f32 %v7570, %v7762
  %7764 = vmatprep.mubr.bf16.mxu0 %v6045
  %7765 = vmatmul.mubr.bf16.gmra.mxu0 %v6044
  %v7766 = vpop.f32.mrf.mxu0
  %v7767 = vadd.f32 %v7574, %v7766
  %v7768 = vpop.f32.mrf.mxu0
  %v7769 = vadd.f32 %v7576, %v7768
  %v7770 = vpop.f32.mrf.mxu0
  %v7771 = vadd.f32 %v7578, %v7770
  %v7772 = vpop.f32.mrf.mxu0
  %v7773 = vadd.f32 %v7580, %v7772
  %7774 = vmatprep.mubr.bf16.mxu0 %v6064
  %7775 = vmatmul.mubr.bf16.gmra.mxu0 %v6063
  %v7776 = vpop.f32.mrf.mxu0
  %v7777 = vadd.f32 %v7584, %v7776
  %v7778 = vpop.f32.mrf.mxu0
  %v7779 = vadd.f32 %v7586, %v7778
  %v7780 = vpop.f32.mrf.mxu0
  %v7781 = vadd.f32 %v7588, %v7780
  %v7782 = vpop.f32.mrf.mxu0
  %v7783 = vadd.f32 %v7590, %v7782
  %7784 = vmatprep.mubr.bf16.mxu0 %v6083
  %7785 = vmatmul.mubr.bf16.gmra.mxu0 %v6082
  %v7786 = vpop.f32.mrf.mxu0
  %v7787 = vadd.f32 %v7594, %v7786
  %v7788 = vpop.f32.mrf.mxu0
  %v7789 = vadd.f32 %v7596, %v7788
  %v7790 = vpop.f32.mrf.mxu0
  %v7791 = vadd.f32 %v7598, %v7790
  %v7792 = vpop.f32.mrf.mxu0
  %v7793 = vadd.f32 %v7600, %v7792
  %7794 = vmatprep.mubr.bf16.mxu0 %v6102
  %7795 = vmatmul.mubr.bf16.gmra.mxu0 %v6101
  %v7796 = vpop.f32.mrf.mxu0
  %v7797 = vadd.f32 %v7604, %v7796
  %v7798 = vpop.f32.mrf.mxu0
  %v7799 = vadd.f32 %v7606, %v7798
  %v7800 = vpop.f32.mrf.mxu0
  %v7801 = vadd.f32 %v7608, %v7800
  %v7802 = vpop.f32.mrf.mxu0
  %v7803 = vadd.f32 %v7610, %v7802
  %7804 = vmatprep.mubr.bf16.mxu0 %v6121
  %7805 = vmatmul.mubr.bf16.gmra.mxu0 %v6120
  %v7806 = vpop.f32.mrf.mxu0
  %v7807 = vadd.f32 %v7614, %v7806
  %v7808 = vpop.f32.mrf.mxu0
  %v7809 = vadd.f32 %v7616, %v7808
  %v7810 = vpop.f32.mrf.mxu0
  %v7811 = vadd.f32 %v7618, %v7810
  %v7812 = vpop.f32.mrf.mxu0
  %v7813 = vadd.f32 %v7620, %v7812
  %7814 = vdwg.mxu0
  %7815 = vmatprep.subr.bf16.mxu0 %v4099
  %7816 = vmatpush1.bf16.msra.mxu0 %v4244
  %7817 = vmatprep.subr.bf16.mxu0 %v4095
  %7818 = vmatpush1.bf16.msra.mxu0 %v4243
  %7819 = vmatprep.subr.bf16.mxu0 %v4091
  %7820 = vmatpush1.bf16.msra.mxu0 %v4242
  %7821 = vmatprep.subr.bf16.mxu0 %v4087
  %7822 = vmatpush1.bf16.msra.mxu0 %v4241
  %7823 = vmatprep.subr.bf16.mxu0 %v4083
  %7824 = vmatpush1.bf16.msra.mxu0 %v4240
  %7825 = vmatprep.subr.bf16.mxu0 %v4079
  %7826 = vmatpush1.bf16.msra.mxu0 %v4239
  %7827 = vmatprep.subr.bf16.mxu0 %v4075
  %7828 = vmatpush1.bf16.msra.mxu0 %v4238
  %7829 = vmatprep.subr.bf16.mxu0 %v4071
  %7830 = vmatpush1.bf16.msra.mxu0 %v4237
  %7831 = vmatprep.subr.bf16.mxu0 %v4131
  %7832 = vmatpush2.bf16.msra.mxu0 %v4252
  %7833 = vmatprep.subr.bf16.mxu0 %v4127
  %7834 = vmatpush2.bf16.msra.mxu0 %v4251
  %7835 = vmatprep.subr.bf16.mxu0 %v4123
  %7836 = vmatpush2.bf16.msra.mxu0 %v4250
  %7837 = vmatprep.subr.bf16.mxu0 %v4119
  %7838 = vmatpush2.bf16.msra.mxu0 %v4249
  %7839 = vmatprep.subr.bf16.mxu0 %v4115
  %7840 = vmatpush2.bf16.msra.mxu0 %v4248
  %7841 = vmatprep.subr.bf16.mxu0 %v4111
  %7842 = vmatpush2.bf16.msra.mxu0 %v4247
  %7843 = vmatprep.subr.bf16.mxu0 %v4107
  %7844 = vmatpush2.bf16.msra.mxu0 %v4246
  %7845 = vmatprep.subr.bf16.mxu0 %v4103
  %7846 = vmatpush2.bf16.msra.mxu0 %v4245
  %7847 = vmatprep.mubr.bf16.mxu0 %v5838
  %7848 = vmatmul.mubr.bf16.gmra.mxu0 %v5837
  %v7849 = vpop.f32.mrf.mxu0
  %v7850 = vadd.f32 %v7657, %v7849
  %v7851 = vpop.f32.mrf.mxu0
  %v7852 = vadd.f32 %v7659, %v7851
  %v7853 = vpop.f32.mrf.mxu0
  %v7854 = vadd.f32 %v7661, %v7853
  %v7855 = vpop.f32.mrf.mxu0
  %v7856 = vadd.f32 %v7663, %v7855
  %7857 = vmatprep.mubr.bf16.mxu0 %v5857
  %7858 = vmatmul.mubr.bf16.gmra.mxu0 %v5856
  %v7859 = vpop.f32.mrf.mxu0
  %v7860 = vadd.f32 %v7667, %v7859
  %v7861 = vpop.f32.mrf.mxu0
  %v7862 = vadd.f32 %v7669, %v7861
  %v7863 = vpop.f32.mrf.mxu0
  %v7864 = vadd.f32 %v7671, %v7863
  %v7865 = vpop.f32.mrf.mxu0
  %v7866 = vadd.f32 %v7673, %v7865
  %7867 = vmatprep.mubr.bf16.mxu0 %v5876
  %7868 = vmatmul.mubr.bf16.gmra.mxu0 %v5875
  %v7869 = vpop.f32.mrf.mxu0
  %v7870 = vadd.f32 %v7677, %v7869
  %v7871 = vpop.f32.mrf.mxu0
  %v7872 = vadd.f32 %v7679, %v7871
  %v7873 = vpop.f32.mrf.mxu0
  %v7874 = vadd.f32 %v7681, %v7873
  %v7875 = vpop.f32.mrf.mxu0
  %v7876 = vadd.f32 %v7683, %v7875
  %7877 = vmatprep.mubr.bf16.mxu0 %v5895
  %7878 = vmatmul.mubr.bf16.gmra.mxu0 %v5894
  %v7879 = vpop.f32.mrf.mxu0
  %v7880 = vadd.f32 %v7687, %v7879
  %v7881 = vpop.f32.mrf.mxu0
  %v7882 = vadd.f32 %v7689, %v7881
  %v7883 = vpop.f32.mrf.mxu0
  %v7884 = vadd.f32 %v7691, %v7883
  %v7885 = vpop.f32.mrf.mxu0
  %v7886 = vadd.f32 %v7693, %v7885
  %7887 = vmatprep.mubr.bf16.mxu0 %v5914
  %7888 = vmatmul.mubr.bf16.gmra.mxu0 %v5913
  %v7889 = vpop.f32.mrf.mxu0
  %v7890 = vadd.f32 %v7697, %v7889
  %v7891 = vpop.f32.mrf.mxu0
  %v7892 = vadd.f32 %v7699, %v7891
  %v7893 = vpop.f32.mrf.mxu0
  %v7894 = vadd.f32 %v7701, %v7893
  %v7895 = vpop.f32.mrf.mxu0
  %v7896 = vadd.f32 %v7703, %v7895
  %7897 = vmatprep.mubr.bf16.mxu0 %v5933
  %7898 = vmatmul.mubr.bf16.gmra.mxu0 %v5932
  %v7899 = vpop.f32.mrf.mxu0
  %v7900 = vadd.f32 %v7707, %v7899
  %v7901 = vpop.f32.mrf.mxu0
  %v7902 = vadd.f32 %v7709, %v7901
  %v7903 = vpop.f32.mrf.mxu0
  %v7904 = vadd.f32 %v7711, %v7903
  %v7905 = vpop.f32.mrf.mxu0
  %v7906 = vadd.f32 %v7713, %v7905
  %7907 = vmatprep.mubr.bf16.mxu0 %v5952
  %7908 = vmatmul.mubr.bf16.gmra.mxu0 %v5951
  %v7909 = vpop.f32.mrf.mxu0
  %v7910 = vadd.f32 %v7717, %v7909
  %v7911 = vpop.f32.mrf.mxu0
  %v7912 = vadd.f32 %v7719, %v7911
  %v7913 = vpop.f32.mrf.mxu0
  %v7914 = vadd.f32 %v7721, %v7913
  %v7915 = vpop.f32.mrf.mxu0
  %v7916 = vadd.f32 %v7723, %v7915
  %7917 = vmatprep.mubr.bf16.mxu0 %v5971
  %7918 = vmatmul.mubr.bf16.gmra.mxu0 %v5970
  %v7919 = vpop.f32.mrf.mxu0
  %v7920 = vadd.f32 %v7727, %v7919
  %v7921 = vpop.f32.mrf.mxu0
  %v7922 = vadd.f32 %v7729, %v7921
  %v7923 = vpop.f32.mrf.mxu0
  %v7924 = vadd.f32 %v7731, %v7923
  %v7925 = vpop.f32.mrf.mxu0
  %v7926 = vadd.f32 %v7733, %v7925
  %7927 = vmatprep.mubr.bf16.mxu0 %v5990
  %7928 = vmatmul.mubr.bf16.gmra.mxu0 %v5989
  %v7929 = vpop.f32.mrf.mxu0
  %v7930 = vadd.f32 %v7737, %v7929
  %v7931 = vpop.f32.mrf.mxu0
  %v7932 = vadd.f32 %v7739, %v7931
  %v7933 = vpop.f32.mrf.mxu0
  %v7934 = vadd.f32 %v7741, %v7933
  %v7935 = vpop.f32.mrf.mxu0
  %v7936 = vadd.f32 %v7743, %v7935
  %7937 = vmatprep.mubr.bf16.mxu0 %v6009
  %7938 = vmatmul.mubr.bf16.gmra.mxu0 %v6008
  %v7939 = vpop.f32.mrf.mxu0
  %v7940 = vadd.f32 %v7747, %v7939
  %v7941 = vpop.f32.mrf.mxu0
  %v7942 = vadd.f32 %v7749, %v7941
  %v7943 = vpop.f32.mrf.mxu0
  %v7944 = vadd.f32 %v7751, %v7943
  %v7945 = vpop.f32.mrf.mxu0
  %v7946 = vadd.f32 %v7753, %v7945
  %7947 = vmatprep.mubr.bf16.mxu0 %v6028
  %7948 = vmatmul.mubr.bf16.gmra.mxu0 %v6027
  %v7949 = vpop.f32.mrf.mxu0
  %v7950 = vadd.f32 %v7757, %v7949
  %v7951 = vpop.f32.mrf.mxu0
  %v7952 = vadd.f32 %v7759, %v7951
  %v7953 = vpop.f32.mrf.mxu0
  %v7954 = vadd.f32 %v7761, %v7953
  %v7955 = vpop.f32.mrf.mxu0
  %v7956 = vadd.f32 %v7763, %v7955
  %7957 = vmatprep.mubr.bf16.mxu0 %v6047
  %7958 = vmatmul.mubr.bf16.gmra.mxu0 %v6046
  %v7959 = vpop.f32.mrf.mxu0
  %v7960 = vadd.f32 %v7767, %v7959
  %v7961 = vpop.f32.mrf.mxu0
  %v7962 = vadd.f32 %v7769, %v7961
  %v7963 = vpop.f32.mrf.mxu0
  %v7964 = vadd.f32 %v7771, %v7963
  %v7965 = vpop.f32.mrf.mxu0
  %v7966 = vadd.f32 %v7773, %v7965
  %7967 = vmatprep.mubr.bf16.mxu0 %v6066
  %7968 = vmatmul.mubr.bf16.gmra.mxu0 %v6065
  %v7969 = vpop.f32.mrf.mxu0
  %v7970 = vadd.f32 %v7777, %v7969
  %v7971 = vpop.f32.mrf.mxu0
  %v7972 = vadd.f32 %v7779, %v7971
  %v7973 = vpop.f32.mrf.mxu0
  %v7974 = vadd.f32 %v7781, %v7973
  %v7975 = vpop.f32.mrf.mxu0
  %v7976 = vadd.f32 %v7783, %v7975
  %7977 = vmatprep.mubr.bf16.mxu0 %v6085
  %7978 = vmatmul.mubr.bf16.gmra.mxu0 %v6084
  %v7979 = vpop.f32.mrf.mxu0
  %v7980 = vadd.f32 %v7787, %v7979
  %v7981 = vpop.f32.mrf.mxu0
  %v7982 = vadd.f32 %v7789, %v7981
  %v7983 = vpop.f32.mrf.mxu0
  %v7984 = vadd.f32 %v7791, %v7983
  %v7985 = vpop.f32.mrf.mxu0
  %v7986 = vadd.f32 %v7793, %v7985
  %7987 = vmatprep.mubr.bf16.mxu0 %v6104
  %7988 = vmatmul.mubr.bf16.gmra.mxu0 %v6103
  %v7989 = vpop.f32.mrf.mxu0
  %v7990 = vadd.f32 %v7797, %v7989
  %v7991 = vpop.f32.mrf.mxu0
  %v7992 = vadd.f32 %v7799, %v7991
  %v7993 = vpop.f32.mrf.mxu0
  %v7994 = vadd.f32 %v7801, %v7993
  %v7995 = vpop.f32.mrf.mxu0
  %v7996 = vadd.f32 %v7803, %v7995
  %7997 = vmatprep.mubr.bf16.mxu0 %v6123
  %7998 = vmatmul.mubr.bf16.gmra.mxu0 %v6122
  %v7999 = vpop.f32.mrf.mxu0
  %v8000 = vadd.f32 %v7807, %v7999
  %v8001 = vpop.f32.mrf.mxu0
  %v8002 = vadd.f32 %v7809, %v8001
  %v8003 = vpop.f32.mrf.mxu0
  %v8004 = vadd.f32 %v7811, %v8003
  %v8005 = vpop.f32.mrf.mxu0
  %v8006 = vadd.f32 %v7813, %v8005
  %8007 = vdwg.mxu0
  %8008 = vmatprep.subr.bf16.mxu0 %v4163
  %8009 = vmatpush1.bf16.msra.mxu0 %v4260
  %8010 = vmatprep.subr.bf16.mxu0 %v4159
  %8011 = vmatpush1.bf16.msra.mxu0 %v4259
  %8012 = vmatprep.subr.bf16.mxu0 %v4155
  %8013 = vmatpush1.bf16.msra.mxu0 %v4258
  %8014 = vmatprep.subr.bf16.mxu0 %v4151
  %8015 = vmatpush1.bf16.msra.mxu0 %v4257
  %8016 = vmatprep.subr.bf16.mxu0 %v4147
  %8017 = vmatpush1.bf16.msra.mxu0 %v4256
  %8018 = vmatprep.subr.bf16.mxu0 %v4143
  %8019 = vmatpush1.bf16.msra.mxu0 %v4255
  %8020 = vmatprep.subr.bf16.mxu0 %v4139
  %8021 = vmatpush1.bf16.msra.mxu0 %v4254
  %8022 = vmatprep.subr.bf16.mxu0 %v4135
  %8023 = vmatpush1.bf16.msra.mxu0 %v4253
  %8024 = vmatprep.subr.bf16.mxu0 %v4195
  %8025 = vmatpush2.bf16.msra.mxu0 %v4268
  %8026 = vmatprep.subr.bf16.mxu0 %v4191
  %8027 = vmatpush2.bf16.msra.mxu0 %v4267
  %8028 = vmatprep.subr.bf16.mxu0 %v4187
  %8029 = vmatpush2.bf16.msra.mxu0 %v4266
  %8030 = vmatprep.subr.bf16.mxu0 %v4183
  %8031 = vmatpush2.bf16.msra.mxu0 %v4265
  %8032 = vmatprep.subr.bf16.mxu0 %v4179
  %8033 = vmatpush2.bf16.msra.mxu0 %v4264
  %8034 = vmatprep.subr.bf16.mxu0 %v4175
  %8035 = vmatpush2.bf16.msra.mxu0 %v4263
  %8036 = vmatprep.subr.bf16.mxu0 %v4171
  %8037 = vmatpush2.bf16.msra.mxu0 %v4262
  %8038 = vmatprep.subr.bf16.mxu0 %v4167
  %8039 = vmatpush2.bf16.msra.mxu0 %v4261
  %8040 = vmatprep.mubr.bf16.mxu0 %v5840
  %8041 = vmatmul.mubr.bf16.gmra.mxu0 %v5839
  %v8042 = vpop.f32.mrf.mxu0
  %v8043 = vadd.f32 %v7850, %v8042
  %v8044 = vpop.f32.mrf.mxu0
  %v8045 = vadd.f32 %v7852, %v8044
  %v8046 = vpop.f32.mrf.mxu0
  %v8047 = vadd.f32 %v7854, %v8046
  %v8048 = vpop.f32.mrf.mxu0
  %v8049 = vadd.f32 %v7856, %v8048
  %8050 = vmatprep.mubr.bf16.mxu0 %v5859
  %8051 = vmatmul.mubr.bf16.gmra.mxu0 %v5858
  %v8052 = vpop.f32.mrf.mxu0
  %v8053 = vadd.f32 %v7860, %v8052
  %v8054 = vpop.f32.mrf.mxu0
  %v8055 = vadd.f32 %v7862, %v8054
  %v8056 = vpop.f32.mrf.mxu0
  %v8057 = vadd.f32 %v7864, %v8056
  %v8058 = vpop.f32.mrf.mxu0
  %v8059 = vadd.f32 %v7866, %v8058
  %8060 = vmatprep.mubr.bf16.mxu0 %v5878
  %8061 = vmatmul.mubr.bf16.gmra.mxu0 %v5877
  %v8062 = vpop.f32.mrf.mxu0
  %v8063 = vadd.f32 %v7870, %v8062
  %v8064 = vpop.f32.mrf.mxu0
  %v8065 = vadd.f32 %v7872, %v8064
  %v8066 = vpop.f32.mrf.mxu0
  %v8067 = vadd.f32 %v7874, %v8066
  %v8068 = vpop.f32.mrf.mxu0
  %v8069 = vadd.f32 %v7876, %v8068
  %8070 = vmatprep.mubr.bf16.mxu0 %v5897
  %8071 = vmatmul.mubr.bf16.gmra.mxu0 %v5896
  %v8072 = vpop.f32.mrf.mxu0
  %v8073 = vadd.f32 %v7880, %v8072
  %v8074 = vpop.f32.mrf.mxu0
  %v8075 = vadd.f32 %v7882, %v8074
  %v8076 = vpop.f32.mrf.mxu0
  %v8077 = vadd.f32 %v7884, %v8076
  %v8078 = vpop.f32.mrf.mxu0
  %v8079 = vadd.f32 %v7886, %v8078
  %8080 = vmatprep.mubr.bf16.mxu0 %v5916
  %8081 = vmatmul.mubr.bf16.gmra.mxu0 %v5915
  %v8082 = vpop.f32.mrf.mxu0
  %v8083 = vadd.f32 %v7890, %v8082
  %v8084 = vpop.f32.mrf.mxu0
  %v8085 = vadd.f32 %v7892, %v8084
  %v8086 = vpop.f32.mrf.mxu0
  %v8087 = vadd.f32 %v7894, %v8086
  %v8088 = vpop.f32.mrf.mxu0
  %v8089 = vadd.f32 %v7896, %v8088
  %8090 = vmatprep.mubr.bf16.mxu0 %v5935
  %8091 = vmatmul.mubr.bf16.gmra.mxu0 %v5934
  %v8092 = vpop.f32.mrf.mxu0
  %v8093 = vadd.f32 %v7900, %v8092
  %v8094 = vpop.f32.mrf.mxu0
  %v8095 = vadd.f32 %v7902, %v8094
  %v8096 = vpop.f32.mrf.mxu0
  %v8097 = vadd.f32 %v7904, %v8096
  %v8098 = vpop.f32.mrf.mxu0
  %v8099 = vadd.f32 %v7906, %v8098
  %8100 = vmatprep.mubr.bf16.mxu0 %v5954
  %8101 = vmatmul.mubr.bf16.gmra.mxu0 %v5953
  %v8102 = vpop.f32.mrf.mxu0
  %v8103 = vadd.f32 %v7910, %v8102
  %v8104 = vpop.f32.mrf.mxu0
  %v8105 = vadd.f32 %v7912, %v8104
  %v8106 = vpop.f32.mrf.mxu0
  %v8107 = vadd.f32 %v7914, %v8106
  %v8108 = vpop.f32.mrf.mxu0
  %v8109 = vadd.f32 %v7916, %v8108
  %8110 = vmatprep.mubr.bf16.mxu0 %v5973
  %8111 = vmatmul.mubr.bf16.gmra.mxu0 %v5972
  %v8112 = vpop.f32.mrf.mxu0
  %v8113 = vadd.f32 %v7920, %v8112
  %v8114 = vpop.f32.mrf.mxu0
  %v8115 = vadd.f32 %v7922, %v8114
  %v8116 = vpop.f32.mrf.mxu0
  %v8117 = vadd.f32 %v7924, %v8116
  %v8118 = vpop.f32.mrf.mxu0
  %v8119 = vadd.f32 %v7926, %v8118
  %8120 = vmatprep.mubr.bf16.mxu0 %v5992
  %8121 = vmatmul.mubr.bf16.gmra.mxu0 %v5991
  %v8122 = vpop.f32.mrf.mxu0
  %v8123 = vadd.f32 %v7930, %v8122
  %v8124 = vpop.f32.mrf.mxu0
  %v8125 = vadd.f32 %v7932, %v8124
  %v8126 = vpop.f32.mrf.mxu0
  %v8127 = vadd.f32 %v7934, %v8126
  %v8128 = vpop.f32.mrf.mxu0
  %v8129 = vadd.f32 %v7936, %v8128
  %8130 = vmatprep.mubr.bf16.mxu0 %v6011
  %8131 = vmatmul.mubr.bf16.gmra.mxu0 %v6010
  %v8132 = vpop.f32.mrf.mxu0
  %v8133 = vadd.f32 %v7940, %v8132
  %v8134 = vpop.f32.mrf.mxu0
  %v8135 = vadd.f32 %v7942, %v8134
  %v8136 = vpop.f32.mrf.mxu0
  %v8137 = vadd.f32 %v7944, %v8136
  %v8138 = vpop.f32.mrf.mxu0
  %v8139 = vadd.f32 %v7946, %v8138
  %8140 = vmatprep.mubr.bf16.mxu0 %v6030
  %8141 = vmatmul.mubr.bf16.gmra.mxu0 %v6029
  %v8142 = vpop.f32.mrf.mxu0
  %v8143 = vadd.f32 %v7950, %v8142
  %v8144 = vpop.f32.mrf.mxu0
  %v8145 = vadd.f32 %v7952, %v8144
  %v8146 = vpop.f32.mrf.mxu0
  %v8147 = vadd.f32 %v7954, %v8146
  %v8148 = vpop.f32.mrf.mxu0
  %v8149 = vadd.f32 %v7956, %v8148
  %8150 = vmatprep.mubr.bf16.mxu0 %v6049
  %8151 = vmatmul.mubr.bf16.gmra.mxu0 %v6048
  %v8152 = vpop.f32.mrf.mxu0
  %v8153 = vadd.f32 %v7960, %v8152
  %v8154 = vpop.f32.mrf.mxu0
  %v8155 = vadd.f32 %v7962, %v8154
  %v8156 = vpop.f32.mrf.mxu0
  %v8157 = vadd.f32 %v7964, %v8156
  %v8158 = vpop.f32.mrf.mxu0
  %v8159 = vadd.f32 %v7966, %v8158
  %8160 = vmatprep.mubr.bf16.mxu0 %v6068
  %8161 = vmatmul.mubr.bf16.gmra.mxu0 %v6067
  %v8162 = vpop.f32.mrf.mxu0
  %v8163 = vadd.f32 %v7970, %v8162
  %v8164 = vpop.f32.mrf.mxu0
  %v8165 = vadd.f32 %v7972, %v8164
  %v8166 = vpop.f32.mrf.mxu0
  %v8167 = vadd.f32 %v7974, %v8166
  %v8168 = vpop.f32.mrf.mxu0
  %v8169 = vadd.f32 %v7976, %v8168
  %8170 = vmatprep.mubr.bf16.mxu0 %v6087
  %8171 = vmatmul.mubr.bf16.gmra.mxu0 %v6086
  %v8172 = vpop.f32.mrf.mxu0
  %v8173 = vadd.f32 %v7980, %v8172
  %v8174 = vpop.f32.mrf.mxu0
  %v8175 = vadd.f32 %v7982, %v8174
  %v8176 = vpop.f32.mrf.mxu0
  %v8177 = vadd.f32 %v7984, %v8176
  %v8178 = vpop.f32.mrf.mxu0
  %v8179 = vadd.f32 %v7986, %v8178
  %8180 = vmatprep.mubr.bf16.mxu0 %v6106
  %8181 = vmatmul.mubr.bf16.gmra.mxu0 %v6105
  %v8182 = vpop.f32.mrf.mxu0
  %v8183 = vadd.f32 %v7990, %v8182
  %v8184 = vpop.f32.mrf.mxu0
  %v8185 = vadd.f32 %v7992, %v8184
  %v8186 = vpop.f32.mrf.mxu0
  %v8187 = vadd.f32 %v7994, %v8186
  %v8188 = vpop.f32.mrf.mxu0
  %v8189 = vadd.f32 %v7996, %v8188
  %8190 = vmatprep.mubr.bf16.mxu0 %v6125
  %8191 = vmatmul.mubr.bf16.gmra.mxu0 %v6124
  %v8192 = vpop.f32.mrf.mxu0
  %v8193 = vadd.f32 %v8000, %v8192
  %v8194 = vpop.f32.mrf.mxu0
  %v8195 = vadd.f32 %v8002, %v8194
  %v8196 = vpop.f32.mrf.mxu0
  %v8197 = vadd.f32 %v8004, %v8196
  %v8198 = vpop.f32.mrf.mxu0
  %v8199 = vadd.f32 %v8006, %v8198
  %8200 = vdwg.mxu0
  %8201 = vmatprep.subr.bf16.mxu0 0
  %8202 = vmatpush1.bf16.msra.mxu0 0
  %8203 = vmatprep.subr.bf16.mxu0 0
  %8204 = vmatpush1.bf16.msra.mxu0 0
  %8205 = vmatprep.subr.bf16.mxu0 %v4219
  %8206 = vmatpush1.bf16.msra.mxu0 %v4274
  %8207 = vmatprep.subr.bf16.mxu0 %v4215
  %8208 = vmatpush1.bf16.msra.mxu0 %v4273
  %8209 = vmatprep.subr.bf16.mxu0 %v4211
  %8210 = vmatpush1.bf16.msra.mxu0 %v4272
  %8211 = vmatprep.subr.bf16.mxu0 %v4207
  %8212 = vmatpush1.bf16.msra.mxu0 %v4271
  %8213 = vmatprep.subr.bf16.mxu0 %v4203
  %8214 = vmatpush1.bf16.msra.mxu0 %v4270
  %8215 = vmatprep.subr.bf16.mxu0 %v4199
  %8216 = vmatpush1.bf16.msra.mxu0 %v4269
  %8217 = vmatprep.subr.bf16.mxu0 0
  %8218 = vmatpush2.bf16.msra.mxu0 0
  %8219 = vmatprep.subr.bf16.mxu0 0
  %8220 = vmatpush2.bf16.msra.mxu0 0
  %8221 = vmatprep.subr.bf16.mxu0 0
  %8222 = vmatpush2.bf16.msra.mxu0 0
  %8223 = vmatprep.subr.bf16.mxu0 0
  %8224 = vmatpush2.bf16.msra.mxu0 0
  %8225 = vmatprep.subr.bf16.mxu0 0
  %8226 = vmatpush2.bf16.msra.mxu0 0
  %8227 = vmatprep.subr.bf16.mxu0 0
  %8228 = vmatpush2.bf16.msra.mxu0 0
  %8229 = vmatprep.subr.bf16.mxu0 0
  %8230 = vmatpush2.bf16.msra.mxu0 0
  %8231 = vmatprep.subr.bf16.mxu0 0
  %8232 = vmatpush2.bf16.msra.mxu0 0
  %8233 = vmatprep.mubr.bf16.mxu0 0
  %8234 = vmatmul.mubr.bf16.gmra.mxu0 %v6417
  %v8235 = vpop.f32.mrf.mxu0
  %v8236 = vadd.f32 %v8043, %v8235
  %v8237 = vpop.f32.mrf.mxu0
  %v8238 = vadd.f32 %v8045, %v8237
  %v8239 = vpop.f32.mrf.mxu0
  %v8240 = vadd.f32 %v8047, %v8239
  %v8241 = vpop.f32.mrf.mxu0
  %v8242 = vadd.f32 %v8049, %v8241
  %8243 = vmatprep.mubr.bf16.mxu0 0
  %8244 = vmatmul.mubr.bf16.gmra.mxu0 %v6420
  %v8245 = vpop.f32.mrf.mxu0
  %v8246 = vadd.f32 %v8053, %v8245
  %v8247 = vpop.f32.mrf.mxu0
  %v8248 = vadd.f32 %v8055, %v8247
  %v8249 = vpop.f32.mrf.mxu0
  %v8250 = vadd.f32 %v8057, %v8249
  %v8251 = vpop.f32.mrf.mxu0
  %v8252 = vadd.f32 %v8059, %v8251
  %8253 = vmatprep.mubr.bf16.mxu0 0
  %8254 = vmatmul.mubr.bf16.gmra.mxu0 %v6423
  %v8255 = vpop.f32.mrf.mxu0
  %v8256 = vadd.f32 %v8063, %v8255
  %v8257 = vpop.f32.mrf.mxu0
  %v8258 = vadd.f32 %v8065, %v8257
  %v8259 = vpop.f32.mrf.mxu0
  %v8260 = vadd.f32 %v8067, %v8259
  %v8261 = vpop.f32.mrf.mxu0
  %v8262 = vadd.f32 %v8069, %v8261
  %8263 = vmatprep.mubr.bf16.mxu0 0
  %8264 = vmatmul.mubr.bf16.gmra.mxu0 %v6426
  %v8265 = vpop.f32.mrf.mxu0
  %v8266 = vadd.f32 %v8073, %v8265
  %v8267 = vpop.f32.mrf.mxu0
  %v8268 = vadd.f32 %v8075, %v8267
  %v8269 = vpop.f32.mrf.mxu0
  %v8270 = vadd.f32 %v8077, %v8269
  %v8271 = vpop.f32.mrf.mxu0
  %v8272 = vadd.f32 %v8079, %v8271
  %8273 = vmatprep.mubr.bf16.mxu0 0
  %8274 = vmatmul.mubr.bf16.gmra.mxu0 %v6429
  %v8275 = vpop.f32.mrf.mxu0
  %v8276 = vadd.f32 %v8083, %v8275
  %v8277 = vpop.f32.mrf.mxu0
  %v8278 = vadd.f32 %v8085, %v8277
  %v8279 = vpop.f32.mrf.mxu0
  %v8280 = vadd.f32 %v8087, %v8279
  %v8281 = vpop.f32.mrf.mxu0
  %v8282 = vadd.f32 %v8089, %v8281
  %8283 = vmatprep.mubr.bf16.mxu0 0
  %8284 = vmatmul.mubr.bf16.gmra.mxu0 %v6432
  %v8285 = vpop.f32.mrf.mxu0
  %v8286 = vadd.f32 %v8093, %v8285
  %v8287 = vpop.f32.mrf.mxu0
  %v8288 = vadd.f32 %v8095, %v8287
  %v8289 = vpop.f32.mrf.mxu0
  %v8290 = vadd.f32 %v8097, %v8289
  %v8291 = vpop.f32.mrf.mxu0
  %v8292 = vadd.f32 %v8099, %v8291
  %8293 = vmatprep.mubr.bf16.mxu0 0
  %8294 = vmatmul.mubr.bf16.gmra.mxu0 %v6435
  %v8295 = vpop.f32.mrf.mxu0
  %v8296 = vadd.f32 %v8103, %v8295
  %v8297 = vpop.f32.mrf.mxu0
  %v8298 = vadd.f32 %v8105, %v8297
  %v8299 = vpop.f32.mrf.mxu0
  %v8300 = vadd.f32 %v8107, %v8299
  %v8301 = vpop.f32.mrf.mxu0
  %v8302 = vadd.f32 %v8109, %v8301
  %8303 = vmatprep.mubr.bf16.mxu0 0
  %8304 = vmatmul.mubr.bf16.gmra.mxu0 %v6438
  %v8305 = vpop.f32.mrf.mxu0
  %v8306 = vadd.f32 %v8113, %v8305
  %v8307 = vpop.f32.mrf.mxu0
  %v8308 = vadd.f32 %v8115, %v8307
  %v8309 = vpop.f32.mrf.mxu0
  %v8310 = vadd.f32 %v8117, %v8309
  %v8311 = vpop.f32.mrf.mxu0
  %v8312 = vadd.f32 %v8119, %v8311
  %8313 = vmatprep.mubr.bf16.mxu0 0
  %8314 = vmatmul.mubr.bf16.gmra.mxu0 %v6441
  %v8315 = vpop.f32.mrf.mxu0
  %v8316 = vadd.f32 %v8123, %v8315
  %v8317 = vpop.f32.mrf.mxu0
  %v8318 = vadd.f32 %v8125, %v8317
  %v8319 = vpop.f32.mrf.mxu0
  %v8320 = vadd.f32 %v8127, %v8319
  %v8321 = vpop.f32.mrf.mxu0
  %v8322 = vadd.f32 %v8129, %v8321
  %8323 = vmatprep.mubr.bf16.mxu0 0
  %8324 = vmatmul.mubr.bf16.gmra.mxu0 %v6444
  %v8325 = vpop.f32.mrf.mxu0
  %v8326 = vadd.f32 %v8133, %v8325
  %v8327 = vpop.f32.mrf.mxu0
  %v8328 = vadd.f32 %v8135, %v8327
  %v8329 = vpop.f32.mrf.mxu0
  %v8330 = vadd.f32 %v8137, %v8329
  %v8331 = vpop.f32.mrf.mxu0
  %v8332 = vadd.f32 %v8139, %v8331
  %8333 = vmatprep.mubr.bf16.mxu0 0
  %8334 = vmatmul.mubr.bf16.gmra.mxu0 %v6447
  %v8335 = vpop.f32.mrf.mxu0
  %v8336 = vadd.f32 %v8143, %v8335
  %v8337 = vpop.f32.mrf.mxu0
  %v8338 = vadd.f32 %v8145, %v8337
  %v8339 = vpop.f32.mrf.mxu0
  %v8340 = vadd.f32 %v8147, %v8339
  %v8341 = vpop.f32.mrf.mxu0
  %v8342 = vadd.f32 %v8149, %v8341
  %8343 = vmatprep.mubr.bf16.mxu0 0
  %8344 = vmatmul.mubr.bf16.gmra.mxu0 %v6450
  %v8345 = vpop.f32.mrf.mxu0
  %v8346 = vadd.f32 %v8153, %v8345
  %v8347 = vpop.f32.mrf.mxu0
  %v8348 = vadd.f32 %v8155, %v8347
  %v8349 = vpop.f32.mrf.mxu0
  %v8350 = vadd.f32 %v8157, %v8349
  %v8351 = vpop.f32.mrf.mxu0
  %v8352 = vadd.f32 %v8159, %v8351
  %8353 = vmatprep.mubr.bf16.mxu0 0
  %8354 = vmatmul.mubr.bf16.gmra.mxu0 %v6453
  %v8355 = vpop.f32.mrf.mxu0
  %v8356 = vadd.f32 %v8163, %v8355
  %v8357 = vpop.f32.mrf.mxu0
  %v8358 = vadd.f32 %v8165, %v8357
  %v8359 = vpop.f32.mrf.mxu0
  %v8360 = vadd.f32 %v8167, %v8359
  %v8361 = vpop.f32.mrf.mxu0
  %v8362 = vadd.f32 %v8169, %v8361
  %8363 = vmatprep.mubr.bf16.mxu0 0
  %8364 = vmatmul.mubr.bf16.gmra.mxu0 %v6456
  %v8365 = vpop.f32.mrf.mxu0
  %v8366 = vadd.f32 %v8173, %v8365
  %v8367 = vpop.f32.mrf.mxu0
  %v8368 = vadd.f32 %v8175, %v8367
  %v8369 = vpop.f32.mrf.mxu0
  %v8370 = vadd.f32 %v8177, %v8369
  %v8371 = vpop.f32.mrf.mxu0
  %v8372 = vadd.f32 %v8179, %v8371
  %8373 = vmatprep.mubr.bf16.mxu0 0
  %8374 = vmatmul.mubr.bf16.gmra.mxu0 %v6459
  %v8375 = vpop.f32.mrf.mxu0
  %v8376 = vadd.f32 %v8183, %v8375
  %v8377 = vpop.f32.mrf.mxu0
  %v8378 = vadd.f32 %v8185, %v8377
  %v8379 = vpop.f32.mrf.mxu0
  %v8380 = vadd.f32 %v8187, %v8379
  %v8381 = vpop.f32.mrf.mxu0
  %v8382 = vadd.f32 %v8189, %v8381
  %8383 = vmatprep.mubr.bf16.mxu0 0
  %8384 = vmatmul.mubr.bf16.gmra.mxu0 %v6462
  %v8385 = vpop.f32.mrf.mxu0
  %v8386 = vadd.f32 %v8193, %v8385
  %v8387 = vpop.f32.mrf.mxu0
  %v8388 = vadd.f32 %v8195, %v8387
  %v8389 = vpop.f32.mrf.mxu0
  %v8390 = vadd.f32 %v8197, %v8389
  %v8391 = vpop.f32.mrf.mxu0
  %v8392 = vadd.f32 %v8199, %v8391
  %8393 = vdwg.mxu0
  %v8394 = vsub.f32 0.0, %v8236
  %v8395 = vsub.f32 0.0, %v8238
  %v8396 = vsub.f32 0.0, %v8240
  %v8397 = vsub.f32 0.0, %v8242
  %v8398 = vsub.f32 0.0, %v8246
  %v8399 = vsub.f32 0.0, %v8248
  %v8400 = vsub.f32 0.0, %v8250
  %v8401 = vsub.f32 0.0, %v8252
  %v8402 = vsub.f32 0.0, %v8256
  %v8403 = vsub.f32 0.0, %v8258
  %v8404 = vsub.f32 0.0, %v8260
  %v8405 = vsub.f32 0.0, %v8262
  %v8406 = vsub.f32 0.0, %v8266
  %v8407 = vsub.f32 0.0, %v8268
  %v8408 = vsub.f32 0.0, %v8270
  %v8409 = vsub.f32 0.0, %v8272
  %v8410 = vsub.f32 0.0, %v8276
  %v8411 = vsub.f32 0.0, %v8278
  %v8412 = vsub.f32 0.0, %v8280
  %v8413 = vsub.f32 0.0, %v8282
  %v8414 = vsub.f32 0.0, %v8286
  %v8415 = vsub.f32 0.0, %v8288
  %v8416 = vsub.f32 0.0, %v8290
  %v8417 = vsub.f32 0.0, %v8292
  %v8418 = vsub.f32 0.0, %v8296
  %v8419 = vsub.f32 0.0, %v8298
  %v8420 = vsub.f32 0.0, %v8300
  %v8421 = vsub.f32 0.0, %v8302
  %v8422 = vsub.f32 0.0, %v8306
  %v8423 = vsub.f32 0.0, %v8308
  %v8424 = vsub.f32 0.0, %v8310
  %v8425 = vsub.f32 0.0, %v8312
  %v8426 = vsub.f32 0.0, %v8316
  %v8427 = vsub.f32 0.0, %v8318
  %v8428 = vsub.f32 0.0, %v8320
  %v8429 = vsub.f32 0.0, %v8322
  %v8430 = vsub.f32 0.0, %v8326
  %v8431 = vsub.f32 0.0, %v8328
  %v8432 = vsub.f32 0.0, %v8330
  %v8433 = vsub.f32 0.0, %v8332
  %v8434 = vsub.f32 0.0, %v8336
  %v8435 = vsub.f32 0.0, %v8338
  %v8436 = vsub.f32 0.0, %v8340
  %v8437 = vsub.f32 0.0, %v8342
  %v8438 = vsub.f32 0.0, %v8346
  %v8439 = vsub.f32 0.0, %v8348
  %v8440 = vsub.f32 0.0, %v8350
  %v8441 = vsub.f32 0.0, %v8352
  %v8442 = vsub.f32 0.0, %v8356
  %v8443 = vsub.f32 0.0, %v8358
  %v8444 = vsub.f32 0.0, %v8360
  %v8445 = vsub.f32 0.0, %v8362
  %v8446 = vsub.f32 0.0, %v8366
  %v8447 = vsub.f32 0.0, %v8368
  %v8448 = vsub.f32 0.0, %v8370
  %v8449 = vsub.f32 0.0, %v8372
  %v8450 = vsub.f32 0.0, %v8376
  %v8451 = vsub.f32 0.0, %v8378
  %v8452 = vsub.f32 0.0, %v8380
  %v8453 = vsub.f32 0.0, %v8382
  %v8454 = vsub.f32 0.0, %v8386
  %v8455 = vsub.f32 0.0, %v8388
  %v8456 = vsub.f32 0.0, %v8390
  %v8457 = vsub.f32 0.0, %v8392
  %v8458 = vmul.f32 %v8394, 1.442695
  %v8459 = vpow.pop %v8458
  %v8460 = vmul.f32 %v8395, 1.442695
  %v8461 = vpow.pop %v8460
  %v8462 = vmul.f32 %v8396, 1.442695
  %v8463 = vpow.pop %v8462
  %v8464 = vmul.f32 %v8397, 1.442695
  %v8465 = vpow.pop %v8464
  %v8466 = vmul.f32 %v8398, 1.442695
  %v8467 = vpow.pop %v8466
  %v8468 = vmul.f32 %v8399, 1.442695
  %v8469 = vpow.pop %v8468
  %v8470 = vmul.f32 %v8400, 1.442695
  %v8471 = vpow.pop %v8470
  %v8472 = vmul.f32 %v8401, 1.442695
  %v8473 = vpow.pop %v8472
  %v8474 = vmul.f32 %v8402, 1.442695
  %v8475 = vpow.pop %v8474
  %v8476 = vmul.f32 %v8403, 1.442695
  %v8477 = vpow.pop %v8476
  %v8478 = vmul.f32 %v8404, 1.442695
  %v8479 = vpow.pop %v8478
  %v8480 = vmul.f32 %v8405, 1.442695
  %v8481 = vpow.pop %v8480
  %v8482 = vmul.f32 %v8406, 1.442695
  %v8483 = vpow.pop %v8482
  %v8484 = vmul.f32 %v8407, 1.442695
  %v8485 = vpow.pop %v8484
  %v8486 = vmul.f32 %v8408, 1.442695
  %v8487 = vpow.pop %v8486
  %v8488 = vmul.f32 %v8409, 1.442695
  %v8489 = vpow.pop %v8488
  %v8490 = vmul.f32 %v8410, 1.442695
  %v8491 = vpow.pop %v8490
  %v8492 = vmul.f32 %v8411, 1.442695
  %v8493 = vpow.pop %v8492
  %v8494 = vmul.f32 %v8412, 1.442695
  %v8495 = vpow.pop %v8494
  %v8496 = vmul.f32 %v8413, 1.442695
  %v8497 = vpow.pop %v8496
  %v8498 = vmul.f32 %v8414, 1.442695
  %v8499 = vpow.pop %v8498
  %v8500 = vmul.f32 %v8415, 1.442695
  %v8501 = vpow.pop %v8500
  %v8502 = vmul.f32 %v8416, 1.442695
  %v8503 = vpow.pop %v8502
  %v8504 = vmul.f32 %v8417, 1.442695
  %v8505 = vpow.pop %v8504
  %v8506 = vmul.f32 %v8418, 1.442695
  %v8507 = vpow.pop %v8506
  %v8508 = vmul.f32 %v8419, 1.442695
  %v8509 = vpow.pop %v8508
  %v8510 = vmul.f32 %v8420, 1.442695
  %v8511 = vpow.pop %v8510
  %v8512 = vmul.f32 %v8421, 1.442695
  %v8513 = vpow.pop %v8512
  %v8514 = vmul.f32 %v8422, 1.442695
  %v8515 = vpow.pop %v8514
  %v8516 = vmul.f32 %v8423, 1.442695
  %v8517 = vpow.pop %v8516
  %v8518 = vmul.f32 %v8424, 1.442695
  %v8519 = vpow.pop %v8518
  %v8520 = vmul.f32 %v8425, 1.442695
  %v8521 = vpow.pop %v8520
  %v8522 = vmul.f32 %v8426, 1.442695
  %v8523 = vpow.pop %v8522
  %v8524 = vmul.f32 %v8427, 1.442695
  %v8525 = vpow.pop %v8524
  %v8526 = vmul.f32 %v8428, 1.442695
  %v8527 = vpow.pop %v8526
  %v8528 = vmul.f32 %v8429, 1.442695
  %v8529 = vpow.pop %v8528
  %v8530 = vmul.f32 %v8430, 1.442695
  %v8531 = vpow.pop %v8530
  %v8532 = vmul.f32 %v8431, 1.442695
  %v8533 = vpow.pop %v8532
  %v8534 = vmul.f32 %v8432, 1.442695
  %v8535 = vpow.pop %v8534
  %v8536 = vmul.f32 %v8433, 1.442695
  %v8537 = vpow.pop %v8536
  %v8538 = vmul.f32 %v8434, 1.442695
  %v8539 = vpow.pop %v8538
  %v8540 = vmul.f32 %v8435, 1.442695
  %v8541 = vpow.pop %v8540
  %v8542 = vmul.f32 %v8436, 1.442695
  %v8543 = vpow.pop %v8542
  %v8544 = vmul.f32 %v8437, 1.442695
  %v8545 = vpow.pop %v8544
  %v8546 = vmul.f32 %v8438, 1.442695
  %v8547 = vpow.pop %v8546
  %v8548 = vmul.f32 %v8439, 1.442695
  %v8549 = vpow.pop %v8548
  %v8550 = vmul.f32 %v8440, 1.442695
  %v8551 = vpow.pop %v8550
  %v8552 = vmul.f32 %v8441, 1.442695
  %v8553 = vpow.pop %v8552
  %v8554 = vmul.f32 %v8442, 1.442695
  %v8555 = vpow.pop %v8554
  %v8556 = vmul.f32 %v8443, 1.442695
  %v8557 = vpow.pop %v8556
  %v8558 = vmul.f32 %v8444, 1.442695
  %v8559 = vpow.pop %v8558
  %v8560 = vmul.f32 %v8445, 1.442695
  %v8561 = vpow.pop %v8560
  %v8562 = vmul.f32 %v8446, 1.442695
  %v8563 = vpow.pop %v8562
  %v8564 = vmul.f32 %v8447, 1.442695
  %v8565 = vpow.pop %v8564
  %v8566 = vmul.f32 %v8448, 1.442695
  %v8567 = vpow.pop %v8566
  %v8568 = vmul.f32 %v8449, 1.442695
  %v8569 = vpow.pop %v8568
  %v8570 = vmul.f32 %v8450, 1.442695
  %v8571 = vpow.pop %v8570
  %v8572 = vmul.f32 %v8451, 1.442695
  %v8573 = vpow.pop %v8572
  %v8574 = vmul.f32 %v8452, 1.442695
  %v8575 = vpow.pop %v8574
  %v8576 = vmul.f32 %v8453, 1.442695
  %v8577 = vpow.pop %v8576
  %v8578 = vmul.f32 %v8454, 1.442695
  %v8579 = vpow.pop %v8578
  %v8580 = vmul.f32 %v8455, 1.442695
  %v8581 = vpow.pop %v8580
  %v8582 = vmul.f32 %v8456, 1.442695
  %v8583 = vpow.pop %v8582
  %v8584 = vmul.f32 %v8457, 1.442695
  %v8585 = vpow.pop %v8584
  %v8586 = vadd.f32 %v8459, 1.0
  %v8587 = vadd.f32 %v8461, 1.0
  %v8588 = vadd.f32 %v8463, 1.0
  %v8589 = vadd.f32 %v8465, 1.0
  %v8590 = vadd.f32 %v8467, 1.0
  %v8591 = vadd.f32 %v8469, 1.0
  %v8592 = vadd.f32 %v8471, 1.0
  %v8593 = vadd.f32 %v8473, 1.0
  %v8594 = vadd.f32 %v8475, 1.0
  %v8595 = vadd.f32 %v8477, 1.0
  %v8596 = vadd.f32 %v8479, 1.0
  %v8597 = vadd.f32 %v8481, 1.0
  %v8598 = vadd.f32 %v8483, 1.0
  %v8599 = vadd.f32 %v8485, 1.0
  %v8600 = vadd.f32 %v8487, 1.0
  %v8601 = vadd.f32 %v8489, 1.0
  %v8602 = vadd.f32 %v8491, 1.0
  %v8603 = vadd.f32 %v8493, 1.0
  %v8604 = vadd.f32 %v8495, 1.0
  %v8605 = vadd.f32 %v8497, 1.0
  %v8606 = vadd.f32 %v8499, 1.0
  %v8607 = vadd.f32 %v8501, 1.0
  %v8608 = vadd.f32 %v8503, 1.0
  %v8609 = vadd.f32 %v8505, 1.0
  %v8610 = vadd.f32 %v8507, 1.0
  %v8611 = vadd.f32 %v8509, 1.0
  %v8612 = vadd.f32 %v8511, 1.0
  %v8613 = vadd.f32 %v8513, 1.0
  %v8614 = vadd.f32 %v8515, 1.0
  %v8615 = vadd.f32 %v8517, 1.0
  %v8616 = vadd.f32 %v8519, 1.0
  %v8617 = vadd.f32 %v8521, 1.0
  %v8618 = vadd.f32 %v8523, 1.0
  %v8619 = vadd.f32 %v8525, 1.0
  %v8620 = vadd.f32 %v8527, 1.0
  %v8621 = vadd.f32 %v8529, 1.0
  %v8622 = vadd.f32 %v8531, 1.0
  %v8623 = vadd.f32 %v8533, 1.0
  %v8624 = vadd.f32 %v8535, 1.0
  %v8625 = vadd.f32 %v8537, 1.0
  %v8626 = vadd.f32 %v8539, 1.0
  %v8627 = vadd.f32 %v8541, 1.0
  %v8628 = vadd.f32 %v8543, 1.0
  %v8629 = vadd.f32 %v8545, 1.0
  %v8630 = vadd.f32 %v8547, 1.0
  %v8631 = vadd.f32 %v8549, 1.0
  %v8632 = vadd.f32 %v8551, 1.0
  %v8633 = vadd.f32 %v8553, 1.0
  %v8634 = vadd.f32 %v8555, 1.0
  %v8635 = vadd.f32 %v8557, 1.0
  %v8636 = vadd.f32 %v8559, 1.0
  %v8637 = vadd.f32 %v8561, 1.0
  %v8638 = vadd.f32 %v8563, 1.0
  %v8639 = vadd.f32 %v8565, 1.0
  %v8640 = vadd.f32 %v8567, 1.0
  %v8641 = vadd.f32 %v8569, 1.0
  %v8642 = vadd.f32 %v8571, 1.0
  %v8643 = vadd.f32 %v8573, 1.0
  %v8644 = vadd.f32 %v8575, 1.0
  %v8645 = vadd.f32 %v8577, 1.0
  %v8646 = vadd.f32 %v8579, 1.0
  %v8647 = vadd.f32 %v8581, 1.0
  %v8648 = vadd.f32 %v8583, 1.0
  %v8649 = vadd.f32 %v8585, 1.0
  %v8650 = vrcp.pop %v8586
  %v8651 = vrcp.pop %v8587
  %v8652 = vrcp.pop %v8588
  %v8653 = vrcp.pop %v8589
  %v8654 = vrcp.pop %v8590
  %v8655 = vrcp.pop %v8591
  %v8656 = vrcp.pop %v8592
  %v8657 = vrcp.pop %v8593
  %v8658 = vrcp.pop %v8594
  %v8659 = vrcp.pop %v8595
  %v8660 = vrcp.pop %v8596
  %v8661 = vrcp.pop %v8597
  %v8662 = vrcp.pop %v8598
  %v8663 = vrcp.pop %v8599
  %v8664 = vrcp.pop %v8600
  %v8665 = vrcp.pop %v8601
  %v8666 = vrcp.pop %v8602
  %v8667 = vrcp.pop %v8603
  %v8668 = vrcp.pop %v8604
  %v8669 = vrcp.pop %v8605
  %v8670 = vrcp.pop %v8606
  %v8671 = vrcp.pop %v8607
  %v8672 = vrcp.pop %v8608
  %v8673 = vrcp.pop %v8609
  %v8674 = vrcp.pop %v8610
  %v8675 = vrcp.pop %v8611
  %v8676 = vrcp.pop %v8612
  %v8677 = vrcp.pop %v8613
  %v8678 = vrcp.pop %v8614
  %v8679 = vrcp.pop %v8615
  %v8680 = vrcp.pop %v8616
  %v8681 = vrcp.pop %v8617
  %v8682 = vrcp.pop %v8618
  %v8683 = vrcp.pop %v8619
  %v8684 = vrcp.pop %v8620
  %v8685 = vrcp.pop %v8621
  %v8686 = vrcp.pop %v8622
  %v8687 = vrcp.pop %v8623
  %v8688 = vrcp.pop %v8624
  %v8689 = vrcp.pop %v8625
  %v8690 = vrcp.pop %v8626
  %v8691 = vrcp.pop %v8627
  %v8692 = vrcp.pop %v8628
  %v8693 = vrcp.pop %v8629
  %v8694 = vrcp.pop %v8630
  %v8695 = vrcp.pop %v8631
  %v8696 = vrcp.pop %v8632
  %v8697 = vrcp.pop %v8633
  %v8698 = vrcp.pop %v8634
  %v8699 = vrcp.pop %v8635
  %v8700 = vrcp.pop %v8636
  %v8701 = vrcp.pop %v8637
  %v8702 = vrcp.pop %v8638
  %v8703 = vrcp.pop %v8639
  %v8704 = vrcp.pop %v8640
  %v8705 = vrcp.pop %v8641
  %v8706 = vrcp.pop %v8642
  %v8707 = vrcp.pop %v8643
  %v8708 = vrcp.pop %v8644
  %v8709 = vrcp.pop %v8645
  %v8710 = vrcp.pop %v8646
  %v8711 = vrcp.pop %v8647
  %v8712 = vrcp.pop %v8648
  %v8713 = vrcp.pop %v8649
  %v8714 = vpack.c.bf16 %v8652, %v8650
  %v8715 = vpack.c.bf16 %v8653, %v8651
  %v8716 = vpack.c.bf16 %v8656, %v8654
  %v8717 = vpack.c.bf16 %v8657, %v8655
  %v8718 = vpack.c.bf16 %v8660, %v8658
  %v8719 = vpack.c.bf16 %v8661, %v8659
  %v8720 = vpack.c.bf16 %v8664, %v8662
  %v8721 = vpack.c.bf16 %v8665, %v8663
  %v8722 = vpack.c.bf16 %v8668, %v8666
  %v8723 = vpack.c.bf16 %v8669, %v8667
  %v8724 = vpack.c.bf16 %v8672, %v8670
  %v8725 = vpack.c.bf16 %v8673, %v8671
  %v8726 = vpack.c.bf16 %v8676, %v8674
  %v8727 = vpack.c.bf16 %v8677, %v8675
  %v8728 = vpack.c.bf16 %v8680, %v8678
  %v8729 = vpack.c.bf16 %v8681, %v8679
  %v8730 = vpack.c.bf16 %v8684, %v8682
  %v8731 = vpack.c.bf16 %v8685, %v8683
  %v8732 = vpack.c.bf16 %v8688, %v8686
  %v8733 = vpack.c.bf16 %v8689, %v8687
  %v8734 = vpack.c.bf16 %v8692, %v8690
  %v8735 = vpack.c.bf16 %v8693, %v8691
  %v8736 = vpack.c.bf16 %v8696, %v8694
  %v8737 = vpack.c.bf16 %v8697, %v8695
  %v8738 = vpack.c.bf16 %v8700, %v8698
  %v8739 = vpack.c.bf16 %v8701, %v8699
  %v8740 = vpack.c.bf16 %v8704, %v8702
  %v8741 = vpack.c.bf16 %v8705, %v8703
  %v8742 = vpack.c.bf16 %v8708, %v8706
  %v8743 = vpack.c.bf16 %v8709, %v8707
  %v8744 = vpack.c.bf16 %v8712, %v8710
  %v8745 = vpack.c.bf16 %v8713, %v8711
  %v8746 = vld [vmem:[%s6] sm:$0xf]
  %v8747 = vld [vmem:[%s6 + $0x4] sm:$0xf]
  %v8748 = vld [vmem:[%s6 + $0x8] sm:$0xf]
  %v8749 = vld [vmem:[%s6 + $0xc] sm:$0xf]
  %v8750 = vld [vmem:[%s6 + $0x10] sm:$0xf]
  %v8751 = vld [vmem:[%s6 + $0x14] sm:$0xf]
  %v8752 = vld [vmem:[%s6 + $0x18] sm:$0xf]
  %v8753 = vld [vmem:[%s6 + $0x1c] sm:$0xf]
  %v8754 = vld [vmem:[%s6 + $0x20] sm:$0xf]
  %v8755 = vld [vmem:[%s6 + $0x24] sm:$0xf]
  %v8756 = vld [vmem:[%s6 + $0x28] sm:$0xf]
  %v8757 = vld [vmem:[%s6 + $0x2c] sm:$0xf]
  %v8758 = vld [vmem:[%s6 + $0x30] sm:$0xf]
  %v8759 = vld [vmem:[%s6 + $0x34] sm:$0xf]
  %v8760 = vld [vmem:[%s6 + $0x38] sm:$0xf]
  %v8761 = vld [vmem:[%s6 + $0x3c] sm:$0xf]
  %v8762 = vld [vmem:[%s6 + $0x40] sm:$0xf]
  %v8780 = vunpack.c.l.b16 %v8746
  %v8781 = vunpack.c.l.b16 %v8747
  %v8782 = vunpack.c.l.b16 %v8748
  %v8783 = vunpack.c.l.b16 %v8749
  %v8784 = vunpack.c.l.b16 %v8750
  %v8785 = vunpack.c.l.b16 %v8751
  %v8786 = vunpack.c.l.b16 %v8752
  %v8787 = vunpack.c.l.b16 %v8753
  %v8788 = vunpack.c.l.b16 %v8754
  %v8789 = vunpack.c.l.b16 %v8755
  %v8790 = vunpack.c.l.b16 %v8756
  %v8791 = vunpack.c.l.b16 %v8757
  %v8792 = vunpack.c.l.b16 %v8758
  %v8793 = vunpack.c.l.b16 %v8759
  %v8794 = vunpack.c.l.b16 %v8760
  %v8795 = vunpack.c.l.b16 %v8761
  %v8796 = vunpack.c.l.b16 %v8762
  %v8797 = vpack.c.b16 %v8781, %v8780
  %v8798 = vpack.c.b16 %v8783, %v8782
  %v8799 = vpack.c.b16 %v8785, %v8784
  %v8800 = vpack.c.b16 %v8787, %v8786
  %v8801 = vpack.c.b16 %v8789, %v8788
  %v8802 = vpack.c.b16 %v8791, %v8790
  %v8803 = vpack.c.b16 %v8793, %v8792
  %v8804 = vpack.c.b16 %v8795, %v8794
  %v8805 = vpack.c.b16 %v8796, %v8796
  %vm8814 = vcmask 64512
  %v8816 = vsel %vm8814, %v8715, 0
  %v8819 = vsel %vm8814, %v8717, 0
  %v8822 = vsel %vm8814, %v8719, 0
  %v8825 = vsel %vm8814, %v8721, 0
  %v8828 = vsel %vm8814, %v8723, 0
  %v8831 = vsel %vm8814, %v8725, 0
  %v8834 = vsel %vm8814, %v8727, 0
  %v8837 = vsel %vm8814, %v8729, 0
  %v8840 = vsel %vm8814, %v8731, 0
  %v8843 = vsel %vm8814, %v8733, 0
  %v8846 = vsel %vm8814, %v8735, 0
  %v8849 = vsel %vm8814, %v8737, 0
  %v8852 = vsel %vm8814, %v8739, 0
  %v8855 = vsel %vm8814, %v8741, 0
  %v8858 = vsel %vm8814, %v8743, 0
  %v8861 = vsel %vm8814, %v8745, 0
  %vm8863 = vcmask 1043456
  %v8865 = vsel %vm8863, %v8805, 0
  %8867 = vmatprep.subr.bf16.mxu0 0
  %8868 = vmatpush1.bf16.msra.mxu0 %v8804
  %8869 = vmatprep.subr.bf16.mxu0 0
  %8870 = vmatpush1.bf16.msra.mxu0 %v8803
  %8871 = vmatprep.subr.bf16.mxu0 0
  %8872 = vmatpush1.bf16.msra.mxu0 %v8802
  %8873 = vmatprep.subr.bf16.mxu0 0
  %8874 = vmatpush1.bf16.msra.mxu0 %v8801
  %8875 = vmatprep.subr.bf16.mxu0 0
  %8876 = vmatpush1.bf16.msra.mxu0 %v8800
  %8877 = vmatprep.subr.bf16.mxu0 0
  %8878 = vmatpush1.bf16.msra.mxu0 %v8799
  %8879 = vmatprep.subr.bf16.mxu0 0
  %8880 = vmatpush1.bf16.msra.mxu0 %v8798
  %8881 = vmatprep.subr.bf16.mxu0 0
  %8882 = vmatpush1.bf16.msra.mxu0 %v8797
  %8883 = vmatprep.subr.bf16.mxu0 0
  %8884 = vmatpush2.bf16.msra.mxu0 0
  %8885 = vmatprep.subr.bf16.mxu0 0
  %8886 = vmatpush2.bf16.msra.mxu0 0
  %8887 = vmatprep.subr.bf16.mxu0 0
  %8888 = vmatpush2.bf16.msra.mxu0 0
  %8889 = vmatprep.subr.bf16.mxu0 0
  %8890 = vmatpush2.bf16.msra.mxu0 0
  %8891 = vmatprep.subr.bf16.mxu0 0
  %8892 = vmatpush2.bf16.msra.mxu0 0
  %8893 = vmatprep.subr.bf16.mxu0 0
  %8894 = vmatpush2.bf16.msra.mxu0 0
  %8895 = vmatprep.subr.bf16.mxu0 0
  %8896 = vmatpush2.bf16.msra.mxu0 0
  %8897 = vmatprep.subr.bf16.mxu0 0
  %8898 = vmatpush2.bf16.msra.mxu0 %v8865
  %8899 = vmatprep.mubr.bf16.mxu0 %v8816
  %8900 = vmatmul.mubr.bf16.gmra.mxu0 %v8714
  %v8901 = vpop.f32.mrf.mxu0
  %v8902 = vadd.f32 0.0, %v8901
  %v8903 = vpop.f32.mrf.mxu0
  %v8904 = vpop.f32.mrf.mxu0
  %v8905 = vadd.f32 0.0, %v8904
  %v8906 = vpop.f32.mrf.mxu0
  %8907 = vmatprep.mubr.bf16.mxu0 %v8819
  %8908 = vmatmul.mubr.bf16.gmra.mxu0 %v8716
  %v8909 = vpop.f32.mrf.mxu0
  %v8910 = vadd.f32 0.0, %v8909
  %v8911 = vpop.f32.mrf.mxu0
  %v8912 = vpop.f32.mrf.mxu0
  %v8913 = vadd.f32 0.0, %v8912
  %v8914 = vpop.f32.mrf.mxu0
  %8915 = vmatprep.mubr.bf16.mxu0 %v8822
  %8916 = vmatmul.mubr.bf16.gmra.mxu0 %v8718
  %v8917 = vpop.f32.mrf.mxu0
  %v8918 = vadd.f32 0.0, %v8917
  %v8919 = vpop.f32.mrf.mxu0
  %v8920 = vpop.f32.mrf.mxu0
  %v8921 = vadd.f32 0.0, %v8920
  %v8922 = vpop.f32.mrf.mxu0
  %8923 = vmatprep.mubr.bf16.mxu0 %v8825
  %8924 = vmatmul.mubr.bf16.gmra.mxu0 %v8720
  %v8925 = vpop.f32.mrf.mxu0
  %v8926 = vadd.f32 0.0, %v8925
  %v8927 = vpop.f32.mrf.mxu0
  %v8928 = vpop.f32.mrf.mxu0
  %v8929 = vadd.f32 0.0, %v8928
  %v8930 = vpop.f32.mrf.mxu0
  %8931 = vmatprep.mubr.bf16.mxu0 %v8828
  %8932 = vmatmul.mubr.bf16.gmra.mxu0 %v8722
  %v8933 = vpop.f32.mrf.mxu0
  %v8934 = vadd.f32 0.0, %v8933
  %v8935 = vpop.f32.mrf.mxu0
  %v8936 = vpop.f32.mrf.mxu0
  %v8937 = vadd.f32 0.0, %v8936
  %v8938 = vpop.f32.mrf.mxu0
  %8939 = vmatprep.mubr.bf16.mxu0 %v8831
  %8940 = vmatmul.mubr.bf16.gmra.mxu0 %v8724
  %v8941 = vpop.f32.mrf.mxu0
  %v8942 = vadd.f32 0.0, %v8941
  %v8943 = vpop.f32.mrf.mxu0
  %v8944 = vpop.f32.mrf.mxu0
  %v8945 = vadd.f32 0.0, %v8944
  %v8946 = vpop.f32.mrf.mxu0
  %8947 = vmatprep.mubr.bf16.mxu0 %v8834
  %8948 = vmatmul.mubr.bf16.gmra.mxu0 %v8726
  %v8949 = vpop.f32.mrf.mxu0
  %v8950 = vadd.f32 0.0, %v8949
  %v8951 = vpop.f32.mrf.mxu0
  %v8952 = vpop.f32.mrf.mxu0
  %v8953 = vadd.f32 0.0, %v8952
  %v8954 = vpop.f32.mrf.mxu0
  %8955 = vmatprep.mubr.bf16.mxu0 %v8837
  %8956 = vmatmul.mubr.bf16.gmra.mxu0 %v8728
  %v8957 = vpop.f32.mrf.mxu0
  %v8958 = vadd.f32 0.0, %v8957
  %v8959 = vpop.f32.mrf.mxu0
  %v8960 = vpop.f32.mrf.mxu0
  %v8961 = vadd.f32 0.0, %v8960
  %v8962 = vpop.f32.mrf.mxu0
  %8963 = vmatprep.mubr.bf16.mxu0 %v8840
  %8964 = vmatmul.mubr.bf16.gmra.mxu0 %v8730
  %v8965 = vpop.f32.mrf.mxu0
  %v8966 = vadd.f32 0.0, %v8965
  %v8967 = vpop.f32.mrf.mxu0
  %v8968 = vpop.f32.mrf.mxu0
  %v8969 = vadd.f32 0.0, %v8968
  %v8970 = vpop.f32.mrf.mxu0
  %8971 = vmatprep.mubr.bf16.mxu0 %v8843
  %8972 = vmatmul.mubr.bf16.gmra.mxu0 %v8732
  %v8973 = vpop.f32.mrf.mxu0
  %v8974 = vadd.f32 0.0, %v8973
  %v8975 = vpop.f32.mrf.mxu0
  %v8976 = vpop.f32.mrf.mxu0
  %v8977 = vadd.f32 0.0, %v8976
  %v8978 = vpop.f32.mrf.mxu0
  %8979 = vmatprep.mubr.bf16.mxu0 %v8846
  %8980 = vmatmul.mubr.bf16.gmra.mxu0 %v8734
  %v8981 = vpop.f32.mrf.mxu0
  %v8982 = vadd.f32 0.0, %v8981
  %v8983 = vpop.f32.mrf.mxu0
  %v8984 = vpop.f32.mrf.mxu0
  %v8985 = vadd.f32 0.0, %v8984
  %v8986 = vpop.f32.mrf.mxu0
  %8987 = vmatprep.mubr.bf16.mxu0 %v8849
  %8988 = vmatmul.mubr.bf16.gmra.mxu0 %v8736
  %v8989 = vpop.f32.mrf.mxu0
  %v8990 = vadd.f32 0.0, %v8989
  %v8991 = vpop.f32.mrf.mxu0
  %v8992 = vpop.f32.mrf.mxu0
  %v8993 = vadd.f32 0.0, %v8992
  %v8994 = vpop.f32.mrf.mxu0
  %8995 = vmatprep.mubr.bf16.mxu0 %v8852
  %8996 = vmatmul.mubr.bf16.gmra.mxu0 %v8738
  %v8997 = vpop.f32.mrf.mxu0
  %v8998 = vadd.f32 0.0, %v8997
  %v8999 = vpop.f32.mrf.mxu0
  %v9000 = vpop.f32.mrf.mxu0
  %v9001 = vadd.f32 0.0, %v9000
  %v9002 = vpop.f32.mrf.mxu0
  %9003 = vmatprep.mubr.bf16.mxu0 %v8855
  %9004 = vmatmul.mubr.bf16.gmra.mxu0 %v8740
  %v9005 = vpop.f32.mrf.mxu0
  %v9006 = vadd.f32 0.0, %v9005
  %v9007 = vpop.f32.mrf.mxu0
  %v9008 = vpop.f32.mrf.mxu0
  %v9009 = vadd.f32 0.0, %v9008
  %v9010 = vpop.f32.mrf.mxu0
  %9011 = vmatprep.mubr.bf16.mxu0 %v8858
  %9012 = vmatmul.mubr.bf16.gmra.mxu0 %v8742
  %v9013 = vpop.f32.mrf.mxu0
  %v9014 = vadd.f32 0.0, %v9013
  %v9015 = vpop.f32.mrf.mxu0
  %v9016 = vpop.f32.mrf.mxu0
  %v9017 = vadd.f32 0.0, %v9016
  %v9018 = vpop.f32.mrf.mxu0
  %9019 = vmatprep.mubr.bf16.mxu0 %v8861
  %9020 = vmatmul.mubr.bf16.gmra.mxu0 %v8744
  %v9021 = vpop.f32.mrf.mxu0
  %v9022 = vadd.f32 0.0, %v9021
  %v9023 = vpop.f32.mrf.mxu0
  %v9024 = vpop.f32.mrf.mxu0
  %v9025 = vadd.f32 0.0, %v9024
  %v9026 = vpop.f32.mrf.mxu0
  %9027 = vdwg.mxu0
  %v9028 = vpack.c.bf16 %v8905, %v8902
  %v9029 = vpack.c.bf16 %v8913, %v8910
  %v9030 = vpack.c.bf16 %v8921, %v8918
  %v9031 = vpack.c.bf16 %v8929, %v8926
  %v9032 = vpack.c.bf16 %v8937, %v8934
  %v9033 = vpack.c.bf16 %v8945, %v8942
  %v9034 = vpack.c.bf16 %v8953, %v8950
  %v9035 = vpack.c.bf16 %v8961, %v8958
  %v9036 = vpack.c.bf16 %v8969, %v8966
  %v9037 = vpack.c.bf16 %v8977, %v8974
  %v9038 = vpack.c.bf16 %v8985, %v8982
  %v9039 = vpack.c.bf16 %v8993, %v8990
  %v9040 = vpack.c.bf16 %v9001, %v8998
  %v9041 = vpack.c.bf16 %v9009, %v9006
  %v9042 = vpack.c.bf16 %v9017, %v9014
  %v9043 = vpack.c.bf16 %v9025, %v9022
  %v9044 = vld [vmem:[%s7] sm:$0xf]
  %v9045 = vld [vmem:[%s7 + $0x4] sm:$0xf]
  %v9046 = vld [vmem:[%s7 + $0x8] sm:$0xf]
  %v9047 = vld [vmem:[%s7 + $0xc] sm:$0xf]
  %v9048 = vld [vmem:[%s7 + $0x10] sm:$0xf]
  %v9049 = vld [vmem:[%s7 + $0x14] sm:$0xf]
  %v9050 = vld [vmem:[%s7 + $0x18] sm:$0xf]
  %v9051 = vld [vmem:[%s7 + $0x1c] sm:$0xf]
  %v9052 = vld [vmem:[%s7 + $0x20] sm:$0xf]
  %v9053 = vld [vmem:[%s7 + $0x24] sm:$0xf]
  %v9054 = vld [vmem:[%s7 + $0x28] sm:$0xf]
  %v9055 = vld [vmem:[%s7 + $0x2c] sm:$0xf]
  %v9056 = vld [vmem:[%s7 + $0x30] sm:$0xf]
  %v9057 = vld [vmem:[%s7 + $0x34] sm:$0xf]
  %v9058 = vld [vmem:[%s7 + $0x38] sm:$0xf]
  %v9059 = vld [vmem:[%s7 + $0x3c] sm:$0xf]
  %v9060 = vld [vmem:[%s7 + $0x40] sm:$0xf]
  %v9061 = vld [vmem:[%s7 + $0x44] sm:$0xf]
  %v9062 = vld [vmem:[%s7 + $0x48] sm:$0xf]
  %v9063 = vld [vmem:[%s7 + $0x4c] sm:$0xf]
  %v9064 = vld [vmem:[%s7 + $0x50] sm:$0xf]
  %v9065 = vld [vmem:[%s7 + $0x54] sm:$0xf]
  %v9066 = vld [vmem:[%s7 + $0x58] sm:$0xf]
  %v9067 = vld [vmem:[%s7 + $0x5c] sm:$0xf]
  %v9068 = vld [vmem:[%s7 + $0x60] sm:$0xf]
  %v9069 = vld [vmem:[%s7 + $0x64] sm:$0xf]
  %v9070 = vld [vmem:[%s7 + $0x68] sm:$0xf]
  %v9071 = vld [vmem:[%s7 + $0x6c] sm:$0xf]
  %v9072 = vld [vmem:[%s7 + $0x70] sm:$0xf]
  %v9073 = vld [vmem:[%s7 + $0x74] sm:$0xf]
  %v9074 = vld [vmem:[%s7 + $0x78] sm:$0xf]
  %v9075 = vld [vmem:[%s7 + $0x7c] sm:$0xf]
  %v9076 = vld [vmem:[%s7 + $0x80] sm:$0xf]
  %v9077 = vld [vmem:[%s7 + $0x84] sm:$0xf]
  %v9078 = vld [vmem:[%s7 + $0x88] sm:$0xf]
  %v9079 = vld [vmem:[%s7 + $0x8c] sm:$0xf]
  %v9080 = vld [vmem:[%s7 + $0x90] sm:$0xf]
  %v9081 = vld [vmem:[%s7 + $0x94] sm:$0xf]
  %v9082 = vld [vmem:[%s7 + $0x98] sm:$0xf]
  %v9083 = vld [vmem:[%s7 + $0x9c] sm:$0xf]
  %v9084 = vld [vmem:[%s7 + $0xa0] sm:$0xf]
  %v9085 = vld [vmem:[%s7 + $0xa4] sm:$0xf]
  %v9086 = vld [vmem:[%s7 + $0xa8] sm:$0xf]
  %v9087 = vld [vmem:[%s7 + $0xac] sm:$0xf]
  %v9088 = vld [vmem:[%s7 + $0xb0] sm:$0xf]
  %v9089 = vld [vmem:[%s7 + $0xb4] sm:$0xf]
  %v9090 = vld [vmem:[%s7 + $0xb8] sm:$0xf]
  %v9091 = vld [vmem:[%s7 + $0xbc] sm:$0xf]
  %v9092 = vld [vmem:[%s7 + $0xc0] sm:$0xf]
  %v9093 = vld [vmem:[%s7 + $0xc4] sm:$0xf]
  %v9098 = vunpack.c.l.b16 %v9047
  %v9099 = vunpack.c.l.b16 %v9048
  %v9100 = vunpack.c.l.b16 %v9049
  %v9101 = vunpack.c.l.b16 %v9050
  %v9102 = vpack.c.b16 %v9099, %v9098
  %v9103 = vpack.c.b16 %v9101, %v9100
  %vm9104 = vsmask.f32 7424
  %v9106 = vshrl.u32 %v9102, 16
  %v9108 = vshll.u32 %v9102, 16
  %v9110 = vrot.slane %v9108, 1
  %v9111 = vor.u32 %v9106, %v9110
  %v9113 = vshll.u32 %v9103, 16
  %v9115 = vrot.slane %v9113, 1
  %v9116 = vsel %vm9104, %v9111, %v9115
  %v9117 = vshrl.u32 %v9103, 16
  %v9119 = vor.u32 %v9117, %v9115
  %vm9121 = vcmask 203776
  %v9123 = vsel %vm9121, %v9029, 0
  %vm9125 = vcmask 1044480
  %v9126 = vsel %vm8863, 4294967295, 65535
  %v9127 = vsel %vm9125, %v9126, 0
  %v9129 = vand.u32 %v9119, %v9127
  %9131 = vmatprep.subr.bf16.mxu0 0
  %9132 = vmatpush1.bf16.msra.mxu0 0
  %9133 = vmatprep.subr.bf16.mxu0 0
  %9134 = vmatpush1.bf16.msra.mxu0 0
  %9135 = vmatprep.subr.bf16.mxu0 0
  %9136 = vmatpush1.bf16.msra.mxu0 0
  %9137 = vmatprep.subr.bf16.mxu0 0
  %9138 = vmatpush1.bf16.msra.mxu0 0
  %9139 = vmatprep.subr.bf16.mxu0 0
  %9140 = vmatpush1.bf16.msra.mxu0 0
  %9141 = vmatprep.subr.bf16.mxu0 0
  %9142 = vmatpush1.bf16.msra.mxu0 0
  %9143 = vmatprep.subr.bf16.mxu0 0
  %9144 = vmatpush1.bf16.msra.mxu0 %v9129
  %9145 = vmatprep.subr.bf16.mxu0 0
  %9146 = vmatpush1.bf16.msra.mxu0 %v9116
  %9147 = vmatprep.subr.bf16.mxu0 0
  %9148 = vmatpush2.bf16.msra.mxu0 0
  %9149 = vmatprep.subr.bf16.mxu0 0
  %9150 = vmatpush2.bf16.msra.mxu0 0
  %9151 = vmatprep.subr.bf16.mxu0 0
  %9152 = vmatpush2.bf16.msra.mxu0 0
  %9153 = vmatprep.subr.bf16.mxu0 0
  %9154 = vmatpush2.bf16.msra.mxu0 0
  %9155 = vmatprep.subr.bf16.mxu0 0
  %9156 = vmatpush2.bf16.msra.mxu0 0
  %9157 = vmatprep.subr.bf16.mxu0 0
  %9158 = vmatpush2.bf16.msra.mxu0 0
  %9159 = vmatprep.subr.bf16.mxu0 0
  %9160 = vmatpush2.bf16.msra.mxu0 0
  %9161 = vmatprep.subr.bf16.mxu0 0
  %9162 = vmatpush2.bf16.msra.mxu0 0
  %9163 = vmatprep.mubr.bf16.mxu0 0
  %9164 = vmatmul.mubr.bf16.gmra.mxu0 %v9123
  %v9165 = vpop.f32.mrf.mxu0
  %v9166 = vadd.f32 0.0, %v9165
  %v9167 = vpop.f32.mrf.mxu0
  %v9168 = vpop.f32.mrf.mxu0
  %v9169 = vadd.f32 0.0, %v9168
  %v9170 = vpop.f32.mrf.mxu0
  %9171 = vdwg.mxu0
  %v9175 = vunpack.c.l.b16 %v9044
  %v9176 = vunpack.c.l.b16 %v9045
  %v9177 = vunpack.c.l.b16 %v9046
  %v9178 = vpack.c.b16 %v9176, %v9175
  %v9179 = vpack.c.b16 %v9098, %v9177
  %v9182 = vsel %vm9121, %v9028, 0
  %v9185 = vand.u32 %v9179, %v9127
  %9187 = vmatprep.subr.bf16.mxu0 0
  %9188 = vmatpush1.bf16.msra.mxu0 0
  %9189 = vmatprep.subr.bf16.mxu0 0
  %9190 = vmatpush1.bf16.msra.mxu0 0
  %9191 = vmatprep.subr.bf16.mxu0 0
  %9192 = vmatpush1.bf16.msra.mxu0 0
  %9193 = vmatprep.subr.bf16.mxu0 0
  %9194 = vmatpush1.bf16.msra.mxu0 0
  %9195 = vmatprep.subr.bf16.mxu0 0
  %9196 = vmatpush1.bf16.msra.mxu0 0
  %9197 = vmatprep.subr.bf16.mxu0 0
  %9198 = vmatpush1.bf16.msra.mxu0 0
  %9199 = vmatprep.subr.bf16.mxu0 0
  %9200 = vmatpush1.bf16.msra.mxu0 %v9185
  %9201 = vmatprep.subr.bf16.mxu0 0
  %9202 = vmatpush1.bf16.msra.mxu0 %v9178
  %9203 = vmatprep.subr.bf16.mxu0 0
  %9204 = vmatpush2.bf16.msra.mxu0 0
  %9205 = vmatprep.subr.bf16.mxu0 0
  %9206 = vmatpush2.bf16.msra.mxu0 0
  %9207 = vmatprep.subr.bf16.mxu0 0
  %9208 = vmatpush2.bf16.msra.mxu0 0
  %9209 = vmatprep.subr.bf16.mxu0 0
  %9210 = vmatpush2.bf16.msra.mxu0 0
  %9211 = vmatprep.subr.bf16.mxu0 0
  %9212 = vmatpush2.bf16.msra.mxu0 0
  %9213 = vmatprep.subr.bf16.mxu0 0
  %9214 = vmatpush2.bf16.msra.mxu0 0
  %9215 = vmatprep.subr.bf16.mxu0 0
  %9216 = vmatpush2.bf16.msra.mxu0 0
  %9217 = vmatprep.subr.bf16.mxu0 0
  %9218 = vmatpush2.bf16.msra.mxu0 0
  %9219 = vmatprep.mubr.bf16.mxu0 0
  %9220 = vmatmul.mubr.bf16.gmra.mxu0 %v9182
  %v9221 = vpop.f32.mrf.mxu0
  %v9222 = vadd.f32 %v9166, %v9221
  %v9223 = vpop.f32.mrf.mxu0
  %v9224 = vpop.f32.mrf.mxu0
  %v9225 = vadd.f32 %v9169, %v9224
  %v9226 = vpop.f32.mrf.mxu0
  %9227 = vdwg.mxu0
  %v9231 = vunpack.c.l.b16 %v9051
  %v9232 = vunpack.c.l.b16 %v9052
  %v9233 = vunpack.c.l.b16 %v9053
  %v9234 = vpack.c.b16 %v9231, %v9101
  %v9235 = vpack.c.b16 %v9233, %v9232
  %vm9236 = vcmask 1046528
  %v9237 = vrot.slane %v9234, 1
  %v9238 = vrot.slane %v9235, 1
  %v9239 = vsel %vm9236, %v9237, %v9238
  %v9242 = vsel %vm9121, %v9030, 0
  %v9245 = vand.u32 %v9238, %v9127
  %9247 = vmatprep.subr.bf16.mxu0 0
  %9248 = vmatpush1.bf16.msra.mxu0 0
  %9249 = vmatprep.subr.bf16.mxu0 0
  %9250 = vmatpush1.bf16.msra.mxu0 0
  %9251 = vmatprep.subr.bf16.mxu0 0
  %9252 = vmatpush1.bf16.msra.mxu0 0
  %9253 = vmatprep.subr.bf16.mxu0 0
  %9254 = vmatpush1.bf16.msra.mxu0 0
  %9255 = vmatprep.subr.bf16.mxu0 0
  %9256 = vmatpush1.bf16.msra.mxu0 0
  %9257 = vmatprep.subr.bf16.mxu0 0
  %9258 = vmatpush1.bf16.msra.mxu0 0
  %9259 = vmatprep.subr.bf16.mxu0 0
  %9260 = vmatpush1.bf16.msra.mxu0 %v9245
  %9261 = vmatprep.subr.bf16.mxu0 0
  %9262 = vmatpush1.bf16.msra.mxu0 %v9239
  %9263 = vmatprep.subr.bf16.mxu0 0
  %9264 = vmatpush2.bf16.msra.mxu0 0
  %9265 = vmatprep.subr.bf16.mxu0 0
  %9266 = vmatpush2.bf16.msra.mxu0 0
  %9267 = vmatprep.subr.bf16.mxu0 0
  %9268 = vmatpush2.bf16.msra.mxu0 0
  %9269 = vmatprep.subr.bf16.mxu0 0
  %9270 = vmatpush2.bf16.msra.mxu0 0
  %9271 = vmatprep.subr.bf16.mxu0 0
  %9272 = vmatpush2.bf16.msra.mxu0 0
  %9273 = vmatprep.subr.bf16.mxu0 0
  %9274 = vmatpush2.bf16.msra.mxu0 0
  %9275 = vmatprep.subr.bf16.mxu0 0
  %9276 = vmatpush2.bf16.msra.mxu0 0
  %9277 = vmatprep.subr.bf16.mxu0 0
  %9278 = vmatpush2.bf16.msra.mxu0 0
  %9279 = vmatprep.mubr.bf16.mxu0 0
  %9280 = vmatmul.mubr.bf16.gmra.mxu0 %v9242
  %v9281 = vpop.f32.mrf.mxu0
  %v9282 = vadd.f32 0.0, %v9281
  %v9283 = vpop.f32.mrf.mxu0
  %v9284 = vpop.f32.mrf.mxu0
  %v9285 = vadd.f32 0.0, %v9284
  %v9286 = vpop.f32.mrf.mxu0
  %9287 = vdwg.mxu0
  %v9288 = vadd.f32 %v9222, %v9282
  %v9289 = vadd.f32 %v9225, %v9285
  %v9293 = vunpack.c.l.b16 %v9054
  %v9294 = vunpack.c.l.b16 %v9055
  %v9295 = vunpack.c.l.b16 %v9056
  %v9296 = vpack.c.b16 %v9293, %v9233
  %v9297 = vpack.c.b16 %v9295, %v9294
  %vm9298 = vsmask.f32 6400
  %v9300 = vshrl.u32 %v9296, 16
  %v9302 = vrot.slane %v9300, 1
  %v9303 = vshll.u32 %v9296, 16
  %v9305 = vrot.slane %v9303, 2
  %v9306 = vor.u32 %v9302, %v9305
  %v9308 = vshrl.u32 %v9297, 16
  %v9310 = vrot.slane %v9308, 1
  %v9311 = vshll.u32 %v9297, 16
  %v9313 = vrot.slane %v9311, 2
  %v9314 = vor.u32 %v9310, %v9313
  %v9315 = vsel %vm9298, %v9306, %v9314
  %v9318 = vsel %vm9121, %v9031, 0
  %v9321 = vand.u32 %v9314, %v9127
  %9323 = vmatprep.subr.bf16.mxu0 0
  %9324 = vmatpush1.bf16.msra.mxu0 0
  %9325 = vmatprep.subr.bf16.mxu0 0
  %9326 = vmatpush1.bf16.msra.mxu0 0
  %9327 = vmatprep.subr.bf16.mxu0 0
  %9328 = vmatpush1.bf16.msra.mxu0 0
  %9329 = vmatprep.subr.bf16.mxu0 0
  %9330 = vmatpush1.bf16.msra.mxu0 0
  %9331 = vmatprep.subr.bf16.mxu0 0
  %9332 = vmatpush1.bf16.msra.mxu0 0
  %9333 = vmatprep.subr.bf16.mxu0 0
  %9334 = vmatpush1.bf16.msra.mxu0 0
  %9335 = vmatprep.subr.bf16.mxu0 0
  %9336 = vmatpush1.bf16.msra.mxu0 %v9321
  %9337 = vmatprep.subr.bf16.mxu0 0
  %9338 = vmatpush1.bf16.msra.mxu0 %v9315
  %9339 = vmatprep.subr.bf16.mxu0 0
  %9340 = vmatpush2.bf16.msra.mxu0 0
  %9341 = vmatprep.subr.bf16.mxu0 0
  %9342 = vmatpush2.bf16.msra.mxu0 0
  %9343 = vmatprep.subr.bf16.mxu0 0
  %9344 = vmatpush2.bf16.msra.mxu0 0
  %9345 = vmatprep.subr.bf16.mxu0 0
  %9346 = vmatpush2.bf16.msra.mxu0 0
  %9347 = vmatprep.subr.bf16.mxu0 0
  %9348 = vmatpush2.bf16.msra.mxu0 0
  %9349 = vmatprep.subr.bf16.mxu0 0
  %9350 = vmatpush2.bf16.msra.mxu0 0
  %9351 = vmatprep.subr.bf16.mxu0 0
  %9352 = vmatpush2.bf16.msra.mxu0 0
  %9353 = vmatprep.subr.bf16.mxu0 0
  %9354 = vmatpush2.bf16.msra.mxu0 0
  %9355 = vmatprep.mubr.bf16.mxu0 0
  %9356 = vmatmul.mubr.bf16.gmra.mxu0 %v9318
  %v9357 = vpop.f32.mrf.mxu0
  %v9358 = vadd.f32 0.0, %v9357
  %v9359 = vpop.f32.mrf.mxu0
  %v9360 = vpop.f32.mrf.mxu0
  %v9361 = vadd.f32 0.0, %v9360
  %v9362 = vpop.f32.mrf.mxu0
  %9363 = vdwg.mxu0
  %v9364 = vadd.f32 %v9288, %v9358
  %v9365 = vadd.f32 %v9289, %v9361
  %v9369 = vunpack.c.l.b16 %v9057
  %v9370 = vunpack.c.l.b16 %v9058
  %v9371 = vunpack.c.l.b16 %v9059
  %v9372 = vpack.c.b16 %v9369, %v9295
  %v9373 = vpack.c.b16 %v9371, %v9370
  %vm9374 = vcmask 1045504
  %v9375 = vrot.slane %v9372, 2
  %v9376 = vrot.slane %v9373, 2
  %v9377 = vsel %vm9374, %v9375, %v9376
  %v9380 = vsel %vm9121, %v9032, 0
  %v9383 = vand.u32 %v9376, %v9127
  %9385 = vmatprep.subr.bf16.mxu0 0
  %9386 = vmatpush1.bf16.msra.mxu0 0
  %9387 = vmatprep.subr.bf16.mxu0 0
  %9388 = vmatpush1.bf16.msra.mxu0 0
  %9389 = vmatprep.subr.bf16.mxu0 0
  %9390 = vmatpush1.bf16.msra.mxu0 0
  %9391 = vmatprep.subr.bf16.mxu0 0
  %9392 = vmatpush1.bf16.msra.mxu0 0
  %9393 = vmatprep.subr.bf16.mxu0 0
  %9394 = vmatpush1.bf16.msra.mxu0 0
  %9395 = vmatprep.subr.bf16.mxu0 0
  %9396 = vmatpush1.bf16.msra.mxu0 0
  %9397 = vmatprep.subr.bf16.mxu0 0
  %9398 = vmatpush1.bf16.msra.mxu0 %v9383
  %9399 = vmatprep.subr.bf16.mxu0 0
  %9400 = vmatpush1.bf16.msra.mxu0 %v9377
  %9401 = vmatprep.subr.bf16.mxu0 0
  %9402 = vmatpush2.bf16.msra.mxu0 0
  %9403 = vmatprep.subr.bf16.mxu0 0
  %9404 = vmatpush2.bf16.msra.mxu0 0
  %9405 = vmatprep.subr.bf16.mxu0 0
  %9406 = vmatpush2.bf16.msra.mxu0 0
  %9407 = vmatprep.subr.bf16.mxu0 0
  %9408 = vmatpush2.bf16.msra.mxu0 0
  %9409 = vmatprep.subr.bf16.mxu0 0
  %9410 = vmatpush2.bf16.msra.mxu0 0
  %9411 = vmatprep.subr.bf16.mxu0 0
  %9412 = vmatpush2.bf16.msra.mxu0 0
  %9413 = vmatprep.subr.bf16.mxu0 0
  %9414 = vmatpush2.bf16.msra.mxu0 0
  %9415 = vmatprep.subr.bf16.mxu0 0
  %9416 = vmatpush2.bf16.msra.mxu0 0
  %9417 = vmatprep.mubr.bf16.mxu0 0
  %9418 = vmatmul.mubr.bf16.gmra.mxu0 %v9380
  %v9419 = vpop.f32.mrf.mxu0
  %v9420 = vadd.f32 0.0, %v9419
  %v9421 = vpop.f32.mrf.mxu0
  %v9422 = vpop.f32.mrf.mxu0
  %v9423 = vadd.f32 0.0, %v9422
  %v9424 = vpop.f32.mrf.mxu0
  %9425 = vdwg.mxu0
  %v9426 = vadd.f32 %v9364, %v9420
  %v9427 = vadd.f32 %v9365, %v9423
  %v9431 = vunpack.c.l.b16 %v9060
  %v9432 = vunpack.c.l.b16 %v9061
  %v9433 = vunpack.c.l.b16 %v9062
  %v9434 = vpack.c.b16 %v9431, %v9371
  %v9435 = vpack.c.b16 %v9433, %v9432
  %vm9436 = vsmask.f32 5376
  %v9438 = vshrl.u32 %v9434, 16
  %v9440 = vrot.slane %v9438, 2
  %v9441 = vshll.u32 %v9434, 16
  %v9443 = vrot.slane %v9441, 3
  %v9444 = vor.u32 %v9440, %v9443
  %v9446 = vshrl.u32 %v9435, 16
  %v9448 = vrot.slane %v9446, 2
  %v9449 = vshll.u32 %v9435, 16
  %v9451 = vrot.slane %v9449, 3
  %v9452 = vor.u32 %v9448, %v9451
  %v9453 = vsel %vm9436, %v9444, %v9452
  %v9456 = vsel %vm9121, %v9033, 0
  %v9459 = vand.u32 %v9452, %v9127
  %9461 = vmatprep.subr.bf16.mxu0 0
  %9462 = vmatpush1.bf16.msra.mxu0 0
  %9463 = vmatprep.subr.bf16.mxu0 0
  %9464 = vmatpush1.bf16.msra.mxu0 0
  %9465 = vmatprep.subr.bf16.mxu0 0
  %9466 = vmatpush1.bf16.msra.mxu0 0
  %9467 = vmatprep.subr.bf16.mxu0 0
  %9468 = vmatpush1.bf16.msra.mxu0 0
  %9469 = vmatprep.subr.bf16.mxu0 0
  %9470 = vmatpush1.bf16.msra.mxu0 0
  %9471 = vmatprep.subr.bf16.mxu0 0
  %9472 = vmatpush1.bf16.msra.mxu0 0
  %9473 = vmatprep.subr.bf16.mxu0 0
  %9474 = vmatpush1.bf16.msra.mxu0 %v9459
  %9475 = vmatprep.subr.bf16.mxu0 0
  %9476 = vmatpush1.bf16.msra.mxu0 %v9453
  %9477 = vmatprep.subr.bf16.mxu0 0
  %9478 = vmatpush2.bf16.msra.mxu0 0
  %9479 = vmatprep.subr.bf16.mxu0 0
  %9480 = vmatpush2.bf16.msra.mxu0 0
  %9481 = vmatprep.subr.bf16.mxu0 0
  %9482 = vmatpush2.bf16.msra.mxu0 0
  %9483 = vmatprep.subr.bf16.mxu0 0
  %9484 = vmatpush2.bf16.msra.mxu0 0
  %9485 = vmatprep.subr.bf16.mxu0 0
  %9486 = vmatpush2.bf16.msra.mxu0 0
  %9487 = vmatprep.subr.bf16.mxu0 0
  %9488 = vmatpush2.bf16.msra.mxu0 0
  %9489 = vmatprep.subr.bf16.mxu0 0
  %9490 = vmatpush2.bf16.msra.mxu0 0
  %9491 = vmatprep.subr.bf16.mxu0 0
  %9492 = vmatpush2.bf16.msra.mxu0 0
  %9493 = vmatprep.mubr.bf16.mxu0 0
  %9494 = vmatmul.mubr.bf16.gmra.mxu0 %v9456
  %v9495 = vpop.f32.mrf.mxu0
  %v9496 = vadd.f32 0.0, %v9495
  %v9497 = vpop.f32.mrf.mxu0
  %v9498 = vpop.f32.mrf.mxu0
  %v9499 = vadd.f32 0.0, %v9498
  %v9500 = vpop.f32.mrf.mxu0
  %9501 = vdwg.mxu0
  %v9502 = vadd.f32 %v9426, %v9496
  %v9503 = vadd.f32 %v9427, %v9499
  %v9507 = vunpack.c.l.b16 %v9063
  %v9508 = vunpack.c.l.b16 %v9064
  %v9509 = vunpack.c.l.b16 %v9065
  %v9510 = vpack.c.b16 %v9507, %v9433
  %v9511 = vpack.c.b16 %v9509, %v9508
  %vm9512 = vcmask 1044480
  %v9513 = vrot.slane %v9510, 3
  %v9514 = vrot.slane %v9511, 3
  %v9515 = vsel %vm9512, %v9513, %v9514
  %v9518 = vsel %vm9121, %v9034, 0
  %v9521 = vand.u32 %v9514, %v9127
  %9523 = vmatprep.subr.bf16.mxu0 0
  %9524 = vmatpush1.bf16.msra.mxu0 0
  %9525 = vmatprep.subr.bf16.mxu0 0
  %9526 = vmatpush1.bf16.msra.mxu0 0
  %9527 = vmatprep.subr.bf16.mxu0 0
  %9528 = vmatpush1.bf16.msra.mxu0 0
  %9529 = vmatprep.subr.bf16.mxu0 0
  %9530 = vmatpush1.bf16.msra.mxu0 0
  %9531 = vmatprep.subr.bf16.mxu0 0
  %9532 = vmatpush1.bf16.msra.mxu0 0
  %9533 = vmatprep.subr.bf16.mxu0 0
  %9534 = vmatpush1.bf16.msra.mxu0 0
  %9535 = vmatprep.subr.bf16.mxu0 0
  %9536 = vmatpush1.bf16.msra.mxu0 %v9521
  %9537 = vmatprep.subr.bf16.mxu0 0
  %9538 = vmatpush1.bf16.msra.mxu0 %v9515
  %9539 = vmatprep.subr.bf16.mxu0 0
  %9540 = vmatpush2.bf16.msra.mxu0 0
  %9541 = vmatprep.subr.bf16.mxu0 0
  %9542 = vmatpush2.bf16.msra.mxu0 0
  %9543 = vmatprep.subr.bf16.mxu0 0
  %9544 = vmatpush2.bf16.msra.mxu0 0
  %9545 = vmatprep.subr.bf16.mxu0 0
  %9546 = vmatpush2.bf16.msra.mxu0 0
  %9547 = vmatprep.subr.bf16.mxu0 0
  %9548 = vmatpush2.bf16.msra.mxu0 0
  %9549 = vmatprep.subr.bf16.mxu0 0
  %9550 = vmatpush2.bf16.msra.mxu0 0
  %9551 = vmatprep.subr.bf16.mxu0 0
  %9552 = vmatpush2.bf16.msra.mxu0 0
  %9553 = vmatprep.subr.bf16.mxu0 0
  %9554 = vmatpush2.bf16.msra.mxu0 0
  %9555 = vmatprep.mubr.bf16.mxu0 0
  %9556 = vmatmul.mubr.bf16.gmra.mxu0 %v9518
  %v9557 = vpop.f32.mrf.mxu0
  %v9558 = vadd.f32 0.0, %v9557
  %v9559 = vpop.f32.mrf.mxu0
  %v9560 = vpop.f32.mrf.mxu0
  %v9561 = vadd.f32 0.0, %v9560
  %v9562 = vpop.f32.mrf.mxu0
  %9563 = vdwg.mxu0
  %v9564 = vadd.f32 %v9502, %v9558
  %v9565 = vadd.f32 %v9503, %v9561
  %v9569 = vunpack.c.l.b16 %v9066
  %v9570 = vunpack.c.l.b16 %v9067
  %v9571 = vunpack.c.l.b16 %v9068
  %v9572 = vpack.c.b16 %v9569, %v9509
  %v9573 = vpack.c.b16 %v9571, %v9570
  %vm9574 = vsmask.f32 4352
  %v9576 = vshrl.u32 %v9572, 16
  %v9578 = vrot.slane %v9576, 3
  %v9579 = vshll.u32 %v9572, 16
  %v9581 = vrot.slane %v9579, 4
  %v9582 = vor.u32 %v9578, %v9581
  %v9584 = vshrl.u32 %v9573, 16
  %v9586 = vrot.slane %v9584, 3
  %v9587 = vshll.u32 %v9573, 16
  %v9589 = vrot.slane %v9587, 4
  %v9590 = vor.u32 %v9586, %v9589
  %v9591 = vsel %vm9574, %v9582, %v9590
  %v9594 = vsel %vm9121, %v9035, 0
  %v9597 = vand.u32 %v9590, %v9127
  %9599 = vmatprep.subr.bf16.mxu0 0
  %9600 = vmatpush1.bf16.msra.mxu0 0
  %9601 = vmatprep.subr.bf16.mxu0 0
  %9602 = vmatpush1.bf16.msra.mxu0 0
  %9603 = vmatprep.subr.bf16.mxu0 0
  %9604 = vmatpush1.bf16.msra.mxu0 0
  %9605 = vmatprep.subr.bf16.mxu0 0
  %9606 = vmatpush1.bf16.msra.mxu0 0
  %9607 = vmatprep.subr.bf16.mxu0 0
  %9608 = vmatpush1.bf16.msra.mxu0 0
  %9609 = vmatprep.subr.bf16.mxu0 0
  %9610 = vmatpush1.bf16.msra.mxu0 0
  %9611 = vmatprep.subr.bf16.mxu0 0
  %9612 = vmatpush1.bf16.msra.mxu0 %v9597
  %9613 = vmatprep.subr.bf16.mxu0 0
  %9614 = vmatpush1.bf16.msra.mxu0 %v9591
  %9615 = vmatprep.subr.bf16.mxu0 0
  %9616 = vmatpush2.bf16.msra.mxu0 0
  %9617 = vmatprep.subr.bf16.mxu0 0
  %9618 = vmatpush2.bf16.msra.mxu0 0
  %9619 = vmatprep.subr.bf16.mxu0 0
  %9620 = vmatpush2.bf16.msra.mxu0 0
  %9621 = vmatprep.subr.bf16.mxu0 0
  %9622 = vmatpush2.bf16.msra.mxu0 0
  %9623 = vmatprep.subr.bf16.mxu0 0
  %9624 = vmatpush2.bf16.msra.mxu0 0
  %9625 = vmatprep.subr.bf16.mxu0 0
  %9626 = vmatpush2.bf16.msra.mxu0 0
  %9627 = vmatprep.subr.bf16.mxu0 0
  %9628 = vmatpush2.bf16.msra.mxu0 0
  %9629 = vmatprep.subr.bf16.mxu0 0
  %9630 = vmatpush2.bf16.msra.mxu0 0
  %9631 = vmatprep.mubr.bf16.mxu0 0
  %9632 = vmatmul.mubr.bf16.gmra.mxu0 %v9594
  %v9633 = vpop.f32.mrf.mxu0
  %v9634 = vadd.f32 0.0, %v9633
  %v9635 = vpop.f32.mrf.mxu0
  %v9636 = vpop.f32.mrf.mxu0
  %v9637 = vadd.f32 0.0, %v9636
  %v9638 = vpop.f32.mrf.mxu0
  %9639 = vdwg.mxu0
  %v9640 = vadd.f32 %v9564, %v9634
  %v9641 = vadd.f32 %v9565, %v9637
  %v9646 = vunpack.c.l.b16 %v9069
  %v9647 = vunpack.c.l.b16 %v9070
  %v9648 = vunpack.c.l.b16 %v9071
  %v9649 = vunpack.c.l.b16 %v9072
  %v9650 = vpack.c.b16 %v9647, %v9646
  %v9651 = vpack.c.b16 %v9649, %v9648
  %v9654 = vsel %vm9121, %v9036, 0
  %v9657 = vand.u32 %v9651, %v9127
  %9659 = vmatprep.subr.bf16.mxu0 0
  %9660 = vmatpush1.bf16.msra.mxu0 0
  %9661 = vmatprep.subr.bf16.mxu0 0
  %9662 = vmatpush1.bf16.msra.mxu0 0
  %9663 = vmatprep.subr.bf16.mxu0 0
  %9664 = vmatpush1.bf16.msra.mxu0 0
  %9665 = vmatprep.subr.bf16.mxu0 0
  %9666 = vmatpush1.bf16.msra.mxu0 0
  %9667 = vmatprep.subr.bf16.mxu0 0
  %9668 = vmatpush1.bf16.msra.mxu0 0
  %9669 = vmatprep.subr.bf16.mxu0 0
  %9670 = vmatpush1.bf16.msra.mxu0 0
  %9671 = vmatprep.subr.bf16.mxu0 0
  %9672 = vmatpush1.bf16.msra.mxu0 %v9657
  %9673 = vmatprep.subr.bf16.mxu0 0
  %9674 = vmatpush1.bf16.msra.mxu0 %v9650
  %9675 = vmatprep.subr.bf16.mxu0 0
  %9676 = vmatpush2.bf16.msra.mxu0 0
  %9677 = vmatprep.subr.bf16.mxu0 0
  %9678 = vmatpush2.bf16.msra.mxu0 0
  %9679 = vmatprep.subr.bf16.mxu0 0
  %9680 = vmatpush2.bf16.msra.mxu0 0
  %9681 = vmatprep.subr.bf16.mxu0 0
  %9682 = vmatpush2.bf16.msra.mxu0 0
  %9683 = vmatprep.subr.bf16.mxu0 0
  %9684 = vmatpush2.bf16.msra.mxu0 0
  %9685 = vmatprep.subr.bf16.mxu0 0
  %9686 = vmatpush2.bf16.msra.mxu0 0
  %9687 = vmatprep.subr.bf16.mxu0 0
  %9688 = vmatpush2.bf16.msra.mxu0 0
  %9689 = vmatprep.subr.bf16.mxu0 0
  %9690 = vmatpush2.bf16.msra.mxu0 0
  %9691 = vmatprep.mubr.bf16.mxu0 0
  %9692 = vmatmul.mubr.bf16.gmra.mxu0 %v9654
  %v9693 = vpop.f32.mrf.mxu0
  %v9694 = vadd.f32 0.0, %v9693
  %v9695 = vpop.f32.mrf.mxu0
  %v9696 = vpop.f32.mrf.mxu0
  %v9697 = vadd.f32 0.0, %v9696
  %v9698 = vpop.f32.mrf.mxu0
  %9699 = vdwg.mxu0
  %v9700 = vadd.f32 %v9640, %v9694
  %v9701 = vadd.f32 %v9641, %v9697
  %v9705 = vunpack.c.l.b16 %v9073
  %v9706 = vunpack.c.l.b16 %v9074
  %v9707 = vunpack.c.l.b16 %v9075
  %v9708 = vpack.c.b16 %v9705, %v9649
  %v9709 = vpack.c.b16 %v9707, %v9706
  %v9711 = vshrl.u32 %v9708, 16
  %v9713 = vshll.u32 %v9708, 16
  %v9715 = vrot.slane %v9713, 1
  %v9716 = vor.u32 %v9711, %v9715
  %v9718 = vshll.u32 %v9709, 16
  %v9720 = vrot.slane %v9718, 1
  %v9721 = vsel %vm9104, %v9716, %v9720
  %v9722 = vshrl.u32 %v9709, 16
  %v9724 = vor.u32 %v9722, %v9720
  %v9727 = vsel %vm9121, %v9037, 0
  %v9730 = vand.u32 %v9724, %v9127
  %9732 = vmatprep.subr.bf16.mxu0 0
  %9733 = vmatpush1.bf16.msra.mxu0 0
  %9734 = vmatprep.subr.bf16.mxu0 0
  %9735 = vmatpush1.bf16.msra.mxu0 0
  %9736 = vmatprep.subr.bf16.mxu0 0
  %9737 = vmatpush1.bf16.msra.mxu0 0
  %9738 = vmatprep.subr.bf16.mxu0 0
  %9739 = vmatpush1.bf16.msra.mxu0 0
  %9740 = vmatprep.subr.bf16.mxu0 0
  %9741 = vmatpush1.bf16.msra.mxu0 0
  %9742 = vmatprep.subr.bf16.mxu0 0
  %9743 = vmatpush1.bf16.msra.mxu0 0
  %9744 = vmatprep.subr.bf16.mxu0 0
  %9745 = vmatpush1.bf16.msra.mxu0 %v9730
  %9746 = vmatprep.subr.bf16.mxu0 0
  %9747 = vmatpush1.bf16.msra.mxu0 %v9721
  %9748 = vmatprep.subr.bf16.mxu0 0
  %9749 = vmatpush2.bf16.msra.mxu0 0
  %9750 = vmatprep.subr.bf16.mxu0 0
  %9751 = vmatpush2.bf16.msra.mxu0 0
  %9752 = vmatprep.subr.bf16.mxu0 0
  %9753 = vmatpush2.bf16.msra.mxu0 0
  %9754 = vmatprep.subr.bf16.mxu0 0
  %9755 = vmatpush2.bf16.msra.mxu0 0
  %9756 = vmatprep.subr.bf16.mxu0 0
  %9757 = vmatpush2.bf16.msra.mxu0 0
  %9758 = vmatprep.subr.bf16.mxu0 0
  %9759 = vmatpush2.bf16.msra.mxu0 0
  %9760 = vmatprep.subr.bf16.mxu0 0
  %9761 = vmatpush2.bf16.msra.mxu0 0
  %9762 = vmatprep.subr.bf16.mxu0 0
  %9763 = vmatpush2.bf16.msra.mxu0 0
  %9764 = vmatprep.mubr.bf16.mxu0 0
  %9765 = vmatmul.mubr.bf16.gmra.mxu0 %v9727
  %v9766 = vpop.f32.mrf.mxu0
  %v9767 = vadd.f32 0.0, %v9766
  %v9768 = vpop.f32.mrf.mxu0
  %v9769 = vpop.f32.mrf.mxu0
  %v9770 = vadd.f32 0.0, %v9769
  %v9771 = vpop.f32.mrf.mxu0
  %9772 = vdwg.mxu0
  %v9773 = vadd.f32 %v9700, %v9767
  %v9774 = vadd.f32 %v9701, %v9770
  %v9778 = vunpack.c.l.b16 %v9076
  %v9779 = vunpack.c.l.b16 %v9077
  %v9780 = vunpack.c.l.b16 %v9078
  %v9781 = vpack.c.b16 %v9778, %v9707
  %v9782 = vpack.c.b16 %v9780, %v9779
  %v9783 = vrot.slane %v9781, 1
  %v9784 = vrot.slane %v9782, 1
  %v9785 = vsel %vm9236, %v9783, %v9784
  %v9788 = vsel %vm9121, %v9038, 0
  %v9791 = vand.u32 %v9784, %v9127
  %9793 = vmatprep.subr.bf16.mxu0 0
  %9794 = vmatpush1.bf16.msra.mxu0 0
  %9795 = vmatprep.subr.bf16.mxu0 0
  %9796 = vmatpush1.bf16.msra.mxu0 0
  %9797 = vmatprep.subr.bf16.mxu0 0
  %9798 = vmatpush1.bf16.msra.mxu0 0
  %9799 = vmatprep.subr.bf16.mxu0 0
  %9800 = vmatpush1.bf16.msra.mxu0 0
  %9801 = vmatprep.subr.bf16.mxu0 0
  %9802 = vmatpush1.bf16.msra.mxu0 0
  %9803 = vmatprep.subr.bf16.mxu0 0
  %9804 = vmatpush1.bf16.msra.mxu0 0
  %9805 = vmatprep.subr.bf16.mxu0 0
  %9806 = vmatpush1.bf16.msra.mxu0 %v9791
  %9807 = vmatprep.subr.bf16.mxu0 0
  %9808 = vmatpush1.bf16.msra.mxu0 %v9785
  %9809 = vmatprep.subr.bf16.mxu0 0
  %9810 = vmatpush2.bf16.msra.mxu0 0
  %9811 = vmatprep.subr.bf16.mxu0 0
  %9812 = vmatpush2.bf16.msra.mxu0 0
  %9813 = vmatprep.subr.bf16.mxu0 0
  %9814 = vmatpush2.bf16.msra.mxu0 0
  %9815 = vmatprep.subr.bf16.mxu0 0
  %9816 = vmatpush2.bf16.msra.mxu0 0
  %9817 = vmatprep.subr.bf16.mxu0 0
  %9818 = vmatpush2.bf16.msra.mxu0 0
  %9819 = vmatprep.subr.bf16.mxu0 0
  %9820 = vmatpush2.bf16.msra.mxu0 0
  %9821 = vmatprep.subr.bf16.mxu0 0
  %9822 = vmatpush2.bf16.msra.mxu0 0
  %9823 = vmatprep.subr.bf16.mxu0 0
  %9824 = vmatpush2.bf16.msra.mxu0 0
  %9825 = vmatprep.mubr.bf16.mxu0 0
  %9826 = vmatmul.mubr.bf16.gmra.mxu0 %v9788
  %v9827 = vpop.f32.mrf.mxu0
  %v9828 = vadd.f32 0.0, %v9827
  %v9829 = vpop.f32.mrf.mxu0
  %v9830 = vpop.f32.mrf.mxu0
  %v9831 = vadd.f32 0.0, %v9830
  %v9832 = vpop.f32.mrf.mxu0
  %9833 = vdwg.mxu0
  %v9834 = vadd.f32 %v9773, %v9828
  %v9835 = vadd.f32 %v9774, %v9831
  %v9839 = vunpack.c.l.b16 %v9079
  %v9840 = vunpack.c.l.b16 %v9080
  %v9841 = vunpack.c.l.b16 %v9081
  %v9842 = vpack.c.b16 %v9839, %v9780
  %v9843 = vpack.c.b16 %v9841, %v9840
  %v9845 = vshrl.u32 %v9842, 16
  %v9847 = vrot.slane %v9845, 1
  %v9848 = vshll.u32 %v9842, 16
  %v9850 = vrot.slane %v9848, 2
  %v9851 = vor.u32 %v9847, %v9850
  %v9853 = vshrl.u32 %v9843, 16
  %v9855 = vrot.slane %v9853, 1
  %v9856 = vshll.u32 %v9843, 16
  %v9858 = vrot.slane %v9856, 2
  %v9859 = vor.u32 %v9855, %v9858
  %v9860 = vsel %vm9298, %v9851, %v9859
  %v9863 = vsel %vm9121, %v9039, 0
  %v9866 = vand.u32 %v9859, %v9127
  %9868 = vmatprep.subr.bf16.mxu0 0
  %9869 = vmatpush1.bf16.msra.mxu0 0
  %9870 = vmatprep.subr.bf16.mxu0 0
  %9871 = vmatpush1.bf16.msra.mxu0 0
  %9872 = vmatprep.subr.bf16.mxu0 0
  %9873 = vmatpush1.bf16.msra.mxu0 0
  %9874 = vmatprep.subr.bf16.mxu0 0
  %9875 = vmatpush1.bf16.msra.mxu0 0
  %9876 = vmatprep.subr.bf16.mxu0 0
  %9877 = vmatpush1.bf16.msra.mxu0 0
  %9878 = vmatprep.subr.bf16.mxu0 0
  %9879 = vmatpush1.bf16.msra.mxu0 0
  %9880 = vmatprep.subr.bf16.mxu0 0
  %9881 = vmatpush1.bf16.msra.mxu0 %v9866
  %9882 = vmatprep.subr.bf16.mxu0 0
  %9883 = vmatpush1.bf16.msra.mxu0 %v9860
  %9884 = vmatprep.subr.bf16.mxu0 0
  %9885 = vmatpush2.bf16.msra.mxu0 0
  %9886 = vmatprep.subr.bf16.mxu0 0
  %9887 = vmatpush2.bf16.msra.mxu0 0
  %9888 = vmatprep.subr.bf16.mxu0 0
  %9889 = vmatpush2.bf16.msra.mxu0 0
  %9890 = vmatprep.subr.bf16.mxu0 0
  %9891 = vmatpush2.bf16.msra.mxu0 0
  %9892 = vmatprep.subr.bf16.mxu0 0
  %9893 = vmatpush2.bf16.msra.mxu0 0
  %9894 = vmatprep.subr.bf16.mxu0 0
  %9895 = vmatpush2.bf16.msra.mxu0 0
  %9896 = vmatprep.subr.bf16.mxu0 0
  %9897 = vmatpush2.bf16.msra.mxu0 0
  %9898 = vmatprep.subr.bf16.mxu0 0
  %9899 = vmatpush2.bf16.msra.mxu0 0
  %9900 = vmatprep.mubr.bf16.mxu0 0
  %9901 = vmatmul.mubr.bf16.gmra.mxu0 %v9863
  %v9902 = vpop.f32.mrf.mxu0
  %v9903 = vadd.f32 0.0, %v9902
  %v9904 = vpop.f32.mrf.mxu0
  %v9905 = vpop.f32.mrf.mxu0
  %v9906 = vadd.f32 0.0, %v9905
  %v9907 = vpop.f32.mrf.mxu0
  %9908 = vdwg.mxu0
  %v9909 = vadd.f32 %v9834, %v9903
  %v9910 = vadd.f32 %v9835, %v9906
  %v9914 = vunpack.c.l.b16 %v9082
  %v9915 = vunpack.c.l.b16 %v9083
  %v9916 = vunpack.c.l.b16 %v9084
  %v9917 = vpack.c.b16 %v9914, %v9841
  %v9918 = vpack.c.b16 %v9916, %v9915
  %v9919 = vrot.slane %v9917, 2
  %v9920 = vrot.slane %v9918, 2
  %v9921 = vsel %vm9374, %v9919, %v9920
  %v9924 = vsel %vm9121, %v9040, 0
  %v9927 = vand.u32 %v9920, %v9127
  %9929 = vmatprep.subr.bf16.mxu0 0
  %9930 = vmatpush1.bf16.msra.mxu0 0
  %9931 = vmatprep.subr.bf16.mxu0 0
  %9932 = vmatpush1.bf16.msra.mxu0 0
  %9933 = vmatprep.subr.bf16.mxu0 0
  %9934 = vmatpush1.bf16.msra.mxu0 0
  %9935 = vmatprep.subr.bf16.mxu0 0
  %9936 = vmatpush1.bf16.msra.mxu0 0
  %9937 = vmatprep.subr.bf16.mxu0 0
  %9938 = vmatpush1.bf16.msra.mxu0 0
  %9939 = vmatprep.subr.bf16.mxu0 0
  %9940 = vmatpush1.bf16.msra.mxu0 0
  %9941 = vmatprep.subr.bf16.mxu0 0
  %9942 = vmatpush1.bf16.msra.mxu0 %v9927
  %9943 = vmatprep.subr.bf16.mxu0 0
  %9944 = vmatpush1.bf16.msra.mxu0 %v9921
  %9945 = vmatprep.subr.bf16.mxu0 0
  %9946 = vmatpush2.bf16.msra.mxu0 0
  %9947 = vmatprep.subr.bf16.mxu0 0
  %9948 = vmatpush2.bf16.msra.mxu0 0
  %9949 = vmatprep.subr.bf16.mxu0 0
  %9950 = vmatpush2.bf16.msra.mxu0 0
  %9951 = vmatprep.subr.bf16.mxu0 0
  %9952 = vmatpush2.bf16.msra.mxu0 0
  %9953 = vmatprep.subr.bf16.mxu0 0
  %9954 = vmatpush2.bf16.msra.mxu0 0
  %9955 = vmatprep.subr.bf16.mxu0 0
  %9956 = vmatpush2.bf16.msra.mxu0 0
  %9957 = vmatprep.subr.bf16.mxu0 0
  %9958 = vmatpush2.bf16.msra.mxu0 0
  %9959 = vmatprep.subr.bf16.mxu0 0
  %9960 = vmatpush2.bf16.msra.mxu0 0
  %9961 = vmatprep.mubr.bf16.mxu0 0
  %9962 = vmatmul.mubr.bf16.gmra.mxu0 %v9924
  %v9963 = vpop.f32.mrf.mxu0
  %v9964 = vadd.f32 0.0, %v9963
  %v9965 = vpop.f32.mrf.mxu0
  %v9966 = vpop.f32.mrf.mxu0
  %v9967 = vadd.f32 0.0, %v9966
  %v9968 = vpop.f32.mrf.mxu0
  %9969 = vdwg.mxu0
  %v9970 = vadd.f32 %v9909, %v9964
  %v9971 = vadd.f32 %v9910, %v9967
  %v9975 = vunpack.c.l.b16 %v9085
  %v9976 = vunpack.c.l.b16 %v9086
  %v9977 = vunpack.c.l.b16 %v9087
  %v9978 = vpack.c.b16 %v9975, %v9916
  %v9979 = vpack.c.b16 %v9977, %v9976
  %v9981 = vshrl.u32 %v9978, 16
  %v9983 = vrot.slane %v9981, 2
  %v9984 = vshll.u32 %v9978, 16
  %v9986 = vrot.slane %v9984, 3
  %v9987 = vor.u32 %v9983, %v9986
  %v9989 = vshrl.u32 %v9979, 16
  %v9991 = vrot.slane %v9989, 2
  %v9992 = vshll.u32 %v9979, 16
  %v9994 = vrot.slane %v9992, 3
  %v9995 = vor.u32 %v9991, %v9994
  %v9996 = vsel %vm9436, %v9987, %v9995
  %v9999 = vsel %vm9121, %v9041, 0
  %v10002 = vand.u32 %v9995, %v9127
  %10004 = vmatprep.subr.bf16.mxu0 0
  %10005 = vmatpush1.bf16.msra.mxu0 0
  %10006 = vmatprep.subr.bf16.mxu0 0
  %10007 = vmatpush1.bf16.msra.mxu0 0
  %10008 = vmatprep.subr.bf16.mxu0 0
  %10009 = vmatpush1.bf16.msra.mxu0 0
  %10010 = vmatprep.subr.bf16.mxu0 0
  %10011 = vmatpush1.bf16.msra.mxu0 0
  %10012 = vmatprep.subr.bf16.mxu0 0
  %10013 = vmatpush1.bf16.msra.mxu0 0
  %10014 = vmatprep.subr.bf16.mxu0 0
  %10015 = vmatpush1.bf16.msra.mxu0 0
  %10016 = vmatprep.subr.bf16.mxu0 0
  %10017 = vmatpush1.bf16.msra.mxu0 %v10002
  %10018 = vmatprep.subr.bf16.mxu0 0
  %10019 = vmatpush1.bf16.msra.mxu0 %v9996
  %10020 = vmatprep.subr.bf16.mxu0 0
  %10021 = vmatpush2.bf16.msra.mxu0 0
  %10022 = vmatprep.subr.bf16.mxu0 0
  %10023 = vmatpush2.bf16.msra.mxu0 0
  %10024 = vmatprep.subr.bf16.mxu0 0
  %10025 = vmatpush2.bf16.msra.mxu0 0
  %10026 = vmatprep.subr.bf16.mxu0 0
  %10027 = vmatpush2.bf16.msra.mxu0 0
  %10028 = vmatprep.subr.bf16.mxu0 0
  %10029 = vmatpush2.bf16.msra.mxu0 0
  %10030 = vmatprep.subr.bf16.mxu0 0
  %10031 = vmatpush2.bf16.msra.mxu0 0
  %10032 = vmatprep.subr.bf16.mxu0 0
  %10033 = vmatpush2.bf16.msra.mxu0 0
  %10034 = vmatprep.subr.bf16.mxu0 0
  %10035 = vmatpush2.bf16.msra.mxu0 0
  %10036 = vmatprep.mubr.bf16.mxu0 0
  %10037 = vmatmul.mubr.bf16.gmra.mxu0 %v9999
  %v10038 = vpop.f32.mrf.mxu0
  %v10039 = vadd.f32 0.0, %v10038
  %v10040 = vpop.f32.mrf.mxu0
  %v10041 = vpop.f32.mrf.mxu0
  %v10042 = vadd.f32 0.0, %v10041
  %v10043 = vpop.f32.mrf.mxu0
  %10044 = vdwg.mxu0
  %v10045 = vadd.f32 %v9970, %v10039
  %v10046 = vadd.f32 %v9971, %v10042
  %v10050 = vunpack.c.l.b16 %v9088
  %v10051 = vunpack.c.l.b16 %v9089
  %v10052 = vunpack.c.l.b16 %v9090
  %v10053 = vpack.c.b16 %v10050, %v9977
  %v10054 = vpack.c.b16 %v10052, %v10051
  %v10055 = vrot.slane %v10053, 3
  %v10056 = vrot.slane %v10054, 3
  %v10057 = vsel %vm9512, %v10055, %v10056
  %v10060 = vsel %vm9121, %v9042, 0
  %v10063 = vand.u32 %v10056, %v9127
  %10065 = vmatprep.subr.bf16.mxu0 0
  %10066 = vmatpush1.bf16.msra.mxu0 0
  %10067 = vmatprep.subr.bf16.mxu0 0
  %10068 = vmatpush1.bf16.msra.mxu0 0
  %10069 = vmatprep.subr.bf16.mxu0 0
  %10070 = vmatpush1.bf16.msra.mxu0 0
  %10071 = vmatprep.subr.bf16.mxu0 0
  %10072 = vmatpush1.bf16.msra.mxu0 0
  %10073 = vmatprep.subr.bf16.mxu0 0
  %10074 = vmatpush1.bf16.msra.mxu0 0
  %10075 = vmatprep.subr.bf16.mxu0 0
  %10076 = vmatpush1.bf16.msra.mxu0 0
  %10077 = vmatprep.subr.bf16.mxu0 0
  %10078 = vmatpush1.bf16.msra.mxu0 %v10063
  %10079 = vmatprep.subr.bf16.mxu0 0
  %10080 = vmatpush1.bf16.msra.mxu0 %v10057
  %10081 = vmatprep.subr.bf16.mxu0 0
  %10082 = vmatpush2.bf16.msra.mxu0 0
  %10083 = vmatprep.subr.bf16.mxu0 0
  %10084 = vmatpush2.bf16.msra.mxu0 0
  %10085 = vmatprep.subr.bf16.mxu0 0
  %10086 = vmatpush2.bf16.msra.mxu0 0
  %10087 = vmatprep.subr.bf16.mxu0 0
  %10088 = vmatpush2.bf16.msra.mxu0 0
  %10089 = vmatprep.subr.bf16.mxu0 0
  %10090 = vmatpush2.bf16.msra.mxu0 0
  %10091 = vmatprep.subr.bf16.mxu0 0
  %10092 = vmatpush2.bf16.msra.mxu0 0
  %10093 = vmatprep.subr.bf16.mxu0 0
  %10094 = vmatpush2.bf16.msra.mxu0 0
  %10095 = vmatprep.subr.bf16.mxu0 0
  %10096 = vmatpush2.bf16.msra.mxu0 0
  %10097 = vmatprep.mubr.bf16.mxu0 0
  %10098 = vmatmul.mubr.bf16.gmra.mxu0 %v10060
  %v10099 = vpop.f32.mrf.mxu0
  %v10100 = vadd.f32 0.0, %v10099
  %v10101 = vpop.f32.mrf.mxu0
  %v10102 = vpop.f32.mrf.mxu0
  %v10103 = vadd.f32 0.0, %v10102
  %v10104 = vpop.f32.mrf.mxu0
  %10105 = vdwg.mxu0
  %v10106 = vadd.f32 %v10045, %v10100
  %v10107 = vadd.f32 %v10046, %v10103
  %v10111 = vunpack.c.l.b16 %v9091
  %v10112 = vunpack.c.l.b16 %v9092
  %v10113 = vunpack.c.l.b16 %v9093
  %v10114 = vpack.c.b16 %v10111, %v10052
  %v10115 = vpack.c.b16 %v10113, %v10112
  %v10117 = vshrl.u32 %v10114, 16
  %v10119 = vrot.slane %v10117, 3
  %v10120 = vshll.u32 %v10114, 16
  %v10122 = vrot.slane %v10120, 4
  %v10123 = vor.u32 %v10119, %v10122
  %v10125 = vshrl.u32 %v10115, 16
  %v10127 = vrot.slane %v10125, 3
  %v10128 = vshll.u32 %v10115, 16
  %v10130 = vrot.slane %v10128, 4
  %v10131 = vor.u32 %v10127, %v10130
  %v10132 = vsel %vm9574, %v10123, %v10131
  %v10135 = vsel %vm9121, %v9043, 0
  %v10138 = vand.u32 %v10131, %v9127
  %10140 = vmatprep.subr.bf16.mxu0 0
  %10141 = vmatpush1.bf16.msra.mxu0 0
  %10142 = vmatprep.subr.bf16.mxu0 0
  %10143 = vmatpush1.bf16.msra.mxu0 0
  %10144 = vmatprep.subr.bf16.mxu0 0
  %10145 = vmatpush1.bf16.msra.mxu0 0
  %10146 = vmatprep.subr.bf16.mxu0 0
  %10147 = vmatpush1.bf16.msra.mxu0 0
  %10148 = vmatprep.subr.bf16.mxu0 0
  %10149 = vmatpush1.bf16.msra.mxu0 0
  %10150 = vmatprep.subr.bf16.mxu0 0
  %10151 = vmatpush1.bf16.msra.mxu0 0
  %10152 = vmatprep.subr.bf16.mxu0 0
  %10153 = vmatpush1.bf16.msra.mxu0 %v10138
  %10154 = vmatprep.subr.bf16.mxu0 0
  %10155 = vmatpush1.bf16.msra.mxu0 %v10132
  %10156 = vmatprep.subr.bf16.mxu0 0
  %10157 = vmatpush2.bf16.msra.mxu0 0
  %10158 = vmatprep.subr.bf16.mxu0 0
  %10159 = vmatpush2.bf16.msra.mxu0 0
  %10160 = vmatprep.subr.bf16.mxu0 0
  %10161 = vmatpush2.bf16.msra.mxu0 0
  %10162 = vmatprep.subr.bf16.mxu0 0
  %10163 = vmatpush2.bf16.msra.mxu0 0
  %10164 = vmatprep.subr.bf16.mxu0 0
  %10165 = vmatpush2.bf16.msra.mxu0 0
  %10166 = vmatprep.subr.bf16.mxu0 0
  %10167 = vmatpush2.bf16.msra.mxu0 0
  %10168 = vmatprep.subr.bf16.mxu0 0
  %10169 = vmatpush2.bf16.msra.mxu0 0
  %10170 = vmatprep.subr.bf16.mxu0 0
  %10171 = vmatpush2.bf16.msra.mxu0 0
  %10172 = vmatprep.mubr.bf16.mxu0 0
  %10173 = vmatmul.mubr.bf16.gmra.mxu0 %v10135
  %v10174 = vpop.f32.mrf.mxu0
  %v10175 = vadd.f32 0.0, %v10174
  %v10176 = vpop.f32.mrf.mxu0
  %v10177 = vpop.f32.mrf.mxu0
  %v10178 = vadd.f32 0.0, %v10177
  %v10179 = vpop.f32.mrf.mxu0
  %10180 = vdwg.mxu0
  %v10181 = vadd.f32 %v10106, %v10175
  %v10182 = vadd.f32 %v10107, %v10178
  %v10183 = vld [vmem:[%s8] sm:$0x1]
  %v10185 = vlaneseq
  %v10186 = vshrl.u32 %v10185, 7
  %v10187 = vsub.s32 0, %v10186
  %v10188 = vrot.slane %v10183, %v10187
  %v10190 = vadd.f32 %v10181, %v10188
  %v10191 = vadd.f32 %v10182, %v10188
  %v10192 = vsub.f32 0.0, %v10190
  %v10193 = vsub.f32 0.0, %v10191
  %v10194 = vmul.f32 %v10192, 1.442695
  %v10195 = vpow.pop %v10194
  %v10196 = vmul.f32 %v10193, 1.442695
  %v10197 = vpow.pop %v10196
  %v10198 = vadd.f32 %v10195, 1.0
  %v10199 = vadd.f32 %v10197, 1.0
  %v10200 = vrcp.pop %v10198
  %v10201 = vrcp.pop %v10199
  %v10202 = vpack.c.bf16 %v10201, %v10200
  %v10203 = vld [vmem:[%s9] sm:$0xf]
  %v10204 = vld [vmem:[%s9 + $0x4] sm:$0xf]
  %v10205 = vld [vmem:[%s9 + $0x8] sm:$0xf]
  %v10206 = vld [vmem:[%s9 + $0xc] sm:$0xf]
  %v10207 = vld [vmem:[%s9 + $0x10] sm:$0xf]
  %v10208 = vld [vmem:[%s9 + $0x14] sm:$0xf]
  %v10209 = vld [vmem:[%s9 + $0x18] sm:$0xf]
  %v10210 = vld [vmem:[%s9 + $0x1c] sm:$0xf]
  %v10211 = vld [vmem:[%s9 + $0x20] sm:$0xf]
  %v10212 = vld [vmem:[%s9 + $0x24] sm:$0xf]
  %v10213 = vld [vmem:[%s9 + $0x28] sm:$0xf]
  %v10214 = vld [vmem:[%s9 + $0x2c] sm:$0xf]
  %v10215 = vld [vmem:[%s9 + $0x30] sm:$0xf]
  %v10216 = vld [vmem:[%s9 + $0x34] sm:$0xf]
  %v10217 = vld [vmem:[%s9 + $0x38] sm:$0xf]
  %v10218 = vld [vmem:[%s10] sm:$0x1]
  %v10220 = vlaneseq
  %v10221 = vshrl.u32 %v10220, 7
  %v10222 = vsub.s32 0, %v10221
  %v10223 = vrot.slane %v10218, %v10222
  %v10240 = vunpack.c.l.b16 %v10203
  %v10241 = vunpack.c.l.b16 %v10204
  %v10242 = vunpack.c.l.b16 %v10205
  %v10243 = vunpack.c.l.b16 %v10206
  %v10244 = vunpack.c.l.b16 %v10207
  %v10245 = vunpack.c.l.b16 %v10208
  %v10246 = vunpack.c.l.b16 %v10209
  %v10247 = vunpack.c.l.b16 %v10210
  %v10248 = vunpack.c.l.b16 %v10211
  %v10249 = vunpack.c.l.b16 %v10212
  %v10250 = vunpack.c.l.b16 %v10213
  %v10251 = vunpack.c.l.b16 %v10214
  %v10252 = vunpack.c.l.b16 %v10215
  %v10253 = vunpack.c.l.b16 %v10216
  %v10254 = vunpack.c.l.b16 %v10217
  %v10255 = vpack.c.b16 %v10241, %v10240
  %v10256 = vpack.c.b16 %v10243, %v10242
  %v10257 = vpack.c.b16 %v10245, %v10244
  %v10258 = vpack.c.b16 %v10247, %v10246
  %v10259 = vpack.c.b16 %v10249, %v10248
  %v10260 = vpack.c.b16 %v10251, %v10250
  %v10261 = vpack.c.b16 %v10253, %v10252
  %v10262 = vpack.c.b16 %v10254, %v10254
  %vm10270 = vcmask 982016
  %v10272 = vsel %vm10270, %v10202, 0
  %v10275 = vsel %vm8863, %v10262, 0
  %10277 = vmatprep.subr.bf16.mxu0 0
  %10278 = vmatpush1.bf16.msra.mxu0 %v10275
  %10279 = vmatprep.subr.bf16.mxu0 0
  %10280 = vmatpush1.bf16.msra.mxu0 %v10261
  %10281 = vmatprep.subr.bf16.mxu0 0
  %10282 = vmatpush1.bf16.msra.mxu0 %v10260
  %10283 = vmatprep.subr.bf16.mxu0 0
  %10284 = vmatpush1.bf16.msra.mxu0 %v10259
  %10285 = vmatprep.subr.bf16.mxu0 0
  %10286 = vmatpush1.bf16.msra.mxu0 %v10258
  %10287 = vmatprep.subr.bf16.mxu0 0
  %10288 = vmatpush1.bf16.msra.mxu0 %v10257
  %10289 = vmatprep.subr.bf16.mxu0 0
  %10290 = vmatpush1.bf16.msra.mxu0 %v10256
  %10291 = vmatprep.subr.bf16.mxu0 0
  %10292 = vmatpush1.bf16.msra.mxu0 %v10255
  %10293 = vmatprep.subr.bf16.mxu0 0
  %10294 = vmatpush2.bf16.msra.mxu0 0
  %10295 = vmatprep.subr.bf16.mxu0 0
  %10296 = vmatpush2.bf16.msra.mxu0 0
  %10297 = vmatprep.subr.bf16.mxu0 0
  %10298 = vmatpush2.bf16.msra.mxu0 0
  %10299 = vmatprep.subr.bf16.mxu0 0
  %10300 = vmatpush2.bf16.msra.mxu0 0
  %10301 = vmatprep.subr.bf16.mxu0 0
  %10302 = vmatpush2.bf16.msra.mxu0 0
  %10303 = vmatprep.subr.bf16.mxu0 0
  %10304 = vmatpush2.bf16.msra.mxu0 0
  %10305 = vmatprep.subr.bf16.mxu0 0
  %10306 = vmatpush2.bf16.msra.mxu0 0
  %10307 = vmatprep.subr.bf16.mxu0 0
  %10308 = vmatpush2.bf16.msra.mxu0 0
  %10309 = vmatprep.mubr.bf16.mxu0 0
  %10310 = vmatmul.mubr.bf16.gmra.mxu0 %v10272
  %v10311 = vpop.f32.mrf.mxu0
  %v10312 = vadd.f32 %v10223, %v10311
  %v10313 = vpop.f32.mrf.mxu0
  %v10314 = vpop.f32.mrf.mxu0
  %v10315 = vadd.f32 %v10223, %v10314
  %v10316 = vpop.f32.mrf.mxu0
  %10317 = vdwg.mxu0
  %v10318 = vsub.f32 0.0, %v10312
  %v10319 = vsub.f32 0.0, %v10315
  %v10320 = vmul.f32 %v10318, 1.442695
  %v10321 = vpow.pop %v10320
  %v10322 = vmul.f32 %v10319, 1.442695
  %v10323 = vpow.pop %v10322
  %v10324 = vadd.f32 %v10321, 1.0
  %v10325 = vadd.f32 %v10323, 1.0
  %v10326 = vrcp.pop %v10324
  %v10327 = vrcp.pop %v10325
  %v10328 = vpack.c.bf16 %v10327, %v10326
  %v10329 = vld [vmem:[%s11] sm:$0xf]
  %v10330 = vld [vmem:[%s11 + $0x4] sm:$0xf]
  %v10331 = vld [vmem:[%s11 + $0x8] sm:$0xf]
  %v10332 = vld [vmem:[%s11 + $0xc] sm:$0xf]
  %v10333 = vld [vmem:[%s11 + $0x10] sm:$0xf]
  %v10334 = vld [vmem:[%s11 + $0x14] sm:$0xf]
  %v10335 = vld [vmem:[%s11 + $0x18] sm:$0xf]
  %v10336 = vld [vmem:[%s11 + $0x1c] sm:$0xf]
  %v10337 = vld [vmem:[%s11 + $0x20] sm:$0xf]
  %v10338 = vld [vmem:[%s11 + $0x24] sm:$0xf]
  %v10339 = vld [vmem:[%s11 + $0x28] sm:$0x3]
  %v10340 = vld [vmem:[%s12] sm:$0x1]
  %v10342 = vlaneseq
  %v10343 = vshrl.u32 %v10342, 7
  %v10344 = vsub.s32 0, %v10343
  %v10345 = vrot.slane %v10340, %v10344
  %v10358 = vunpack.c.l.b16 %v10329
  %v10359 = vunpack.c.l.b16 %v10330
  %v10360 = vunpack.c.l.b16 %v10331
  %v10361 = vunpack.c.l.b16 %v10332
  %v10362 = vunpack.c.l.b16 %v10333
  %v10363 = vunpack.c.l.b16 %v10334
  %v10364 = vunpack.c.l.b16 %v10335
  %v10365 = vunpack.c.l.b16 %v10336
  %v10366 = vunpack.c.l.b16 %v10337
  %v10367 = vunpack.c.l.b16 %v10338
  %v10368 = vunpack.c.l.b16 %v10339
  %v10369 = vpack.c.b16 %v10359, %v10358
  %v10370 = vpack.c.b16 %v10361, %v10360
  %v10371 = vpack.c.b16 %v10363, %v10362
  %v10372 = vpack.c.b16 %v10365, %v10364
  %v10373 = vpack.c.b16 %v10367, %v10366
  %v10374 = vpack.c.b16 %v10368, %v10368
  %vm10380 = vcmask 687104
  %v10382 = vsel %vm10380, %v10328, 0
  %vm10384 = vcmask 1041408
  %v10386 = vsel %vm10384, %v10374, 0
  %10388 = vmatprep.subr.bf16.mxu0 0
  %10389 = vmatpush1.bf16.msra.mxu0 0
  %10390 = vmatprep.subr.bf16.mxu0 0
  %10391 = vmatpush1.bf16.msra.mxu0 0
  %10392 = vmatprep.subr.bf16.mxu0 0
  %10393 = vmatpush1.bf16.msra.mxu0 %v10386
  %10394 = vmatprep.subr.bf16.mxu0 0
  %10395 = vmatpush1.bf16.msra.mxu0 %v10373
  %10396 = vmatprep.subr.bf16.mxu0 0
  %10397 = vmatpush1.bf16.msra.mxu0 %v10372
  %10398 = vmatprep.subr.bf16.mxu0 0
  %10399 = vmatpush1.bf16.msra.mxu0 %v10371
  %10400 = vmatprep.subr.bf16.mxu0 0
  %10401 = vmatpush1.bf16.msra.mxu0 %v10370
  %10402 = vmatprep.subr.bf16.mxu0 0
  %10403 = vmatpush1.bf16.msra.mxu0 %v10369
  %10404 = vmatprep.subr.bf16.mxu0 0
  %10405 = vmatpush2.bf16.msra.mxu0 0
  %10406 = vmatprep.subr.bf16.mxu0 0
  %10407 = vmatpush2.bf16.msra.mxu0 0
  %10408 = vmatprep.subr.bf16.mxu0 0
  %10409 = vmatpush2.bf16.msra.mxu0 0
  %10410 = vmatprep.subr.bf16.mxu0 0
  %10411 = vmatpush2.bf16.msra.mxu0 0
  %10412 = vmatprep.subr.bf16.mxu0 0
  %10413 = vmatpush2.bf16.msra.mxu0 0
  %10414 = vmatprep.subr.bf16.mxu0 0
  %10415 = vmatpush2.bf16.msra.mxu0 0
  %10416 = vmatprep.subr.bf16.mxu0 0
  %10417 = vmatpush2.bf16.msra.mxu0 0
  %10418 = vmatprep.subr.bf16.mxu0 0
  %10419 = vmatpush2.bf16.msra.mxu0 0
  %10420 = vmatprep.mubr.bf16.mxu0 0
  %10421 = vmatmul.mubr.bf16.gmra.mxu0 %v10382
  %v10422 = vpop.f32.mrf.mxu0
  %v10423 = vadd.f32 %v10345, %v10422
  %v10424 = vpop.f32.mrf.mxu0
  %v10425 = vpop.f32.mrf.mxu0
  %v10426 = vadd.f32 %v10345, %v10425
  %v10427 = vpop.f32.mrf.mxu0
  %10428 = vdwg.mxu0
  %vm10429 = vcmask 80896
  %v10430 = vsel %vm10429, %v10423, -inf
  %10431 = vmax.xlane.f32.xlu0 %v10430
  %v10432 = vpop.xlane.xlu0 %10431
  %v10433 = vsel %vm10429, %v10426, -inf
  %10434 = vmax.xlane.f32.xlu0 %v10433
  %v10435 = vpop.xlane.xlu0 %10434
  %v10436 = vsub.f32 %v10423, %v10432
  %v10437 = vsub.f32 %v10426, %v10435
  %v10438 = vmul.f32 %v10436, 1.442695
  %v10439 = vpow.pop %v10438
  %v10440 = vmul.f32 %v10437, 1.442695
  %v10441 = vpow.pop %v10440
  %v10442 = vsel %vm10429, %v10439, 0.0
  %10443 = vadd.xlane.f32.xlu0 %v10442
  %v10444 = vpop.xlane.xlu0 %10443
  %v10445 = vsel %vm10429, %v10441, 0.0
  %10446 = vadd.xlane.f32.xlu0 %v10445
  %v10447 = vpop.xlane.xlu0 %10446
  %v10448 = vlog2.pop %v10444
  %v10449 = vmul.f32 %v10448, 0.6931472
  %v10450 = vlog2.pop %v10447
  %v10451 = vmul.f32 %v10450, 0.6931472
  %v10452 = vsub.f32 %v10436, %v10449
  %v10453 = vsub.f32 %v10437, %v10451
  %10454 = vst.msk [vmem:[%s13] sm:$0xff] %vm10429, %v10452
  %10455 = vst.msk [vmem:[%s13 + $0x8] sm:$0xff] %vm10429, %v10453
  // Predicated region
  $region54: #{lenet_forward.1} parent=0 // pred_check
    _
  $region55: #{lenet_forward.1} parent=0 // pred_check_branch
    %10457 = sbr.rel (0) target = $region57
  $region56: #{lenet_forward.1} parent=0 // pred_region
    _
  $region57: #{lenet_forward.1} parent=0 // pred_fallthru
    _
  // Predicated region
  $region58: #{lenet_forward.1} parent=0 // pred_check
    _
  $region59: #{lenet_forward.1} parent=0 // pred_check_branch
    %10459 = sbr.rel (0) target = $region61
  $region60: #{lenet_forward.1} parent=0 // pred_region
    _
  $region61: #{lenet_forward.1} parent=0 // pred_fallthru
    _

</llo_original>
